<compile_context>
chip_gen: v6e
topology: v6e:2x2x1
jax: 0.10.0
libtpu: 0.0.40
codegen_flags: <defaults>
</compile_context>

<pallas_src>
import jax
import jax.numpy as jnp
from jax.experimental import pallas as pl
from jax.experimental.pallas import tpu as pltpu

N_ENC = 5            # encoder0 .. encoder4
N_SEG = 13           # x.reshape(B, 13, -1)
SEG = 16             # per-segment length (even: interleaved real/imag pairs)
D_IN = N_SEG * SEG   # 208  input feature length per sample
D_ENC = 128          # latent width of each sub-encoder (lane-dense output)


def encoder_kernel(x_ref, we_ref, be_ref, wd_ref, bd_ref, ps_ref, gseg_ref, o_ref):
    """One grid step == one batch tile of TM rows; all 5 heads are VMEM-resident."""
    x = x_ref[...]                                   # (TM, D_IN)   == y_ (flattened)
    gseg = gseg_ref[...]                             # (D_IN, N_SEG) segment one-hots
    # Pair-swapped / signed copy of y_:  xs[2m] = x[2m+1], xs[2m+1] = -x[2m].
    # Built with an MXU matmul against a constant (D_IN, D_IN) matrix instead of a
    # lane-strided gather.
    xs = jnp.dot(x, ps_ref[...], preferred_element_type=jnp.float32)   # (TM, D_IN)

    best_out = None
    best_score = None
    for h in range(N_ENC):                           # static unroll over the 5 heads
        out_h = jnp.dot(x, we_ref[h], preferred_element_type=jnp.float32) + be_ref[h]
        y_h = jnp.dot(out_h, wd_ref[h], preferred_element_type=jnp.float32) + bd_ref[h]

        # complex_corr(y_h, y_): per 13-segment  i = sum(re*re + im*im),
        #                                        j = sum(re*im - im*re),  c = i^2 + j^2
        i_seg = jnp.dot(y_h * x, gseg, preferred_element_type=jnp.float32)   # (TM, 13)
        j_seg = jnp.dot(y_h * xs, gseg, preferred_element_type=jnp.float32)  # (TM, 13)
        c = i_seg * i_seg + j_seg * j_seg
        score_h = jnp.sum(c, axis=-1, keepdims=True) * (1.0 / N_SEG)         # (TM, 1)

        if h == 0:
            best_out, best_score = out_h, score_h
        else:
            take = score_h > best_score    # strict '>' keeps first max (torch.argmax)
            best_out = jnp.where(take, out_h, best_out)
            best_score = jnp.where(take, score_h, best_score)

    o_ref[...] = best_out


def encoder_forward(x, We_all, be_all, Wd_all, bd_all, *, tm=256):
    """x: (B, D_IN) f32; We_all: (5, D_IN, D_ENC); be_all: (5, D_ENC);
       Wd_all: (5, D_ENC, D_IN); bd_all: (5, D_IN)."""
    B = x.shape[0]
    grid_b = pl.cdiv(B, tm)
    Bp = grid_b * tm
    if Bp != B:
        x = jnp.pad(x, ((0, Bp - B), (0, 0)))

    # Constant helper matrices (VMEM-resident, constant index_map).
    p = jnp.arange(D_IN)[:, None]
    q = jnp.arange(D_IN)[None, :]
    PS = jnp.where((q % 2 == 0) & (p == q + 1), 1.0,
                   jnp.where((q % 2 == 1) & (p == q - 1), -1.0, 0.0)).astype(jnp.float32)
    Gseg = (jnp.arange(D_IN)[:, None] // SEG ==
            jnp.arange(N_SEG)[None, :]).astype(jnp.float32)                 # (D_IN, 13)

    be3 = be_all.reshape(N_ENC, 1, D_ENC)
    bd3 = bd_all.reshape(N_ENC, 1, D_IN)

    out = pl.pallas_call(
        encoder_kernel,
        out_shape=jax.ShapeDtypeStruct((Bp, D_ENC), jnp.float32),
        grid_spec=pltpu.PrefetchScalarGridSpec(
            num_scalar_prefetch=0,
            grid=(grid_b,),
            in_specs=[
                pl.BlockSpec((tm, D_IN), lambda i: (i, 0)),                   # x tile
                pl.BlockSpec((N_ENC, D_IN, D_ENC), lambda i: (0, 0, 0)),      # all enc W
                pl.BlockSpec((N_ENC, 1, D_ENC), lambda i: (0, 0, 0)),         # all enc b
                pl.BlockSpec((N_ENC, D_ENC, D_IN), lambda i: (0, 0, 0)),      # all dec W
                pl.BlockSpec((N_ENC, 1, D_IN), lambda i: (0, 0, 0)),          # all dec b
                pl.BlockSpec((D_IN, D_IN), lambda i: (0, 0)),                 # PS
                pl.BlockSpec((D_IN, N_SEG), lambda i: (0, 0)),                # Gseg
            ],
            out_specs=pl.BlockSpec((tm, D_ENC), lambda i: (i, 0)),
        ),
        compiler_params=pltpu.CompilerParams(
            dimension_semantics=("parallel",)),
    )(x, We_all, be3, Wd_all, bd3, PS, Gseg)

    return out[:B]


def reference_heads(x, We_all, be_all, Wd_all, bd_all):
    """Pure-JAX mirror of the PyTorch forward (per-head outputs and scores)."""
    B = x.shape[0]
    hp = jax.lax.Precision.HIGHEST
    y_ = x.reshape(B, N_SEG, SEG)
    br, bi_ = y_[..., 0::2], y_[..., 1::2]
    outs, scores = [], []
    for h in range(N_ENC):
        out_h = jnp.dot(x, We_all[h], precision=hp) + be_all[h]
        y_h = (jnp.dot(out_h, Wd_all[h], precision=hp) + bd_all[h]).reshape(B, N_SEG, SEG)
        ar, ai_ = y_h[..., 0::2], y_h[..., 1::2]
        i = (ar * br + ai_ * bi_).sum(-1)
        j = (ar * bi_ - ai_ * br).sum(-1)
        c = i * i + j * j                      # (B, 13)
        scores.append(c.mean(-1))              # (B,)
        outs.append(out_h)
    return jnp.stack(outs, 1), jnp.stack(scores, 1)   # (B,5,D_ENC), (B,5)


if __name__ == "__main__":
    key = jax.random.PRNGKey(0)
    kx, kwe, kbe, kwd, kbd = jax.random.split(key, 5)
    B = 512
    x = jax.random.normal(kx, (B, D_IN), dtype=jnp.float32)
    # Deterministic synthetic parameters for the 5 encoder/decoder heads.
    We_all = 0.1 * jax.random.normal(kwe, (N_ENC, D_IN, D_ENC), dtype=jnp.float32)
    be_all = 0.1 * jax.random.normal(kbe, (N_ENC, D_ENC), dtype=jnp.float32)
    Wd_all = 0.1 * jax.random.normal(kwd, (N_ENC, D_ENC, D_IN), dtype=jnp.float32)
    bd_all = 0.1 * jax.random.normal(kbd, (N_ENC, D_IN), dtype=jnp.float32)

    out = encoder_forward(x, We_all, be_all, Wd_all, bd_all, tm=256)
    out = jax.block_until_ready(out)
    assert out.shape == (B, D_ENC)

    # Check: every row must equal the reference output of a head whose reference score
    # is (numerically) at the max — tolerant to matmul-precision-induced near-ties.
    outs_all, scores_all = reference_heads(x, We_all, be_all, Wd_all, bd_all)
    best = scores_all.max(-1, keepdims=True)
    near = scores_all >= best - 2e-2 * jnp.abs(best)                    # (B, 5)
    err = jnp.max(jnp.abs(out[:, None, :] - outs_all), axis=-1)         # (B, 5)
    row_ok = jnp.any(near & (err < 5e-2), axis=-1)
    if not bool(jnp.all(row_ok)):
        raise AssertionError("Pallas Encoder output mismatch vs reference")
    print("KERNEL_OK")
</pallas_src>

<mosaic_0001>
module attributes {stable_mosaic.version = 11 : i64} {
  func.func @encoder_kernel(%arg0: i32, %arg1: memref<256x208xf32, #tpu.memory_space<vmem>>, %arg2: memref<5x208x128xf32, #tpu.memory_space<vmem>>, %arg3: memref<5x1x128xf32, #tpu.memory_space<vmem>>, %arg4: memref<5x128x208xf32, #tpu.memory_space<vmem>>, %arg5: memref<5x1x208xf32, #tpu.memory_space<vmem>>, %arg6: memref<208x208xf32, #tpu.memory_space<vmem>>, %arg7: memref<208x13xf32, #tpu.memory_space<vmem>>, %arg8: memref<256x128xf32, #tpu.memory_space<vmem>>) attributes {dimension_semantics = [#tpu.dimension_semantics<parallel>], iteration_bounds = array<i64: 2>, scalar_prefetch = 0 : i64, scratch_operands = 0 : i64, tpu.core_type = #tpu.core_type<tc>, window_params = [{transform_indices = @transform_0, window_bounds = array<i64: 256, 208>}, {pipeline_mode = #tpu.pipeline_mode<synchronous>, transform_indices = @transform_1, window_bounds = array<i64: 5, 208, 128>}, {pipeline_mode = #tpu.pipeline_mode<synchronous>, transform_indices = @transform_2, window_bounds = array<i64: 5, 1, 128>}, {pipeline_mode = #tpu.pipeline_mode<synchronous>, transform_indices = @transform_3, window_bounds = array<i64: 5, 128, 208>}, {pipeline_mode = #tpu.pipeline_mode<synchronous>, transform_indices = @transform_4, window_bounds = array<i64: 5, 1, 208>}, {pipeline_mode = #tpu.pipeline_mode<synchronous>, transform_indices = @transform_5, window_bounds = array<i64: 208, 208>}, {pipeline_mode = #tpu.pipeline_mode<synchronous>, transform_indices = @transform_6, window_bounds = array<i64: 208, 13>}, {transform_indices = @transform_7, window_bounds = array<i64: 256, 128>}]} {
    %c0 = arith.constant 0 : index
    %c0_0 = arith.constant 0 : index
    %0 = vector.load %arg1[%c0, %c0_0] : memref<256x208xf32, #tpu.memory_space<vmem>>, vector<256x208xf32>
    %c0_1 = arith.constant 0 : index
    %c0_2 = arith.constant 0 : index
    %1 = vector.load %arg7[%c0_1, %c0_2] : memref<208x13xf32, #tpu.memory_space<vmem>>, vector<208x13xf32>
    %c0_3 = arith.constant 0 : index
    %c0_4 = arith.constant 0 : index
    %2 = vector.load %arg6[%c0_3, %c0_4] : memref<208x208xf32, #tpu.memory_space<vmem>>, vector<208x208xf32>
    %cst = arith.constant dense<0.000000e+00> : vector<256x208xf32>
    %3 = tpu.matmul %0, %2, %cst {dimension_numbers = #tpu.dot_dimension_numbers<[1], [0], [0], [1], [0, 0, 1, 1], [], []>} : vector<256x208xf32>, vector<208x208xf32>, vector<256x208xf32> -> vector<256x208xf32>
    %c0_5 = arith.constant 0 : index
    %c0_6 = arith.constant 0 : index
    %c0_7 = arith.constant 0 : index
    %4 = vector.load %arg2[%c0_5, %c0_6, %c0_7] : memref<5x208x128xf32, #tpu.memory_space<vmem>>, vector<1x208x128xf32>
    %5 = vector.shape_cast %4 : vector<1x208x128xf32> to vector<208x128xf32>
    %cst_8 = arith.constant dense<0.000000e+00> : vector<256x128xf32>
    %6 = tpu.matmul %0, %5, %cst_8 {dimension_numbers = #tpu.dot_dimension_numbers<[1], [0], [0], [1], [0, 0, 1, 1], [], []>} : vector<256x208xf32>, vector<208x128xf32>, vector<256x128xf32> -> vector<256x128xf32>
    %c0_9 = arith.constant 0 : index
    %c0_10 = arith.constant 0 : index
    %c0_11 = arith.constant 0 : index
    %7 = vector.load %arg3[%c0_9, %c0_10, %c0_11] : memref<5x1x128xf32, #tpu.memory_space<vmem>>, vector<1x1x128xf32>
    %8 = vector.shape_cast %7 : vector<1x1x128xf32> to vector<1x128xf32>
    %9 = vector.broadcast %8 : vector<1x128xf32> to vector<256x128xf32>
    %10 = arith.addf %6, %9 : vector<256x128xf32>
    %c0_12 = arith.constant 0 : index
    %c0_13 = arith.constant 0 : index
    %c0_14 = arith.constant 0 : index
    %11 = vector.load %arg4[%c0_12, %c0_13, %c0_14] : memref<5x128x208xf32, #tpu.memory_space<vmem>>, vector<1x128x208xf32>
    %12 = vector.shape_cast %11 : vector<1x128x208xf32> to vector<128x208xf32>
    %cst_15 = arith.constant dense<0.000000e+00> : vector<256x208xf32>
    %13 = tpu.matmul %10, %12, %cst_15 {dimension_numbers = #tpu.dot_dimension_numbers<[1], [0], [0], [1], [0, 0, 1, 1], [], []>} : vector<256x128xf32>, vector<128x208xf32>, vector<256x208xf32> -> vector<256x208xf32>
    %c0_16 = arith.constant 0 : index
    %c0_17 = arith.constant 0 : index
    %c0_18 = arith.constant 0 : index
    %14 = vector.load %arg5[%c0_16, %c0_17, %c0_18] : memref<5x1x208xf32, #tpu.memory_space<vmem>>, vector<1x1x208xf32>
    %15 = vector.shape_cast %14 : vector<1x1x208xf32> to vector<1x208xf32>
    %16 = vector.broadcast %15 : vector<1x208xf32> to vector<256x208xf32>
    %17 = arith.addf %13, %16 : vector<256x208xf32>
    %18 = arith.mulf %17, %0 : vector<256x208xf32>
    %cst_19 = arith.constant dense<0.000000e+00> : vector<256x13xf32>
    %19 = tpu.matmul %18, %1, %cst_19 {dimension_numbers = #tpu.dot_dimension_numbers<[1], [0], [0], [1], [0, 0, 1, 1], [], []>} : vector<256x208xf32>, vector<208x13xf32>, vector<256x13xf32> -> vector<256x13xf32>
    %20 = arith.mulf %17, %3 : vector<256x208xf32>
    %cst_20 = arith.constant dense<0.000000e+00> : vector<256x13xf32>
    %21 = tpu.matmul %20, %1, %cst_20 {dimension_numbers = #tpu.dot_dimension_numbers<[1], [0], [0], [1], [0, 0, 1, 1], [], []>} : vector<256x208xf32>, vector<208x13xf32>, vector<256x13xf32> -> vector<256x13xf32>
    %22 = arith.mulf %19, %19 : vector<256x13xf32>
    %23 = arith.mulf %21, %21 : vector<256x13xf32>
    %24 = arith.addf %22, %23 : vector<256x13xf32>
    %cst_21 = arith.constant dense<0.000000e+00> : vector<256xf32>
    %25 = vector.multi_reduction <add>, %24, %cst_21 [1] : vector<256x13xf32> to vector<256xf32>
    %26 = vector.shape_cast %25 : vector<256xf32> to vector<256x1xf32>
    %cst_22 = arith.constant 0.0769230798 : f32
    %27 = vector.broadcast %cst_22 : f32 to vector<256x1xf32>
    %28 = arith.mulf %26, %27 : vector<256x1xf32>
    %c1 = arith.constant 1 : index
    %c0_23 = arith.constant 0 : index
    %c0_24 = arith.constant 0 : index
    %29 = vector.load %arg2[%c1, %c0_23, %c0_24] : memref<5x208x128xf32, #tpu.memory_space<vmem>>, vector<1x208x128xf32>
    %30 = vector.shape_cast %29 : vector<1x208x128xf32> to vector<208x128xf32>
    %cst_25 = arith.constant dense<0.000000e+00> : vector<256x128xf32>
    %31 = tpu.matmul %0, %30, %cst_25 {dimension_numbers = #tpu.dot_dimension_numbers<[1], [0], [0], [1], [0, 0, 1, 1], [], []>} : vector<256x208xf32>, vector<208x128xf32>, vector<256x128xf32> -> vector<256x128xf32>
    %c1_26 = arith.constant 1 : index
    %c0_27 = arith.constant 0 : index
    %c0_28 = arith.constant 0 : index
    %32 = vector.load %arg3[%c1_26, %c0_27, %c0_28] : memref<5x1x128xf32, #tpu.memory_space<vmem>>, vector<1x1x128xf32>
    %33 = vector.shape_cast %32 : vector<1x1x128xf32> to vector<1x128xf32>
    %34 = vector.broadcast %33 : vector<1x128xf32> to vector<256x128xf32>
    %35 = arith.addf %31, %34 : vector<256x128xf32>
    %c1_29 = arith.constant 1 : index
    %c0_30 = arith.constant 0 : index
    %c0_31 = arith.constant 0 : index
    %36 = vector.load %arg4[%c1_29, %c0_30, %c0_31] : memref<5x128x208xf32, #tpu.memory_space<vmem>>, vector<1x128x208xf32>
    %37 = vector.shape_cast %36 : vector<1x128x208xf32> to vector<128x208xf32>
    %cst_32 = arith.constant dense<0.000000e+00> : vector<256x208xf32>
    %38 = tpu.matmul %35, %37, %cst_32 {dimension_numbers = #tpu.dot_dimension_numbers<[1], [0], [0], [1], [0, 0, 1, 1], [], []>} : vector<256x128xf32>, vector<128x208xf32>, vector<256x208xf32> -> vector<256x208xf32>
    %c1_33 = arith.constant 1 : index
    %c0_34 = arith.constant 0 : index
    %c0_35 = arith.constant 0 : index
    %39 = vector.load %arg5[%c1_33, %c0_34, %c0_35] : memref<5x1x208xf32, #tpu.memory_space<vmem>>, vector<1x1x208xf32>
    %40 = vector.shape_cast %39 : vector<1x1x208xf32> to vector<1x208xf32>
    %41 = vector.broadcast %40 : vector<1x208xf32> to vector<256x208xf32>
    %42 = arith.addf %38, %41 : vector<256x208xf32>
    %43 = arith.mulf %42, %0 : vector<256x208xf32>
    %cst_36 = arith.constant dense<0.000000e+00> : vector<256x13xf32>
    %44 = tpu.matmul %43, %1, %cst_36 {dimension_numbers = #tpu.dot_dimension_numbers<[1], [0], [0], [1], [0, 0, 1, 1], [], []>} : vector<256x208xf32>, vector<208x13xf32>, vector<256x13xf32> -> vector<256x13xf32>
    %45 = arith.mulf %42, %3 : vector<256x208xf32>
    %cst_37 = arith.constant dense<0.000000e+00> : vector<256x13xf32>
    %46 = tpu.matmul %45, %1, %cst_37 {dimension_numbers = #tpu.dot_dimension_numbers<[1], [0], [0], [1], [0, 0, 1, 1], [], []>} : vector<256x208xf32>, vector<208x13xf32>, vector<256x13xf32> -> vector<256x13xf32>
    %47 = arith.mulf %44, %44 : vector<256x13xf32>
    %48 = arith.mulf %46, %46 : vector<256x13xf32>
    %49 = arith.addf %47, %48 : vector<256x13xf32>
    %cst_38 = arith.constant dense<0.000000e+00> : vector<256xf32>
    %50 = vector.multi_reduction <add>, %49, %cst_38 [1] : vector<256x13xf32> to vector<256xf32>
    %51 = vector.shape_cast %50 : vector<256xf32> to vector<256x1xf32>
    %cst_39 = arith.constant 0.0769230798 : f32
    %52 = vector.broadcast %cst_39 : f32 to vector<256x1xf32>
    %53 = arith.mulf %51, %52 : vector<256x1xf32>
    %54 = arith.cmpf ogt, %53, %28 : vector<256x1xf32>
    %55 = vector.shape_cast %54 : vector<256x1xi1> to vector<256x1xi1>
    %56 = vector.broadcast %55 : vector<256x1xi1> to vector<256x128xi1>
    %57 = arith.select %56, %35, %10 : vector<256x128xi1>, vector<256x128xf32>
    %58 = arith.select %54, %53, %28 : vector<256x1xi1>, vector<256x1xf32>
    %c2 = arith.constant 2 : index
    %c0_40 = arith.constant 0 : index
    %c0_41 = arith.constant 0 : index
    %59 = vector.load %arg2[%c2, %c0_40, %c0_41] : memref<5x208x128xf32, #tpu.memory_space<vmem>>, vector<1x208x128xf32>
    %60 = vector.shape_cast %59 : vector<1x208x128xf32> to vector<208x128xf32>
    %cst_42 = arith.constant dense<0.000000e+00> : vector<256x128xf32>
    %61 = tpu.matmul %0, %60, %cst_42 {dimension_numbers = #tpu.dot_dimension_numbers<[1], [0], [0], [1], [0, 0, 1, 1], [], []>} : vector<256x208xf32>, vector<208x128xf32>, vector<256x128xf32> -> vector<256x128xf32>
    %c2_43 = arith.constant 2 : index
    %c0_44 = arith.constant 0 : index
    %c0_45 = arith.constant 0 : index
    %62 = vector.load %arg3[%c2_43, %c0_44, %c0_45] : memref<5x1x128xf32, #tpu.memory_space<vmem>>, vector<1x1x128xf32>
    %63 = vector.shape_cast %62 : vector<1x1x128xf32> to vector<1x128xf32>
    %64 = vector.broadcast %63 : vector<1x128xf32> to vector<256x128xf32>
    %65 = arith.addf %61, %64 : vector<256x128xf32>
    %c2_46 = arith.constant 2 : index
    %c0_47 = arith.constant 0 : index
    %c0_48 = arith.constant 0 : index
    %66 = vector.load %arg4[%c2_46, %c0_47, %c0_48] : memref<5x128x208xf32, #tpu.memory_space<vmem>>, vector<1x128x208xf32>
    %67 = vector.shape_cast %66 : vector<1x128x208xf32> to vector<128x208xf32>
    %cst_49 = arith.constant dense<0.000000e+00> : vector<256x208xf32>
    %68 = tpu.matmul %65, %67, %cst_49 {dimension_numbers = #tpu.dot_dimension_numbers<[1], [0], [0], [1], [0, 0, 1, 1], [], []>} : vector<256x128xf32>, vector<128x208xf32>, vector<256x208xf32> -> vector<256x208xf32>
    %c2_50 = arith.constant 2 : index
    %c0_51 = arith.constant 0 : index
    %c0_52 = arith.constant 0 : index
    %69 = vector.load %arg5[%c2_50, %c0_51, %c0_52] : memref<5x1x208xf32, #tpu.memory_space<vmem>>, vector<1x1x208xf32>
    %70 = vector.shape_cast %69 : vector<1x1x208xf32> to vector<1x208xf32>
    %71 = vector.broadcast %70 : vector<1x208xf32> to vector<256x208xf32>
    %72 = arith.addf %68, %71 : vector<256x208xf32>
    %73 = arith.mulf %72, %0 : vector<256x208xf32>
    %cst_53 = arith.constant dense<0.000000e+00> : vector<256x13xf32>
    %74 = tpu.matmul %73, %1, %cst_53 {dimension_numbers = #tpu.dot_dimension_numbers<[1], [0], [0], [1], [0, 0, 1, 1], [], []>} : vector<256x208xf32>, vector<208x13xf32>, vector<256x13xf32> -> vector<256x13xf32>
    %75 = arith.mulf %72, %3 : vector<256x208xf32>
    %cst_54 = arith.constant dense<0.000000e+00> : vector<256x13xf32>
    %76 = tpu.matmul %75, %1, %cst_54 {dimension_numbers = #tpu.dot_dimension_numbers<[1], [0], [0], [1], [0, 0, 1, 1], [], []>} : vector<256x208xf32>, vector<208x13xf32>, vector<256x13xf32> -> vector<256x13xf32>
    %77 = arith.mulf %74, %74 : vector<256x13xf32>
    %78 = arith.mulf %76, %76 : vector<256x13xf32>
    %79 = arith.addf %77, %78 : vector<256x13xf32>
    %cst_55 = arith.constant dense<0.000000e+00> : vector<256xf32>
    %80 = vector.multi_reduction <add>, %79, %cst_55 [1] : vector<256x13xf32> to vector<256xf32>
    %81 = vector.shape_cast %80 : vector<256xf32> to vector<256x1xf32>
    %cst_56 = arith.constant 0.0769230798 : f32
    %82 = vector.broadcast %cst_56 : f32 to vector<256x1xf32>
    %83 = arith.mulf %81, %82 : vector<256x1xf32>
    %84 = arith.cmpf ogt, %83, %58 : vector<256x1xf32>
    %85 = vector.shape_cast %84 : vector<256x1xi1> to vector<256x1xi1>
    %86 = vector.broadcast %85 : vector<256x1xi1> to vector<256x128xi1>
    %87 = arith.select %86, %65, %57 : vector<256x128xi1>, vector<256x128xf32>
    %88 = arith.select %84, %83, %58 : vector<256x1xi1>, vector<256x1xf32>
    %c3 = arith.constant 3 : index
    %c0_57 = arith.constant 0 : index
    %c0_58 = arith.constant 0 : index
    %89 = vector.load %arg2[%c3, %c0_57, %c0_58] : memref<5x208x128xf32, #tpu.memory_space<vmem>>, vector<1x208x128xf32>
    %90 = vector.shape_cast %89 : vector<1x208x128xf32> to vector<208x128xf32>
    %cst_59 = arith.constant dense<0.000000e+00> : vector<256x128xf32>
    %91 = tpu.matmul %0, %90, %cst_59 {dimension_numbers = #tpu.dot_dimension_numbers<[1], [0], [0], [1], [0, 0, 1, 1], [], []>} : vector<256x208xf32>, vector<208x128xf32>, vector<256x128xf32> -> vector<256x128xf32>
    %c3_60 = arith.constant 3 : index
    %c0_61 = arith.constant 0 : index
    %c0_62 = arith.constant 0 : index
    %92 = vector.load %arg3[%c3_60, %c0_61, %c0_62] : memref<5x1x128xf32, #tpu.memory_space<vmem>>, vector<1x1x128xf32>
    %93 = vector.shape_cast %92 : vector<1x1x128xf32> to vector<1x128xf32>
    %94 = vector.broadcast %93 : vector<1x128xf32> to vector<256x128xf32>
    %95 = arith.addf %91, %94 : vector<256x128xf32>
    %c3_63 = arith.constant 3 : index
    %c0_64 = arith.constant 0 : index
    %c0_65 = arith.constant 0 : index
    %96 = vector.load %arg4[%c3_63, %c0_64, %c0_65] : memref<5x128x208xf32, #tpu.memory_space<vmem>>, vector<1x128x208xf32>
    %97 = vector.shape_cast %96 : vector<1x128x208xf32> to vector<128x208xf32>
    %cst_66 = arith.constant dense<0.000000e+00> : vector<256x208xf32>
    %98 = tpu.matmul %95, %97, %cst_66 {dimension_numbers = #tpu.dot_dimension_numbers<[1], [0], [0], [1], [0, 0, 1, 1], [], []>} : vector<256x128xf32>, vector<128x208xf32>, vector<256x208xf32> -> vector<256x208xf32>
    %c3_67 = arith.constant 3 : index
    %c0_68 = arith.constant 0 : index
    %c0_69 = arith.constant 0 : index
    %99 = vector.load %arg5[%c3_67, %c0_68, %c0_69] : memref<5x1x208xf32, #tpu.memory_space<vmem>>, vector<1x1x208xf32>
    %100 = vector.shape_cast %99 : vector<1x1x208xf32> to vector<1x208xf32>
    %101 = vector.broadcast %100 : vector<1x208xf32> to vector<256x208xf32>
    %102 = arith.addf %98, %101 : vector<256x208xf32>
    %103 = arith.mulf %102, %0 : vector<256x208xf32>
    %cst_70 = arith.constant dense<0.000000e+00> : vector<256x13xf32>
    %104 = tpu.matmul %103, %1, %cst_70 {dimension_numbers = #tpu.dot_dimension_numbers<[1], [0], [0], [1], [0, 0, 1, 1], [], []>} : vector<256x208xf32>, vector<208x13xf32>, vector<256x13xf32> -> vector<256x13xf32>
    %105 = arith.mulf %102, %3 : vector<256x208xf32>
    %cst_71 = arith.constant dense<0.000000e+00> : vector<256x13xf32>
    %106 = tpu.matmul %105, %1, %cst_71 {dimension_numbers = #tpu.dot_dimension_numbers<[1], [0], [0], [1], [0, 0, 1, 1], [], []>} : vector<256x208xf32>, vector<208x13xf32>, vector<256x13xf32> -> vector<256x13xf32>
    %107 = arith.mulf %104, %104 : vector<256x13xf32>
    %108 = arith.mulf %106, %106 : vector<256x13xf32>
    %109 = arith.addf %107, %108 : vector<256x13xf32>
    %cst_72 = arith.constant dense<0.000000e+00> : vector<256xf32>
    %110 = vector.multi_reduction <add>, %109, %cst_72 [1] : vector<256x13xf32> to vector<256xf32>
    %111 = vector.shape_cast %110 : vector<256xf32> to vector<256x1xf32>
    %cst_73 = arith.constant 0.0769230798 : f32
    %112 = vector.broadcast %cst_73 : f32 to vector<256x1xf32>
    %113 = arith.mulf %111, %112 : vector<256x1xf32>
    %114 = arith.cmpf ogt, %113, %88 : vector<256x1xf32>
    %115 = vector.shape_cast %114 : vector<256x1xi1> to vector<256x1xi1>
    %116 = vector.broadcast %115 : vector<256x1xi1> to vector<256x128xi1>
    %117 = arith.select %116, %95, %87 : vector<256x128xi1>, vector<256x128xf32>
    %118 = arith.select %114, %113, %88 : vector<256x1xi1>, vector<256x1xf32>
    %c4 = arith.constant 4 : index
    %c0_74 = arith.constant 0 : index
    %c0_75 = arith.constant 0 : index
    %119 = vector.load %arg2[%c4, %c0_74, %c0_75] : memref<5x208x128xf32, #tpu.memory_space<vmem>>, vector<1x208x128xf32>
    %120 = vector.shape_cast %119 : vector<1x208x128xf32> to vector<208x128xf32>
    %cst_76 = arith.constant dense<0.000000e+00> : vector<256x128xf32>
    %121 = tpu.matmul %0, %120, %cst_76 {dimension_numbers = #tpu.dot_dimension_numbers<[1], [0], [0], [1], [0, 0, 1, 1], [], []>} : vector<256x208xf32>, vector<208x128xf32>, vector<256x128xf32> -> vector<256x128xf32>
    %c4_77 = arith.constant 4 : index
    %c0_78 = arith.constant 0 : index
    %c0_79 = arith.constant 0 : index
    %122 = vector.load %arg3[%c4_77, %c0_78, %c0_79] : memref<5x1x128xf32, #tpu.memory_space<vmem>>, vector<1x1x128xf32>
    %123 = vector.shape_cast %122 : vector<1x1x128xf32> to vector<1x128xf32>
    %124 = vector.broadcast %123 : vector<1x128xf32> to vector<256x128xf32>
    %125 = arith.addf %121, %124 : vector<256x128xf32>
    %c4_80 = arith.constant 4 : index
    %c0_81 = arith.constant 0 : index
    %c0_82 = arith.constant 0 : index
    %126 = vector.load %arg4[%c4_80, %c0_81, %c0_82] : memref<5x128x208xf32, #tpu.memory_space<vmem>>, vector<1x128x208xf32>
    %127 = vector.shape_cast %126 : vector<1x128x208xf32> to vector<128x208xf32>
    %cst_83 = arith.constant dense<0.000000e+00> : vector<256x208xf32>
    %128 = tpu.matmul %125, %127, %cst_83 {dimension_numbers = #tpu.dot_dimension_numbers<[1], [0], [0], [1], [0, 0, 1, 1], [], []>} : vector<256x128xf32>, vector<128x208xf32>, vector<256x208xf32> -> vector<256x208xf32>
    %c4_84 = arith.constant 4 : index
    %c0_85 = arith.constant 0 : index
    %c0_86 = arith.constant 0 : index
    %129 = vector.load %arg5[%c4_84, %c0_85, %c0_86] : memref<5x1x208xf32, #tpu.memory_space<vmem>>, vector<1x1x208xf32>
    %130 = vector.shape_cast %129 : vector<1x1x208xf32> to vector<1x208xf32>
    %131 = vector.broadcast %130 : vector<1x208xf32> to vector<256x208xf32>
    %132 = arith.addf %128, %131 : vector<256x208xf32>
    %133 = arith.mulf %132, %0 : vector<256x208xf32>
    %cst_87 = arith.constant dense<0.000000e+00> : vector<256x13xf32>
    %134 = tpu.matmul %133, %1, %cst_87 {dimension_numbers = #tpu.dot_dimension_numbers<[1], [0], [0], [1], [0, 0, 1, 1], [], []>} : vector<256x208xf32>, vector<208x13xf32>, vector<256x13xf32> -> vector<256x13xf32>
    %135 = arith.mulf %132, %3 : vector<256x208xf32>
    %cst_88 = arith.constant dense<0.000000e+00> : vector<256x13xf32>
    %136 = tpu.matmul %135, %1, %cst_88 {dimension_numbers = #tpu.dot_dimension_numbers<[1], [0], [0], [1], [0, 0, 1, 1], [], []>} : vector<256x208xf32>, vector<208x13xf32>, vector<256x13xf32> -> vector<256x13xf32>
    %137 = arith.mulf %134, %134 : vector<256x13xf32>
    %138 = arith.mulf %136, %136 : vector<256x13xf32>
    %139 = arith.addf %137, %138 : vector<256x13xf32>
    %cst_89 = arith.constant dense<0.000000e+00> : vector<256xf32>
    %140 = vector.multi_reduction <add>, %139, %cst_89 [1] : vector<256x13xf32> to vector<256xf32>
    %141 = vector.shape_cast %140 : vector<256xf32> to vector<256x1xf32>
    %cst_90 = arith.constant 0.0769230798 : f32
    %142 = vector.broadcast %cst_90 : f32 to vector<256x1xf32>
    %143 = arith.mulf %141, %142 : vector<256x1xf32>
    %144 = arith.cmpf ogt, %143, %118 : vector<256x1xf32>
    %145 = vector.shape_cast %144 : vector<256x1xi1> to vector<256x1xi1>
    %146 = vector.broadcast %145 : vector<256x1xi1> to vector<256x128xi1>
    %147 = arith.select %146, %125, %117 : vector<256x128xi1>, vector<256x128xf32>
    %c0_91 = arith.constant 0 : index
    %c0_92 = arith.constant 0 : index
    %148 = vector.load %arg8[%c0_91, %c0_92] : memref<256x128xf32, #tpu.memory_space<vmem>>, vector<256x128xf32>
    tpu.vector_store %arg8[%c0_91, %c0_92], %147 {strides = array<i32>} : memref<256x128xf32, #tpu.memory_space<vmem>>, vector<256x128xf32>,
    return
  }
  func.func @transform_0(%arg0: i32) -> (i32, i32) {
    %c0_i32 = arith.constant 0 : i32
    %c0_i32_0 = arith.constant 0 : i32
    return %arg0, %c0_i32 : i32, i32
  }
  func.func @transform_1(%arg0: i32) -> (i32, i32, i32) {
    %c0_i32 = arith.constant 0 : i32
    %c0_i32_0 = arith.constant 0 : i32
    %c0_i32_1 = arith.constant 0 : i32
    %c0_i32_2 = arith.constant 0 : i32
    return %c0_i32, %c0_i32_0, %c0_i32_1 : i32, i32, i32
  }
  func.func @transform_2(%arg0: i32) -> (i32, i32, i32) {
    %c0_i32 = arith.constant 0 : i32
    %c0_i32_0 = arith.constant 0 : i32
    %c0_i32_1 = arith.constant 0 : i32
    %c0_i32_2 = arith.constant 0 : i32
    return %c0_i32, %c0_i32_0, %c0_i32_1 : i32, i32, i32
  }
  func.func @transform_3(%arg0: i32) -> (i32, i32, i32) {
    %c0_i32 = arith.constant 0 : i32
    %c0_i32_0 = arith.constant 0 : i32
    %c0_i32_1 = arith.constant 0 : i32
    %c0_i32_2 = arith.constant 0 : i32
    return %c0_i32, %c0_i32_0, %c0_i32_1 : i32, i32, i32
  }
  func.func @transform_4(%arg0: i32) -> (i32, i32, i32) {
    %c0_i32 = arith.constant 0 : i32
    %c0_i32_0 = arith.constant 0 : i32
    %c0_i32_1 = arith.constant 0 : i32
    %c0_i32_2 = arith.constant 0 : i32
    return %c0_i32, %c0_i32_0, %c0_i32_1 : i32, i32, i32
  }
  func.func @transform_5(%arg0: i32) -> (i32, i32) {
    %c0_i32 = arith.constant 0 : i32
    %c0_i32_0 = arith.constant 0 : i32
    %c0_i32_1 = arith.constant 0 : i32
    return %c0_i32, %c0_i32_0 : i32, i32
  }
  func.func @transform_6(%arg0: i32) -> (i32, i32) {
    %c0_i32 = arith.constant 0 : i32
    %c0_i32_0 = arith.constant 0 : i32
    %c0_i32_1 = arith.constant 0 : i32
    return %c0_i32, %c0_i32_0 : i32, i32
  }
  func.func @transform_7(%arg0: i32) -> (i32, i32) {
    %c0_i32 = arith.constant 0 : i32
    %c0_i32_0 = arith.constant 0 : i32
    return %arg0, %c0_i32 : i32, i32
  }
}

</mosaic_0001>

<llo_original>
// kernel: tpu_custom_call.1
$region0: #{tpu_custom_call.1}
  #allocation0 [shape = 'u32[]', space=smem, size = 0x4, offset = 0x4, fixed_abs, tag = 'smem constant byte address 0x4 - core index']
  #allocation1 [shape = 'u32[144,128]{1,0:T(1,128)}', space=vmem, size = 0x12000, scoped, tag = 'internal scratch']
  %s0 = inlined_call_operand.vmem [shape: f32[512,208], index: 0, kind: input, shape index: {}]
  %s1 = inlined_call_operand.vmem [shape: f32[5,208,128], index: 1, kind: input, shape index: {}]
  %s2 = inlined_call_operand.vmem [shape: f32[5,1,128], index: 2, kind: input, shape index: {}]
  %s3 = inlined_call_operand.vmem [shape: f32[5,128,208], index: 3, kind: input, shape index: {}]
  %s4 = inlined_call_operand.vmem [shape: f32[5,1,208], index: 4, kind: input, shape index: {}]
  %s5 = inlined_call_operand.vmem [shape: f32[208,208], index: 5, kind: input, shape index: {}]
  %s6 = inlined_call_operand.vmem [shape: f32[208,13], index: 6, kind: input, shape index: {}]
  %s7 = inlined_call_operand.hbm [shape: f32[512,128], index: 7, kind: output, shape index: {}]
  %s8 = sld [smem:[#allocation0]]
  $region61: #{tpu_custom_call.1} parent=0
    _
  %s10 = ssub.s32 1, %s8
  %s11 = scalar_select 0, %s10, %s8
  $region1: #{tpu_custom_call.1} parent=0
    #allocation2 [shape = 'u8[262144]{0}', space=vmem, size = 0x40000, scoped, tag = 'output window, operand 0']
    #allocation3 [shape = 's32[2]{0}', space=sflag, size = 0x8, scoped, tag = 'scoped memory for tpu_custom_call.1']
    %12 = vsyncpa [#allocation3], 0
    %s13 = scalar_lea.sflag [#allocation3], 1
    %14 = vsyncpa %s13, 0
    loop: start=0, step=1, limit=4
    $region2: #{tpu_custom_call.1} parent=1 // loop_pre_header
      _
    $region3: #{tpu_custom_call.1} parent=1 // loop_header
      %s16 = sphi 0, %s20
      %p17 = scmp.ge.s32.totalorder %s16, 4
      %s26 = sphi 0, %s28
      %s29 = sphi 0, %s26
      %s30 = sphi 0, %s29
      %s46 = sphi 0, %s30
      %s50 = sphi 0, %s50
      %s52 = sphi 0, %s50
      %s53 = sphi 0, %s52
      %s67 = sphi 0, %s53
      %s71 = sphi 0, %s71
      %s73 = sphi 0, %s71
      %s74 = sphi 0, %s73
      %s88 = sphi 0, %s74
      %s92 = sphi 0, %s92
      %s94 = sphi 0, %s92
      %s95 = sphi 0, %s94
      %s109 = sphi 0, %s95
      %s113 = sphi 0, %s113
      %s115 = sphi 0, %s113
      %s116 = sphi 0, %s115
      %s130 = sphi 0, %s116
      %s134 = sphi 0, %s134
      %s136 = sphi 0, %s134
      %s137 = sphi 0, %s136
      %s151 = sphi 0, %s137
      %s155 = sphi 0, %s155
      %s157 = sphi 0, %s155
      %s158 = sphi 0, %s157
      %s172 = sphi 0, %s158
      %s178 = sphi 0, %s180
      %s181 = sphi 0, %s178
      %s182 = sphi 0, %s181
      %s198 = sphi 0, %s182
    $region4: #{tpu_custom_call.1} parent=1 // loop_header_branch
      %19 = sbr.rel (%p17) target = $region8
    $region5: #{tpu_custom_call.1} parent=1 // loop_body
      %s21 = ssub.s32 %s16, 1
      %s22 = ssub.s32 %s16, 2
      %s23 = sadd.s32 %s16, 1
      %s24 = ssub.s32 %s16, %s23
      %p25 = scmp.eq.s32.totalorder %s24, 0
      %s27 = sadd.s32 %s26, 1
      %s28 = scalar_select %p25, %s26, %s27
      %p31 = pneg %p25
      %p32 = scmp.eq.s32.totalorder %s16, 1
      %p33 = por %p31, %p32
      %p34 = scmp.ne.s32.totalorder %s26, %s29
      %p35 = scmp.eq.s32.totalorder %s16, 0
      %p36 = por %p34, %p35
      %p37 = scmp.ne.s32.totalorder %s26, %s29
      %p38 = scmp.eq.s32.totalorder %s21, 1
      %p39 = por %p37, %p38
      %p40 = scmp.ne.s32.totalorder %s29, %s30
      %p41 = scmp.eq.s32.totalorder %s21, 0
      %p42 = por %p40, %p41
      %p43 = scmp.ne.s32.totalorder %s29, %s30
      %p44 = scmp.eq.s32.totalorder %s22, 1
      %p45 = por %p43, %p44
      %p47 = scmp.ne.s32.totalorder %s30, %s46
      %p48 = scmp.eq.s32.totalorder %s22, 0
      %p49 = por %p47, %p48
      %s51 = sadd.s32 %s50, 1
      %p54 = scmp.eq.s32.totalorder %s16, 1
      %p55 = scmp.ne.s32.totalorder %s50, %s52
      %p56 = scmp.eq.s32.totalorder %s16, 0
      %p57 = por %p55, %p56
      %p58 = scmp.ne.s32.totalorder %s50, %s52
      %p59 = scmp.eq.s32.totalorder %s21, 1
      %p60 = por %p58, %p59
      %p61 = scmp.ne.s32.totalorder %s52, %s53
      %p62 = scmp.eq.s32.totalorder %s21, 0
      %p63 = por %p61, %p62
      %p64 = scmp.ne.s32.totalorder %s52, %s53
      %p65 = scmp.eq.s32.totalorder %s22, 1
      %p66 = por %p64, %p65
      %p68 = scmp.ne.s32.totalorder %s53, %s67
      %p69 = scmp.eq.s32.totalorder %s22, 0
      %p70 = por %p68, %p69
      %s72 = sadd.s32 %s71, 1
      %p75 = scmp.eq.s32.totalorder %s16, 1
      %p76 = scmp.ne.s32.totalorder %s71, %s73
      %p77 = scmp.eq.s32.totalorder %s16, 0
      %p78 = por %p76, %p77
      %p79 = scmp.ne.s32.totalorder %s71, %s73
      %p80 = scmp.eq.s32.totalorder %s21, 1
      %p81 = por %p79, %p80
      %p82 = scmp.ne.s32.totalorder %s73, %s74
      %p83 = scmp.eq.s32.totalorder %s21, 0
      %p84 = por %p82, %p83
      %p85 = scmp.ne.s32.totalorder %s73, %s74
      %p86 = scmp.eq.s32.totalorder %s22, 1
      %p87 = por %p85, %p86
      %p89 = scmp.ne.s32.totalorder %s74, %s88
      %p90 = scmp.eq.s32.totalorder %s22, 0
      %p91 = por %p89, %p90
      %s93 = sadd.s32 %s92, 1
      %p96 = scmp.eq.s32.totalorder %s16, 1
      %p97 = scmp.ne.s32.totalorder %s92, %s94
      %p98 = scmp.eq.s32.totalorder %s16, 0
      %p99 = por %p97, %p98
      %p100 = scmp.ne.s32.totalorder %s92, %s94
      %p101 = scmp.eq.s32.totalorder %s21, 1
      %p102 = por %p100, %p101
      %p103 = scmp.ne.s32.totalorder %s94, %s95
      %p104 = scmp.eq.s32.totalorder %s21, 0
      %p105 = por %p103, %p104
      %p106 = scmp.ne.s32.totalorder %s94, %s95
      %p107 = scmp.eq.s32.totalorder %s22, 1
      %p108 = por %p106, %p107
      %p110 = scmp.ne.s32.totalorder %s95, %s109
      %p111 = scmp.eq.s32.totalorder %s22, 0
      %p112 = por %p110, %p111
      %s114 = sadd.s32 %s113, 1
      %p117 = scmp.eq.s32.totalorder %s16, 1
      %p118 = scmp.ne.s32.totalorder %s113, %s115
      %p119 = scmp.eq.s32.totalorder %s16, 0
      %p120 = por %p118, %p119
      %p121 = scmp.ne.s32.totalorder %s113, %s115
      %p122 = scmp.eq.s32.totalorder %s21, 1
      %p123 = por %p121, %p122
      %p124 = scmp.ne.s32.totalorder %s115, %s116
      %p125 = scmp.eq.s32.totalorder %s21, 0
      %p126 = por %p124, %p125
      %p127 = scmp.ne.s32.totalorder %s115, %s116
      %p128 = scmp.eq.s32.totalorder %s22, 1
      %p129 = por %p127, %p128
      %p131 = scmp.ne.s32.totalorder %s116, %s130
      %p132 = scmp.eq.s32.totalorder %s22, 0
      %p133 = por %p131, %p132
      %s135 = sadd.s32 %s134, 1
      %p138 = scmp.eq.s32.totalorder %s16, 1
      %p139 = scmp.ne.s32.totalorder %s134, %s136
      %p140 = scmp.eq.s32.totalorder %s16, 0
      %p141 = por %p139, %p140
      %p142 = scmp.ne.s32.totalorder %s134, %s136
      %p143 = scmp.eq.s32.totalorder %s21, 1
      %p144 = por %p142, %p143
      %p145 = scmp.ne.s32.totalorder %s136, %s137
      %p146 = scmp.eq.s32.totalorder %s21, 0
      %p147 = por %p145, %p146
      %p148 = scmp.ne.s32.totalorder %s136, %s137
      %p149 = scmp.eq.s32.totalorder %s22, 1
      %p150 = por %p148, %p149
      %p152 = scmp.ne.s32.totalorder %s137, %s151
      %p153 = scmp.eq.s32.totalorder %s22, 0
      %p154 = por %p152, %p153
      %s156 = sadd.s32 %s155, 1
      %p159 = scmp.eq.s32.totalorder %s16, 1
      %p160 = scmp.ne.s32.totalorder %s155, %s157
      %p161 = scmp.eq.s32.totalorder %s16, 0
      %p162 = por %p160, %p161
      %p163 = scmp.ne.s32.totalorder %s155, %s157
      %p164 = scmp.eq.s32.totalorder %s21, 1
      %p165 = por %p163, %p164
      %p166 = scmp.ne.s32.totalorder %s157, %s158
      %p167 = scmp.eq.s32.totalorder %s21, 0
      %p168 = por %p166, %p167
      %p169 = scmp.ne.s32.totalorder %s157, %s158
      %p170 = scmp.eq.s32.totalorder %s22, 1
      %p171 = por %p169, %p170
      %p173 = scmp.ne.s32.totalorder %s158, %s172
      %p174 = scmp.eq.s32.totalorder %s22, 0
      %p175 = por %p173, %p174
      %s176 = ssub.s32 %s16, %s23
      %p177 = scmp.eq.s32.totalorder %s176, 0
      %s179 = sadd.s32 %s178, 1
      %s180 = scalar_select %p177, %s178, %s179
      %p183 = pneg %p177
      %p184 = scmp.eq.s32.totalorder %s16, 1
      %p185 = por %p183, %p184
      %p186 = scmp.ne.s32.totalorder %s178, %s181
      %p187 = scmp.eq.s32.totalorder %s16, 0
      %p188 = por %p186, %p187
      %p189 = scmp.ne.s32.totalorder %s178, %s181
      %p190 = scmp.eq.s32.totalorder %s21, 1
      %p191 = por %p189, %p190
      %p192 = scmp.ne.s32.totalorder %s181, %s182
      %p193 = scmp.eq.s32.totalorder %s21, 0
      %p194 = por %p192, %p193
      %p195 = scmp.ne.s32.totalorder %s181, %s182
      %p196 = scmp.eq.s32.totalorder %s22, 1
      %p197 = por %p195, %p196
      %p199 = scmp.ne.s32.totalorder %s182, %s198
      %p200 = scmp.eq.s32.totalorder %s22, 0
      %p201 = por %p199, %p200
      %p202 = scmp.le.s32.totalorder 1, %s16
      %p203 = scmp.lt.s32.totalorder %s16, 3
      %p204 = pnand %p202, %p203
      %p205 = pneg %p204
      // Predicated region
      $region9: #{tpu_custom_call.1} parent=5 // pred_check
        _
      $region10: #{tpu_custom_call.1} parent=5 // pred_check_branch
        %207 = sbr.rel (%p204) target = $region12
      $region11: #{tpu_custom_call.1} parent=5 // pred_region
        %s208 = ssub.s32 %s16, 1
        // Predicated region
        $region13: #{tpu_custom_call.1} parent=11 // pred_check
          %p209 = pneg %p63
        $region14: #{tpu_custom_call.1} parent=11 // pred_check_branch
          %211 = sbr.rel (%p209) target = $region16
        $region15: #{tpu_custom_call.1} parent=11 // pred_region
          _
        $region16: #{tpu_custom_call.1} parent=11 // pred_fallthru
          _
        // Predicated region
        $region17: #{tpu_custom_call.1} parent=11 // pred_check
          %p212 = pneg %p84
        $region18: #{tpu_custom_call.1} parent=11 // pred_check_branch
          %214 = sbr.rel (%p212) target = $region20
        $region19: #{tpu_custom_call.1} parent=11 // pred_region
          _
        $region20: #{tpu_custom_call.1} parent=11 // pred_fallthru
          _
        // Predicated region
        $region21: #{tpu_custom_call.1} parent=11 // pred_check
          %p215 = pneg %p105
        $region22: #{tpu_custom_call.1} parent=11 // pred_check_branch
          %217 = sbr.rel (%p215) target = $region24
        $region23: #{tpu_custom_call.1} parent=11 // pred_region
          _
        $region24: #{tpu_custom_call.1} parent=11 // pred_fallthru
          _
        // Predicated region
        $region25: #{tpu_custom_call.1} parent=11 // pred_check
          %p218 = pneg %p126
        $region26: #{tpu_custom_call.1} parent=11 // pred_check_branch
          %220 = sbr.rel (%p218) target = $region28
        $region27: #{tpu_custom_call.1} parent=11 // pred_region
          _
        $region28: #{tpu_custom_call.1} parent=11 // pred_fallthru
          _
        // Predicated region
        $region29: #{tpu_custom_call.1} parent=11 // pred_check
          %p221 = pneg %p147
        $region30: #{tpu_custom_call.1} parent=11 // pred_check_branch
          %223 = sbr.rel (%p221) target = $region32
        $region31: #{tpu_custom_call.1} parent=11 // pred_region
          _
        $region32: #{tpu_custom_call.1} parent=11 // pred_fallthru
          _
        // Predicated region
        $region33: #{tpu_custom_call.1} parent=11 // pred_check
          %p224 = pneg %p168
        $region34: #{tpu_custom_call.1} parent=11 // pred_check_branch
          %226 = sbr.rel (%p224) target = $region36
        $region35: #{tpu_custom_call.1} parent=11 // pred_region
          _
        $region36: #{tpu_custom_call.1} parent=11 // pred_fallthru
          _
      $region12: #{tpu_custom_call.1} parent=5 // pred_fallthru
        _
      %p227 = scmp.lt.s32.totalorder %s16, 2
      // Predicated region
      $region37: #{tpu_custom_call.1} parent=5 // pred_check
        %p228 = pneg %p227
      $region38: #{tpu_custom_call.1} parent=5 // pred_check_branch
        %230 = sbr.rel (%p228) target = $region40
      $region39: #{tpu_custom_call.1} parent=5 // pred_region
        // Predicated region
        $region41: #{tpu_custom_call.1} parent=39 // pred_check
          %p231 = pneg %p36
        $region42: #{tpu_custom_call.1} parent=39 // pred_check_branch
          %233 = sbr.rel (%p231) target = $region44
        $region43: #{tpu_custom_call.1} parent=39 // pred_region
          %s234 = smul.u32 32, %s16
          %p235 = scmp.lt.s32.totalorder %s234, 63
          %s236 = scalar_select %p235, %s234, 63
          %s237 = smul.addr %s236, 2
          %s238 = smul.addr %s237, 8
          %s239 = scalar_lea.vmem %s0, %s238
          %s240 = smul.u32 32, %s16
        $region44: #{tpu_custom_call.1} parent=39 // pred_fallthru
          _
      $region40: #{tpu_custom_call.1} parent=5 // pred_fallthru
        _
      %p241 = scmp.le.s32.totalorder 1, %s16
      %p242 = scmp.lt.s32.totalorder %s16, 3
      %p243 = pnand %p241, %p242
      %p244 = pneg %p243
      // Predicated region
      $region45: #{tpu_custom_call.1} parent=5 // pred_check
        _
      $region46: #{tpu_custom_call.1} parent=5 // pred_check_branch
        %246 = sbr.rel (%p243) target = $region48
      $region47: #{tpu_custom_call.1} parent=5 // pred_region
        %s247 = ssub.s32 %s16, 1
        %s248 = smul.u32 32, %s21
        %p249 = scmp.lt.s32.totalorder %s248, 63
        %s250 = scalar_select %p249, %s248, 63
        %s251 = smul.addr %s250, 2
        %s252 = smul.addr %s251, 8
        %s253 = scalar_lea.vmem %s0, %s252
        %p254 = pneg %p42
        %p255 = pneg %p39
        %p256 = pneg %p63
        %p257 = pneg %p60
        %p258 = pneg %p84
        %p259 = pneg %p81
        %p260 = pneg %p105
        %p261 = pneg %p102
        %p262 = pneg %p126
        %p263 = pneg %p123
        %p264 = pneg %p147
        %p265 = pneg %p144
        %p266 = pneg %p168
        %p267 = pneg %p165
        %p268 = pneg %p194
        %p269 = pneg %p191
        %s270 = sand.u32 %s181, 1
        %s271 = scalar_lea.sflag [#allocation3], %s270
        %s272 = sand.u32 %s181, 1
        %s273 = smul.addr %s272, 256
        %s274 = scalar_lea.vmem [#allocation2], %s273
        %s275 = smul.u32 32, %s21
        %p276 = scmp.lt.s32.totalorder %s275, 63
        %s277 = scalar_select %p276, %s275, 63
        %s278 = smul.addr %s277, 2
        %s279 = smul.addr %s278, 8
        %s280 = scalar_lea.vmem %s0, %s279
        %s281 = smul.u32 32, %s21
        %s282 = smul.u32 32, %s21
        %v283 = vld [vmem:[%s280] sm:$0xff]
        %v284 = vld [vmem:[%s280 + $0x8] sm:$0xff]
        %v285 = vld [vmem:[%s280 + $0x10] sm:$0xff]
        %v286 = vld [vmem:[%s280 + $0x18] sm:$0xff]
        %v287 = vld [vmem:[%s280 + $0x20] sm:$0xff]
        %v288 = vld [vmem:[%s280 + $0x28] sm:$0xff]
        %v289 = vld [vmem:[%s280 + $0x30] sm:$0xff]
        %v290 = vld [vmem:[%s280 + $0x38] sm:$0xff]
        %v291 = vld [vmem:[%s280 + $0x40] sm:$0xff]
        %v292 = vld [vmem:[%s280 + $0x48] sm:$0xff]
        %v293 = vld [vmem:[%s280 + $0x50] sm:$0xff]
        %v294 = vld [vmem:[%s280 + $0x58] sm:$0xff]
        %v295 = vld [vmem:[%s280 + $0x60] sm:$0xff]
        %v296 = vld [vmem:[%s280 + $0x68] sm:$0xff]
        %v297 = vld [vmem:[%s280 + $0x70] sm:$0xff]
        %v298 = vld [vmem:[%s280 + $0x78] sm:$0xff]
        %v299 = vld [vmem:[%s280 + $0x80] sm:$0xff]
        %v300 = vld [vmem:[%s280 + $0x88] sm:$0xff]
        %v301 = vld [vmem:[%s280 + $0x90] sm:$0xff]
        %v302 = vld [vmem:[%s280 + $0x98] sm:$0xff]
        %v303 = vld [vmem:[%s280 + $0xa0] sm:$0xff]
        %v304 = vld [vmem:[%s280 + $0xa8] sm:$0xff]
        %v305 = vld [vmem:[%s280 + $0xb0] sm:$0xff]
        %v306 = vld [vmem:[%s280 + $0xb8] sm:$0xff]
        %v307 = vld [vmem:[%s280 + $0xc0] sm:$0xff]
        %v308 = vld [vmem:[%s280 + $0xc8] sm:$0xff]
        %v309 = vld [vmem:[%s280 + $0xd0] sm:$0xff]
        %v310 = vld [vmem:[%s280 + $0xd8] sm:$0xff]
        %v311 = vld [vmem:[%s280 + $0xe0] sm:$0xff]
        %v312 = vld [vmem:[%s280 + $0xe8] sm:$0xff]
        %v313 = vld [vmem:[%s280 + $0xf0] sm:$0xff]
        %v314 = vld [vmem:[%s280 + $0xf8] sm:$0xff]
        %v315 = vld [vmem:[%s280 + $0x100] sm:$0xff]
        %v316 = vld [vmem:[%s280 + $0x108] sm:$0xff]
        %v317 = vld [vmem:[%s280 + $0x110] sm:$0xff]
        %v318 = vld [vmem:[%s280 + $0x118] sm:$0xff]
        %v319 = vld [vmem:[%s280 + $0x120] sm:$0xff]
        %v320 = vld [vmem:[%s280 + $0x128] sm:$0xff]
        %v321 = vld [vmem:[%s280 + $0x130] sm:$0xff]
        %v322 = vld [vmem:[%s280 + $0x138] sm:$0xff]
        %v323 = vld [vmem:[%s280 + $0x140] sm:$0xff]
        %v324 = vld [vmem:[%s280 + $0x148] sm:$0xff]
        %v325 = vld [vmem:[%s280 + $0x150] sm:$0xff]
        %v326 = vld [vmem:[%s280 + $0x158] sm:$0xff]
        %v327 = vld [vmem:[%s280 + $0x160] sm:$0xff]
        %v328 = vld [vmem:[%s280 + $0x168] sm:$0xff]
        %v329 = vld [vmem:[%s280 + $0x170] sm:$0xff]
        %v330 = vld [vmem:[%s280 + $0x178] sm:$0xff]
        %v331 = vld [vmem:[%s280 + $0x180] sm:$0xff]
        %v332 = vld [vmem:[%s280 + $0x188] sm:$0xff]
        %v333 = vld [vmem:[%s280 + $0x190] sm:$0xff]
        %v334 = vld [vmem:[%s280 + $0x198] sm:$0xff]
        %v335 = vld [vmem:[%s280 + $0x1a0] sm:$0xff]
        %v336 = vld [vmem:[%s280 + $0x1a8] sm:$0xff]
        %v337 = vld [vmem:[%s280 + $0x1b0] sm:$0xff]
        %v338 = vld [vmem:[%s280 + $0x1b8] sm:$0xff]
        %v339 = vld [vmem:[%s280 + $0x1c0] sm:$0xff]
        %v340 = vld [vmem:[%s280 + $0x1c8] sm:$0xff]
        %v341 = vld [vmem:[%s280 + $0x1d0] sm:$0xff]
        %v342 = vld [vmem:[%s280 + $0x1d8] sm:$0xff]
        %v343 = vld [vmem:[%s280 + $0x1e0] sm:$0xff]
        %v344 = vld [vmem:[%s280 + $0x1e8] sm:$0xff]
        %v345 = vld [vmem:[%s280 + $0x1f0] sm:$0xff]
        %v346 = vld [vmem:[%s280 + $0x1f8] sm:$0xff]
        %v347 = vld [vmem:[%s6] sm:$0xff]
        %v348 = vld [vmem:[%s6 + $0x8] sm:$0xff]
        %v349 = vld [vmem:[%s6 + $0x10] sm:$0xff]
        %v350 = vld [vmem:[%s6 + $0x18] sm:$0xff]
        %v351 = vld [vmem:[%s6 + $0x20] sm:$0xff]
        %v352 = vld [vmem:[%s6 + $0x28] sm:$0xff]
        %v353 = vld [vmem:[%s6 + $0x30] sm:$0xff]
        %v354 = vld [vmem:[%s6 + $0x38] sm:$0xff]
        %v355 = vld [vmem:[%s6 + $0x40] sm:$0xff]
        %v356 = vld [vmem:[%s6 + $0x48] sm:$0xff]
        %v357 = vld [vmem:[%s6 + $0x50] sm:$0xff]
        %v358 = vld [vmem:[%s6 + $0x58] sm:$0xff]
        %v359 = vld [vmem:[%s6 + $0x60] sm:$0xff]
        %v360 = vld [vmem:[%s6 + $0x68] sm:$0xff]
        %v361 = vld [vmem:[%s6 + $0x70] sm:$0xff]
        %v362 = vld [vmem:[%s6 + $0x78] sm:$0xff]
        %v363 = vld [vmem:[%s6 + $0x80] sm:$0xff]
        %v364 = vld [vmem:[%s6 + $0x88] sm:$0xff]
        %v365 = vld [vmem:[%s6 + $0x90] sm:$0xff]
        %v366 = vld [vmem:[%s6 + $0x98] sm:$0xff]
        %v367 = vld [vmem:[%s6 + $0xa0] sm:$0xff]
        %v368 = vld [vmem:[%s6 + $0xa8] sm:$0xff]
        %v369 = vld [vmem:[%s6 + $0xb0] sm:$0xff]
        %v370 = vld [vmem:[%s6 + $0xb8] sm:$0xff]
        %v371 = vld [vmem:[%s6 + $0xc0] sm:$0xff]
        %v372 = vld [vmem:[%s6 + $0xc8] sm:$0xff]
        %v373 = vld [vmem:[%s5] sm:$0xff]
        %v374 = vld [vmem:[%s5 + $0x8] sm:$0xff]
        %v375 = vld [vmem:[%s5 + $0x10] sm:$0xff]
        %v376 = vld [vmem:[%s5 + $0x18] sm:$0xff]
        %v377 = vld [vmem:[%s5 + $0x20] sm:$0xff]
        %v378 = vld [vmem:[%s5 + $0x28] sm:$0xff]
        %v379 = vld [vmem:[%s5 + $0x30] sm:$0xff]
        %v380 = vld [vmem:[%s5 + $0x38] sm:$0xff]
        %v381 = vld [vmem:[%s5 + $0x40] sm:$0xff]
        %v382 = vld [vmem:[%s5 + $0x48] sm:$0xff]
        %v383 = vld [vmem:[%s5 + $0x50] sm:$0xff]
        %v384 = vld [vmem:[%s5 + $0x58] sm:$0xff]
        %v385 = vld [vmem:[%s5 + $0x60] sm:$0xff]
        %v386 = vld [vmem:[%s5 + $0x68] sm:$0xff]
        %v387 = vld [vmem:[%s5 + $0x70] sm:$0xff]
        %v388 = vld [vmem:[%s5 + $0x78] sm:$0xff]
        %v389 = vld [vmem:[%s5 + $0x80] sm:$0xff]
        %v390 = vld [vmem:[%s5 + $0x88] sm:$0xff]
        %v391 = vld [vmem:[%s5 + $0x90] sm:$0xff]
        %v392 = vld [vmem:[%s5 + $0x98] sm:$0xff]
        %v393 = vld [vmem:[%s5 + $0xa0] sm:$0xff]
        %v394 = vld [vmem:[%s5 + $0xa8] sm:$0xff]
        %v395 = vld [vmem:[%s5 + $0xb0] sm:$0xff]
        %v396 = vld [vmem:[%s5 + $0xb8] sm:$0xff]
        %v397 = vld [vmem:[%s5 + $0xc0] sm:$0xff]
        %v398 = vld [vmem:[%s5 + $0xc8] sm:$0xff]
        %v399 = vld [vmem:[%s5 + $0xd0] sm:$0xff]
        %v400 = vld [vmem:[%s5 + $0xd8] sm:$0xff]
        %v401 = vld [vmem:[%s5 + $0xe0] sm:$0xff]
        %v402 = vld [vmem:[%s5 + $0xe8] sm:$0xff]
        %v403 = vld [vmem:[%s5 + $0xf0] sm:$0xff]
        %v404 = vld [vmem:[%s5 + $0xf8] sm:$0xff]
        %v405 = vld [vmem:[%s5 + $0x100] sm:$0xff]
        %v406 = vld [vmem:[%s5 + $0x108] sm:$0xff]
        %v407 = vld [vmem:[%s5 + $0x110] sm:$0xff]
        %v408 = vld [vmem:[%s5 + $0x118] sm:$0xff]
        %v409 = vld [vmem:[%s5 + $0x120] sm:$0xff]
        %v410 = vld [vmem:[%s5 + $0x128] sm:$0xff]
        %v411 = vld [vmem:[%s5 + $0x130] sm:$0xff]
        %v412 = vld [vmem:[%s5 + $0x138] sm:$0xff]
        %v413 = vld [vmem:[%s5 + $0x140] sm:$0xff]
        %v414 = vld [vmem:[%s5 + $0x148] sm:$0xff]
        %v415 = vld [vmem:[%s5 + $0x150] sm:$0xff]
        %v416 = vld [vmem:[%s5 + $0x158] sm:$0xff]
        %v417 = vld [vmem:[%s5 + $0x160] sm:$0xff]
        %v418 = vld [vmem:[%s5 + $0x168] sm:$0xff]
        %v419 = vld [vmem:[%s5 + $0x170] sm:$0xff]
        %v420 = vld [vmem:[%s5 + $0x178] sm:$0xff]
        %v421 = vld [vmem:[%s5 + $0x180] sm:$0xff]
        %v422 = vld [vmem:[%s5 + $0x188] sm:$0xff]
        %v423 = vld [vmem:[%s5 + $0x190] sm:$0xff]
        %v424 = vld [vmem:[%s5 + $0x198] sm:$0xff]
        %vm425 = vcmask 654336
        %v427 = vsel %vm425, %v284, 0
        %v430 = vsel %vm425, %v286, 0
        %v433 = vsel %vm425, %v288, 0
        %v436 = vsel %vm425, %v290, 0
        %v439 = vsel %vm425, %v292, 0
        %v442 = vsel %vm425, %v294, 0
        %v445 = vsel %vm425, %v296, 0
        %v448 = vsel %vm425, %v298, 0
        %v451 = vsel %vm425, %v300, 0
        %v454 = vsel %vm425, %v302, 0
        %v457 = vsel %vm425, %v304, 0
        %v460 = vsel %vm425, %v306, 0
        %v463 = vsel %vm425, %v308, 0
        %v466 = vsel %vm425, %v310, 0
        %v469 = vsel %vm425, %v312, 0
        %v472 = vsel %vm425, %v314, 0
        %v475 = vsel %vm425, %v316, 0
        %v478 = vsel %vm425, %v318, 0
        %v481 = vsel %vm425, %v320, 0
        %v484 = vsel %vm425, %v322, 0
        %v487 = vsel %vm425, %v324, 0
        %v490 = vsel %vm425, %v326, 0
        %v493 = vsel %vm425, %v328, 0
        %v496 = vsel %vm425, %v330, 0
        %v499 = vsel %vm425, %v332, 0
        %v502 = vsel %vm425, %v334, 0
        %v505 = vsel %vm425, %v336, 0
        %v508 = vsel %vm425, %v338, 0
        %v511 = vsel %vm425, %v340, 0
        %v514 = vsel %vm425, %v342, 0
        %v517 = vsel %vm425, %v344, 0
        %v520 = vsel %vm425, %v346, 0
        %522 = vmatprep.subr.mxu0 %v404
        %523 = vmatpush1.msra.mxu0 %v403
        %524 = vmatprep.subr.mxu0 %v402
        %525 = vmatpush1.msra.mxu0 %v401
        %526 = vmatprep.subr.mxu0 %v400
        %527 = vmatpush1.msra.mxu0 %v399
        %528 = vmatprep.subr.mxu0 %v398
        %529 = vmatpush1.msra.mxu0 %v397
        %530 = vmatprep.subr.mxu0 %v396
        %531 = vmatpush1.msra.mxu0 %v395
        %532 = vmatprep.subr.mxu0 %v394
        %533 = vmatpush1.msra.mxu0 %v393
        %534 = vmatprep.subr.mxu0 %v392
        %535 = vmatpush1.msra.mxu0 %v391
        %536 = vmatprep.subr.mxu0 %v390
        %537 = vmatpush1.msra.mxu0 %v389
        %538 = vmatprep.subr.mxu0 %v388
        %539 = vmatpush1.msra.mxu0 %v387
        %540 = vmatprep.subr.mxu0 %v386
        %541 = vmatpush1.msra.mxu0 %v385
        %542 = vmatprep.subr.mxu0 %v384
        %543 = vmatpush1.msra.mxu0 %v383
        %544 = vmatprep.subr.mxu0 %v382
        %545 = vmatpush1.msra.mxu0 %v381
        %546 = vmatprep.subr.mxu0 %v380
        %547 = vmatpush1.msra.mxu0 %v379
        %548 = vmatprep.subr.mxu0 %v378
        %549 = vmatpush1.msra.mxu0 %v377
        %550 = vmatprep.subr.mxu0 %v376
        %551 = vmatpush1.msra.mxu0 %v375
        %552 = vmatprep.subr.mxu0 %v374
        %553 = vmatpush1.msra.mxu0 %v373
        %554 = vmatprep.subr.mxu0 0.0
        %555 = vmatpush2.msra.mxu0 0.0
        %556 = vmatprep.subr.mxu0 0.0
        %557 = vmatpush2.msra.mxu0 0.0
        %558 = vmatprep.subr.mxu0 0.0
        %559 = vmatpush2.msra.mxu0 0.0
        %560 = vmatprep.subr.mxu0 0.0
        %561 = vmatpush2.msra.mxu0 0.0
        %562 = vmatprep.subr.mxu0 0.0
        %563 = vmatpush2.msra.mxu0 0.0
        %564 = vmatprep.subr.mxu0 0.0
        %565 = vmatpush2.msra.mxu0 0.0
        %566 = vmatprep.subr.mxu0 %v424
        %567 = vmatpush2.msra.mxu0 %v423
        %568 = vmatprep.subr.mxu0 %v422
        %569 = vmatpush2.msra.mxu0 %v421
        %570 = vmatprep.subr.mxu0 %v420
        %571 = vmatpush2.msra.mxu0 %v419
        %572 = vmatprep.subr.mxu0 %v418
        %573 = vmatpush2.msra.mxu0 %v417
        %574 = vmatprep.subr.mxu0 %v416
        %575 = vmatpush2.msra.mxu0 %v415
        %576 = vmatprep.subr.mxu0 %v414
        %577 = vmatpush2.msra.mxu0 %v413
        %578 = vmatprep.subr.mxu0 %v412
        %579 = vmatpush2.msra.mxu0 %v411
        %580 = vmatprep.subr.mxu0 %v410
        %581 = vmatpush2.msra.mxu0 %v409
        %582 = vmatprep.subr.mxu0 %v408
        %583 = vmatpush2.msra.mxu0 %v407
        %584 = vmatprep.subr.mxu0 %v406
        %585 = vmatpush2.msra.mxu0 %v405
        %586 = vmatprep.mubr.f32.mxu0 %v427
        %587 = vmatmul.mubr.f32.gmra.mxu0 %v283
        %v588 = vpop.f32.mrf.mxu0
        %v589 = vadd.f32 0.0, %v588
        %v590 = vpop.f32.mrf.mxu0
        %v591 = vadd.f32 0.0, %v590
        %592 = vmatprep.mubr.f32.mxu0 %v430
        %593 = vmatmul.mubr.f32.gmra.mxu0 %v285
        %v594 = vpop.f32.mrf.mxu0
        %v595 = vadd.f32 0.0, %v594
        %v596 = vpop.f32.mrf.mxu0
        %v597 = vadd.f32 0.0, %v596
        %598 = vmatprep.mubr.f32.mxu0 %v433
        %599 = vmatmul.mubr.f32.gmra.mxu0 %v287
        %v600 = vpop.f32.mrf.mxu0
        %v601 = vadd.f32 0.0, %v600
        %v602 = vpop.f32.mrf.mxu0
        %v603 = vadd.f32 0.0, %v602
        %604 = vmatprep.mubr.f32.mxu0 %v436
        %605 = vmatmul.mubr.f32.gmra.mxu0 %v289
        %v606 = vpop.f32.mrf.mxu0
        %v607 = vadd.f32 0.0, %v606
        %v608 = vpop.f32.mrf.mxu0
        %v609 = vadd.f32 0.0, %v608
        %610 = vmatprep.mubr.f32.mxu0 %v439
        %611 = vmatmul.mubr.f32.gmra.mxu0 %v291
        %v612 = vpop.f32.mrf.mxu0
        %v613 = vadd.f32 0.0, %v612
        %v614 = vpop.f32.mrf.mxu0
        %v615 = vadd.f32 0.0, %v614
        %616 = vmatprep.mubr.f32.mxu0 %v442
        %617 = vmatmul.mubr.f32.gmra.mxu0 %v293
        %v618 = vpop.f32.mrf.mxu0
        %v619 = vadd.f32 0.0, %v618
        %v620 = vpop.f32.mrf.mxu0
        %v621 = vadd.f32 0.0, %v620
        %622 = vmatprep.mubr.f32.mxu0 %v445
        %623 = vmatmul.mubr.f32.gmra.mxu0 %v295
        %v624 = vpop.f32.mrf.mxu0
        %v625 = vadd.f32 0.0, %v624
        %v626 = vpop.f32.mrf.mxu0
        %v627 = vadd.f32 0.0, %v626
        %628 = vmatprep.mubr.f32.mxu0 %v448
        %629 = vmatmul.mubr.f32.gmra.mxu0 %v297
        %v630 = vpop.f32.mrf.mxu0
        %v631 = vadd.f32 0.0, %v630
        %v632 = vpop.f32.mrf.mxu0
        %v633 = vadd.f32 0.0, %v632
        %634 = vmatprep.mubr.f32.mxu0 %v451
        %635 = vmatmul.mubr.f32.gmra.mxu0 %v299
        %v636 = vpop.f32.mrf.mxu0
        %v637 = vadd.f32 0.0, %v636
        %v638 = vpop.f32.mrf.mxu0
        %v639 = vadd.f32 0.0, %v638
        %640 = vmatprep.mubr.f32.mxu0 %v454
        %641 = vmatmul.mubr.f32.gmra.mxu0 %v301
        %v642 = vpop.f32.mrf.mxu0
        %v643 = vadd.f32 0.0, %v642
        %v644 = vpop.f32.mrf.mxu0
        %v645 = vadd.f32 0.0, %v644
        %646 = vmatprep.mubr.f32.mxu0 %v457
        %647 = vmatmul.mubr.f32.gmra.mxu0 %v303
        %v648 = vpop.f32.mrf.mxu0
        %v649 = vadd.f32 0.0, %v648
        %v650 = vpop.f32.mrf.mxu0
        %v651 = vadd.f32 0.0, %v650
        %652 = vmatprep.mubr.f32.mxu0 %v460
        %653 = vmatmul.mubr.f32.gmra.mxu0 %v305
        %v654 = vpop.f32.mrf.mxu0
        %v655 = vadd.f32 0.0, %v654
        %v656 = vpop.f32.mrf.mxu0
        %v657 = vadd.f32 0.0, %v656
        %658 = vmatprep.mubr.f32.mxu0 %v463
        %659 = vmatmul.mubr.f32.gmra.mxu0 %v307
        %v660 = vpop.f32.mrf.mxu0
        %v661 = vadd.f32 0.0, %v660
        %v662 = vpop.f32.mrf.mxu0
        %v663 = vadd.f32 0.0, %v662
        %664 = vmatprep.mubr.f32.mxu0 %v466
        %665 = vmatmul.mubr.f32.gmra.mxu0 %v309
        %v666 = vpop.f32.mrf.mxu0
        %v667 = vadd.f32 0.0, %v666
        %v668 = vpop.f32.mrf.mxu0
        %v669 = vadd.f32 0.0, %v668
        %670 = vmatprep.mubr.f32.mxu0 %v469
        %671 = vmatmul.mubr.f32.gmra.mxu0 %v311
        %v672 = vpop.f32.mrf.mxu0
        %v673 = vadd.f32 0.0, %v672
        %v674 = vpop.f32.mrf.mxu0
        %v675 = vadd.f32 0.0, %v674
        %676 = vmatprep.mubr.f32.mxu0 %v472
        %677 = vmatmul.mubr.f32.gmra.mxu0 %v313
        %v678 = vpop.f32.mrf.mxu0
        %v679 = vadd.f32 0.0, %v678
        %v680 = vpop.f32.mrf.mxu0
        %v681 = vadd.f32 0.0, %v680
        %682 = vmatprep.mubr.f32.mxu0 %v475
        %683 = vmatmul.mubr.f32.gmra.mxu0 %v315
        %v684 = vpop.f32.mrf.mxu0
        %v685 = vadd.f32 0.0, %v684
        %v686 = vpop.f32.mrf.mxu0
        %v687 = vadd.f32 0.0, %v686
        %688 = vmatprep.mubr.f32.mxu0 %v478
        %689 = vmatmul.mubr.f32.gmra.mxu0 %v317
        %v690 = vpop.f32.mrf.mxu0
        %v691 = vadd.f32 0.0, %v690
        %v692 = vpop.f32.mrf.mxu0
        %v693 = vadd.f32 0.0, %v692
        %694 = vmatprep.mubr.f32.mxu0 %v481
        %695 = vmatmul.mubr.f32.gmra.mxu0 %v319
        %v696 = vpop.f32.mrf.mxu0
        %v697 = vadd.f32 0.0, %v696
        %v698 = vpop.f32.mrf.mxu0
        %v699 = vadd.f32 0.0, %v698
        %700 = vmatprep.mubr.f32.mxu0 %v484
        %701 = vmatmul.mubr.f32.gmra.mxu0 %v321
        %v702 = vpop.f32.mrf.mxu0
        %v703 = vadd.f32 0.0, %v702
        %v704 = vpop.f32.mrf.mxu0
        %v705 = vadd.f32 0.0, %v704
        %706 = vmatprep.mubr.f32.mxu0 %v487
        %707 = vmatmul.mubr.f32.gmra.mxu0 %v323
        %v708 = vpop.f32.mrf.mxu0
        %v709 = vadd.f32 0.0, %v708
        %v710 = vpop.f32.mrf.mxu0
        %v711 = vadd.f32 0.0, %v710
        %712 = vmatprep.mubr.f32.mxu0 %v490
        %713 = vmatmul.mubr.f32.gmra.mxu0 %v325
        %v714 = vpop.f32.mrf.mxu0
        %v715 = vadd.f32 0.0, %v714
        %v716 = vpop.f32.mrf.mxu0
        %v717 = vadd.f32 0.0, %v716
        %718 = vmatprep.mubr.f32.mxu0 %v493
        %719 = vmatmul.mubr.f32.gmra.mxu0 %v327
        %v720 = vpop.f32.mrf.mxu0
        %v721 = vadd.f32 0.0, %v720
        %v722 = vpop.f32.mrf.mxu0
        %v723 = vadd.f32 0.0, %v722
        %724 = vmatprep.mubr.f32.mxu0 %v496
        %725 = vmatmul.mubr.f32.gmra.mxu0 %v329
        %v726 = vpop.f32.mrf.mxu0
        %v727 = vadd.f32 0.0, %v726
        %v728 = vpop.f32.mrf.mxu0
        %v729 = vadd.f32 0.0, %v728
        %730 = vmatprep.mubr.f32.mxu0 %v499
        %731 = vmatmul.mubr.f32.gmra.mxu0 %v331
        %v732 = vpop.f32.mrf.mxu0
        %v733 = vadd.f32 0.0, %v732
        %v734 = vpop.f32.mrf.mxu0
        %v735 = vadd.f32 0.0, %v734
        %736 = vmatprep.mubr.f32.mxu0 %v502
        %737 = vmatmul.mubr.f32.gmra.mxu0 %v333
        %v738 = vpop.f32.mrf.mxu0
        %v739 = vadd.f32 0.0, %v738
        %v740 = vpop.f32.mrf.mxu0
        %v741 = vadd.f32 0.0, %v740
        %742 = vmatprep.mubr.f32.mxu0 %v505
        %743 = vmatmul.mubr.f32.gmra.mxu0 %v335
        %v744 = vpop.f32.mrf.mxu0
        %v745 = vadd.f32 0.0, %v744
        %v746 = vpop.f32.mrf.mxu0
        %v747 = vadd.f32 0.0, %v746
        %748 = vmatprep.mubr.f32.mxu0 %v508
        %749 = vmatmul.mubr.f32.gmra.mxu0 %v337
        %v750 = vpop.f32.mrf.mxu0
        %v751 = vadd.f32 0.0, %v750
        %v752 = vpop.f32.mrf.mxu0
        %v753 = vadd.f32 0.0, %v752
        %754 = vmatprep.mubr.f32.mxu0 %v511
        %755 = vmatmul.mubr.f32.gmra.mxu0 %v339
        %v756 = vpop.f32.mrf.mxu0
        %v757 = vadd.f32 0.0, %v756
        %v758 = vpop.f32.mrf.mxu0
        %v759 = vadd.f32 0.0, %v758
        %760 = vmatprep.mubr.f32.mxu0 %v514
        %761 = vmatmul.mubr.f32.gmra.mxu0 %v341
        %v762 = vpop.f32.mrf.mxu0
        %v763 = vadd.f32 0.0, %v762
        %v764 = vpop.f32.mrf.mxu0
        %v765 = vadd.f32 0.0, %v764
        %766 = vmatprep.mubr.f32.mxu0 %v517
        %767 = vmatmul.mubr.f32.gmra.mxu0 %v343
        %v768 = vpop.f32.mrf.mxu0
        %v769 = vadd.f32 0.0, %v768
        %v770 = vpop.f32.mrf.mxu0
        %v771 = vadd.f32 0.0, %v770
        %772 = vmatprep.mubr.f32.mxu0 %v520
        %773 = vmatmul.mubr.f32.gmra.mxu0 %v345
        %v774 = vpop.f32.mrf.mxu0
        %v775 = vadd.f32 0.0, %v774
        %v776 = vpop.f32.mrf.mxu0
        %v777 = vadd.f32 0.0, %v776
        %778 = vdwg.mxu0
        %v779 = vld [vmem:[%s1] sm:$0xff]
        %v780 = vld [vmem:[%s1 + $0x8] sm:$0xff]
        %v781 = vld [vmem:[%s1 + $0x10] sm:$0xff]
        %v782 = vld [vmem:[%s1 + $0x18] sm:$0xff]
        %v783 = vld [vmem:[%s1 + $0x20] sm:$0xff]
        %v784 = vld [vmem:[%s1 + $0x28] sm:$0xff]
        %v785 = vld [vmem:[%s1 + $0x30] sm:$0xff]
        %v786 = vld [vmem:[%s1 + $0x38] sm:$0xff]
        %v787 = vld [vmem:[%s1 + $0x40] sm:$0xff]
        %v788 = vld [vmem:[%s1 + $0x48] sm:$0xff]
        %v789 = vld [vmem:[%s1 + $0x50] sm:$0xff]
        %v790 = vld [vmem:[%s1 + $0x58] sm:$0xff]
        %v791 = vld [vmem:[%s1 + $0x60] sm:$0xff]
        %v792 = vld [vmem:[%s1 + $0x68] sm:$0xff]
        %v793 = vld [vmem:[%s1 + $0x70] sm:$0xff]
        %v794 = vld [vmem:[%s1 + $0x78] sm:$0xff]
        %v795 = vld [vmem:[%s1 + $0x80] sm:$0xff]
        %v796 = vld [vmem:[%s1 + $0x88] sm:$0xff]
        %v797 = vld [vmem:[%s1 + $0x90] sm:$0xff]
        %v798 = vld [vmem:[%s1 + $0x98] sm:$0xff]
        %v799 = vld [vmem:[%s1 + $0xa0] sm:$0xff]
        %v800 = vld [vmem:[%s1 + $0xa8] sm:$0xff]
        %v801 = vld [vmem:[%s1 + $0xb0] sm:$0xff]
        %v802 = vld [vmem:[%s1 + $0xb8] sm:$0xff]
        %v803 = vld [vmem:[%s1 + $0xc0] sm:$0xff]
        %v804 = vld [vmem:[%s1 + $0xc8] sm:$0xff]
        %v805 = vld [vmem:[%s2] sm:$0x1]
        %v807 = vlaneseq
        %v808 = vshrl.u32 %v807, 7
        %v809 = vsub.s32 0, %v808
        %v810 = vrot.slane %v805, %v809
        %812 = vmatprep.subr.mxu0 0.0
        %813 = vmatpush1.msra.mxu0 %v794
        %814 = vmatprep.subr.mxu0 0.0
        %815 = vmatpush1.msra.mxu0 %v793
        %816 = vmatprep.subr.mxu0 0.0
        %817 = vmatpush1.msra.mxu0 %v792
        %818 = vmatprep.subr.mxu0 0.0
        %819 = vmatpush1.msra.mxu0 %v791
        %820 = vmatprep.subr.mxu0 0.0
        %821 = vmatpush1.msra.mxu0 %v790
        %822 = vmatprep.subr.mxu0 0.0
        %823 = vmatpush1.msra.mxu0 %v789
        %824 = vmatprep.subr.mxu0 0.0
        %825 = vmatpush1.msra.mxu0 %v788
        %826 = vmatprep.subr.mxu0 0.0
        %827 = vmatpush1.msra.mxu0 %v787
        %828 = vmatprep.subr.mxu0 0.0
        %829 = vmatpush1.msra.mxu0 %v786
        %830 = vmatprep.subr.mxu0 0.0
        %831 = vmatpush1.msra.mxu0 %v785
        %832 = vmatprep.subr.mxu0 0.0
        %833 = vmatpush1.msra.mxu0 %v784
        %834 = vmatprep.subr.mxu0 0.0
        %835 = vmatpush1.msra.mxu0 %v783
        %836 = vmatprep.subr.mxu0 0.0
        %837 = vmatpush1.msra.mxu0 %v782
        %838 = vmatprep.subr.mxu0 0.0
        %839 = vmatpush1.msra.mxu0 %v781
        %840 = vmatprep.subr.mxu0 0.0
        %841 = vmatpush1.msra.mxu0 %v780
        %842 = vmatprep.subr.mxu0 0.0
        %843 = vmatpush1.msra.mxu0 %v779
        %844 = vmatprep.subr.mxu0 0.0
        %845 = vmatpush2.msra.mxu0 0.0
        %846 = vmatprep.subr.mxu0 0.0
        %847 = vmatpush2.msra.mxu0 0.0
        %848 = vmatprep.subr.mxu0 0.0
        %849 = vmatpush2.msra.mxu0 0.0
        %850 = vmatprep.subr.mxu0 0.0
        %851 = vmatpush2.msra.mxu0 0.0
        %852 = vmatprep.subr.mxu0 0.0
        %853 = vmatpush2.msra.mxu0 0.0
        %854 = vmatprep.subr.mxu0 0.0
        %855 = vmatpush2.msra.mxu0 0.0
        %856 = vmatprep.subr.mxu0 0.0
        %857 = vmatpush2.msra.mxu0 %v804
        %858 = vmatprep.subr.mxu0 0.0
        %859 = vmatpush2.msra.mxu0 %v803
        %860 = vmatprep.subr.mxu0 0.0
        %861 = vmatpush2.msra.mxu0 %v802
        %862 = vmatprep.subr.mxu0 0.0
        %863 = vmatpush2.msra.mxu0 %v801
        %864 = vmatprep.subr.mxu0 0.0
        %865 = vmatpush2.msra.mxu0 %v800
        %866 = vmatprep.subr.mxu0 0.0
        %867 = vmatpush2.msra.mxu0 %v799
        %868 = vmatprep.subr.mxu0 0.0
        %869 = vmatpush2.msra.mxu0 %v798
        %870 = vmatprep.subr.mxu0 0.0
        %871 = vmatpush2.msra.mxu0 %v797
        %872 = vmatprep.subr.mxu0 0.0
        %873 = vmatpush2.msra.mxu0 %v796
        %874 = vmatprep.subr.mxu0 0.0
        %875 = vmatpush2.msra.mxu0 %v795
        %876 = vmatprep.mubr.f32.mxu0 %v427
        %877 = vmatmul.mubr.f32.gmra.mxu0 %v283
        %v878 = vpop.f32.mrf.mxu0
        %v879 = vadd.f32 %v810, %v878
        %v880 = vpop.f32.mrf.mxu0
        %881 = vmatprep.mubr.f32.mxu0 %v430
        %882 = vmatmul.mubr.f32.gmra.mxu0 %v285
        %v883 = vpop.f32.mrf.mxu0
        %v884 = vadd.f32 %v810, %v883
        %v885 = vpop.f32.mrf.mxu0
        %886 = vmatprep.mubr.f32.mxu0 %v433
        %887 = vmatmul.mubr.f32.gmra.mxu0 %v287
        %v888 = vpop.f32.mrf.mxu0
        %v889 = vadd.f32 %v810, %v888
        %v890 = vpop.f32.mrf.mxu0
        %891 = vmatprep.mubr.f32.mxu0 %v436
        %892 = vmatmul.mubr.f32.gmra.mxu0 %v289
        %v893 = vpop.f32.mrf.mxu0
        %v894 = vadd.f32 %v810, %v893
        %v895 = vpop.f32.mrf.mxu0
        %896 = vmatprep.mubr.f32.mxu0 %v439
        %897 = vmatmul.mubr.f32.gmra.mxu0 %v291
        %v898 = vpop.f32.mrf.mxu0
        %v899 = vadd.f32 %v810, %v898
        %v900 = vpop.f32.mrf.mxu0
        %901 = vmatprep.mubr.f32.mxu0 %v442
        %902 = vmatmul.mubr.f32.gmra.mxu0 %v293
        %v903 = vpop.f32.mrf.mxu0
        %v904 = vadd.f32 %v810, %v903
        %v905 = vpop.f32.mrf.mxu0
        %906 = vmatprep.mubr.f32.mxu0 %v445
        %907 = vmatmul.mubr.f32.gmra.mxu0 %v295
        %v908 = vpop.f32.mrf.mxu0
        %v909 = vadd.f32 %v810, %v908
        %v910 = vpop.f32.mrf.mxu0
        %911 = vmatprep.mubr.f32.mxu0 %v448
        %912 = vmatmul.mubr.f32.gmra.mxu0 %v297
        %v913 = vpop.f32.mrf.mxu0
        %v914 = vadd.f32 %v810, %v913
        %v915 = vpop.f32.mrf.mxu0
        %916 = vmatprep.mubr.f32.mxu0 %v451
        %917 = vmatmul.mubr.f32.gmra.mxu0 %v299
        %v918 = vpop.f32.mrf.mxu0
        %v919 = vadd.f32 %v810, %v918
        %v920 = vpop.f32.mrf.mxu0
        %921 = vmatprep.mubr.f32.mxu0 %v454
        %922 = vmatmul.mubr.f32.gmra.mxu0 %v301
        %v923 = vpop.f32.mrf.mxu0
        %v924 = vadd.f32 %v810, %v923
        %v925 = vpop.f32.mrf.mxu0
        %926 = vmatprep.mubr.f32.mxu0 %v457
        %927 = vmatmul.mubr.f32.gmra.mxu0 %v303
        %v928 = vpop.f32.mrf.mxu0
        %v929 = vadd.f32 %v810, %v928
        %v930 = vpop.f32.mrf.mxu0
        %931 = vmatprep.mubr.f32.mxu0 %v460
        %932 = vmatmul.mubr.f32.gmra.mxu0 %v305
        %v933 = vpop.f32.mrf.mxu0
        %v934 = vadd.f32 %v810, %v933
        %v935 = vpop.f32.mrf.mxu0
        %936 = vmatprep.mubr.f32.mxu0 %v463
        %937 = vmatmul.mubr.f32.gmra.mxu0 %v307
        %v938 = vpop.f32.mrf.mxu0
        %v939 = vadd.f32 %v810, %v938
        %v940 = vpop.f32.mrf.mxu0
        %941 = vmatprep.mubr.f32.mxu0 %v466
        %942 = vmatmul.mubr.f32.gmra.mxu0 %v309
        %v943 = vpop.f32.mrf.mxu0
        %v944 = vadd.f32 %v810, %v943
        %v945 = vpop.f32.mrf.mxu0
        %946 = vmatprep.mubr.f32.mxu0 %v469
        %947 = vmatmul.mubr.f32.gmra.mxu0 %v311
        %v948 = vpop.f32.mrf.mxu0
        %v949 = vadd.f32 %v810, %v948
        %v950 = vpop.f32.mrf.mxu0
        %951 = vmatprep.mubr.f32.mxu0 %v472
        %952 = vmatmul.mubr.f32.gmra.mxu0 %v313
        %v953 = vpop.f32.mrf.mxu0
        %v954 = vadd.f32 %v810, %v953
        %v955 = vpop.f32.mrf.mxu0
        %956 = vmatprep.mubr.f32.mxu0 %v475
        %957 = vmatmul.mubr.f32.gmra.mxu0 %v315
        %v958 = vpop.f32.mrf.mxu0
        %v959 = vadd.f32 %v810, %v958
        %v960 = vpop.f32.mrf.mxu0
        %961 = vmatprep.mubr.f32.mxu0 %v478
        %962 = vmatmul.mubr.f32.gmra.mxu0 %v317
        %v963 = vpop.f32.mrf.mxu0
        %v964 = vadd.f32 %v810, %v963
        %v965 = vpop.f32.mrf.mxu0
        %966 = vmatprep.mubr.f32.mxu0 %v481
        %967 = vmatmul.mubr.f32.gmra.mxu0 %v319
        %v968 = vpop.f32.mrf.mxu0
        %v969 = vadd.f32 %v810, %v968
        %v970 = vpop.f32.mrf.mxu0
        %971 = vmatprep.mubr.f32.mxu0 %v484
        %972 = vmatmul.mubr.f32.gmra.mxu0 %v321
        %v973 = vpop.f32.mrf.mxu0
        %v974 = vadd.f32 %v810, %v973
        %v975 = vpop.f32.mrf.mxu0
        %976 = vmatprep.mubr.f32.mxu0 %v487
        %977 = vmatmul.mubr.f32.gmra.mxu0 %v323
        %v978 = vpop.f32.mrf.mxu0
        %v979 = vadd.f32 %v810, %v978
        %v980 = vpop.f32.mrf.mxu0
        %981 = vmatprep.mubr.f32.mxu0 %v490
        %982 = vmatmul.mubr.f32.gmra.mxu0 %v325
        %v983 = vpop.f32.mrf.mxu0
        %v984 = vadd.f32 %v810, %v983
        %v985 = vpop.f32.mrf.mxu0
        %986 = vmatprep.mubr.f32.mxu0 %v493
        %987 = vmatmul.mubr.f32.gmra.mxu0 %v327
        %v988 = vpop.f32.mrf.mxu0
        %v989 = vadd.f32 %v810, %v988
        %v990 = vpop.f32.mrf.mxu0
        %991 = vmatprep.mubr.f32.mxu0 %v496
        %992 = vmatmul.mubr.f32.gmra.mxu0 %v329
        %v993 = vpop.f32.mrf.mxu0
        %v994 = vadd.f32 %v810, %v993
        %v995 = vpop.f32.mrf.mxu0
        %996 = vmatprep.mubr.f32.mxu0 %v499
        %997 = vmatmul.mubr.f32.gmra.mxu0 %v331
        %v998 = vpop.f32.mrf.mxu0
        %v999 = vadd.f32 %v810, %v998
        %v1000 = vpop.f32.mrf.mxu0
        %1001 = vmatprep.mubr.f32.mxu0 %v502
        %1002 = vmatmul.mubr.f32.gmra.mxu0 %v333
        %v1003 = vpop.f32.mrf.mxu0
        %v1004 = vadd.f32 %v810, %v1003
        %v1005 = vpop.f32.mrf.mxu0
        %1006 = vmatprep.mubr.f32.mxu0 %v505
        %1007 = vmatmul.mubr.f32.gmra.mxu0 %v335
        %v1008 = vpop.f32.mrf.mxu0
        %v1009 = vadd.f32 %v810, %v1008
        %v1010 = vpop.f32.mrf.mxu0
        %1011 = vmatprep.mubr.f32.mxu0 %v508
        %1012 = vmatmul.mubr.f32.gmra.mxu0 %v337
        %v1013 = vpop.f32.mrf.mxu0
        %v1014 = vadd.f32 %v810, %v1013
        %v1015 = vpop.f32.mrf.mxu0
        %1016 = vmatprep.mubr.f32.mxu0 %v511
        %1017 = vmatmul.mubr.f32.gmra.mxu0 %v339
        %v1018 = vpop.f32.mrf.mxu0
        %v1019 = vadd.f32 %v810, %v1018
        %v1020 = vpop.f32.mrf.mxu0
        %1021 = vmatprep.mubr.f32.mxu0 %v514
        %1022 = vmatmul.mubr.f32.gmra.mxu0 %v341
        %v1023 = vpop.f32.mrf.mxu0
        %v1024 = vadd.f32 %v810, %v1023
        %v1025 = vpop.f32.mrf.mxu0
        %1026 = vmatprep.mubr.f32.mxu0 %v517
        %1027 = vmatmul.mubr.f32.gmra.mxu0 %v343
        %v1028 = vpop.f32.mrf.mxu0
        %v1029 = vadd.f32 %v810, %v1028
        %v1030 = vpop.f32.mrf.mxu0
        %1031 = vmatprep.mubr.f32.mxu0 %v520
        %1032 = vmatmul.mubr.f32.gmra.mxu0 %v345
        %v1033 = vpop.f32.mrf.mxu0
        %v1034 = vadd.f32 %v810, %v1033
        %v1035 = vpop.f32.mrf.mxu0
        %1036 = vdwg.mxu0
        %v1037 = vld [vmem:[%s3] sm:$0xff]
        %v1038 = vld [vmem:[%s3 + $0x8] sm:$0xff]
        %v1039 = vld [vmem:[%s3 + $0x10] sm:$0xff]
        %v1040 = vld [vmem:[%s3 + $0x18] sm:$0xff]
        %v1041 = vld [vmem:[%s3 + $0x20] sm:$0xff]
        %v1042 = vld [vmem:[%s3 + $0x28] sm:$0xff]
        %v1043 = vld [vmem:[%s3 + $0x30] sm:$0xff]
        %v1044 = vld [vmem:[%s3 + $0x38] sm:$0xff]
        %v1045 = vld [vmem:[%s3 + $0x40] sm:$0xff]
        %v1046 = vld [vmem:[%s3 + $0x48] sm:$0xff]
        %v1047 = vld [vmem:[%s3 + $0x50] sm:$0xff]
        %v1048 = vld [vmem:[%s3 + $0x58] sm:$0xff]
        %v1049 = vld [vmem:[%s3 + $0x60] sm:$0xff]
        %v1050 = vld [vmem:[%s3 + $0x68] sm:$0xff]
        %v1051 = vld [vmem:[%s3 + $0x70] sm:$0xff]
        %v1052 = vld [vmem:[%s3 + $0x78] sm:$0xff]
        %v1053 = vld [vmem:[%s3 + $0x80] sm:$0xff]
        %v1054 = vld [vmem:[%s3 + $0x88] sm:$0xff]
        %v1055 = vld [vmem:[%s3 + $0x90] sm:$0xff]
        %v1056 = vld [vmem:[%s3 + $0x98] sm:$0xff]
        %v1057 = vld [vmem:[%s3 + $0xa0] sm:$0xff]
        %v1058 = vld [vmem:[%s3 + $0xa8] sm:$0xff]
        %v1059 = vld [vmem:[%s3 + $0xb0] sm:$0xff]
        %v1060 = vld [vmem:[%s3 + $0xb8] sm:$0xff]
        %v1061 = vld [vmem:[%s3 + $0xc0] sm:$0xff]
        %v1062 = vld [vmem:[%s3 + $0xc8] sm:$0xff]
        %v1063 = vld [vmem:[%s3 + $0xd0] sm:$0xff]
        %v1064 = vld [vmem:[%s3 + $0xd8] sm:$0xff]
        %v1065 = vld [vmem:[%s3 + $0xe0] sm:$0xff]
        %v1066 = vld [vmem:[%s3 + $0xe8] sm:$0xff]
        %v1067 = vld [vmem:[%s3 + $0xf0] sm:$0xff]
        %v1068 = vld [vmem:[%s3 + $0xf8] sm:$0xff]
        %v1069 = vld [vmem:[%s4] sm:$0x3]
        %v1071 = vlaneseq
        %v1072 = vshrl.u32 %v1071, 7
        %v1073 = vsub.s32 0, %v1072
        %v1074 = vrot.slane %v1069, %v1073
        %v1075 = vlaneseq
        %v1076 = vshrl.u32 %v1075, 7
        %v1077 = vsub.s32 1, %v1076
        %v1078 = vrot.slane %v1069, %v1077
        %1081 = vmatprep.subr.mxu0 %v1068
        %1082 = vmatpush1.msra.mxu0 %v1067
        %1083 = vmatprep.subr.mxu0 %v1066
        %1084 = vmatpush1.msra.mxu0 %v1065
        %1085 = vmatprep.subr.mxu0 %v1064
        %1086 = vmatpush1.msra.mxu0 %v1063
        %1087 = vmatprep.subr.mxu0 %v1062
        %1088 = vmatpush1.msra.mxu0 %v1061
        %1089 = vmatprep.subr.mxu0 %v1060
        %1090 = vmatpush1.msra.mxu0 %v1059
        %1091 = vmatprep.subr.mxu0 %v1058
        %1092 = vmatpush1.msra.mxu0 %v1057
        %1093 = vmatprep.subr.mxu0 %v1056
        %1094 = vmatpush1.msra.mxu0 %v1055
        %1095 = vmatprep.subr.mxu0 %v1054
        %1096 = vmatpush1.msra.mxu0 %v1053
        %1097 = vmatprep.subr.mxu0 %v1052
        %1098 = vmatpush1.msra.mxu0 %v1051
        %1099 = vmatprep.subr.mxu0 %v1050
        %1100 = vmatpush1.msra.mxu0 %v1049
        %1101 = vmatprep.subr.mxu0 %v1048
        %1102 = vmatpush1.msra.mxu0 %v1047
        %1103 = vmatprep.subr.mxu0 %v1046
        %1104 = vmatpush1.msra.mxu0 %v1045
        %1105 = vmatprep.subr.mxu0 %v1044
        %1106 = vmatpush1.msra.mxu0 %v1043
        %1107 = vmatprep.subr.mxu0 %v1042
        %1108 = vmatpush1.msra.mxu0 %v1041
        %1109 = vmatprep.subr.mxu0 %v1040
        %1110 = vmatpush1.msra.mxu0 %v1039
        %1111 = vmatprep.subr.mxu0 %v1038
        %1112 = vmatpush1.msra.mxu0 %v1037
        %1113 = vmatprep.subr.mxu0 0.0
        %1114 = vmatpush2.msra.mxu0 0.0
        %1115 = vmatprep.subr.mxu0 0.0
        %1116 = vmatpush2.msra.mxu0 0.0
        %1117 = vmatprep.subr.mxu0 0.0
        %1118 = vmatpush2.msra.mxu0 0.0
        %1119 = vmatprep.subr.mxu0 0.0
        %1120 = vmatpush2.msra.mxu0 0.0
        %1121 = vmatprep.subr.mxu0 0.0
        %1122 = vmatpush2.msra.mxu0 0.0
        %1123 = vmatprep.subr.mxu0 0.0
        %1124 = vmatpush2.msra.mxu0 0.0
        %1125 = vmatprep.subr.mxu0 0.0
        %1126 = vmatpush2.msra.mxu0 0.0
        %1127 = vmatprep.subr.mxu0 0.0
        %1128 = vmatpush2.msra.mxu0 0.0
        %1129 = vmatprep.subr.mxu0 0.0
        %1130 = vmatpush2.msra.mxu0 0.0
        %1131 = vmatprep.subr.mxu0 0.0
        %1132 = vmatpush2.msra.mxu0 0.0
        %1133 = vmatprep.subr.mxu0 0.0
        %1134 = vmatpush2.msra.mxu0 0.0
        %1135 = vmatprep.subr.mxu0 0.0
        %1136 = vmatpush2.msra.mxu0 0.0
        %1137 = vmatprep.subr.mxu0 0.0
        %1138 = vmatpush2.msra.mxu0 0.0
        %1139 = vmatprep.subr.mxu0 0.0
        %1140 = vmatpush2.msra.mxu0 0.0
        %1141 = vmatprep.subr.mxu0 0.0
        %1142 = vmatpush2.msra.mxu0 0.0
        %1143 = vmatprep.subr.mxu0 0.0
        %1144 = vmatpush2.msra.mxu0 0.0
        %1145 = vmatprep.mubr.f32.mxu0 0.0
        %1146 = vmatmul.mubr.f32.gmra.mxu0 %v879
        %v1147 = vpop.f32.mrf.mxu0
        %v1148 = vadd.f32 %v1074, %v1147
        %v1149 = vpop.f32.mrf.mxu0
        %v1150 = vadd.f32 %v1078, %v1149
        %1151 = vmatprep.mubr.f32.mxu0 0.0
        %1152 = vmatmul.mubr.f32.gmra.mxu0 %v884
        %v1153 = vpop.f32.mrf.mxu0
        %v1154 = vadd.f32 %v1074, %v1153
        %v1155 = vpop.f32.mrf.mxu0
        %v1156 = vadd.f32 %v1078, %v1155
        %1157 = vmatprep.mubr.f32.mxu0 0.0
        %1158 = vmatmul.mubr.f32.gmra.mxu0 %v889
        %v1159 = vpop.f32.mrf.mxu0
        %v1160 = vadd.f32 %v1074, %v1159
        %v1161 = vpop.f32.mrf.mxu0
        %v1162 = vadd.f32 %v1078, %v1161
        %1163 = vmatprep.mubr.f32.mxu0 0.0
        %1164 = vmatmul.mubr.f32.gmra.mxu0 %v894
        %v1165 = vpop.f32.mrf.mxu0
        %v1166 = vadd.f32 %v1074, %v1165
        %v1167 = vpop.f32.mrf.mxu0
        %v1168 = vadd.f32 %v1078, %v1167
        %1169 = vmatprep.mubr.f32.mxu0 0.0
        %1170 = vmatmul.mubr.f32.gmra.mxu0 %v899
        %v1171 = vpop.f32.mrf.mxu0
        %v1172 = vadd.f32 %v1074, %v1171
        %v1173 = vpop.f32.mrf.mxu0
        %v1174 = vadd.f32 %v1078, %v1173
        %1175 = vmatprep.mubr.f32.mxu0 0.0
        %1176 = vmatmul.mubr.f32.gmra.mxu0 %v904
        %v1177 = vpop.f32.mrf.mxu0
        %v1178 = vadd.f32 %v1074, %v1177
        %v1179 = vpop.f32.mrf.mxu0
        %v1180 = vadd.f32 %v1078, %v1179
        %1181 = vmatprep.mubr.f32.mxu0 0.0
        %1182 = vmatmul.mubr.f32.gmra.mxu0 %v909
        %v1183 = vpop.f32.mrf.mxu0
        %v1184 = vadd.f32 %v1074, %v1183
        %v1185 = vpop.f32.mrf.mxu0
        %v1186 = vadd.f32 %v1078, %v1185
        %1187 = vmatprep.mubr.f32.mxu0 0.0
        %1188 = vmatmul.mubr.f32.gmra.mxu0 %v914
        %v1189 = vpop.f32.mrf.mxu0
        %v1190 = vadd.f32 %v1074, %v1189
        %v1191 = vpop.f32.mrf.mxu0
        %v1192 = vadd.f32 %v1078, %v1191
        %1193 = vmatprep.mubr.f32.mxu0 0.0
        %1194 = vmatmul.mubr.f32.gmra.mxu0 %v919
        %v1195 = vpop.f32.mrf.mxu0
        %v1196 = vadd.f32 %v1074, %v1195
        %v1197 = vpop.f32.mrf.mxu0
        %v1198 = vadd.f32 %v1078, %v1197
        %1199 = vmatprep.mubr.f32.mxu0 0.0
        %1200 = vmatmul.mubr.f32.gmra.mxu0 %v924
        %v1201 = vpop.f32.mrf.mxu0
        %v1202 = vadd.f32 %v1074, %v1201
        %v1203 = vpop.f32.mrf.mxu0
        %v1204 = vadd.f32 %v1078, %v1203
        %1205 = vmatprep.mubr.f32.mxu0 0.0
        %1206 = vmatmul.mubr.f32.gmra.mxu0 %v929
        %v1207 = vpop.f32.mrf.mxu0
        %v1208 = vadd.f32 %v1074, %v1207
        %v1209 = vpop.f32.mrf.mxu0
        %v1210 = vadd.f32 %v1078, %v1209
        %1211 = vmatprep.mubr.f32.mxu0 0.0
        %1212 = vmatmul.mubr.f32.gmra.mxu0 %v934
        %v1213 = vpop.f32.mrf.mxu0
        %v1214 = vadd.f32 %v1074, %v1213
        %v1215 = vpop.f32.mrf.mxu0
        %v1216 = vadd.f32 %v1078, %v1215
        %1217 = vmatprep.mubr.f32.mxu0 0.0
        %1218 = vmatmul.mubr.f32.gmra.mxu0 %v939
        %v1219 = vpop.f32.mrf.mxu0
        %v1220 = vadd.f32 %v1074, %v1219
        %v1221 = vpop.f32.mrf.mxu0
        %v1222 = vadd.f32 %v1078, %v1221
        %1223 = vmatprep.mubr.f32.mxu0 0.0
        %1224 = vmatmul.mubr.f32.gmra.mxu0 %v944
        %v1225 = vpop.f32.mrf.mxu0
        %v1226 = vadd.f32 %v1074, %v1225
        %v1227 = vpop.f32.mrf.mxu0
        %v1228 = vadd.f32 %v1078, %v1227
        %1229 = vmatprep.mubr.f32.mxu0 0.0
        %1230 = vmatmul.mubr.f32.gmra.mxu0 %v949
        %v1231 = vpop.f32.mrf.mxu0
        %v1232 = vadd.f32 %v1074, %v1231
        %v1233 = vpop.f32.mrf.mxu0
        %v1234 = vadd.f32 %v1078, %v1233
        %1235 = vmatprep.mubr.f32.mxu0 0.0
        %1236 = vmatmul.mubr.f32.gmra.mxu0 %v954
        %v1237 = vpop.f32.mrf.mxu0
        %v1238 = vadd.f32 %v1074, %v1237
        %v1239 = vpop.f32.mrf.mxu0
        %v1240 = vadd.f32 %v1078, %v1239
        %1241 = vmatprep.mubr.f32.mxu0 0.0
        %1242 = vmatmul.mubr.f32.gmra.mxu0 %v959
        %v1243 = vpop.f32.mrf.mxu0
        %v1244 = vadd.f32 %v1074, %v1243
        %v1245 = vpop.f32.mrf.mxu0
        %v1246 = vadd.f32 %v1078, %v1245
        %1247 = vmatprep.mubr.f32.mxu0 0.0
        %1248 = vmatmul.mubr.f32.gmra.mxu0 %v964
        %v1249 = vpop.f32.mrf.mxu0
        %v1250 = vadd.f32 %v1074, %v1249
        %v1251 = vpop.f32.mrf.mxu0
        %v1252 = vadd.f32 %v1078, %v1251
        %1253 = vmatprep.mubr.f32.mxu0 0.0
        %1254 = vmatmul.mubr.f32.gmra.mxu0 %v969
        %v1255 = vpop.f32.mrf.mxu0
        %v1256 = vadd.f32 %v1074, %v1255
        %v1257 = vpop.f32.mrf.mxu0
        %v1258 = vadd.f32 %v1078, %v1257
        %1259 = vmatprep.mubr.f32.mxu0 0.0
        %1260 = vmatmul.mubr.f32.gmra.mxu0 %v974
        %v1261 = vpop.f32.mrf.mxu0
        %v1262 = vadd.f32 %v1074, %v1261
        %v1263 = vpop.f32.mrf.mxu0
        %v1264 = vadd.f32 %v1078, %v1263
        %1265 = vmatprep.mubr.f32.mxu0 0.0
        %1266 = vmatmul.mubr.f32.gmra.mxu0 %v979
        %v1267 = vpop.f32.mrf.mxu0
        %v1268 = vadd.f32 %v1074, %v1267
        %v1269 = vpop.f32.mrf.mxu0
        %v1270 = vadd.f32 %v1078, %v1269
        %1271 = vmatprep.mubr.f32.mxu0 0.0
        %1272 = vmatmul.mubr.f32.gmra.mxu0 %v984
        %v1273 = vpop.f32.mrf.mxu0
        %v1274 = vadd.f32 %v1074, %v1273
        %v1275 = vpop.f32.mrf.mxu0
        %v1276 = vadd.f32 %v1078, %v1275
        %1277 = vmatprep.mubr.f32.mxu0 0.0
        %1278 = vmatmul.mubr.f32.gmra.mxu0 %v989
        %v1279 = vpop.f32.mrf.mxu0
        %v1280 = vadd.f32 %v1074, %v1279
        %v1281 = vpop.f32.mrf.mxu0
        %v1282 = vadd.f32 %v1078, %v1281
        %1283 = vmatprep.mubr.f32.mxu0 0.0
        %1284 = vmatmul.mubr.f32.gmra.mxu0 %v994
        %v1285 = vpop.f32.mrf.mxu0
        %v1286 = vadd.f32 %v1074, %v1285
        %v1287 = vpop.f32.mrf.mxu0
        %v1288 = vadd.f32 %v1078, %v1287
        %1289 = vmatprep.mubr.f32.mxu0 0.0
        %1290 = vmatmul.mubr.f32.gmra.mxu0 %v999
        %v1291 = vpop.f32.mrf.mxu0
        %v1292 = vadd.f32 %v1074, %v1291
        %v1293 = vpop.f32.mrf.mxu0
        %v1294 = vadd.f32 %v1078, %v1293
        %1295 = vmatprep.mubr.f32.mxu0 0.0
        %1296 = vmatmul.mubr.f32.gmra.mxu0 %v1004
        %v1297 = vpop.f32.mrf.mxu0
        %v1298 = vadd.f32 %v1074, %v1297
        %v1299 = vpop.f32.mrf.mxu0
        %v1300 = vadd.f32 %v1078, %v1299
        %1301 = vmatprep.mubr.f32.mxu0 0.0
        %1302 = vmatmul.mubr.f32.gmra.mxu0 %v1009
        %v1303 = vpop.f32.mrf.mxu0
        %v1304 = vadd.f32 %v1074, %v1303
        %v1305 = vpop.f32.mrf.mxu0
        %v1306 = vadd.f32 %v1078, %v1305
        %1307 = vmatprep.mubr.f32.mxu0 0.0
        %1308 = vmatmul.mubr.f32.gmra.mxu0 %v1014
        %v1309 = vpop.f32.mrf.mxu0
        %v1310 = vadd.f32 %v1074, %v1309
        %v1311 = vpop.f32.mrf.mxu0
        %v1312 = vadd.f32 %v1078, %v1311
        %1313 = vmatprep.mubr.f32.mxu0 0.0
        %1314 = vmatmul.mubr.f32.gmra.mxu0 %v1019
        %v1315 = vpop.f32.mrf.mxu0
        %v1316 = vadd.f32 %v1074, %v1315
        %v1317 = vpop.f32.mrf.mxu0
        %v1318 = vadd.f32 %v1078, %v1317
        %1319 = vmatprep.mubr.f32.mxu0 0.0
        %1320 = vmatmul.mubr.f32.gmra.mxu0 %v1024
        %v1321 = vpop.f32.mrf.mxu0
        %v1322 = vadd.f32 %v1074, %v1321
        %v1323 = vpop.f32.mrf.mxu0
        %v1324 = vadd.f32 %v1078, %v1323
        %1325 = vmatprep.mubr.f32.mxu0 0.0
        %1326 = vmatmul.mubr.f32.gmra.mxu0 %v1029
        %v1327 = vpop.f32.mrf.mxu0
        %v1328 = vadd.f32 %v1074, %v1327
        %v1329 = vpop.f32.mrf.mxu0
        %v1330 = vadd.f32 %v1078, %v1329
        %1331 = vmatprep.mubr.f32.mxu0 0.0
        %1332 = vmatmul.mubr.f32.gmra.mxu0 %v1034
        %v1333 = vpop.f32.mrf.mxu0
        %v1334 = vadd.f32 %v1074, %v1333
        %v1335 = vpop.f32.mrf.mxu0
        %v1336 = vadd.f32 %v1078, %v1335
        %1337 = vdwg.mxu0
        %v1338 = vmul.f32 %v1148, %v283
        %v1339 = vmul.f32 %v1150, %v284
        %v1340 = vmul.f32 %v1154, %v285
        %v1341 = vmul.f32 %v1156, %v286
        %v1342 = vmul.f32 %v1160, %v287
        %v1343 = vmul.f32 %v1162, %v288
        %v1344 = vmul.f32 %v1166, %v289
        %v1345 = vmul.f32 %v1168, %v290
        %v1346 = vmul.f32 %v1172, %v291
        %v1347 = vmul.f32 %v1174, %v292
        %v1348 = vmul.f32 %v1178, %v293
        %v1349 = vmul.f32 %v1180, %v294
        %v1350 = vmul.f32 %v1184, %v295
        %v1351 = vmul.f32 %v1186, %v296
        %v1352 = vmul.f32 %v1190, %v297
        %v1353 = vmul.f32 %v1192, %v298
        %v1354 = vmul.f32 %v1196, %v299
        %v1355 = vmul.f32 %v1198, %v300
        %v1356 = vmul.f32 %v1202, %v301
        %v1357 = vmul.f32 %v1204, %v302
        %v1358 = vmul.f32 %v1208, %v303
        %v1359 = vmul.f32 %v1210, %v304
        %v1360 = vmul.f32 %v1214, %v305
        %v1361 = vmul.f32 %v1216, %v306
        %v1362 = vmul.f32 %v1220, %v307
        %v1363 = vmul.f32 %v1222, %v308
        %v1364 = vmul.f32 %v1226, %v309
        %v1365 = vmul.f32 %v1228, %v310
        %v1366 = vmul.f32 %v1232, %v311
        %v1367 = vmul.f32 %v1234, %v312
        %v1368 = vmul.f32 %v1238, %v313
        %v1369 = vmul.f32 %v1240, %v314
        %v1370 = vmul.f32 %v1244, %v315
        %v1371 = vmul.f32 %v1246, %v316
        %v1372 = vmul.f32 %v1250, %v317
        %v1373 = vmul.f32 %v1252, %v318
        %v1374 = vmul.f32 %v1256, %v319
        %v1375 = vmul.f32 %v1258, %v320
        %v1376 = vmul.f32 %v1262, %v321
        %v1377 = vmul.f32 %v1264, %v322
        %v1378 = vmul.f32 %v1268, %v323
        %v1379 = vmul.f32 %v1270, %v324
        %v1380 = vmul.f32 %v1274, %v325
        %v1381 = vmul.f32 %v1276, %v326
        %v1382 = vmul.f32 %v1280, %v327
        %v1383 = vmul.f32 %v1282, %v328
        %v1384 = vmul.f32 %v1286, %v329
        %v1385 = vmul.f32 %v1288, %v330
        %v1386 = vmul.f32 %v1292, %v331
        %v1387 = vmul.f32 %v1294, %v332
        %v1388 = vmul.f32 %v1298, %v333
        %v1389 = vmul.f32 %v1300, %v334
        %v1390 = vmul.f32 %v1304, %v335
        %v1391 = vmul.f32 %v1306, %v336
        %v1392 = vmul.f32 %v1310, %v337
        %v1393 = vmul.f32 %v1312, %v338
        %v1394 = vmul.f32 %v1316, %v339
        %v1395 = vmul.f32 %v1318, %v340
        %v1396 = vmul.f32 %v1322, %v341
        %v1397 = vmul.f32 %v1324, %v342
        %v1398 = vmul.f32 %v1328, %v343
        %v1399 = vmul.f32 %v1330, %v344
        %v1400 = vmul.f32 %v1334, %v345
        %v1401 = vmul.f32 %v1336, %v346
        %v1403 = vsel %vm425, %v1339, 0
        %v1406 = vsel %vm425, %v1341, 0
        %v1409 = vsel %vm425, %v1343, 0
        %v1412 = vsel %vm425, %v1345, 0
        %v1415 = vsel %vm425, %v1347, 0
        %v1418 = vsel %vm425, %v1349, 0
        %v1421 = vsel %vm425, %v1351, 0
        %v1424 = vsel %vm425, %v1353, 0
        %v1427 = vsel %vm425, %v1355, 0
        %v1430 = vsel %vm425, %v1357, 0
        %v1433 = vsel %vm425, %v1359, 0
        %v1436 = vsel %vm425, %v1361, 0
        %v1439 = vsel %vm425, %v1363, 0
        %v1442 = vsel %vm425, %v1365, 0
        %v1445 = vsel %vm425, %v1367, 0
        %v1448 = vsel %vm425, %v1369, 0
        %v1451 = vsel %vm425, %v1371, 0
        %v1454 = vsel %vm425, %v1373, 0
        %v1457 = vsel %vm425, %v1375, 0
        %v1460 = vsel %vm425, %v1377, 0
        %v1463 = vsel %vm425, %v1379, 0
        %v1466 = vsel %vm425, %v1381, 0
        %v1469 = vsel %vm425, %v1383, 0
        %v1472 = vsel %vm425, %v1385, 0
        %v1475 = vsel %vm425, %v1387, 0
        %v1478 = vsel %vm425, %v1389, 0
        %v1481 = vsel %vm425, %v1391, 0
        %v1484 = vsel %vm425, %v1393, 0
        %v1487 = vsel %vm425, %v1395, 0
        %v1490 = vsel %vm425, %v1397, 0
        %v1493 = vsel %vm425, %v1399, 0
        %v1496 = vsel %vm425, %v1401, 0
        %1498 = vmatprep.subr.mxu0 0.0
        %1499 = vmatpush1.msra.mxu0 %v362
        %1500 = vmatprep.subr.mxu0 0.0
        %1501 = vmatpush1.msra.mxu0 %v361
        %1502 = vmatprep.subr.mxu0 0.0
        %1503 = vmatpush1.msra.mxu0 %v360
        %1504 = vmatprep.subr.mxu0 0.0
        %1505 = vmatpush1.msra.mxu0 %v359
        %1506 = vmatprep.subr.mxu0 0.0
        %1507 = vmatpush1.msra.mxu0 %v358
        %1508 = vmatprep.subr.mxu0 0.0
        %1509 = vmatpush1.msra.mxu0 %v357
        %1510 = vmatprep.subr.mxu0 0.0
        %1511 = vmatpush1.msra.mxu0 %v356
        %1512 = vmatprep.subr.mxu0 0.0
        %1513 = vmatpush1.msra.mxu0 %v355
        %1514 = vmatprep.subr.mxu0 0.0
        %1515 = vmatpush1.msra.mxu0 %v354
        %1516 = vmatprep.subr.mxu0 0.0
        %1517 = vmatpush1.msra.mxu0 %v353
        %1518 = vmatprep.subr.mxu0 0.0
        %1519 = vmatpush1.msra.mxu0 %v352
        %1520 = vmatprep.subr.mxu0 0.0
        %1521 = vmatpush1.msra.mxu0 %v351
        %1522 = vmatprep.subr.mxu0 0.0
        %1523 = vmatpush1.msra.mxu0 %v350
        %1524 = vmatprep.subr.mxu0 0.0
        %1525 = vmatpush1.msra.mxu0 %v349
        %1526 = vmatprep.subr.mxu0 0.0
        %1527 = vmatpush1.msra.mxu0 %v348
        %1528 = vmatprep.subr.mxu0 0.0
        %1529 = vmatpush1.msra.mxu0 %v347
        %1530 = vmatprep.subr.mxu0 0.0
        %1531 = vmatpush2.msra.mxu0 0.0
        %1532 = vmatprep.subr.mxu0 0.0
        %1533 = vmatpush2.msra.mxu0 0.0
        %1534 = vmatprep.subr.mxu0 0.0
        %1535 = vmatpush2.msra.mxu0 0.0
        %1536 = vmatprep.subr.mxu0 0.0
        %1537 = vmatpush2.msra.mxu0 0.0
        %1538 = vmatprep.subr.mxu0 0.0
        %1539 = vmatpush2.msra.mxu0 0.0
        %1540 = vmatprep.subr.mxu0 0.0
        %1541 = vmatpush2.msra.mxu0 0.0
        %1542 = vmatprep.subr.mxu0 0.0
        %1543 = vmatpush2.msra.mxu0 %v372
        %1544 = vmatprep.subr.mxu0 0.0
        %1545 = vmatpush2.msra.mxu0 %v371
        %1546 = vmatprep.subr.mxu0 0.0
        %1547 = vmatpush2.msra.mxu0 %v370
        %1548 = vmatprep.subr.mxu0 0.0
        %1549 = vmatpush2.msra.mxu0 %v369
        %1550 = vmatprep.subr.mxu0 0.0
        %1551 = vmatpush2.msra.mxu0 %v368
        %1552 = vmatprep.subr.mxu0 0.0
        %1553 = vmatpush2.msra.mxu0 %v367
        %1554 = vmatprep.subr.mxu0 0.0
        %1555 = vmatpush2.msra.mxu0 %v366
        %1556 = vmatprep.subr.mxu0 0.0
        %1557 = vmatpush2.msra.mxu0 %v365
        %1558 = vmatprep.subr.mxu0 0.0
        %1559 = vmatpush2.msra.mxu0 %v364
        %1560 = vmatprep.subr.mxu0 0.0
        %1561 = vmatpush2.msra.mxu0 %v363
        %1562 = vmatprep.mubr.f32.mxu0 %v1403
        %1563 = vmatmul.mubr.f32.gmra.mxu0 %v1338
        %v1564 = vpop.f32.mrf.mxu0
        %v1565 = vadd.f32 0.0, %v1564
        %v1566 = vpop.f32.mrf.mxu0
        %1567 = vmatprep.mubr.f32.mxu0 %v1406
        %1568 = vmatmul.mubr.f32.gmra.mxu0 %v1340
        %v1569 = vpop.f32.mrf.mxu0
        %v1570 = vadd.f32 0.0, %v1569
        %v1571 = vpop.f32.mrf.mxu0
        %1572 = vmatprep.mubr.f32.mxu0 %v1409
        %1573 = vmatmul.mubr.f32.gmra.mxu0 %v1342
        %v1574 = vpop.f32.mrf.mxu0
        %v1575 = vadd.f32 0.0, %v1574
        %v1576 = vpop.f32.mrf.mxu0
        %1577 = vmatprep.mubr.f32.mxu0 %v1412
        %1578 = vmatmul.mubr.f32.gmra.mxu0 %v1344
        %v1579 = vpop.f32.mrf.mxu0
        %v1580 = vadd.f32 0.0, %v1579
        %v1581 = vpop.f32.mrf.mxu0
        %1582 = vmatprep.mubr.f32.mxu0 %v1415
        %1583 = vmatmul.mubr.f32.gmra.mxu0 %v1346
        %v1584 = vpop.f32.mrf.mxu0
        %v1585 = vadd.f32 0.0, %v1584
        %v1586 = vpop.f32.mrf.mxu0
        %1587 = vmatprep.mubr.f32.mxu0 %v1418
        %1588 = vmatmul.mubr.f32.gmra.mxu0 %v1348
        %v1589 = vpop.f32.mrf.mxu0
        %v1590 = vadd.f32 0.0, %v1589
        %v1591 = vpop.f32.mrf.mxu0
        %1592 = vmatprep.mubr.f32.mxu0 %v1421
        %1593 = vmatmul.mubr.f32.gmra.mxu0 %v1350
        %v1594 = vpop.f32.mrf.mxu0
        %v1595 = vadd.f32 0.0, %v1594
        %v1596 = vpop.f32.mrf.mxu0
        %1597 = vmatprep.mubr.f32.mxu0 %v1424
        %1598 = vmatmul.mubr.f32.gmra.mxu0 %v1352
        %v1599 = vpop.f32.mrf.mxu0
        %v1600 = vadd.f32 0.0, %v1599
        %v1601 = vpop.f32.mrf.mxu0
        %1602 = vmatprep.mubr.f32.mxu0 %v1427
        %1603 = vmatmul.mubr.f32.gmra.mxu0 %v1354
        %v1604 = vpop.f32.mrf.mxu0
        %v1605 = vadd.f32 0.0, %v1604
        %v1606 = vpop.f32.mrf.mxu0
        %1607 = vmatprep.mubr.f32.mxu0 %v1430
        %1608 = vmatmul.mubr.f32.gmra.mxu0 %v1356
        %v1609 = vpop.f32.mrf.mxu0
        %v1610 = vadd.f32 0.0, %v1609
        %v1611 = vpop.f32.mrf.mxu0
        %1612 = vmatprep.mubr.f32.mxu0 %v1433
        %1613 = vmatmul.mubr.f32.gmra.mxu0 %v1358
        %v1614 = vpop.f32.mrf.mxu0
        %v1615 = vadd.f32 0.0, %v1614
        %v1616 = vpop.f32.mrf.mxu0
        %1617 = vmatprep.mubr.f32.mxu0 %v1436
        %1618 = vmatmul.mubr.f32.gmra.mxu0 %v1360
        %v1619 = vpop.f32.mrf.mxu0
        %v1620 = vadd.f32 0.0, %v1619
        %v1621 = vpop.f32.mrf.mxu0
        %1622 = vmatprep.mubr.f32.mxu0 %v1439
        %1623 = vmatmul.mubr.f32.gmra.mxu0 %v1362
        %v1624 = vpop.f32.mrf.mxu0
        %v1625 = vadd.f32 0.0, %v1624
        %v1626 = vpop.f32.mrf.mxu0
        %1627 = vmatprep.mubr.f32.mxu0 %v1442
        %1628 = vmatmul.mubr.f32.gmra.mxu0 %v1364
        %v1629 = vpop.f32.mrf.mxu0
        %v1630 = vadd.f32 0.0, %v1629
        %v1631 = vpop.f32.mrf.mxu0
        %1632 = vmatprep.mubr.f32.mxu0 %v1445
        %1633 = vmatmul.mubr.f32.gmra.mxu0 %v1366
        %v1634 = vpop.f32.mrf.mxu0
        %v1635 = vadd.f32 0.0, %v1634
        %v1636 = vpop.f32.mrf.mxu0
        %1637 = vmatprep.mubr.f32.mxu0 %v1448
        %1638 = vmatmul.mubr.f32.gmra.mxu0 %v1368
        %v1639 = vpop.f32.mrf.mxu0
        %v1640 = vadd.f32 0.0, %v1639
        %v1641 = vpop.f32.mrf.mxu0
        %1642 = vmatprep.mubr.f32.mxu0 %v1451
        %1643 = vmatmul.mubr.f32.gmra.mxu0 %v1370
        %v1644 = vpop.f32.mrf.mxu0
        %v1645 = vadd.f32 0.0, %v1644
        %v1646 = vpop.f32.mrf.mxu0
        %1647 = vmatprep.mubr.f32.mxu0 %v1454
        %1648 = vmatmul.mubr.f32.gmra.mxu0 %v1372
        %v1649 = vpop.f32.mrf.mxu0
        %v1650 = vadd.f32 0.0, %v1649
        %v1651 = vpop.f32.mrf.mxu0
        %1652 = vmatprep.mubr.f32.mxu0 %v1457
        %1653 = vmatmul.mubr.f32.gmra.mxu0 %v1374
        %v1654 = vpop.f32.mrf.mxu0
        %v1655 = vadd.f32 0.0, %v1654
        %v1656 = vpop.f32.mrf.mxu0
        %1657 = vmatprep.mubr.f32.mxu0 %v1460
        %1658 = vmatmul.mubr.f32.gmra.mxu0 %v1376
        %v1659 = vpop.f32.mrf.mxu0
        %v1660 = vadd.f32 0.0, %v1659
        %v1661 = vpop.f32.mrf.mxu0
        %1662 = vmatprep.mubr.f32.mxu0 %v1463
        %1663 = vmatmul.mubr.f32.gmra.mxu0 %v1378
        %v1664 = vpop.f32.mrf.mxu0
        %v1665 = vadd.f32 0.0, %v1664
        %v1666 = vpop.f32.mrf.mxu0
        %1667 = vmatprep.mubr.f32.mxu0 %v1466
        %1668 = vmatmul.mubr.f32.gmra.mxu0 %v1380
        %v1669 = vpop.f32.mrf.mxu0
        %v1670 = vadd.f32 0.0, %v1669
        %v1671 = vpop.f32.mrf.mxu0
        %1672 = vmatprep.mubr.f32.mxu0 %v1469
        %1673 = vmatmul.mubr.f32.gmra.mxu0 %v1382
        %v1674 = vpop.f32.mrf.mxu0
        %v1675 = vadd.f32 0.0, %v1674
        %v1676 = vpop.f32.mrf.mxu0
        %1677 = vmatprep.mubr.f32.mxu0 %v1472
        %1678 = vmatmul.mubr.f32.gmra.mxu0 %v1384
        %v1679 = vpop.f32.mrf.mxu0
        %v1680 = vadd.f32 0.0, %v1679
        %v1681 = vpop.f32.mrf.mxu0
        %1682 = vmatprep.mubr.f32.mxu0 %v1475
        %1683 = vmatmul.mubr.f32.gmra.mxu0 %v1386
        %v1684 = vpop.f32.mrf.mxu0
        %v1685 = vadd.f32 0.0, %v1684
        %v1686 = vpop.f32.mrf.mxu0
        %1687 = vmatprep.mubr.f32.mxu0 %v1478
        %1688 = vmatmul.mubr.f32.gmra.mxu0 %v1388
        %v1689 = vpop.f32.mrf.mxu0
        %v1690 = vadd.f32 0.0, %v1689
        %v1691 = vpop.f32.mrf.mxu0
        %1692 = vmatprep.mubr.f32.mxu0 %v1481
        %1693 = vmatmul.mubr.f32.gmra.mxu0 %v1390
        %v1694 = vpop.f32.mrf.mxu0
        %v1695 = vadd.f32 0.0, %v1694
        %v1696 = vpop.f32.mrf.mxu0
        %1697 = vmatprep.mubr.f32.mxu0 %v1484
        %1698 = vmatmul.mubr.f32.gmra.mxu0 %v1392
        %v1699 = vpop.f32.mrf.mxu0
        %v1700 = vadd.f32 0.0, %v1699
        %v1701 = vpop.f32.mrf.mxu0
        %1702 = vmatprep.mubr.f32.mxu0 %v1487
        %1703 = vmatmul.mubr.f32.gmra.mxu0 %v1394
        %v1704 = vpop.f32.mrf.mxu0
        %v1705 = vadd.f32 0.0, %v1704
        %v1706 = vpop.f32.mrf.mxu0
        %1707 = vmatprep.mubr.f32.mxu0 %v1490
        %1708 = vmatmul.mubr.f32.gmra.mxu0 %v1396
        %v1709 = vpop.f32.mrf.mxu0
        %v1710 = vadd.f32 0.0, %v1709
        %v1711 = vpop.f32.mrf.mxu0
        %1712 = vmatprep.mubr.f32.mxu0 %v1493
        %1713 = vmatmul.mubr.f32.gmra.mxu0 %v1398
        %v1714 = vpop.f32.mrf.mxu0
        %v1715 = vadd.f32 0.0, %v1714
        %v1716 = vpop.f32.mrf.mxu0
        %1717 = vmatprep.mubr.f32.mxu0 %v1496
        %1718 = vmatmul.mubr.f32.gmra.mxu0 %v1400
        %v1719 = vpop.f32.mrf.mxu0
        %v1720 = vadd.f32 0.0, %v1719
        %v1721 = vpop.f32.mrf.mxu0
        %1722 = vdwg.mxu0
        %v1723 = vmul.f32 %v1148, %v589
        %v1724 = vmul.f32 %v1150, %v591
        %v1725 = vmul.f32 %v1154, %v595
        %v1726 = vmul.f32 %v1156, %v597
        %v1727 = vmul.f32 %v1160, %v601
        %v1728 = vmul.f32 %v1162, %v603
        %v1729 = vmul.f32 %v1166, %v607
        %v1730 = vmul.f32 %v1168, %v609
        %v1731 = vmul.f32 %v1172, %v613
        %v1732 = vmul.f32 %v1174, %v615
        %v1733 = vmul.f32 %v1178, %v619
        %v1734 = vmul.f32 %v1180, %v621
        %v1735 = vmul.f32 %v1184, %v625
        %v1736 = vmul.f32 %v1186, %v627
        %v1737 = vmul.f32 %v1190, %v631
        %v1738 = vmul.f32 %v1192, %v633
        %v1739 = vmul.f32 %v1196, %v637
        %v1740 = vmul.f32 %v1198, %v639
        %v1741 = vmul.f32 %v1202, %v643
        %v1742 = vmul.f32 %v1204, %v645
        %v1743 = vmul.f32 %v1208, %v649
        %v1744 = vmul.f32 %v1210, %v651
        %v1745 = vmul.f32 %v1214, %v655
        %v1746 = vmul.f32 %v1216, %v657
        %v1747 = vmul.f32 %v1220, %v661
        %v1748 = vmul.f32 %v1222, %v663
        %v1749 = vmul.f32 %v1226, %v667
        %v1750 = vmul.f32 %v1228, %v669
        %v1751 = vmul.f32 %v1232, %v673
        %v1752 = vmul.f32 %v1234, %v675
        %v1753 = vmul.f32 %v1238, %v679
        %v1754 = vmul.f32 %v1240, %v681
        %v1755 = vmul.f32 %v1244, %v685
        %v1756 = vmul.f32 %v1246, %v687
        %v1757 = vmul.f32 %v1250, %v691
        %v1758 = vmul.f32 %v1252, %v693
        %v1759 = vmul.f32 %v1256, %v697
        %v1760 = vmul.f32 %v1258, %v699
        %v1761 = vmul.f32 %v1262, %v703
        %v1762 = vmul.f32 %v1264, %v705
        %v1763 = vmul.f32 %v1268, %v709
        %v1764 = vmul.f32 %v1270, %v711
        %v1765 = vmul.f32 %v1274, %v715
        %v1766 = vmul.f32 %v1276, %v717
        %v1767 = vmul.f32 %v1280, %v721
        %v1768 = vmul.f32 %v1282, %v723
        %v1769 = vmul.f32 %v1286, %v727
        %v1770 = vmul.f32 %v1288, %v729
        %v1771 = vmul.f32 %v1292, %v733
        %v1772 = vmul.f32 %v1294, %v735
        %v1773 = vmul.f32 %v1298, %v739
        %v1774 = vmul.f32 %v1300, %v741
        %v1775 = vmul.f32 %v1304, %v745
        %v1776 = vmul.f32 %v1306, %v747
        %v1777 = vmul.f32 %v1310, %v751
        %v1778 = vmul.f32 %v1312, %v753
        %v1779 = vmul.f32 %v1316, %v757
        %v1780 = vmul.f32 %v1318, %v759
        %v1781 = vmul.f32 %v1322, %v763
        %v1782 = vmul.f32 %v1324, %v765
        %v1783 = vmul.f32 %v1328, %v769
        %v1784 = vmul.f32 %v1330, %v771
        %v1785 = vmul.f32 %v1334, %v775
        %v1786 = vmul.f32 %v1336, %v777
        %v1788 = vsel %vm425, %v1724, 0
        %v1791 = vsel %vm425, %v1726, 0
        %v1794 = vsel %vm425, %v1728, 0
        %v1797 = vsel %vm425, %v1730, 0
        %v1800 = vsel %vm425, %v1732, 0
        %v1803 = vsel %vm425, %v1734, 0
        %v1806 = vsel %vm425, %v1736, 0
        %v1809 = vsel %vm425, %v1738, 0
        %v1812 = vsel %vm425, %v1740, 0
        %v1815 = vsel %vm425, %v1742, 0
        %v1818 = vsel %vm425, %v1744, 0
        %v1821 = vsel %vm425, %v1746, 0
        %v1824 = vsel %vm425, %v1748, 0
        %v1827 = vsel %vm425, %v1750, 0
        %v1830 = vsel %vm425, %v1752, 0
        %v1833 = vsel %vm425, %v1754, 0
        %v1836 = vsel %vm425, %v1756, 0
        %v1839 = vsel %vm425, %v1758, 0
        %v1842 = vsel %vm425, %v1760, 0
        %v1845 = vsel %vm425, %v1762, 0
        %v1848 = vsel %vm425, %v1764, 0
        %v1851 = vsel %vm425, %v1766, 0
        %v1854 = vsel %vm425, %v1768, 0
        %v1857 = vsel %vm425, %v1770, 0
        %v1860 = vsel %vm425, %v1772, 0
        %v1863 = vsel %vm425, %v1774, 0
        %v1866 = vsel %vm425, %v1776, 0
        %v1869 = vsel %vm425, %v1778, 0
        %v1872 = vsel %vm425, %v1780, 0
        %v1875 = vsel %vm425, %v1782, 0
        %v1878 = vsel %vm425, %v1784, 0
        %v1881 = vsel %vm425, %v1786, 0
        %1883 = vmatprep.subr.mxu0 0.0
        %1884 = vmatpush1.msra.mxu0 %v362
        %1885 = vmatprep.subr.mxu0 0.0
        %1886 = vmatpush1.msra.mxu0 %v361
        %1887 = vmatprep.subr.mxu0 0.0
        %1888 = vmatpush1.msra.mxu0 %v360
        %1889 = vmatprep.subr.mxu0 0.0
        %1890 = vmatpush1.msra.mxu0 %v359
        %1891 = vmatprep.subr.mxu0 0.0
        %1892 = vmatpush1.msra.mxu0 %v358
        %1893 = vmatprep.subr.mxu0 0.0
        %1894 = vmatpush1.msra.mxu0 %v357
        %1895 = vmatprep.subr.mxu0 0.0
        %1896 = vmatpush1.msra.mxu0 %v356
        %1897 = vmatprep.subr.mxu0 0.0
        %1898 = vmatpush1.msra.mxu0 %v355
        %1899 = vmatprep.subr.mxu0 0.0
        %1900 = vmatpush1.msra.mxu0 %v354
        %1901 = vmatprep.subr.mxu0 0.0
        %1902 = vmatpush1.msra.mxu0 %v353
        %1903 = vmatprep.subr.mxu0 0.0
        %1904 = vmatpush1.msra.mxu0 %v352
        %1905 = vmatprep.subr.mxu0 0.0
        %1906 = vmatpush1.msra.mxu0 %v351
        %1907 = vmatprep.subr.mxu0 0.0
        %1908 = vmatpush1.msra.mxu0 %v350
        %1909 = vmatprep.subr.mxu0 0.0
        %1910 = vmatpush1.msra.mxu0 %v349
        %1911 = vmatprep.subr.mxu0 0.0
        %1912 = vmatpush1.msra.mxu0 %v348
        %1913 = vmatprep.subr.mxu0 0.0
        %1914 = vmatpush1.msra.mxu0 %v347
        %1915 = vmatprep.subr.mxu0 0.0
        %1916 = vmatpush2.msra.mxu0 0.0
        %1917 = vmatprep.subr.mxu0 0.0
        %1918 = vmatpush2.msra.mxu0 0.0
        %1919 = vmatprep.subr.mxu0 0.0
        %1920 = vmatpush2.msra.mxu0 0.0
        %1921 = vmatprep.subr.mxu0 0.0
        %1922 = vmatpush2.msra.mxu0 0.0
        %1923 = vmatprep.subr.mxu0 0.0
        %1924 = vmatpush2.msra.mxu0 0.0
        %1925 = vmatprep.subr.mxu0 0.0
        %1926 = vmatpush2.msra.mxu0 0.0
        %1927 = vmatprep.subr.mxu0 0.0
        %1928 = vmatpush2.msra.mxu0 %v372
        %1929 = vmatprep.subr.mxu0 0.0
        %1930 = vmatpush2.msra.mxu0 %v371
        %1931 = vmatprep.subr.mxu0 0.0
        %1932 = vmatpush2.msra.mxu0 %v370
        %1933 = vmatprep.subr.mxu0 0.0
        %1934 = vmatpush2.msra.mxu0 %v369
        %1935 = vmatprep.subr.mxu0 0.0
        %1936 = vmatpush2.msra.mxu0 %v368
        %1937 = vmatprep.subr.mxu0 0.0
        %1938 = vmatpush2.msra.mxu0 %v367
        %1939 = vmatprep.subr.mxu0 0.0
        %1940 = vmatpush2.msra.mxu0 %v366
        %1941 = vmatprep.subr.mxu0 0.0
        %1942 = vmatpush2.msra.mxu0 %v365
        %1943 = vmatprep.subr.mxu0 0.0
        %1944 = vmatpush2.msra.mxu0 %v364
        %1945 = vmatprep.subr.mxu0 0.0
        %1946 = vmatpush2.msra.mxu0 %v363
        %1947 = vmatprep.mubr.f32.mxu0 %v1788
        %1948 = vmatmul.mubr.f32.gmra.mxu0 %v1723
        %v1949 = vpop.f32.mrf.mxu0
        %v1950 = vadd.f32 0.0, %v1949
        %v1951 = vpop.f32.mrf.mxu0
        %1952 = vmatprep.mubr.f32.mxu0 %v1791
        %1953 = vmatmul.mubr.f32.gmra.mxu0 %v1725
        %v1954 = vpop.f32.mrf.mxu0
        %v1955 = vadd.f32 0.0, %v1954
        %v1956 = vpop.f32.mrf.mxu0
        %1957 = vmatprep.mubr.f32.mxu0 %v1794
        %1958 = vmatmul.mubr.f32.gmra.mxu0 %v1727
        %v1959 = vpop.f32.mrf.mxu0
        %v1960 = vadd.f32 0.0, %v1959
        %v1961 = vpop.f32.mrf.mxu0
        %1962 = vmatprep.mubr.f32.mxu0 %v1797
        %1963 = vmatmul.mubr.f32.gmra.mxu0 %v1729
        %v1964 = vpop.f32.mrf.mxu0
        %v1965 = vadd.f32 0.0, %v1964
        %v1966 = vpop.f32.mrf.mxu0
        %1967 = vmatprep.mubr.f32.mxu0 %v1800
        %1968 = vmatmul.mubr.f32.gmra.mxu0 %v1731
        %v1969 = vpop.f32.mrf.mxu0
        %v1970 = vadd.f32 0.0, %v1969
        %v1971 = vpop.f32.mrf.mxu0
        %1972 = vmatprep.mubr.f32.mxu0 %v1803
        %1973 = vmatmul.mubr.f32.gmra.mxu0 %v1733
        %v1974 = vpop.f32.mrf.mxu0
        %v1975 = vadd.f32 0.0, %v1974
        %v1976 = vpop.f32.mrf.mxu0
        %1977 = vmatprep.mubr.f32.mxu0 %v1806
        %1978 = vmatmul.mubr.f32.gmra.mxu0 %v1735
        %v1979 = vpop.f32.mrf.mxu0
        %v1980 = vadd.f32 0.0, %v1979
        %v1981 = vpop.f32.mrf.mxu0
        %1982 = vmatprep.mubr.f32.mxu0 %v1809
        %1983 = vmatmul.mubr.f32.gmra.mxu0 %v1737
        %v1984 = vpop.f32.mrf.mxu0
        %v1985 = vadd.f32 0.0, %v1984
        %v1986 = vpop.f32.mrf.mxu0
        %1987 = vmatprep.mubr.f32.mxu0 %v1812
        %1988 = vmatmul.mubr.f32.gmra.mxu0 %v1739
        %v1989 = vpop.f32.mrf.mxu0
        %v1990 = vadd.f32 0.0, %v1989
        %v1991 = vpop.f32.mrf.mxu0
        %1992 = vmatprep.mubr.f32.mxu0 %v1815
        %1993 = vmatmul.mubr.f32.gmra.mxu0 %v1741
        %v1994 = vpop.f32.mrf.mxu0
        %v1995 = vadd.f32 0.0, %v1994
        %v1996 = vpop.f32.mrf.mxu0
        %1997 = vmatprep.mubr.f32.mxu0 %v1818
        %1998 = vmatmul.mubr.f32.gmra.mxu0 %v1743
        %v1999 = vpop.f32.mrf.mxu0
        %v2000 = vadd.f32 0.0, %v1999
        %v2001 = vpop.f32.mrf.mxu0
        %2002 = vmatprep.mubr.f32.mxu0 %v1821
        %2003 = vmatmul.mubr.f32.gmra.mxu0 %v1745
        %v2004 = vpop.f32.mrf.mxu0
        %v2005 = vadd.f32 0.0, %v2004
        %v2006 = vpop.f32.mrf.mxu0
        %2007 = vmatprep.mubr.f32.mxu0 %v1824
        %2008 = vmatmul.mubr.f32.gmra.mxu0 %v1747
        %v2009 = vpop.f32.mrf.mxu0
        %v2010 = vadd.f32 0.0, %v2009
        %v2011 = vpop.f32.mrf.mxu0
        %2012 = vmatprep.mubr.f32.mxu0 %v1827
        %2013 = vmatmul.mubr.f32.gmra.mxu0 %v1749
        %v2014 = vpop.f32.mrf.mxu0
        %v2015 = vadd.f32 0.0, %v2014
        %v2016 = vpop.f32.mrf.mxu0
        %2017 = vmatprep.mubr.f32.mxu0 %v1830
        %2018 = vmatmul.mubr.f32.gmra.mxu0 %v1751
        %v2019 = vpop.f32.mrf.mxu0
        %v2020 = vadd.f32 0.0, %v2019
        %v2021 = vpop.f32.mrf.mxu0
        %2022 = vmatprep.mubr.f32.mxu0 %v1833
        %2023 = vmatmul.mubr.f32.gmra.mxu0 %v1753
        %v2024 = vpop.f32.mrf.mxu0
        %v2025 = vadd.f32 0.0, %v2024
        %v2026 = vpop.f32.mrf.mxu0
        %2027 = vmatprep.mubr.f32.mxu0 %v1836
        %2028 = vmatmul.mubr.f32.gmra.mxu0 %v1755
        %v2029 = vpop.f32.mrf.mxu0
        %v2030 = vadd.f32 0.0, %v2029
        %v2031 = vpop.f32.mrf.mxu0
        %2032 = vmatprep.mubr.f32.mxu0 %v1839
        %2033 = vmatmul.mubr.f32.gmra.mxu0 %v1757
        %v2034 = vpop.f32.mrf.mxu0
        %v2035 = vadd.f32 0.0, %v2034
        %v2036 = vpop.f32.mrf.mxu0
        %2037 = vmatprep.mubr.f32.mxu0 %v1842
        %2038 = vmatmul.mubr.f32.gmra.mxu0 %v1759
        %v2039 = vpop.f32.mrf.mxu0
        %v2040 = vadd.f32 0.0, %v2039
        %v2041 = vpop.f32.mrf.mxu0
        %2042 = vmatprep.mubr.f32.mxu0 %v1845
        %2043 = vmatmul.mubr.f32.gmra.mxu0 %v1761
        %v2044 = vpop.f32.mrf.mxu0
        %v2045 = vadd.f32 0.0, %v2044
        %v2046 = vpop.f32.mrf.mxu0
        %2047 = vmatprep.mubr.f32.mxu0 %v1848
        %2048 = vmatmul.mubr.f32.gmra.mxu0 %v1763
        %v2049 = vpop.f32.mrf.mxu0
        %v2050 = vadd.f32 0.0, %v2049
        %v2051 = vpop.f32.mrf.mxu0
        %2052 = vmatprep.mubr.f32.mxu0 %v1851
        %2053 = vmatmul.mubr.f32.gmra.mxu0 %v1765
        %v2054 = vpop.f32.mrf.mxu0
        %v2055 = vadd.f32 0.0, %v2054
        %v2056 = vpop.f32.mrf.mxu0
        %2057 = vmatprep.mubr.f32.mxu0 %v1854
        %2058 = vmatmul.mubr.f32.gmra.mxu0 %v1767
        %v2059 = vpop.f32.mrf.mxu0
        %v2060 = vadd.f32 0.0, %v2059
        %v2061 = vpop.f32.mrf.mxu0
        %2062 = vmatprep.mubr.f32.mxu0 %v1857
        %2063 = vmatmul.mubr.f32.gmra.mxu0 %v1769
        %v2064 = vpop.f32.mrf.mxu0
        %v2065 = vadd.f32 0.0, %v2064
        %v2066 = vpop.f32.mrf.mxu0
        %2067 = vmatprep.mubr.f32.mxu0 %v1860
        %2068 = vmatmul.mubr.f32.gmra.mxu0 %v1771
        %v2069 = vpop.f32.mrf.mxu0
        %v2070 = vadd.f32 0.0, %v2069
        %v2071 = vpop.f32.mrf.mxu0
        %2072 = vmatprep.mubr.f32.mxu0 %v1863
        %2073 = vmatmul.mubr.f32.gmra.mxu0 %v1773
        %v2074 = vpop.f32.mrf.mxu0
        %v2075 = vadd.f32 0.0, %v2074
        %v2076 = vpop.f32.mrf.mxu0
        %2077 = vmatprep.mubr.f32.mxu0 %v1866
        %2078 = vmatmul.mubr.f32.gmra.mxu0 %v1775
        %v2079 = vpop.f32.mrf.mxu0
        %v2080 = vadd.f32 0.0, %v2079
        %v2081 = vpop.f32.mrf.mxu0
        %2082 = vmatprep.mubr.f32.mxu0 %v1869
        %2083 = vmatmul.mubr.f32.gmra.mxu0 %v1777
        %v2084 = vpop.f32.mrf.mxu0
        %v2085 = vadd.f32 0.0, %v2084
        %v2086 = vpop.f32.mrf.mxu0
        %2087 = vmatprep.mubr.f32.mxu0 %v1872
        %2088 = vmatmul.mubr.f32.gmra.mxu0 %v1779
        %v2089 = vpop.f32.mrf.mxu0
        %v2090 = vadd.f32 0.0, %v2089
        %v2091 = vpop.f32.mrf.mxu0
        %2092 = vmatprep.mubr.f32.mxu0 %v1875
        %2093 = vmatmul.mubr.f32.gmra.mxu0 %v1781
        %v2094 = vpop.f32.mrf.mxu0
        %v2095 = vadd.f32 0.0, %v2094
        %v2096 = vpop.f32.mrf.mxu0
        %2097 = vmatprep.mubr.f32.mxu0 %v1878
        %2098 = vmatmul.mubr.f32.gmra.mxu0 %v1783
        %v2099 = vpop.f32.mrf.mxu0
        %v2100 = vadd.f32 0.0, %v2099
        %v2101 = vpop.f32.mrf.mxu0
        %2102 = vmatprep.mubr.f32.mxu0 %v1881
        %2103 = vmatmul.mubr.f32.gmra.mxu0 %v1785
        %v2104 = vpop.f32.mrf.mxu0
        %v2105 = vadd.f32 0.0, %v2104
        %v2106 = vpop.f32.mrf.mxu0
        %2107 = vdwg.mxu0
        %v2108 = vmul.f32 %v1565, %v1565
        %v2109 = vmul.f32 %v1570, %v1570
        %v2110 = vmul.f32 %v1575, %v1575
        %v2111 = vmul.f32 %v1580, %v1580
        %v2112 = vmul.f32 %v1585, %v1585
        %v2113 = vmul.f32 %v1590, %v1590
        %v2114 = vmul.f32 %v1595, %v1595
        %v2115 = vmul.f32 %v1600, %v1600
        %v2116 = vmul.f32 %v1605, %v1605
        %v2117 = vmul.f32 %v1610, %v1610
        %v2118 = vmul.f32 %v1615, %v1615
        %v2119 = vmul.f32 %v1620, %v1620
        %v2120 = vmul.f32 %v1625, %v1625
        %v2121 = vmul.f32 %v1630, %v1630
        %v2122 = vmul.f32 %v1635, %v1635
        %v2123 = vmul.f32 %v1640, %v1640
        %v2124 = vmul.f32 %v1645, %v1645
        %v2125 = vmul.f32 %v1650, %v1650
        %v2126 = vmul.f32 %v1655, %v1655
        %v2127 = vmul.f32 %v1660, %v1660
        %v2128 = vmul.f32 %v1665, %v1665
        %v2129 = vmul.f32 %v1670, %v1670
        %v2130 = vmul.f32 %v1675, %v1675
        %v2131 = vmul.f32 %v1680, %v1680
        %v2132 = vmul.f32 %v1685, %v1685
        %v2133 = vmul.f32 %v1690, %v1690
        %v2134 = vmul.f32 %v1695, %v1695
        %v2135 = vmul.f32 %v1700, %v1700
        %v2136 = vmul.f32 %v1705, %v1705
        %v2137 = vmul.f32 %v1710, %v1710
        %v2138 = vmul.f32 %v1715, %v1715
        %v2139 = vmul.f32 %v1720, %v1720
        %v2140 = vmul.f32 %v1950, %v1950
        %v2141 = vmul.f32 %v1955, %v1955
        %v2142 = vmul.f32 %v1960, %v1960
        %v2143 = vmul.f32 %v1965, %v1965
        %v2144 = vmul.f32 %v1970, %v1970
        %v2145 = vmul.f32 %v1975, %v1975
        %v2146 = vmul.f32 %v1980, %v1980
        %v2147 = vmul.f32 %v1985, %v1985
        %v2148 = vmul.f32 %v1990, %v1990
        %v2149 = vmul.f32 %v1995, %v1995
        %v2150 = vmul.f32 %v2000, %v2000
        %v2151 = vmul.f32 %v2005, %v2005
        %v2152 = vmul.f32 %v2010, %v2010
        %v2153 = vmul.f32 %v2015, %v2015
        %v2154 = vmul.f32 %v2020, %v2020
        %v2155 = vmul.f32 %v2025, %v2025
        %v2156 = vmul.f32 %v2030, %v2030
        %v2157 = vmul.f32 %v2035, %v2035
        %v2158 = vmul.f32 %v2040, %v2040
        %v2159 = vmul.f32 %v2045, %v2045
        %v2160 = vmul.f32 %v2050, %v2050
        %v2161 = vmul.f32 %v2055, %v2055
        %v2162 = vmul.f32 %v2060, %v2060
        %v2163 = vmul.f32 %v2065, %v2065
        %v2164 = vmul.f32 %v2070, %v2070
        %v2165 = vmul.f32 %v2075, %v2075
        %v2166 = vmul.f32 %v2080, %v2080
        %v2167 = vmul.f32 %v2085, %v2085
        %v2168 = vmul.f32 %v2090, %v2090
        %v2169 = vmul.f32 %v2095, %v2095
        %v2170 = vmul.f32 %v2100, %v2100
        %v2171 = vmul.f32 %v2105, %v2105
        %v2172 = vadd.f32 %v2108, %v2140
        %v2173 = vadd.f32 %v2109, %v2141
        %v2174 = vadd.f32 %v2110, %v2142
        %v2175 = vadd.f32 %v2111, %v2143
        %v2176 = vadd.f32 %v2112, %v2144
        %v2177 = vadd.f32 %v2113, %v2145
        %v2178 = vadd.f32 %v2114, %v2146
        %v2179 = vadd.f32 %v2115, %v2147
        %v2180 = vadd.f32 %v2116, %v2148
        %v2181 = vadd.f32 %v2117, %v2149
        %v2182 = vadd.f32 %v2118, %v2150
        %v2183 = vadd.f32 %v2119, %v2151
        %v2184 = vadd.f32 %v2120, %v2152
        %v2185 = vadd.f32 %v2121, %v2153
        %v2186 = vadd.f32 %v2122, %v2154
        %v2187 = vadd.f32 %v2123, %v2155
        %v2188 = vadd.f32 %v2124, %v2156
        %v2189 = vadd.f32 %v2125, %v2157
        %v2190 = vadd.f32 %v2126, %v2158
        %v2191 = vadd.f32 %v2127, %v2159
        %v2192 = vadd.f32 %v2128, %v2160
        %v2193 = vadd.f32 %v2129, %v2161
        %v2194 = vadd.f32 %v2130, %v2162
        %v2195 = vadd.f32 %v2131, %v2163
        %v2196 = vadd.f32 %v2132, %v2164
        %v2197 = vadd.f32 %v2133, %v2165
        %v2198 = vadd.f32 %v2134, %v2166
        %v2199 = vadd.f32 %v2135, %v2167
        %v2200 = vadd.f32 %v2136, %v2168
        %v2201 = vadd.f32 %v2137, %v2169
        %v2202 = vadd.f32 %v2138, %v2170
        %v2203 = vadd.f32 %v2139, %v2171
        %vm2204 = vcmask 105472
        %v2205 = vsel %vm2204, %v2172, 0.0
        %2206 = vadd.xlane.f32.xlu0 %v2205
        %v2207 = vpop.xlane.xlu0 %2206
        %v2208 = vsel %vm2204, %v2173, 0.0
        %2209 = vadd.xlane.f32.xlu0 %v2208
        %v2210 = vpop.xlane.xlu0 %2209
        %v2211 = vsel %vm2204, %v2174, 0.0
        %2212 = vadd.xlane.f32.xlu0 %v2211
        %v2213 = vpop.xlane.xlu0 %2212
        %v2214 = vsel %vm2204, %v2175, 0.0
        %2215 = vadd.xlane.f32.xlu0 %v2214
        %v2216 = vpop.xlane.xlu0 %2215
        %v2217 = vsel %vm2204, %v2176, 0.0
        %2218 = vadd.xlane.f32.xlu0 %v2217
        %v2219 = vpop.xlane.xlu0 %2218
        %v2220 = vsel %vm2204, %v2177, 0.0
        %2221 = vadd.xlane.f32.xlu0 %v2220
        %v2222 = vpop.xlane.xlu0 %2221
        %v2223 = vsel %vm2204, %v2178, 0.0
        %2224 = vadd.xlane.f32.xlu0 %v2223
        %v2225 = vpop.xlane.xlu0 %2224
        %v2226 = vsel %vm2204, %v2179, 0.0
        %2227 = vadd.xlane.f32.xlu0 %v2226
        %v2228 = vpop.xlane.xlu0 %2227
        %v2229 = vsel %vm2204, %v2180, 0.0
        %2230 = vadd.xlane.f32.xlu0 %v2229
        %v2231 = vpop.xlane.xlu0 %2230
        %v2232 = vsel %vm2204, %v2181, 0.0
        %2233 = vadd.xlane.f32.xlu0 %v2232
        %v2234 = vpop.xlane.xlu0 %2233
        %v2235 = vsel %vm2204, %v2182, 0.0
        %2236 = vadd.xlane.f32.xlu0 %v2235
        %v2237 = vpop.xlane.xlu0 %2236
        %v2238 = vsel %vm2204, %v2183, 0.0
        %2239 = vadd.xlane.f32.xlu0 %v2238
        %v2240 = vpop.xlane.xlu0 %2239
        %v2241 = vsel %vm2204, %v2184, 0.0
        %2242 = vadd.xlane.f32.xlu0 %v2241
        %v2243 = vpop.xlane.xlu0 %2242
        %v2244 = vsel %vm2204, %v2185, 0.0
        %2245 = vadd.xlane.f32.xlu0 %v2244
        %v2246 = vpop.xlane.xlu0 %2245
        %v2247 = vsel %vm2204, %v2186, 0.0
        %2248 = vadd.xlane.f32.xlu0 %v2247
        %v2249 = vpop.xlane.xlu0 %2248
        %v2250 = vsel %vm2204, %v2187, 0.0
        %2251 = vadd.xlane.f32.xlu0 %v2250
        %v2252 = vpop.xlane.xlu0 %2251
        %v2253 = vsel %vm2204, %v2188, 0.0
        %2254 = vadd.xlane.f32.xlu0 %v2253
        %v2255 = vpop.xlane.xlu0 %2254
        %v2256 = vsel %vm2204, %v2189, 0.0
        %2257 = vadd.xlane.f32.xlu0 %v2256
        %v2258 = vpop.xlane.xlu0 %2257
        %v2259 = vsel %vm2204, %v2190, 0.0
        %2260 = vadd.xlane.f32.xlu0 %v2259
        %v2261 = vpop.xlane.xlu0 %2260
        %v2262 = vsel %vm2204, %v2191, 0.0
        %2263 = vadd.xlane.f32.xlu0 %v2262
        %v2264 = vpop.xlane.xlu0 %2263
        %v2265 = vsel %vm2204, %v2192, 0.0
        %2266 = vadd.xlane.f32.xlu0 %v2265
        %v2267 = vpop.xlane.xlu0 %2266
        %v2268 = vsel %vm2204, %v2193, 0.0
        %2269 = vadd.xlane.f32.xlu0 %v2268
        %v2270 = vpop.xlane.xlu0 %2269
        %v2271 = vsel %vm2204, %v2194, 0.0
        %2272 = vadd.xlane.f32.xlu0 %v2271
        %v2273 = vpop.xlane.xlu0 %2272
        %v2274 = vsel %vm2204, %v2195, 0.0
        %2275 = vadd.xlane.f32.xlu0 %v2274
        %v2276 = vpop.xlane.xlu0 %2275
        %v2277 = vsel %vm2204, %v2196, 0.0
        %2278 = vadd.xlane.f32.xlu0 %v2277
        %v2279 = vpop.xlane.xlu0 %2278
        %v2280 = vsel %vm2204, %v2197, 0.0
        %2281 = vadd.xlane.f32.xlu0 %v2280
        %v2282 = vpop.xlane.xlu0 %2281
        %v2283 = vsel %vm2204, %v2198, 0.0
        %2284 = vadd.xlane.f32.xlu0 %v2283
        %v2285 = vpop.xlane.xlu0 %2284
        %v2286 = vsel %vm2204, %v2199, 0.0
        %2287 = vadd.xlane.f32.xlu0 %v2286
        %v2288 = vpop.xlane.xlu0 %2287
        %v2289 = vsel %vm2204, %v2200, 0.0
        %2290 = vadd.xlane.f32.xlu0 %v2289
        %v2291 = vpop.xlane.xlu0 %2290
        %v2292 = vsel %vm2204, %v2201, 0.0
        %2293 = vadd.xlane.f32.xlu0 %v2292
        %v2294 = vpop.xlane.xlu0 %2293
        %v2295 = vsel %vm2204, %v2202, 0.0
        %2296 = vadd.xlane.f32.xlu0 %v2295
        %v2297 = vpop.xlane.xlu0 %2296
        %v2298 = vsel %vm2204, %v2203, 0.0
        %2299 = vadd.xlane.f32.xlu0 %v2298
        %v2300 = vpop.xlane.xlu0 %2299
        %v2301 = vmul.f32 %v2207, 0.07692308
        %v2302 = vmul.f32 %v2210, 0.07692308
        %v2303 = vmul.f32 %v2213, 0.07692308
        %v2304 = vmul.f32 %v2216, 0.07692308
        %v2305 = vmul.f32 %v2219, 0.07692308
        %v2306 = vmul.f32 %v2222, 0.07692308
        %v2307 = vmul.f32 %v2225, 0.07692308
        %v2308 = vmul.f32 %v2228, 0.07692308
        %v2309 = vmul.f32 %v2231, 0.07692308
        %v2310 = vmul.f32 %v2234, 0.07692308
        %v2311 = vmul.f32 %v2237, 0.07692308
        %v2312 = vmul.f32 %v2240, 0.07692308
        %v2313 = vmul.f32 %v2243, 0.07692308
        %v2314 = vmul.f32 %v2246, 0.07692308
        %v2315 = vmul.f32 %v2249, 0.07692308
        %v2316 = vmul.f32 %v2252, 0.07692308
        %v2317 = vmul.f32 %v2255, 0.07692308
        %v2318 = vmul.f32 %v2258, 0.07692308
        %v2319 = vmul.f32 %v2261, 0.07692308
        %v2320 = vmul.f32 %v2264, 0.07692308
        %v2321 = vmul.f32 %v2267, 0.07692308
        %v2322 = vmul.f32 %v2270, 0.07692308
        %v2323 = vmul.f32 %v2273, 0.07692308
        %v2324 = vmul.f32 %v2276, 0.07692308
        %v2325 = vmul.f32 %v2279, 0.07692308
        %v2326 = vmul.f32 %v2282, 0.07692308
        %v2327 = vmul.f32 %v2285, 0.07692308
        %v2328 = vmul.f32 %v2288, 0.07692308
        %v2329 = vmul.f32 %v2291, 0.07692308
        %v2330 = vmul.f32 %v2294, 0.07692308
        %v2331 = vmul.f32 %v2297, 0.07692308
        %v2332 = vmul.f32 %v2300, 0.07692308
        %s2333 = scalar_lea.vmem %s1, 208
        %v2334 = vld [vmem:[%s2333] sm:$0xff]
        %v2335 = vld [vmem:[%s2333 + $0x8] sm:$0xff]
        %v2336 = vld [vmem:[%s2333 + $0x10] sm:$0xff]
        %v2337 = vld [vmem:[%s2333 + $0x18] sm:$0xff]
        %v2338 = vld [vmem:[%s2333 + $0x20] sm:$0xff]
        %v2339 = vld [vmem:[%s2333 + $0x28] sm:$0xff]
        %v2340 = vld [vmem:[%s2333 + $0x30] sm:$0xff]
        %v2341 = vld [vmem:[%s2333 + $0x38] sm:$0xff]
        %v2342 = vld [vmem:[%s2333 + $0x40] sm:$0xff]
        %v2343 = vld [vmem:[%s2333 + $0x48] sm:$0xff]
        %v2344 = vld [vmem:[%s2333 + $0x50] sm:$0xff]
        %v2345 = vld [vmem:[%s2333 + $0x58] sm:$0xff]
        %v2346 = vld [vmem:[%s2333 + $0x60] sm:$0xff]
        %v2347 = vld [vmem:[%s2333 + $0x68] sm:$0xff]
        %v2348 = vld [vmem:[%s2333 + $0x70] sm:$0xff]
        %v2349 = vld [vmem:[%s2333 + $0x78] sm:$0xff]
        %v2350 = vld [vmem:[%s2333 + $0x80] sm:$0xff]
        %v2351 = vld [vmem:[%s2333 + $0x88] sm:$0xff]
        %v2352 = vld [vmem:[%s2333 + $0x90] sm:$0xff]
        %v2353 = vld [vmem:[%s2333 + $0x98] sm:$0xff]
        %v2354 = vld [vmem:[%s2333 + $0xa0] sm:$0xff]
        %v2355 = vld [vmem:[%s2333 + $0xa8] sm:$0xff]
        %v2356 = vld [vmem:[%s2333 + $0xb0] sm:$0xff]
        %v2357 = vld [vmem:[%s2333 + $0xb8] sm:$0xff]
        %v2358 = vld [vmem:[%s2333 + $0xc0] sm:$0xff]
        %v2359 = vld [vmem:[%s2333 + $0xc8] sm:$0xff]
        %s2360 = scalar_lea.vmem %s2, 1
        %v2361 = vld [vmem:[%s2360] sm:$0x1]
        %v2363 = vlaneseq
        %v2364 = vshrl.u32 %v2363, 7
        %v2365 = vsub.s32 0, %v2364
        %v2366 = vrot.slane %v2361, %v2365
        %2368 = vmatprep.subr.mxu0 0.0
        %2369 = vmatpush1.msra.mxu0 %v2349
        %2370 = vmatprep.subr.mxu0 0.0
        %2371 = vmatpush1.msra.mxu0 %v2348
        %2372 = vmatprep.subr.mxu0 0.0
        %2373 = vmatpush1.msra.mxu0 %v2347
        %2374 = vmatprep.subr.mxu0 0.0
        %2375 = vmatpush1.msra.mxu0 %v2346
        %2376 = vmatprep.subr.mxu0 0.0
        %2377 = vmatpush1.msra.mxu0 %v2345
        %2378 = vmatprep.subr.mxu0 0.0
        %2379 = vmatpush1.msra.mxu0 %v2344
        %2380 = vmatprep.subr.mxu0 0.0
        %2381 = vmatpush1.msra.mxu0 %v2343
        %2382 = vmatprep.subr.mxu0 0.0
        %2383 = vmatpush1.msra.mxu0 %v2342
        %2384 = vmatprep.subr.mxu0 0.0
        %2385 = vmatpush1.msra.mxu0 %v2341
        %2386 = vmatprep.subr.mxu0 0.0
        %2387 = vmatpush1.msra.mxu0 %v2340
        %2388 = vmatprep.subr.mxu0 0.0
        %2389 = vmatpush1.msra.mxu0 %v2339
        %2390 = vmatprep.subr.mxu0 0.0
        %2391 = vmatpush1.msra.mxu0 %v2338
        %2392 = vmatprep.subr.mxu0 0.0
        %2393 = vmatpush1.msra.mxu0 %v2337
        %2394 = vmatprep.subr.mxu0 0.0
        %2395 = vmatpush1.msra.mxu0 %v2336
        %2396 = vmatprep.subr.mxu0 0.0
        %2397 = vmatpush1.msra.mxu0 %v2335
        %2398 = vmatprep.subr.mxu0 0.0
        %2399 = vmatpush1.msra.mxu0 %v2334
        %2400 = vmatprep.subr.mxu0 0.0
        %2401 = vmatpush2.msra.mxu0 0.0
        %2402 = vmatprep.subr.mxu0 0.0
        %2403 = vmatpush2.msra.mxu0 0.0
        %2404 = vmatprep.subr.mxu0 0.0
        %2405 = vmatpush2.msra.mxu0 0.0
        %2406 = vmatprep.subr.mxu0 0.0
        %2407 = vmatpush2.msra.mxu0 0.0
        %2408 = vmatprep.subr.mxu0 0.0
        %2409 = vmatpush2.msra.mxu0 0.0
        %2410 = vmatprep.subr.mxu0 0.0
        %2411 = vmatpush2.msra.mxu0 0.0
        %2412 = vmatprep.subr.mxu0 0.0
        %2413 = vmatpush2.msra.mxu0 %v2359
        %2414 = vmatprep.subr.mxu0 0.0
        %2415 = vmatpush2.msra.mxu0 %v2358
        %2416 = vmatprep.subr.mxu0 0.0
        %2417 = vmatpush2.msra.mxu0 %v2357
        %2418 = vmatprep.subr.mxu0 0.0
        %2419 = vmatpush2.msra.mxu0 %v2356
        %2420 = vmatprep.subr.mxu0 0.0
        %2421 = vmatpush2.msra.mxu0 %v2355
        %2422 = vmatprep.subr.mxu0 0.0
        %2423 = vmatpush2.msra.mxu0 %v2354
        %2424 = vmatprep.subr.mxu0 0.0
        %2425 = vmatpush2.msra.mxu0 %v2353
        %2426 = vmatprep.subr.mxu0 0.0
        %2427 = vmatpush2.msra.mxu0 %v2352
        %2428 = vmatprep.subr.mxu0 0.0
        %2429 = vmatpush2.msra.mxu0 %v2351
        %2430 = vmatprep.subr.mxu0 0.0
        %2431 = vmatpush2.msra.mxu0 %v2350
        %2432 = vmatprep.mubr.f32.mxu0 %v427
        %2433 = vmatmul.mubr.f32.gmra.mxu0 %v283
        %v2434 = vpop.f32.mrf.mxu0
        %v2435 = vadd.f32 %v2366, %v2434
        %v2436 = vpop.f32.mrf.mxu0
        %2437 = vmatprep.mubr.f32.mxu0 %v430
        %2438 = vmatmul.mubr.f32.gmra.mxu0 %v285
        %v2439 = vpop.f32.mrf.mxu0
        %v2440 = vadd.f32 %v2366, %v2439
        %v2441 = vpop.f32.mrf.mxu0
        %2442 = vmatprep.mubr.f32.mxu0 %v433
        %2443 = vmatmul.mubr.f32.gmra.mxu0 %v287
        %v2444 = vpop.f32.mrf.mxu0
        %v2445 = vadd.f32 %v2366, %v2444
        %v2446 = vpop.f32.mrf.mxu0
        %2447 = vmatprep.mubr.f32.mxu0 %v436
        %2448 = vmatmul.mubr.f32.gmra.mxu0 %v289
        %v2449 = vpop.f32.mrf.mxu0
        %v2450 = vadd.f32 %v2366, %v2449
        %v2451 = vpop.f32.mrf.mxu0
        %2452 = vmatprep.mubr.f32.mxu0 %v439
        %2453 = vmatmul.mubr.f32.gmra.mxu0 %v291
        %v2454 = vpop.f32.mrf.mxu0
        %v2455 = vadd.f32 %v2366, %v2454
        %v2456 = vpop.f32.mrf.mxu0
        %2457 = vmatprep.mubr.f32.mxu0 %v442
        %2458 = vmatmul.mubr.f32.gmra.mxu0 %v293
        %v2459 = vpop.f32.mrf.mxu0
        %v2460 = vadd.f32 %v2366, %v2459
        %v2461 = vpop.f32.mrf.mxu0
        %2462 = vmatprep.mubr.f32.mxu0 %v445
        %2463 = vmatmul.mubr.f32.gmra.mxu0 %v295
        %v2464 = vpop.f32.mrf.mxu0
        %v2465 = vadd.f32 %v2366, %v2464
        %v2466 = vpop.f32.mrf.mxu0
        %2467 = vmatprep.mubr.f32.mxu0 %v448
        %2468 = vmatmul.mubr.f32.gmra.mxu0 %v297
        %v2469 = vpop.f32.mrf.mxu0
        %v2470 = vadd.f32 %v2366, %v2469
        %v2471 = vpop.f32.mrf.mxu0
        %2472 = vmatprep.mubr.f32.mxu0 %v451
        %2473 = vmatmul.mubr.f32.gmra.mxu0 %v299
        %v2474 = vpop.f32.mrf.mxu0
        %v2475 = vadd.f32 %v2366, %v2474
        %v2476 = vpop.f32.mrf.mxu0
        %2477 = vmatprep.mubr.f32.mxu0 %v454
        %2478 = vmatmul.mubr.f32.gmra.mxu0 %v301
        %v2479 = vpop.f32.mrf.mxu0
        %v2480 = vadd.f32 %v2366, %v2479
        %v2481 = vpop.f32.mrf.mxu0
        %2482 = vmatprep.mubr.f32.mxu0 %v457
        %2483 = vmatmul.mubr.f32.gmra.mxu0 %v303
        %v2484 = vpop.f32.mrf.mxu0
        %v2485 = vadd.f32 %v2366, %v2484
        %v2486 = vpop.f32.mrf.mxu0
        %2487 = vmatprep.mubr.f32.mxu0 %v460
        %2488 = vmatmul.mubr.f32.gmra.mxu0 %v305
        %v2489 = vpop.f32.mrf.mxu0
        %v2490 = vadd.f32 %v2366, %v2489
        %v2491 = vpop.f32.mrf.mxu0
        %2492 = vmatprep.mubr.f32.mxu0 %v463
        %2493 = vmatmul.mubr.f32.gmra.mxu0 %v307
        %v2494 = vpop.f32.mrf.mxu0
        %v2495 = vadd.f32 %v2366, %v2494
        %v2496 = vpop.f32.mrf.mxu0
        %2497 = vmatprep.mubr.f32.mxu0 %v466
        %2498 = vmatmul.mubr.f32.gmra.mxu0 %v309
        %v2499 = vpop.f32.mrf.mxu0
        %v2500 = vadd.f32 %v2366, %v2499
        %v2501 = vpop.f32.mrf.mxu0
        %2502 = vmatprep.mubr.f32.mxu0 %v469
        %2503 = vmatmul.mubr.f32.gmra.mxu0 %v311
        %v2504 = vpop.f32.mrf.mxu0
        %v2505 = vadd.f32 %v2366, %v2504
        %v2506 = vpop.f32.mrf.mxu0
        %2507 = vmatprep.mubr.f32.mxu0 %v472
        %2508 = vmatmul.mubr.f32.gmra.mxu0 %v313
        %v2509 = vpop.f32.mrf.mxu0
        %v2510 = vadd.f32 %v2366, %v2509
        %v2511 = vpop.f32.mrf.mxu0
        %2512 = vmatprep.mubr.f32.mxu0 %v475
        %2513 = vmatmul.mubr.f32.gmra.mxu0 %v315
        %v2514 = vpop.f32.mrf.mxu0
        %v2515 = vadd.f32 %v2366, %v2514
        %v2516 = vpop.f32.mrf.mxu0
        %2517 = vmatprep.mubr.f32.mxu0 %v478
        %2518 = vmatmul.mubr.f32.gmra.mxu0 %v317
        %v2519 = vpop.f32.mrf.mxu0
        %v2520 = vadd.f32 %v2366, %v2519
        %v2521 = vpop.f32.mrf.mxu0
        %2522 = vmatprep.mubr.f32.mxu0 %v481
        %2523 = vmatmul.mubr.f32.gmra.mxu0 %v319
        %v2524 = vpop.f32.mrf.mxu0
        %v2525 = vadd.f32 %v2366, %v2524
        %v2526 = vpop.f32.mrf.mxu0
        %2527 = vmatprep.mubr.f32.mxu0 %v484
        %2528 = vmatmul.mubr.f32.gmra.mxu0 %v321
        %v2529 = vpop.f32.mrf.mxu0
        %v2530 = vadd.f32 %v2366, %v2529
        %v2531 = vpop.f32.mrf.mxu0
        %2532 = vmatprep.mubr.f32.mxu0 %v487
        %2533 = vmatmul.mubr.f32.gmra.mxu0 %v323
        %v2534 = vpop.f32.mrf.mxu0
        %v2535 = vadd.f32 %v2366, %v2534
        %v2536 = vpop.f32.mrf.mxu0
        %2537 = vmatprep.mubr.f32.mxu0 %v490
        %2538 = vmatmul.mubr.f32.gmra.mxu0 %v325
        %v2539 = vpop.f32.mrf.mxu0
        %v2540 = vadd.f32 %v2366, %v2539
        %v2541 = vpop.f32.mrf.mxu0
        %2542 = vmatprep.mubr.f32.mxu0 %v493
        %2543 = vmatmul.mubr.f32.gmra.mxu0 %v327
        %v2544 = vpop.f32.mrf.mxu0
        %v2545 = vadd.f32 %v2366, %v2544
        %v2546 = vpop.f32.mrf.mxu0
        %2547 = vmatprep.mubr.f32.mxu0 %v496
        %2548 = vmatmul.mubr.f32.gmra.mxu0 %v329
        %v2549 = vpop.f32.mrf.mxu0
        %v2550 = vadd.f32 %v2366, %v2549
        %v2551 = vpop.f32.mrf.mxu0
        %2552 = vmatprep.mubr.f32.mxu0 %v499
        %2553 = vmatmul.mubr.f32.gmra.mxu0 %v331
        %v2554 = vpop.f32.mrf.mxu0
        %v2555 = vadd.f32 %v2366, %v2554
        %v2556 = vpop.f32.mrf.mxu0
        %2557 = vmatprep.mubr.f32.mxu0 %v502
        %2558 = vmatmul.mubr.f32.gmra.mxu0 %v333
        %v2559 = vpop.f32.mrf.mxu0
        %v2560 = vadd.f32 %v2366, %v2559
        %v2561 = vpop.f32.mrf.mxu0
        %2562 = vmatprep.mubr.f32.mxu0 %v505
        %2563 = vmatmul.mubr.f32.gmra.mxu0 %v335
        %v2564 = vpop.f32.mrf.mxu0
        %v2565 = vadd.f32 %v2366, %v2564
        %v2566 = vpop.f32.mrf.mxu0
        %2567 = vmatprep.mubr.f32.mxu0 %v508
        %2568 = vmatmul.mubr.f32.gmra.mxu0 %v337
        %v2569 = vpop.f32.mrf.mxu0
        %v2570 = vadd.f32 %v2366, %v2569
        %v2571 = vpop.f32.mrf.mxu0
        %2572 = vmatprep.mubr.f32.mxu0 %v511
        %2573 = vmatmul.mubr.f32.gmra.mxu0 %v339
        %v2574 = vpop.f32.mrf.mxu0
        %v2575 = vadd.f32 %v2366, %v2574
        %v2576 = vpop.f32.mrf.mxu0
        %2577 = vmatprep.mubr.f32.mxu0 %v514
        %2578 = vmatmul.mubr.f32.gmra.mxu0 %v341
        %v2579 = vpop.f32.mrf.mxu0
        %v2580 = vadd.f32 %v2366, %v2579
        %v2581 = vpop.f32.mrf.mxu0
        %2582 = vmatprep.mubr.f32.mxu0 %v517
        %2583 = vmatmul.mubr.f32.gmra.mxu0 %v343
        %v2584 = vpop.f32.mrf.mxu0
        %v2585 = vadd.f32 %v2366, %v2584
        %v2586 = vpop.f32.mrf.mxu0
        %2587 = vmatprep.mubr.f32.mxu0 %v520
        %2588 = vmatmul.mubr.f32.gmra.mxu0 %v345
        %v2589 = vpop.f32.mrf.mxu0
        %v2590 = vadd.f32 %v2366, %v2589
        %v2591 = vpop.f32.mrf.mxu0
        %2592 = vdwg.mxu0
        %s2593 = scalar_lea.vmem %s3, 256
        %v2594 = vld [vmem:[%s2593] sm:$0xff]
        %v2595 = vld [vmem:[%s2593 + $0x8] sm:$0xff]
        %v2596 = vld [vmem:[%s2593 + $0x10] sm:$0xff]
        %v2597 = vld [vmem:[%s2593 + $0x18] sm:$0xff]
        %v2598 = vld [vmem:[%s2593 + $0x20] sm:$0xff]
        %v2599 = vld [vmem:[%s2593 + $0x28] sm:$0xff]
        %v2600 = vld [vmem:[%s2593 + $0x30] sm:$0xff]
        %v2601 = vld [vmem:[%s2593 + $0x38] sm:$0xff]
        %v2602 = vld [vmem:[%s2593 + $0x40] sm:$0xff]
        %v2603 = vld [vmem:[%s2593 + $0x48] sm:$0xff]
        %v2604 = vld [vmem:[%s2593 + $0x50] sm:$0xff]
        %v2605 = vld [vmem:[%s2593 + $0x58] sm:$0xff]
        %v2606 = vld [vmem:[%s2593 + $0x60] sm:$0xff]
        %v2607 = vld [vmem:[%s2593 + $0x68] sm:$0xff]
        %v2608 = vld [vmem:[%s2593 + $0x70] sm:$0xff]
        %v2609 = vld [vmem:[%s2593 + $0x78] sm:$0xff]
        %v2610 = vld [vmem:[%s2593 + $0x80] sm:$0xff]
        %v2611 = vld [vmem:[%s2593 + $0x88] sm:$0xff]
        %v2612 = vld [vmem:[%s2593 + $0x90] sm:$0xff]
        %v2613 = vld [vmem:[%s2593 + $0x98] sm:$0xff]
        %v2614 = vld [vmem:[%s2593 + $0xa0] sm:$0xff]
        %v2615 = vld [vmem:[%s2593 + $0xa8] sm:$0xff]
        %v2616 = vld [vmem:[%s2593 + $0xb0] sm:$0xff]
        %v2617 = vld [vmem:[%s2593 + $0xb8] sm:$0xff]
        %v2618 = vld [vmem:[%s2593 + $0xc0] sm:$0xff]
        %v2619 = vld [vmem:[%s2593 + $0xc8] sm:$0xff]
        %v2620 = vld [vmem:[%s2593 + $0xd0] sm:$0xff]
        %v2621 = vld [vmem:[%s2593 + $0xd8] sm:$0xff]
        %v2622 = vld [vmem:[%s2593 + $0xe0] sm:$0xff]
        %v2623 = vld [vmem:[%s2593 + $0xe8] sm:$0xff]
        %v2624 = vld [vmem:[%s2593 + $0xf0] sm:$0xff]
        %v2625 = vld [vmem:[%s2593 + $0xf8] sm:$0xff]
        %s2626 = scalar_lea.vmem %s4, 2
        %v2627 = vld [vmem:[%s2626] sm:$0x3]
        %v2629 = vlaneseq
        %v2630 = vshrl.u32 %v2629, 7
        %v2631 = vsub.s32 0, %v2630
        %v2632 = vrot.slane %v2627, %v2631
        %v2633 = vlaneseq
        %v2634 = vshrl.u32 %v2633, 7
        %v2635 = vsub.s32 1, %v2634
        %v2636 = vrot.slane %v2627, %v2635
        %2639 = vmatprep.subr.mxu0 %v2625
        %2640 = vmatpush1.msra.mxu0 %v2624
        %2641 = vmatprep.subr.mxu0 %v2623
        %2642 = vmatpush1.msra.mxu0 %v2622
        %2643 = vmatprep.subr.mxu0 %v2621
        %2644 = vmatpush1.msra.mxu0 %v2620
        %2645 = vmatprep.subr.mxu0 %v2619
        %2646 = vmatpush1.msra.mxu0 %v2618
        %2647 = vmatprep.subr.mxu0 %v2617
        %2648 = vmatpush1.msra.mxu0 %v2616
        %2649 = vmatprep.subr.mxu0 %v2615
        %2650 = vmatpush1.msra.mxu0 %v2614
        %2651 = vmatprep.subr.mxu0 %v2613
        %2652 = vmatpush1.msra.mxu0 %v2612
        %2653 = vmatprep.subr.mxu0 %v2611
        %2654 = vmatpush1.msra.mxu0 %v2610
        %2655 = vmatprep.subr.mxu0 %v2609
        %2656 = vmatpush1.msra.mxu0 %v2608
        %2657 = vmatprep.subr.mxu0 %v2607
        %2658 = vmatpush1.msra.mxu0 %v2606
        %2659 = vmatprep.subr.mxu0 %v2605
        %2660 = vmatpush1.msra.mxu0 %v2604
        %2661 = vmatprep.subr.mxu0 %v2603
        %2662 = vmatpush1.msra.mxu0 %v2602
        %2663 = vmatprep.subr.mxu0 %v2601
        %2664 = vmatpush1.msra.mxu0 %v2600
        %2665 = vmatprep.subr.mxu0 %v2599
        %2666 = vmatpush1.msra.mxu0 %v2598
        %2667 = vmatprep.subr.mxu0 %v2597
        %2668 = vmatpush1.msra.mxu0 %v2596
        %2669 = vmatprep.subr.mxu0 %v2595
        %2670 = vmatpush1.msra.mxu0 %v2594
        %2671 = vmatprep.subr.mxu0 0.0
        %2672 = vmatpush2.msra.mxu0 0.0
        %2673 = vmatprep.subr.mxu0 0.0
        %2674 = vmatpush2.msra.mxu0 0.0
        %2675 = vmatprep.subr.mxu0 0.0
        %2676 = vmatpush2.msra.mxu0 0.0
        %2677 = vmatprep.subr.mxu0 0.0
        %2678 = vmatpush2.msra.mxu0 0.0
        %2679 = vmatprep.subr.mxu0 0.0
        %2680 = vmatpush2.msra.mxu0 0.0
        %2681 = vmatprep.subr.mxu0 0.0
        %2682 = vmatpush2.msra.mxu0 0.0
        %2683 = vmatprep.subr.mxu0 0.0
        %2684 = vmatpush2.msra.mxu0 0.0
        %2685 = vmatprep.subr.mxu0 0.0
        %2686 = vmatpush2.msra.mxu0 0.0
        %2687 = vmatprep.subr.mxu0 0.0
        %2688 = vmatpush2.msra.mxu0 0.0
        %2689 = vmatprep.subr.mxu0 0.0
        %2690 = vmatpush2.msra.mxu0 0.0
        %2691 = vmatprep.subr.mxu0 0.0
        %2692 = vmatpush2.msra.mxu0 0.0
        %2693 = vmatprep.subr.mxu0 0.0
        %2694 = vmatpush2.msra.mxu0 0.0
        %2695 = vmatprep.subr.mxu0 0.0
        %2696 = vmatpush2.msra.mxu0 0.0
        %2697 = vmatprep.subr.mxu0 0.0
        %2698 = vmatpush2.msra.mxu0 0.0
        %2699 = vmatprep.subr.mxu0 0.0
        %2700 = vmatpush2.msra.mxu0 0.0
        %2701 = vmatprep.subr.mxu0 0.0
        %2702 = vmatpush2.msra.mxu0 0.0
        %2703 = vmatprep.mubr.f32.mxu0 0.0
        %2704 = vmatmul.mubr.f32.gmra.mxu0 %v2435
        %v2705 = vpop.f32.mrf.mxu0
        %v2706 = vadd.f32 %v2632, %v2705
        %v2707 = vpop.f32.mrf.mxu0
        %v2708 = vadd.f32 %v2636, %v2707
        %2709 = vmatprep.mubr.f32.mxu0 0.0
        %2710 = vmatmul.mubr.f32.gmra.mxu0 %v2440
        %v2711 = vpop.f32.mrf.mxu0
        %v2712 = vadd.f32 %v2632, %v2711
        %v2713 = vpop.f32.mrf.mxu0
        %v2714 = vadd.f32 %v2636, %v2713
        %2715 = vmatprep.mubr.f32.mxu0 0.0
        %2716 = vmatmul.mubr.f32.gmra.mxu0 %v2445
        %v2717 = vpop.f32.mrf.mxu0
        %v2718 = vadd.f32 %v2632, %v2717
        %v2719 = vpop.f32.mrf.mxu0
        %v2720 = vadd.f32 %v2636, %v2719
        %2721 = vmatprep.mubr.f32.mxu0 0.0
        %2722 = vmatmul.mubr.f32.gmra.mxu0 %v2450
        %v2723 = vpop.f32.mrf.mxu0
        %v2724 = vadd.f32 %v2632, %v2723
        %v2725 = vpop.f32.mrf.mxu0
        %v2726 = vadd.f32 %v2636, %v2725
        %2727 = vmatprep.mubr.f32.mxu0 0.0
        %2728 = vmatmul.mubr.f32.gmra.mxu0 %v2455
        %v2729 = vpop.f32.mrf.mxu0
        %v2730 = vadd.f32 %v2632, %v2729
        %v2731 = vpop.f32.mrf.mxu0
        %v2732 = vadd.f32 %v2636, %v2731
        %2733 = vmatprep.mubr.f32.mxu0 0.0
        %2734 = vmatmul.mubr.f32.gmra.mxu0 %v2460
        %v2735 = vpop.f32.mrf.mxu0
        %v2736 = vadd.f32 %v2632, %v2735
        %v2737 = vpop.f32.mrf.mxu0
        %v2738 = vadd.f32 %v2636, %v2737
        %2739 = vmatprep.mubr.f32.mxu0 0.0
        %2740 = vmatmul.mubr.f32.gmra.mxu0 %v2465
        %v2741 = vpop.f32.mrf.mxu0
        %v2742 = vadd.f32 %v2632, %v2741
        %v2743 = vpop.f32.mrf.mxu0
        %v2744 = vadd.f32 %v2636, %v2743
        %2745 = vmatprep.mubr.f32.mxu0 0.0
        %2746 = vmatmul.mubr.f32.gmra.mxu0 %v2470
        %v2747 = vpop.f32.mrf.mxu0
        %v2748 = vadd.f32 %v2632, %v2747
        %v2749 = vpop.f32.mrf.mxu0
        %v2750 = vadd.f32 %v2636, %v2749
        %2751 = vmatprep.mubr.f32.mxu0 0.0
        %2752 = vmatmul.mubr.f32.gmra.mxu0 %v2475
        %v2753 = vpop.f32.mrf.mxu0
        %v2754 = vadd.f32 %v2632, %v2753
        %v2755 = vpop.f32.mrf.mxu0
        %v2756 = vadd.f32 %v2636, %v2755
        %2757 = vmatprep.mubr.f32.mxu0 0.0
        %2758 = vmatmul.mubr.f32.gmra.mxu0 %v2480
        %v2759 = vpop.f32.mrf.mxu0
        %v2760 = vadd.f32 %v2632, %v2759
        %v2761 = vpop.f32.mrf.mxu0
        %v2762 = vadd.f32 %v2636, %v2761
        %2763 = vmatprep.mubr.f32.mxu0 0.0
        %2764 = vmatmul.mubr.f32.gmra.mxu0 %v2485
        %v2765 = vpop.f32.mrf.mxu0
        %v2766 = vadd.f32 %v2632, %v2765
        %v2767 = vpop.f32.mrf.mxu0
        %v2768 = vadd.f32 %v2636, %v2767
        %2769 = vmatprep.mubr.f32.mxu0 0.0
        %2770 = vmatmul.mubr.f32.gmra.mxu0 %v2490
        %v2771 = vpop.f32.mrf.mxu0
        %v2772 = vadd.f32 %v2632, %v2771
        %v2773 = vpop.f32.mrf.mxu0
        %v2774 = vadd.f32 %v2636, %v2773
        %2775 = vmatprep.mubr.f32.mxu0 0.0
        %2776 = vmatmul.mubr.f32.gmra.mxu0 %v2495
        %v2777 = vpop.f32.mrf.mxu0
        %v2778 = vadd.f32 %v2632, %v2777
        %v2779 = vpop.f32.mrf.mxu0
        %v2780 = vadd.f32 %v2636, %v2779
        %2781 = vmatprep.mubr.f32.mxu0 0.0
        %2782 = vmatmul.mubr.f32.gmra.mxu0 %v2500
        %v2783 = vpop.f32.mrf.mxu0
        %v2784 = vadd.f32 %v2632, %v2783
        %v2785 = vpop.f32.mrf.mxu0
        %v2786 = vadd.f32 %v2636, %v2785
        %2787 = vmatprep.mubr.f32.mxu0 0.0
        %2788 = vmatmul.mubr.f32.gmra.mxu0 %v2505
        %v2789 = vpop.f32.mrf.mxu0
        %v2790 = vadd.f32 %v2632, %v2789
        %v2791 = vpop.f32.mrf.mxu0
        %v2792 = vadd.f32 %v2636, %v2791
        %2793 = vmatprep.mubr.f32.mxu0 0.0
        %2794 = vmatmul.mubr.f32.gmra.mxu0 %v2510
        %v2795 = vpop.f32.mrf.mxu0
        %v2796 = vadd.f32 %v2632, %v2795
        %v2797 = vpop.f32.mrf.mxu0
        %v2798 = vadd.f32 %v2636, %v2797
        %2799 = vmatprep.mubr.f32.mxu0 0.0
        %2800 = vmatmul.mubr.f32.gmra.mxu0 %v2515
        %v2801 = vpop.f32.mrf.mxu0
        %v2802 = vadd.f32 %v2632, %v2801
        %v2803 = vpop.f32.mrf.mxu0
        %v2804 = vadd.f32 %v2636, %v2803
        %2805 = vmatprep.mubr.f32.mxu0 0.0
        %2806 = vmatmul.mubr.f32.gmra.mxu0 %v2520
        %v2807 = vpop.f32.mrf.mxu0
        %v2808 = vadd.f32 %v2632, %v2807
        %v2809 = vpop.f32.mrf.mxu0
        %v2810 = vadd.f32 %v2636, %v2809
        %2811 = vmatprep.mubr.f32.mxu0 0.0
        %2812 = vmatmul.mubr.f32.gmra.mxu0 %v2525
        %v2813 = vpop.f32.mrf.mxu0
        %v2814 = vadd.f32 %v2632, %v2813
        %v2815 = vpop.f32.mrf.mxu0
        %v2816 = vadd.f32 %v2636, %v2815
        %2817 = vmatprep.mubr.f32.mxu0 0.0
        %2818 = vmatmul.mubr.f32.gmra.mxu0 %v2530
        %v2819 = vpop.f32.mrf.mxu0
        %v2820 = vadd.f32 %v2632, %v2819
        %v2821 = vpop.f32.mrf.mxu0
        %v2822 = vadd.f32 %v2636, %v2821
        %2823 = vmatprep.mubr.f32.mxu0 0.0
        %2824 = vmatmul.mubr.f32.gmra.mxu0 %v2535
        %v2825 = vpop.f32.mrf.mxu0
        %v2826 = vadd.f32 %v2632, %v2825
        %v2827 = vpop.f32.mrf.mxu0
        %v2828 = vadd.f32 %v2636, %v2827
        %2829 = vmatprep.mubr.f32.mxu0 0.0
        %2830 = vmatmul.mubr.f32.gmra.mxu0 %v2540
        %v2831 = vpop.f32.mrf.mxu0
        %v2832 = vadd.f32 %v2632, %v2831
        %v2833 = vpop.f32.mrf.mxu0
        %v2834 = vadd.f32 %v2636, %v2833
        %2835 = vmatprep.mubr.f32.mxu0 0.0
        %2836 = vmatmul.mubr.f32.gmra.mxu0 %v2545
        %v2837 = vpop.f32.mrf.mxu0
        %v2838 = vadd.f32 %v2632, %v2837
        %v2839 = vpop.f32.mrf.mxu0
        %v2840 = vadd.f32 %v2636, %v2839
        %2841 = vmatprep.mubr.f32.mxu0 0.0
        %2842 = vmatmul.mubr.f32.gmra.mxu0 %v2550
        %v2843 = vpop.f32.mrf.mxu0
        %v2844 = vadd.f32 %v2632, %v2843
        %v2845 = vpop.f32.mrf.mxu0
        %v2846 = vadd.f32 %v2636, %v2845
        %2847 = vmatprep.mubr.f32.mxu0 0.0
        %2848 = vmatmul.mubr.f32.gmra.mxu0 %v2555
        %v2849 = vpop.f32.mrf.mxu0
        %v2850 = vadd.f32 %v2632, %v2849
        %v2851 = vpop.f32.mrf.mxu0
        %v2852 = vadd.f32 %v2636, %v2851
        %2853 = vmatprep.mubr.f32.mxu0 0.0
        %2854 = vmatmul.mubr.f32.gmra.mxu0 %v2560
        %v2855 = vpop.f32.mrf.mxu0
        %v2856 = vadd.f32 %v2632, %v2855
        %v2857 = vpop.f32.mrf.mxu0
        %v2858 = vadd.f32 %v2636, %v2857
        %2859 = vmatprep.mubr.f32.mxu0 0.0
        %2860 = vmatmul.mubr.f32.gmra.mxu0 %v2565
        %v2861 = vpop.f32.mrf.mxu0
        %v2862 = vadd.f32 %v2632, %v2861
        %v2863 = vpop.f32.mrf.mxu0
        %v2864 = vadd.f32 %v2636, %v2863
        %2865 = vmatprep.mubr.f32.mxu0 0.0
        %2866 = vmatmul.mubr.f32.gmra.mxu0 %v2570
        %v2867 = vpop.f32.mrf.mxu0
        %v2868 = vadd.f32 %v2632, %v2867
        %v2869 = vpop.f32.mrf.mxu0
        %v2870 = vadd.f32 %v2636, %v2869
        %2871 = vmatprep.mubr.f32.mxu0 0.0
        %2872 = vmatmul.mubr.f32.gmra.mxu0 %v2575
        %v2873 = vpop.f32.mrf.mxu0
        %v2874 = vadd.f32 %v2632, %v2873
        %v2875 = vpop.f32.mrf.mxu0
        %v2876 = vadd.f32 %v2636, %v2875
        %2877 = vmatprep.mubr.f32.mxu0 0.0
        %2878 = vmatmul.mubr.f32.gmra.mxu0 %v2580
        %v2879 = vpop.f32.mrf.mxu0
        %v2880 = vadd.f32 %v2632, %v2879
        %v2881 = vpop.f32.mrf.mxu0
        %v2882 = vadd.f32 %v2636, %v2881
        %2883 = vmatprep.mubr.f32.mxu0 0.0
        %2884 = vmatmul.mubr.f32.gmra.mxu0 %v2585
        %v2885 = vpop.f32.mrf.mxu0
        %v2886 = vadd.f32 %v2632, %v2885
        %v2887 = vpop.f32.mrf.mxu0
        %v2888 = vadd.f32 %v2636, %v2887
        %2889 = vmatprep.mubr.f32.mxu0 0.0
        %2890 = vmatmul.mubr.f32.gmra.mxu0 %v2590
        %v2891 = vpop.f32.mrf.mxu0
        %v2892 = vadd.f32 %v2632, %v2891
        %v2893 = vpop.f32.mrf.mxu0
        %v2894 = vadd.f32 %v2636, %v2893
        %2895 = vdwg.mxu0
        %v2896 = vmul.f32 %v2706, %v283
        %v2897 = vmul.f32 %v2708, %v284
        %v2898 = vmul.f32 %v2712, %v285
        %v2899 = vmul.f32 %v2714, %v286
        %v2900 = vmul.f32 %v2718, %v287
        %v2901 = vmul.f32 %v2720, %v288
        %v2902 = vmul.f32 %v2724, %v289
        %v2903 = vmul.f32 %v2726, %v290
        %v2904 = vmul.f32 %v2730, %v291
        %v2905 = vmul.f32 %v2732, %v292
        %v2906 = vmul.f32 %v2736, %v293
        %v2907 = vmul.f32 %v2738, %v294
        %v2908 = vmul.f32 %v2742, %v295
        %v2909 = vmul.f32 %v2744, %v296
        %v2910 = vmul.f32 %v2748, %v297
        %v2911 = vmul.f32 %v2750, %v298
        %v2912 = vmul.f32 %v2754, %v299
        %v2913 = vmul.f32 %v2756, %v300
        %v2914 = vmul.f32 %v2760, %v301
        %v2915 = vmul.f32 %v2762, %v302
        %v2916 = vmul.f32 %v2766, %v303
        %v2917 = vmul.f32 %v2768, %v304
        %v2918 = vmul.f32 %v2772, %v305
        %v2919 = vmul.f32 %v2774, %v306
        %v2920 = vmul.f32 %v2778, %v307
        %v2921 = vmul.f32 %v2780, %v308
        %v2922 = vmul.f32 %v2784, %v309
        %v2923 = vmul.f32 %v2786, %v310
        %v2924 = vmul.f32 %v2790, %v311
        %v2925 = vmul.f32 %v2792, %v312
        %v2926 = vmul.f32 %v2796, %v313
        %v2927 = vmul.f32 %v2798, %v314
        %v2928 = vmul.f32 %v2802, %v315
        %v2929 = vmul.f32 %v2804, %v316
        %v2930 = vmul.f32 %v2808, %v317
        %v2931 = vmul.f32 %v2810, %v318
        %v2932 = vmul.f32 %v2814, %v319
        %v2933 = vmul.f32 %v2816, %v320
        %v2934 = vmul.f32 %v2820, %v321
        %v2935 = vmul.f32 %v2822, %v322
        %v2936 = vmul.f32 %v2826, %v323
        %v2937 = vmul.f32 %v2828, %v324
        %v2938 = vmul.f32 %v2832, %v325
        %v2939 = vmul.f32 %v2834, %v326
        %v2940 = vmul.f32 %v2838, %v327
        %v2941 = vmul.f32 %v2840, %v328
        %v2942 = vmul.f32 %v2844, %v329
        %v2943 = vmul.f32 %v2846, %v330
        %v2944 = vmul.f32 %v2850, %v331
        %v2945 = vmul.f32 %v2852, %v332
        %v2946 = vmul.f32 %v2856, %v333
        %v2947 = vmul.f32 %v2858, %v334
        %v2948 = vmul.f32 %v2862, %v335
        %v2949 = vmul.f32 %v2864, %v336
        %v2950 = vmul.f32 %v2868, %v337
        %v2951 = vmul.f32 %v2870, %v338
        %v2952 = vmul.f32 %v2874, %v339
        %v2953 = vmul.f32 %v2876, %v340
        %v2954 = vmul.f32 %v2880, %v341
        %v2955 = vmul.f32 %v2882, %v342
        %v2956 = vmul.f32 %v2886, %v343
        %v2957 = vmul.f32 %v2888, %v344
        %v2958 = vmul.f32 %v2892, %v345
        %v2959 = vmul.f32 %v2894, %v346
        %v2961 = vsel %vm425, %v2897, 0
        %v2964 = vsel %vm425, %v2899, 0
        %v2967 = vsel %vm425, %v2901, 0
        %v2970 = vsel %vm425, %v2903, 0
        %v2973 = vsel %vm425, %v2905, 0
        %v2976 = vsel %vm425, %v2907, 0
        %v2979 = vsel %vm425, %v2909, 0
        %v2982 = vsel %vm425, %v2911, 0
        %v2985 = vsel %vm425, %v2913, 0
        %v2988 = vsel %vm425, %v2915, 0
        %v2991 = vsel %vm425, %v2917, 0
        %v2994 = vsel %vm425, %v2919, 0
        %v2997 = vsel %vm425, %v2921, 0
        %v3000 = vsel %vm425, %v2923, 0
        %v3003 = vsel %vm425, %v2925, 0
        %v3006 = vsel %vm425, %v2927, 0
        %v3009 = vsel %vm425, %v2929, 0
        %v3012 = vsel %vm425, %v2931, 0
        %v3015 = vsel %vm425, %v2933, 0
        %v3018 = vsel %vm425, %v2935, 0
        %v3021 = vsel %vm425, %v2937, 0
        %v3024 = vsel %vm425, %v2939, 0
        %v3027 = vsel %vm425, %v2941, 0
        %v3030 = vsel %vm425, %v2943, 0
        %v3033 = vsel %vm425, %v2945, 0
        %v3036 = vsel %vm425, %v2947, 0
        %v3039 = vsel %vm425, %v2949, 0
        %v3042 = vsel %vm425, %v2951, 0
        %v3045 = vsel %vm425, %v2953, 0
        %v3048 = vsel %vm425, %v2955, 0
        %v3051 = vsel %vm425, %v2957, 0
        %v3054 = vsel %vm425, %v2959, 0
        %3056 = vmatprep.subr.mxu0 0.0
        %3057 = vmatpush1.msra.mxu0 %v362
        %3058 = vmatprep.subr.mxu0 0.0
        %3059 = vmatpush1.msra.mxu0 %v361
        %3060 = vmatprep.subr.mxu0 0.0
        %3061 = vmatpush1.msra.mxu0 %v360
        %3062 = vmatprep.subr.mxu0 0.0
        %3063 = vmatpush1.msra.mxu0 %v359
        %3064 = vmatprep.subr.mxu0 0.0
        %3065 = vmatpush1.msra.mxu0 %v358
        %3066 = vmatprep.subr.mxu0 0.0
        %3067 = vmatpush1.msra.mxu0 %v357
        %3068 = vmatprep.subr.mxu0 0.0
        %3069 = vmatpush1.msra.mxu0 %v356
        %3070 = vmatprep.subr.mxu0 0.0
        %3071 = vmatpush1.msra.mxu0 %v355
        %3072 = vmatprep.subr.mxu0 0.0
        %3073 = vmatpush1.msra.mxu0 %v354
        %3074 = vmatprep.subr.mxu0 0.0
        %3075 = vmatpush1.msra.mxu0 %v353
        %3076 = vmatprep.subr.mxu0 0.0
        %3077 = vmatpush1.msra.mxu0 %v352
        %3078 = vmatprep.subr.mxu0 0.0
        %3079 = vmatpush1.msra.mxu0 %v351
        %3080 = vmatprep.subr.mxu0 0.0
        %3081 = vmatpush1.msra.mxu0 %v350
        %3082 = vmatprep.subr.mxu0 0.0
        %3083 = vmatpush1.msra.mxu0 %v349
        %3084 = vmatprep.subr.mxu0 0.0
        %3085 = vmatpush1.msra.mxu0 %v348
        %3086 = vmatprep.subr.mxu0 0.0
        %3087 = vmatpush1.msra.mxu0 %v347
        %3088 = vmatprep.subr.mxu0 0.0
        %3089 = vmatpush2.msra.mxu0 0.0
        %3090 = vmatprep.subr.mxu0 0.0
        %3091 = vmatpush2.msra.mxu0 0.0
        %3092 = vmatprep.subr.mxu0 0.0
        %3093 = vmatpush2.msra.mxu0 0.0
        %3094 = vmatprep.subr.mxu0 0.0
        %3095 = vmatpush2.msra.mxu0 0.0
        %3096 = vmatprep.subr.mxu0 0.0
        %3097 = vmatpush2.msra.mxu0 0.0
        %3098 = vmatprep.subr.mxu0 0.0
        %3099 = vmatpush2.msra.mxu0 0.0
        %3100 = vmatprep.subr.mxu0 0.0
        %3101 = vmatpush2.msra.mxu0 %v372
        %3102 = vmatprep.subr.mxu0 0.0
        %3103 = vmatpush2.msra.mxu0 %v371
        %3104 = vmatprep.subr.mxu0 0.0
        %3105 = vmatpush2.msra.mxu0 %v370
        %3106 = vmatprep.subr.mxu0 0.0
        %3107 = vmatpush2.msra.mxu0 %v369
        %3108 = vmatprep.subr.mxu0 0.0
        %3109 = vmatpush2.msra.mxu0 %v368
        %3110 = vmatprep.subr.mxu0 0.0
        %3111 = vmatpush2.msra.mxu0 %v367
        %3112 = vmatprep.subr.mxu0 0.0
        %3113 = vmatpush2.msra.mxu0 %v366
        %3114 = vmatprep.subr.mxu0 0.0
        %3115 = vmatpush2.msra.mxu0 %v365
        %3116 = vmatprep.subr.mxu0 0.0
        %3117 = vmatpush2.msra.mxu0 %v364
        %3118 = vmatprep.subr.mxu0 0.0
        %3119 = vmatpush2.msra.mxu0 %v363
        %3120 = vmatprep.mubr.f32.mxu0 %v2961
        %3121 = vmatmul.mubr.f32.gmra.mxu0 %v2896
        %v3122 = vpop.f32.mrf.mxu0
        %v3123 = vadd.f32 0.0, %v3122
        %v3124 = vpop.f32.mrf.mxu0
        %3125 = vmatprep.mubr.f32.mxu0 %v2964
        %3126 = vmatmul.mubr.f32.gmra.mxu0 %v2898
        %v3127 = vpop.f32.mrf.mxu0
        %v3128 = vadd.f32 0.0, %v3127
        %v3129 = vpop.f32.mrf.mxu0
        %3130 = vmatprep.mubr.f32.mxu0 %v2967
        %3131 = vmatmul.mubr.f32.gmra.mxu0 %v2900
        %v3132 = vpop.f32.mrf.mxu0
        %v3133 = vadd.f32 0.0, %v3132
        %v3134 = vpop.f32.mrf.mxu0
        %3135 = vmatprep.mubr.f32.mxu0 %v2970
        %3136 = vmatmul.mubr.f32.gmra.mxu0 %v2902
        %v3137 = vpop.f32.mrf.mxu0
        %v3138 = vadd.f32 0.0, %v3137
        %v3139 = vpop.f32.mrf.mxu0
        %3140 = vmatprep.mubr.f32.mxu0 %v2973
        %3141 = vmatmul.mubr.f32.gmra.mxu0 %v2904
        %v3142 = vpop.f32.mrf.mxu0
        %v3143 = vadd.f32 0.0, %v3142
        %v3144 = vpop.f32.mrf.mxu0
        %3145 = vmatprep.mubr.f32.mxu0 %v2976
        %3146 = vmatmul.mubr.f32.gmra.mxu0 %v2906
        %v3147 = vpop.f32.mrf.mxu0
        %v3148 = vadd.f32 0.0, %v3147
        %v3149 = vpop.f32.mrf.mxu0
        %3150 = vmatprep.mubr.f32.mxu0 %v2979
        %3151 = vmatmul.mubr.f32.gmra.mxu0 %v2908
        %v3152 = vpop.f32.mrf.mxu0
        %v3153 = vadd.f32 0.0, %v3152
        %v3154 = vpop.f32.mrf.mxu0
        %3155 = vmatprep.mubr.f32.mxu0 %v2982
        %3156 = vmatmul.mubr.f32.gmra.mxu0 %v2910
        %v3157 = vpop.f32.mrf.mxu0
        %v3158 = vadd.f32 0.0, %v3157
        %v3159 = vpop.f32.mrf.mxu0
        %3160 = vmatprep.mubr.f32.mxu0 %v2985
        %3161 = vmatmul.mubr.f32.gmra.mxu0 %v2912
        %v3162 = vpop.f32.mrf.mxu0
        %v3163 = vadd.f32 0.0, %v3162
        %v3164 = vpop.f32.mrf.mxu0
        %3165 = vmatprep.mubr.f32.mxu0 %v2988
        %3166 = vmatmul.mubr.f32.gmra.mxu0 %v2914
        %v3167 = vpop.f32.mrf.mxu0
        %v3168 = vadd.f32 0.0, %v3167
        %v3169 = vpop.f32.mrf.mxu0
        %3170 = vmatprep.mubr.f32.mxu0 %v2991
        %3171 = vmatmul.mubr.f32.gmra.mxu0 %v2916
        %v3172 = vpop.f32.mrf.mxu0
        %v3173 = vadd.f32 0.0, %v3172
        %v3174 = vpop.f32.mrf.mxu0
        %3175 = vmatprep.mubr.f32.mxu0 %v2994
        %3176 = vmatmul.mubr.f32.gmra.mxu0 %v2918
        %v3177 = vpop.f32.mrf.mxu0
        %v3178 = vadd.f32 0.0, %v3177
        %v3179 = vpop.f32.mrf.mxu0
        %3180 = vmatprep.mubr.f32.mxu0 %v2997
        %3181 = vmatmul.mubr.f32.gmra.mxu0 %v2920
        %v3182 = vpop.f32.mrf.mxu0
        %v3183 = vadd.f32 0.0, %v3182
        %v3184 = vpop.f32.mrf.mxu0
        %3185 = vmatprep.mubr.f32.mxu0 %v3000
        %3186 = vmatmul.mubr.f32.gmra.mxu0 %v2922
        %v3187 = vpop.f32.mrf.mxu0
        %v3188 = vadd.f32 0.0, %v3187
        %v3189 = vpop.f32.mrf.mxu0
        %3190 = vmatprep.mubr.f32.mxu0 %v3003
        %3191 = vmatmul.mubr.f32.gmra.mxu0 %v2924
        %v3192 = vpop.f32.mrf.mxu0
        %v3193 = vadd.f32 0.0, %v3192
        %v3194 = vpop.f32.mrf.mxu0
        %3195 = vmatprep.mubr.f32.mxu0 %v3006
        %3196 = vmatmul.mubr.f32.gmra.mxu0 %v2926
        %v3197 = vpop.f32.mrf.mxu0
        %v3198 = vadd.f32 0.0, %v3197
        %v3199 = vpop.f32.mrf.mxu0
        %3200 = vmatprep.mubr.f32.mxu0 %v3009
        %3201 = vmatmul.mubr.f32.gmra.mxu0 %v2928
        %v3202 = vpop.f32.mrf.mxu0
        %v3203 = vadd.f32 0.0, %v3202
        %v3204 = vpop.f32.mrf.mxu0
        %3205 = vmatprep.mubr.f32.mxu0 %v3012
        %3206 = vmatmul.mubr.f32.gmra.mxu0 %v2930
        %v3207 = vpop.f32.mrf.mxu0
        %v3208 = vadd.f32 0.0, %v3207
        %v3209 = vpop.f32.mrf.mxu0
        %3210 = vmatprep.mubr.f32.mxu0 %v3015
        %3211 = vmatmul.mubr.f32.gmra.mxu0 %v2932
        %v3212 = vpop.f32.mrf.mxu0
        %v3213 = vadd.f32 0.0, %v3212
        %v3214 = vpop.f32.mrf.mxu0
        %3215 = vmatprep.mubr.f32.mxu0 %v3018
        %3216 = vmatmul.mubr.f32.gmra.mxu0 %v2934
        %v3217 = vpop.f32.mrf.mxu0
        %v3218 = vadd.f32 0.0, %v3217
        %v3219 = vpop.f32.mrf.mxu0
        %3220 = vmatprep.mubr.f32.mxu0 %v3021
        %3221 = vmatmul.mubr.f32.gmra.mxu0 %v2936
        %v3222 = vpop.f32.mrf.mxu0
        %v3223 = vadd.f32 0.0, %v3222
        %v3224 = vpop.f32.mrf.mxu0
        %3225 = vmatprep.mubr.f32.mxu0 %v3024
        %3226 = vmatmul.mubr.f32.gmra.mxu0 %v2938
        %v3227 = vpop.f32.mrf.mxu0
        %v3228 = vadd.f32 0.0, %v3227
        %v3229 = vpop.f32.mrf.mxu0
        %3230 = vmatprep.mubr.f32.mxu0 %v3027
        %3231 = vmatmul.mubr.f32.gmra.mxu0 %v2940
        %v3232 = vpop.f32.mrf.mxu0
        %v3233 = vadd.f32 0.0, %v3232
        %v3234 = vpop.f32.mrf.mxu0
        %3235 = vmatprep.mubr.f32.mxu0 %v3030
        %3236 = vmatmul.mubr.f32.gmra.mxu0 %v2942
        %v3237 = vpop.f32.mrf.mxu0
        %v3238 = vadd.f32 0.0, %v3237
        %v3239 = vpop.f32.mrf.mxu0
        %3240 = vmatprep.mubr.f32.mxu0 %v3033
        %3241 = vmatmul.mubr.f32.gmra.mxu0 %v2944
        %v3242 = vpop.f32.mrf.mxu0
        %v3243 = vadd.f32 0.0, %v3242
        %v3244 = vpop.f32.mrf.mxu0
        %3245 = vmatprep.mubr.f32.mxu0 %v3036
        %3246 = vmatmul.mubr.f32.gmra.mxu0 %v2946
        %v3247 = vpop.f32.mrf.mxu0
        %v3248 = vadd.f32 0.0, %v3247
        %v3249 = vpop.f32.mrf.mxu0
        %3250 = vmatprep.mubr.f32.mxu0 %v3039
        %3251 = vmatmul.mubr.f32.gmra.mxu0 %v2948
        %v3252 = vpop.f32.mrf.mxu0
        %v3253 = vadd.f32 0.0, %v3252
        %v3254 = vpop.f32.mrf.mxu0
        %3255 = vmatprep.mubr.f32.mxu0 %v3042
        %3256 = vmatmul.mubr.f32.gmra.mxu0 %v2950
        %v3257 = vpop.f32.mrf.mxu0
        %v3258 = vadd.f32 0.0, %v3257
        %v3259 = vpop.f32.mrf.mxu0
        %3260 = vmatprep.mubr.f32.mxu0 %v3045
        %3261 = vmatmul.mubr.f32.gmra.mxu0 %v2952
        %v3262 = vpop.f32.mrf.mxu0
        %v3263 = vadd.f32 0.0, %v3262
        %v3264 = vpop.f32.mrf.mxu0
        %3265 = vmatprep.mubr.f32.mxu0 %v3048
        %3266 = vmatmul.mubr.f32.gmra.mxu0 %v2954
        %v3267 = vpop.f32.mrf.mxu0
        %v3268 = vadd.f32 0.0, %v3267
        %v3269 = vpop.f32.mrf.mxu0
        %3270 = vmatprep.mubr.f32.mxu0 %v3051
        %3271 = vmatmul.mubr.f32.gmra.mxu0 %v2956
        %v3272 = vpop.f32.mrf.mxu0
        %v3273 = vadd.f32 0.0, %v3272
        %v3274 = vpop.f32.mrf.mxu0
        %3275 = vmatprep.mubr.f32.mxu0 %v3054
        %3276 = vmatmul.mubr.f32.gmra.mxu0 %v2958
        %v3277 = vpop.f32.mrf.mxu0
        %v3278 = vadd.f32 0.0, %v3277
        %v3279 = vpop.f32.mrf.mxu0
        %3280 = vdwg.mxu0
        %v3281 = vmul.f32 %v2706, %v589
        %v3282 = vmul.f32 %v2708, %v591
        %v3283 = vmul.f32 %v2712, %v595
        %v3284 = vmul.f32 %v2714, %v597
        %v3285 = vmul.f32 %v2718, %v601
        %v3286 = vmul.f32 %v2720, %v603
        %v3287 = vmul.f32 %v2724, %v607
        %v3288 = vmul.f32 %v2726, %v609
        %v3289 = vmul.f32 %v2730, %v613
        %v3290 = vmul.f32 %v2732, %v615
        %v3291 = vmul.f32 %v2736, %v619
        %v3292 = vmul.f32 %v2738, %v621
        %v3293 = vmul.f32 %v2742, %v625
        %v3294 = vmul.f32 %v2744, %v627
        %v3295 = vmul.f32 %v2748, %v631
        %v3296 = vmul.f32 %v2750, %v633
        %v3297 = vmul.f32 %v2754, %v637
        %v3298 = vmul.f32 %v2756, %v639
        %v3299 = vmul.f32 %v2760, %v643
        %v3300 = vmul.f32 %v2762, %v645
        %v3301 = vmul.f32 %v2766, %v649
        %v3302 = vmul.f32 %v2768, %v651
        %v3303 = vmul.f32 %v2772, %v655
        %v3304 = vmul.f32 %v2774, %v657
        %v3305 = vmul.f32 %v2778, %v661
        %v3306 = vmul.f32 %v2780, %v663
        %v3307 = vmul.f32 %v2784, %v667
        %v3308 = vmul.f32 %v2786, %v669
        %v3309 = vmul.f32 %v2790, %v673
        %v3310 = vmul.f32 %v2792, %v675
        %v3311 = vmul.f32 %v2796, %v679
        %v3312 = vmul.f32 %v2798, %v681
        %v3313 = vmul.f32 %v2802, %v685
        %v3314 = vmul.f32 %v2804, %v687
        %v3315 = vmul.f32 %v2808, %v691
        %v3316 = vmul.f32 %v2810, %v693
        %v3317 = vmul.f32 %v2814, %v697
        %v3318 = vmul.f32 %v2816, %v699
        %v3319 = vmul.f32 %v2820, %v703
        %v3320 = vmul.f32 %v2822, %v705
        %v3321 = vmul.f32 %v2826, %v709
        %v3322 = vmul.f32 %v2828, %v711
        %v3323 = vmul.f32 %v2832, %v715
        %v3324 = vmul.f32 %v2834, %v717
        %v3325 = vmul.f32 %v2838, %v721
        %v3326 = vmul.f32 %v2840, %v723
        %v3327 = vmul.f32 %v2844, %v727
        %v3328 = vmul.f32 %v2846, %v729
        %v3329 = vmul.f32 %v2850, %v733
        %v3330 = vmul.f32 %v2852, %v735
        %v3331 = vmul.f32 %v2856, %v739
        %v3332 = vmul.f32 %v2858, %v741
        %v3333 = vmul.f32 %v2862, %v745
        %v3334 = vmul.f32 %v2864, %v747
        %v3335 = vmul.f32 %v2868, %v751
        %v3336 = vmul.f32 %v2870, %v753
        %v3337 = vmul.f32 %v2874, %v757
        %v3338 = vmul.f32 %v2876, %v759
        %v3339 = vmul.f32 %v2880, %v763
        %v3340 = vmul.f32 %v2882, %v765
        %v3341 = vmul.f32 %v2886, %v769
        %v3342 = vmul.f32 %v2888, %v771
        %v3343 = vmul.f32 %v2892, %v775
        %v3344 = vmul.f32 %v2894, %v777
        %v3346 = vsel %vm425, %v3282, 0
        %v3349 = vsel %vm425, %v3284, 0
        %v3352 = vsel %vm425, %v3286, 0
        %v3355 = vsel %vm425, %v3288, 0
        %v3358 = vsel %vm425, %v3290, 0
        %v3361 = vsel %vm425, %v3292, 0
        %v3364 = vsel %vm425, %v3294, 0
        %v3367 = vsel %vm425, %v3296, 0
        %v3370 = vsel %vm425, %v3298, 0
        %v3373 = vsel %vm425, %v3300, 0
        %v3376 = vsel %vm425, %v3302, 0
        %v3379 = vsel %vm425, %v3304, 0
        %v3382 = vsel %vm425, %v3306, 0
        %v3385 = vsel %vm425, %v3308, 0
        %v3388 = vsel %vm425, %v3310, 0
        %v3391 = vsel %vm425, %v3312, 0
        %v3394 = vsel %vm425, %v3314, 0
        %v3397 = vsel %vm425, %v3316, 0
        %v3400 = vsel %vm425, %v3318, 0
        %v3403 = vsel %vm425, %v3320, 0
        %v3406 = vsel %vm425, %v3322, 0
        %v3409 = vsel %vm425, %v3324, 0
        %v3412 = vsel %vm425, %v3326, 0
        %v3415 = vsel %vm425, %v3328, 0
        %v3418 = vsel %vm425, %v3330, 0
        %v3421 = vsel %vm425, %v3332, 0
        %v3424 = vsel %vm425, %v3334, 0
        %v3427 = vsel %vm425, %v3336, 0
        %v3430 = vsel %vm425, %v3338, 0
        %v3433 = vsel %vm425, %v3340, 0
        %v3436 = vsel %vm425, %v3342, 0
        %v3439 = vsel %vm425, %v3344, 0
        %3441 = vmatprep.subr.mxu0 0.0
        %3442 = vmatpush1.msra.mxu0 %v362
        %3443 = vmatprep.subr.mxu0 0.0
        %3444 = vmatpush1.msra.mxu0 %v361
        %3445 = vmatprep.subr.mxu0 0.0
        %3446 = vmatpush1.msra.mxu0 %v360
        %3447 = vmatprep.subr.mxu0 0.0
        %3448 = vmatpush1.msra.mxu0 %v359
        %3449 = vmatprep.subr.mxu0 0.0
        %3450 = vmatpush1.msra.mxu0 %v358
        %3451 = vmatprep.subr.mxu0 0.0
        %3452 = vmatpush1.msra.mxu0 %v357
        %3453 = vmatprep.subr.mxu0 0.0
        %3454 = vmatpush1.msra.mxu0 %v356
        %3455 = vmatprep.subr.mxu0 0.0
        %3456 = vmatpush1.msra.mxu0 %v355
        %3457 = vmatprep.subr.mxu0 0.0
        %3458 = vmatpush1.msra.mxu0 %v354
        %3459 = vmatprep.subr.mxu0 0.0
        %3460 = vmatpush1.msra.mxu0 %v353
        %3461 = vmatprep.subr.mxu0 0.0
        %3462 = vmatpush1.msra.mxu0 %v352
        %3463 = vmatprep.subr.mxu0 0.0
        %3464 = vmatpush1.msra.mxu0 %v351
        %3465 = vmatprep.subr.mxu0 0.0
        %3466 = vmatpush1.msra.mxu0 %v350
        %3467 = vmatprep.subr.mxu0 0.0
        %3468 = vmatpush1.msra.mxu0 %v349
        %3469 = vmatprep.subr.mxu0 0.0
        %3470 = vmatpush1.msra.mxu0 %v348
        %3471 = vmatprep.subr.mxu0 0.0
        %3472 = vmatpush1.msra.mxu0 %v347
        %3473 = vmatprep.subr.mxu0 0.0
        %3474 = vmatpush2.msra.mxu0 0.0
        %3475 = vmatprep.subr.mxu0 0.0
        %3476 = vmatpush2.msra.mxu0 0.0
        %3477 = vmatprep.subr.mxu0 0.0
        %3478 = vmatpush2.msra.mxu0 0.0
        %3479 = vmatprep.subr.mxu0 0.0
        %3480 = vmatpush2.msra.mxu0 0.0
        %3481 = vmatprep.subr.mxu0 0.0
        %3482 = vmatpush2.msra.mxu0 0.0
        %3483 = vmatprep.subr.mxu0 0.0
        %3484 = vmatpush2.msra.mxu0 0.0
        %3485 = vmatprep.subr.mxu0 0.0
        %3486 = vmatpush2.msra.mxu0 %v372
        %3487 = vmatprep.subr.mxu0 0.0
        %3488 = vmatpush2.msra.mxu0 %v371
        %3489 = vmatprep.subr.mxu0 0.0
        %3490 = vmatpush2.msra.mxu0 %v370
        %3491 = vmatprep.subr.mxu0 0.0
        %3492 = vmatpush2.msra.mxu0 %v369
        %3493 = vmatprep.subr.mxu0 0.0
        %3494 = vmatpush2.msra.mxu0 %v368
        %3495 = vmatprep.subr.mxu0 0.0
        %3496 = vmatpush2.msra.mxu0 %v367
        %3497 = vmatprep.subr.mxu0 0.0
        %3498 = vmatpush2.msra.mxu0 %v366
        %3499 = vmatprep.subr.mxu0 0.0
        %3500 = vmatpush2.msra.mxu0 %v365
        %3501 = vmatprep.subr.mxu0 0.0
        %3502 = vmatpush2.msra.mxu0 %v364
        %3503 = vmatprep.subr.mxu0 0.0
        %3504 = vmatpush2.msra.mxu0 %v363
        %3505 = vmatprep.mubr.f32.mxu0 %v3346
        %3506 = vmatmul.mubr.f32.gmra.mxu0 %v3281
        %v3507 = vpop.f32.mrf.mxu0
        %v3508 = vadd.f32 0.0, %v3507
        %v3509 = vpop.f32.mrf.mxu0
        %3510 = vmatprep.mubr.f32.mxu0 %v3349
        %3511 = vmatmul.mubr.f32.gmra.mxu0 %v3283
        %v3512 = vpop.f32.mrf.mxu0
        %v3513 = vadd.f32 0.0, %v3512
        %v3514 = vpop.f32.mrf.mxu0
        %3515 = vmatprep.mubr.f32.mxu0 %v3352
        %3516 = vmatmul.mubr.f32.gmra.mxu0 %v3285
        %v3517 = vpop.f32.mrf.mxu0
        %v3518 = vadd.f32 0.0, %v3517
        %v3519 = vpop.f32.mrf.mxu0
        %3520 = vmatprep.mubr.f32.mxu0 %v3355
        %3521 = vmatmul.mubr.f32.gmra.mxu0 %v3287
        %v3522 = vpop.f32.mrf.mxu0
        %v3523 = vadd.f32 0.0, %v3522
        %v3524 = vpop.f32.mrf.mxu0
        %3525 = vmatprep.mubr.f32.mxu0 %v3358
        %3526 = vmatmul.mubr.f32.gmra.mxu0 %v3289
        %v3527 = vpop.f32.mrf.mxu0
        %v3528 = vadd.f32 0.0, %v3527
        %v3529 = vpop.f32.mrf.mxu0
        %3530 = vmatprep.mubr.f32.mxu0 %v3361
        %3531 = vmatmul.mubr.f32.gmra.mxu0 %v3291
        %v3532 = vpop.f32.mrf.mxu0
        %v3533 = vadd.f32 0.0, %v3532
        %v3534 = vpop.f32.mrf.mxu0
        %3535 = vmatprep.mubr.f32.mxu0 %v3364
        %3536 = vmatmul.mubr.f32.gmra.mxu0 %v3293
        %v3537 = vpop.f32.mrf.mxu0
        %v3538 = vadd.f32 0.0, %v3537
        %v3539 = vpop.f32.mrf.mxu0
        %3540 = vmatprep.mubr.f32.mxu0 %v3367
        %3541 = vmatmul.mubr.f32.gmra.mxu0 %v3295
        %v3542 = vpop.f32.mrf.mxu0
        %v3543 = vadd.f32 0.0, %v3542
        %v3544 = vpop.f32.mrf.mxu0
        %3545 = vmatprep.mubr.f32.mxu0 %v3370
        %3546 = vmatmul.mubr.f32.gmra.mxu0 %v3297
        %v3547 = vpop.f32.mrf.mxu0
        %v3548 = vadd.f32 0.0, %v3547
        %v3549 = vpop.f32.mrf.mxu0
        %3550 = vmatprep.mubr.f32.mxu0 %v3373
        %3551 = vmatmul.mubr.f32.gmra.mxu0 %v3299
        %v3552 = vpop.f32.mrf.mxu0
        %v3553 = vadd.f32 0.0, %v3552
        %v3554 = vpop.f32.mrf.mxu0
        %3555 = vmatprep.mubr.f32.mxu0 %v3376
        %3556 = vmatmul.mubr.f32.gmra.mxu0 %v3301
        %v3557 = vpop.f32.mrf.mxu0
        %v3558 = vadd.f32 0.0, %v3557
        %v3559 = vpop.f32.mrf.mxu0
        %3560 = vmatprep.mubr.f32.mxu0 %v3379
        %3561 = vmatmul.mubr.f32.gmra.mxu0 %v3303
        %v3562 = vpop.f32.mrf.mxu0
        %v3563 = vadd.f32 0.0, %v3562
        %v3564 = vpop.f32.mrf.mxu0
        %3565 = vmatprep.mubr.f32.mxu0 %v3382
        %3566 = vmatmul.mubr.f32.gmra.mxu0 %v3305
        %v3567 = vpop.f32.mrf.mxu0
        %v3568 = vadd.f32 0.0, %v3567
        %v3569 = vpop.f32.mrf.mxu0
        %3570 = vmatprep.mubr.f32.mxu0 %v3385
        %3571 = vmatmul.mubr.f32.gmra.mxu0 %v3307
        %v3572 = vpop.f32.mrf.mxu0
        %v3573 = vadd.f32 0.0, %v3572
        %v3574 = vpop.f32.mrf.mxu0
        %3575 = vmatprep.mubr.f32.mxu0 %v3388
        %3576 = vmatmul.mubr.f32.gmra.mxu0 %v3309
        %v3577 = vpop.f32.mrf.mxu0
        %v3578 = vadd.f32 0.0, %v3577
        %v3579 = vpop.f32.mrf.mxu0
        %3580 = vmatprep.mubr.f32.mxu0 %v3391
        %3581 = vmatmul.mubr.f32.gmra.mxu0 %v3311
        %v3582 = vpop.f32.mrf.mxu0
        %v3583 = vadd.f32 0.0, %v3582
        %v3584 = vpop.f32.mrf.mxu0
        %3585 = vmatprep.mubr.f32.mxu0 %v3394
        %3586 = vmatmul.mubr.f32.gmra.mxu0 %v3313
        %v3587 = vpop.f32.mrf.mxu0
        %v3588 = vadd.f32 0.0, %v3587
        %v3589 = vpop.f32.mrf.mxu0
        %3590 = vmatprep.mubr.f32.mxu0 %v3397
        %3591 = vmatmul.mubr.f32.gmra.mxu0 %v3315
        %v3592 = vpop.f32.mrf.mxu0
        %v3593 = vadd.f32 0.0, %v3592
        %v3594 = vpop.f32.mrf.mxu0
        %3595 = vmatprep.mubr.f32.mxu0 %v3400
        %3596 = vmatmul.mubr.f32.gmra.mxu0 %v3317
        %v3597 = vpop.f32.mrf.mxu0
        %v3598 = vadd.f32 0.0, %v3597
        %v3599 = vpop.f32.mrf.mxu0
        %3600 = vmatprep.mubr.f32.mxu0 %v3403
        %3601 = vmatmul.mubr.f32.gmra.mxu0 %v3319
        %v3602 = vpop.f32.mrf.mxu0
        %v3603 = vadd.f32 0.0, %v3602
        %v3604 = vpop.f32.mrf.mxu0
        %3605 = vmatprep.mubr.f32.mxu0 %v3406
        %3606 = vmatmul.mubr.f32.gmra.mxu0 %v3321
        %v3607 = vpop.f32.mrf.mxu0
        %v3608 = vadd.f32 0.0, %v3607
        %v3609 = vpop.f32.mrf.mxu0
        %3610 = vmatprep.mubr.f32.mxu0 %v3409
        %3611 = vmatmul.mubr.f32.gmra.mxu0 %v3323
        %v3612 = vpop.f32.mrf.mxu0
        %v3613 = vadd.f32 0.0, %v3612
        %v3614 = vpop.f32.mrf.mxu0
        %3615 = vmatprep.mubr.f32.mxu0 %v3412
        %3616 = vmatmul.mubr.f32.gmra.mxu0 %v3325
        %v3617 = vpop.f32.mrf.mxu0
        %v3618 = vadd.f32 0.0, %v3617
        %v3619 = vpop.f32.mrf.mxu0
        %3620 = vmatprep.mubr.f32.mxu0 %v3415
        %3621 = vmatmul.mubr.f32.gmra.mxu0 %v3327
        %v3622 = vpop.f32.mrf.mxu0
        %v3623 = vadd.f32 0.0, %v3622
        %v3624 = vpop.f32.mrf.mxu0
        %3625 = vmatprep.mubr.f32.mxu0 %v3418
        %3626 = vmatmul.mubr.f32.gmra.mxu0 %v3329
        %v3627 = vpop.f32.mrf.mxu0
        %v3628 = vadd.f32 0.0, %v3627
        %v3629 = vpop.f32.mrf.mxu0
        %3630 = vmatprep.mubr.f32.mxu0 %v3421
        %3631 = vmatmul.mubr.f32.gmra.mxu0 %v3331
        %v3632 = vpop.f32.mrf.mxu0
        %v3633 = vadd.f32 0.0, %v3632
        %v3634 = vpop.f32.mrf.mxu0
        %3635 = vmatprep.mubr.f32.mxu0 %v3424
        %3636 = vmatmul.mubr.f32.gmra.mxu0 %v3333
        %v3637 = vpop.f32.mrf.mxu0
        %v3638 = vadd.f32 0.0, %v3637
        %v3639 = vpop.f32.mrf.mxu0
        %3640 = vmatprep.mubr.f32.mxu0 %v3427
        %3641 = vmatmul.mubr.f32.gmra.mxu0 %v3335
        %v3642 = vpop.f32.mrf.mxu0
        %v3643 = vadd.f32 0.0, %v3642
        %v3644 = vpop.f32.mrf.mxu0
        %3645 = vmatprep.mubr.f32.mxu0 %v3430
        %3646 = vmatmul.mubr.f32.gmra.mxu0 %v3337
        %v3647 = vpop.f32.mrf.mxu0
        %v3648 = vadd.f32 0.0, %v3647
        %v3649 = vpop.f32.mrf.mxu0
        %3650 = vmatprep.mubr.f32.mxu0 %v3433
        %3651 = vmatmul.mubr.f32.gmra.mxu0 %v3339
        %v3652 = vpop.f32.mrf.mxu0
        %v3653 = vadd.f32 0.0, %v3652
        %v3654 = vpop.f32.mrf.mxu0
        %3655 = vmatprep.mubr.f32.mxu0 %v3436
        %3656 = vmatmul.mubr.f32.gmra.mxu0 %v3341
        %v3657 = vpop.f32.mrf.mxu0
        %v3658 = vadd.f32 0.0, %v3657
        %v3659 = vpop.f32.mrf.mxu0
        %3660 = vmatprep.mubr.f32.mxu0 %v3439
        %3661 = vmatmul.mubr.f32.gmra.mxu0 %v3343
        %v3662 = vpop.f32.mrf.mxu0
        %v3663 = vadd.f32 0.0, %v3662
        %v3664 = vpop.f32.mrf.mxu0
        %3665 = vdwg.mxu0
        %v3666 = vmul.f32 %v3123, %v3123
        %v3667 = vmul.f32 %v3128, %v3128
        %v3668 = vmul.f32 %v3133, %v3133
        %v3669 = vmul.f32 %v3138, %v3138
        %v3670 = vmul.f32 %v3143, %v3143
        %v3671 = vmul.f32 %v3148, %v3148
        %v3672 = vmul.f32 %v3153, %v3153
        %v3673 = vmul.f32 %v3158, %v3158
        %v3674 = vmul.f32 %v3163, %v3163
        %v3675 = vmul.f32 %v3168, %v3168
        %v3676 = vmul.f32 %v3173, %v3173
        %v3677 = vmul.f32 %v3178, %v3178
        %v3678 = vmul.f32 %v3183, %v3183
        %v3679 = vmul.f32 %v3188, %v3188
        %v3680 = vmul.f32 %v3193, %v3193
        %v3681 = vmul.f32 %v3198, %v3198
        %v3682 = vmul.f32 %v3203, %v3203
        %v3683 = vmul.f32 %v3208, %v3208
        %v3684 = vmul.f32 %v3213, %v3213
        %v3685 = vmul.f32 %v3218, %v3218
        %v3686 = vmul.f32 %v3223, %v3223
        %v3687 = vmul.f32 %v3228, %v3228
        %v3688 = vmul.f32 %v3233, %v3233
        %v3689 = vmul.f32 %v3238, %v3238
        %v3690 = vmul.f32 %v3243, %v3243
        %v3691 = vmul.f32 %v3248, %v3248
        %v3692 = vmul.f32 %v3253, %v3253
        %v3693 = vmul.f32 %v3258, %v3258
        %v3694 = vmul.f32 %v3263, %v3263
        %v3695 = vmul.f32 %v3268, %v3268
        %v3696 = vmul.f32 %v3273, %v3273
        %v3697 = vmul.f32 %v3278, %v3278
        %v3698 = vmul.f32 %v3508, %v3508
        %v3699 = vmul.f32 %v3513, %v3513
        %v3700 = vmul.f32 %v3518, %v3518
        %v3701 = vmul.f32 %v3523, %v3523
        %v3702 = vmul.f32 %v3528, %v3528
        %v3703 = vmul.f32 %v3533, %v3533
        %v3704 = vmul.f32 %v3538, %v3538
        %v3705 = vmul.f32 %v3543, %v3543
        %v3706 = vmul.f32 %v3548, %v3548
        %v3707 = vmul.f32 %v3553, %v3553
        %v3708 = vmul.f32 %v3558, %v3558
        %v3709 = vmul.f32 %v3563, %v3563
        %v3710 = vmul.f32 %v3568, %v3568
        %v3711 = vmul.f32 %v3573, %v3573
        %v3712 = vmul.f32 %v3578, %v3578
        %v3713 = vmul.f32 %v3583, %v3583
        %v3714 = vmul.f32 %v3588, %v3588
        %v3715 = vmul.f32 %v3593, %v3593
        %v3716 = vmul.f32 %v3598, %v3598
        %v3717 = vmul.f32 %v3603, %v3603
        %v3718 = vmul.f32 %v3608, %v3608
        %v3719 = vmul.f32 %v3613, %v3613
        %v3720 = vmul.f32 %v3618, %v3618
        %v3721 = vmul.f32 %v3623, %v3623
        %v3722 = vmul.f32 %v3628, %v3628
        %v3723 = vmul.f32 %v3633, %v3633
        %v3724 = vmul.f32 %v3638, %v3638
        %v3725 = vmul.f32 %v3643, %v3643
        %v3726 = vmul.f32 %v3648, %v3648
        %v3727 = vmul.f32 %v3653, %v3653
        %v3728 = vmul.f32 %v3658, %v3658
        %v3729 = vmul.f32 %v3663, %v3663
        %v3730 = vadd.f32 %v3666, %v3698
        %v3731 = vadd.f32 %v3667, %v3699
        %v3732 = vadd.f32 %v3668, %v3700
        %v3733 = vadd.f32 %v3669, %v3701
        %v3734 = vadd.f32 %v3670, %v3702
        %v3735 = vadd.f32 %v3671, %v3703
        %v3736 = vadd.f32 %v3672, %v3704
        %v3737 = vadd.f32 %v3673, %v3705
        %v3738 = vadd.f32 %v3674, %v3706
        %v3739 = vadd.f32 %v3675, %v3707
        %v3740 = vadd.f32 %v3676, %v3708
        %v3741 = vadd.f32 %v3677, %v3709
        %v3742 = vadd.f32 %v3678, %v3710
        %v3743 = vadd.f32 %v3679, %v3711
        %v3744 = vadd.f32 %v3680, %v3712
        %v3745 = vadd.f32 %v3681, %v3713
        %v3746 = vadd.f32 %v3682, %v3714
        %v3747 = vadd.f32 %v3683, %v3715
        %v3748 = vadd.f32 %v3684, %v3716
        %v3749 = vadd.f32 %v3685, %v3717
        %v3750 = vadd.f32 %v3686, %v3718
        %v3751 = vadd.f32 %v3687, %v3719
        %v3752 = vadd.f32 %v3688, %v3720
        %v3753 = vadd.f32 %v3689, %v3721
        %v3754 = vadd.f32 %v3690, %v3722
        %v3755 = vadd.f32 %v3691, %v3723
        %v3756 = vadd.f32 %v3692, %v3724
        %v3757 = vadd.f32 %v3693, %v3725
        %v3758 = vadd.f32 %v3694, %v3726
        %v3759 = vadd.f32 %v3695, %v3727
        %v3760 = vadd.f32 %v3696, %v3728
        %v3761 = vadd.f32 %v3697, %v3729
        %v3762 = vsel %vm2204, %v3730, 0.0
        %3763 = vadd.xlane.f32.xlu0 %v3762
        %v3764 = vpop.xlane.xlu0 %3763
        %v3765 = vsel %vm2204, %v3731, 0.0
        %3766 = vadd.xlane.f32.xlu0 %v3765
        %v3767 = vpop.xlane.xlu0 %3766
        %v3768 = vsel %vm2204, %v3732, 0.0
        %3769 = vadd.xlane.f32.xlu0 %v3768
        %v3770 = vpop.xlane.xlu0 %3769
        %v3771 = vsel %vm2204, %v3733, 0.0
        %3772 = vadd.xlane.f32.xlu0 %v3771
        %v3773 = vpop.xlane.xlu0 %3772
        %v3774 = vsel %vm2204, %v3734, 0.0
        %3775 = vadd.xlane.f32.xlu0 %v3774
        %v3776 = vpop.xlane.xlu0 %3775
        %v3777 = vsel %vm2204, %v3735, 0.0
        %3778 = vadd.xlane.f32.xlu0 %v3777
        %v3779 = vpop.xlane.xlu0 %3778
        %v3780 = vsel %vm2204, %v3736, 0.0
        %3781 = vadd.xlane.f32.xlu0 %v3780
        %v3782 = vpop.xlane.xlu0 %3781
        %v3783 = vsel %vm2204, %v3737, 0.0
        %3784 = vadd.xlane.f32.xlu0 %v3783
        %v3785 = vpop.xlane.xlu0 %3784
        %v3786 = vsel %vm2204, %v3738, 0.0
        %3787 = vadd.xlane.f32.xlu0 %v3786
        %v3788 = vpop.xlane.xlu0 %3787
        %v3789 = vsel %vm2204, %v3739, 0.0
        %3790 = vadd.xlane.f32.xlu0 %v3789
        %v3791 = vpop.xlane.xlu0 %3790
        %v3792 = vsel %vm2204, %v3740, 0.0
        %3793 = vadd.xlane.f32.xlu0 %v3792
        %v3794 = vpop.xlane.xlu0 %3793
        %v3795 = vsel %vm2204, %v3741, 0.0
        %3796 = vadd.xlane.f32.xlu0 %v3795
        %v3797 = vpop.xlane.xlu0 %3796
        %v3798 = vsel %vm2204, %v3742, 0.0
        %3799 = vadd.xlane.f32.xlu0 %v3798
        %v3800 = vpop.xlane.xlu0 %3799
        %v3801 = vsel %vm2204, %v3743, 0.0
        %3802 = vadd.xlane.f32.xlu0 %v3801
        %v3803 = vpop.xlane.xlu0 %3802
        %v3804 = vsel %vm2204, %v3744, 0.0
        %3805 = vadd.xlane.f32.xlu0 %v3804
        %v3806 = vpop.xlane.xlu0 %3805
        %v3807 = vsel %vm2204, %v3745, 0.0
        %3808 = vadd.xlane.f32.xlu0 %v3807
        %v3809 = vpop.xlane.xlu0 %3808
        %v3810 = vsel %vm2204, %v3746, 0.0
        %3811 = vadd.xlane.f32.xlu0 %v3810
        %v3812 = vpop.xlane.xlu0 %3811
        %v3813 = vsel %vm2204, %v3747, 0.0
        %3814 = vadd.xlane.f32.xlu0 %v3813
        %v3815 = vpop.xlane.xlu0 %3814
        %v3816 = vsel %vm2204, %v3748, 0.0
        %3817 = vadd.xlane.f32.xlu0 %v3816
        %v3818 = vpop.xlane.xlu0 %3817
        %v3819 = vsel %vm2204, %v3749, 0.0
        %3820 = vadd.xlane.f32.xlu0 %v3819
        %v3821 = vpop.xlane.xlu0 %3820
        %v3822 = vsel %vm2204, %v3750, 0.0
        %3823 = vadd.xlane.f32.xlu0 %v3822
        %v3824 = vpop.xlane.xlu0 %3823
        %v3825 = vsel %vm2204, %v3751, 0.0
        %3826 = vadd.xlane.f32.xlu0 %v3825
        %v3827 = vpop.xlane.xlu0 %3826
        %v3828 = vsel %vm2204, %v3752, 0.0
        %3829 = vadd.xlane.f32.xlu0 %v3828
        %v3830 = vpop.xlane.xlu0 %3829
        %v3831 = vsel %vm2204, %v3753, 0.0
        %3832 = vadd.xlane.f32.xlu0 %v3831
        %v3833 = vpop.xlane.xlu0 %3832
        %v3834 = vsel %vm2204, %v3754, 0.0
        %3835 = vadd.xlane.f32.xlu0 %v3834
        %v3836 = vpop.xlane.xlu0 %3835
        %v3837 = vsel %vm2204, %v3755, 0.0
        %3838 = vadd.xlane.f32.xlu0 %v3837
        %v3839 = vpop.xlane.xlu0 %3838
        %v3840 = vsel %vm2204, %v3756, 0.0
        %3841 = vadd.xlane.f32.xlu0 %v3840
        %v3842 = vpop.xlane.xlu0 %3841
        %v3843 = vsel %vm2204, %v3757, 0.0
        %3844 = vadd.xlane.f32.xlu0 %v3843
        %v3845 = vpop.xlane.xlu0 %3844
        %v3846 = vsel %vm2204, %v3758, 0.0
        %3847 = vadd.xlane.f32.xlu0 %v3846
        %v3848 = vpop.xlane.xlu0 %3847
        %v3849 = vsel %vm2204, %v3759, 0.0
        %3850 = vadd.xlane.f32.xlu0 %v3849
        %v3851 = vpop.xlane.xlu0 %3850
        %v3852 = vsel %vm2204, %v3760, 0.0
        %3853 = vadd.xlane.f32.xlu0 %v3852
        %v3854 = vpop.xlane.xlu0 %3853
        %v3855 = vsel %vm2204, %v3761, 0.0
        %3856 = vadd.xlane.f32.xlu0 %v3855
        %v3857 = vpop.xlane.xlu0 %3856
        %v3858 = vmul.f32 %v3764, 0.07692308
        %v3859 = vmul.f32 %v3767, 0.07692308
        %v3860 = vmul.f32 %v3770, 0.07692308
        %v3861 = vmul.f32 %v3773, 0.07692308
        %v3862 = vmul.f32 %v3776, 0.07692308
        %v3863 = vmul.f32 %v3779, 0.07692308
        %v3864 = vmul.f32 %v3782, 0.07692308
        %v3865 = vmul.f32 %v3785, 0.07692308
        %v3866 = vmul.f32 %v3788, 0.07692308
        %v3867 = vmul.f32 %v3791, 0.07692308
        %v3868 = vmul.f32 %v3794, 0.07692308
        %v3869 = vmul.f32 %v3797, 0.07692308
        %v3870 = vmul.f32 %v3800, 0.07692308
        %v3871 = vmul.f32 %v3803, 0.07692308
        %v3872 = vmul.f32 %v3806, 0.07692308
        %v3873 = vmul.f32 %v3809, 0.07692308
        %v3874 = vmul.f32 %v3812, 0.07692308
        %v3875 = vmul.f32 %v3815, 0.07692308
        %v3876 = vmul.f32 %v3818, 0.07692308
        %v3877 = vmul.f32 %v3821, 0.07692308
        %v3878 = vmul.f32 %v3824, 0.07692308
        %v3879 = vmul.f32 %v3827, 0.07692308
        %v3880 = vmul.f32 %v3830, 0.07692308
        %v3881 = vmul.f32 %v3833, 0.07692308
        %v3882 = vmul.f32 %v3836, 0.07692308
        %v3883 = vmul.f32 %v3839, 0.07692308
        %v3884 = vmul.f32 %v3842, 0.07692308
        %v3885 = vmul.f32 %v3845, 0.07692308
        %v3886 = vmul.f32 %v3848, 0.07692308
        %v3887 = vmul.f32 %v3851, 0.07692308
        %v3888 = vmul.f32 %v3854, 0.07692308
        %v3889 = vmul.f32 %v3857, 0.07692308
        %vm3890 = vcmp.gt.f32.partialorder %v3858, %v2301
        %vm3891 = vcmp.gt.f32.partialorder %v3859, %v2302
        %vm3892 = vcmp.gt.f32.partialorder %v3860, %v2303
        %vm3893 = vcmp.gt.f32.partialorder %v3861, %v2304
        %vm3894 = vcmp.gt.f32.partialorder %v3862, %v2305
        %vm3895 = vcmp.gt.f32.partialorder %v3863, %v2306
        %vm3896 = vcmp.gt.f32.partialorder %v3864, %v2307
        %vm3897 = vcmp.gt.f32.partialorder %v3865, %v2308
        %vm3898 = vcmp.gt.f32.partialorder %v3866, %v2309
        %vm3899 = vcmp.gt.f32.partialorder %v3867, %v2310
        %vm3900 = vcmp.gt.f32.partialorder %v3868, %v2311
        %vm3901 = vcmp.gt.f32.partialorder %v3869, %v2312
        %vm3902 = vcmp.gt.f32.partialorder %v3870, %v2313
        %vm3903 = vcmp.gt.f32.partialorder %v3871, %v2314
        %vm3904 = vcmp.gt.f32.partialorder %v3872, %v2315
        %vm3905 = vcmp.gt.f32.partialorder %v3873, %v2316
        %vm3906 = vcmp.gt.f32.partialorder %v3874, %v2317
        %vm3907 = vcmp.gt.f32.partialorder %v3875, %v2318
        %vm3908 = vcmp.gt.f32.partialorder %v3876, %v2319
        %vm3909 = vcmp.gt.f32.partialorder %v3877, %v2320
        %vm3910 = vcmp.gt.f32.partialorder %v3878, %v2321
        %vm3911 = vcmp.gt.f32.partialorder %v3879, %v2322
        %vm3912 = vcmp.gt.f32.partialorder %v3880, %v2323
        %vm3913 = vcmp.gt.f32.partialorder %v3881, %v2324
        %vm3914 = vcmp.gt.f32.partialorder %v3882, %v2325
        %vm3915 = vcmp.gt.f32.partialorder %v3883, %v2326
        %vm3916 = vcmp.gt.f32.partialorder %v3884, %v2327
        %vm3917 = vcmp.gt.f32.partialorder %v3885, %v2328
        %vm3918 = vcmp.gt.f32.partialorder %v3886, %v2329
        %vm3919 = vcmp.gt.f32.partialorder %v3887, %v2330
        %vm3920 = vcmp.gt.f32.partialorder %v3888, %v2331
        %vm3921 = vcmp.gt.f32.partialorder %v3889, %v2332
        %v3922 = vsel %vm3890, 1, 0
        %v3923 = vsel %vm3891, 1, 0
        %v3924 = vsel %vm3892, 1, 0
        %v3925 = vsel %vm3893, 1, 0
        %v3926 = vsel %vm3894, 1, 0
        %v3927 = vsel %vm3895, 1, 0
        %v3928 = vsel %vm3896, 1, 0
        %v3929 = vsel %vm3897, 1, 0
        %v3930 = vsel %vm3898, 1, 0
        %v3931 = vsel %vm3899, 1, 0
        %v3932 = vsel %vm3900, 1, 0
        %v3933 = vsel %vm3901, 1, 0
        %v3934 = vsel %vm3902, 1, 0
        %v3935 = vsel %vm3903, 1, 0
        %v3936 = vsel %vm3904, 1, 0
        %v3937 = vsel %vm3905, 1, 0
        %v3938 = vsel %vm3906, 1, 0
        %v3939 = vsel %vm3907, 1, 0
        %v3940 = vsel %vm3908, 1, 0
        %v3941 = vsel %vm3909, 1, 0
        %v3942 = vsel %vm3910, 1, 0
        %v3943 = vsel %vm3911, 1, 0
        %v3944 = vsel %vm3912, 1, 0
        %v3945 = vsel %vm3913, 1, 0
        %v3946 = vsel %vm3914, 1, 0
        %v3947 = vsel %vm3915, 1, 0
        %v3948 = vsel %vm3916, 1, 0
        %v3949 = vsel %vm3917, 1, 0
        %v3950 = vsel %vm3918, 1, 0
        %v3951 = vsel %vm3919, 1, 0
        %v3952 = vsel %vm3920, 1, 0
        %v3953 = vsel %vm3921, 1, 0
        %vm3954 = vcmp.eq.s32.totalorder %v3922, 1
        %vm3955 = vcmp.eq.s32.totalorder %v3923, 1
        %vm3956 = vcmp.eq.s32.totalorder %v3924, 1
        %vm3957 = vcmp.eq.s32.totalorder %v3925, 1
        %vm3958 = vcmp.eq.s32.totalorder %v3926, 1
        %vm3959 = vcmp.eq.s32.totalorder %v3927, 1
        %vm3960 = vcmp.eq.s32.totalorder %v3928, 1
        %vm3961 = vcmp.eq.s32.totalorder %v3929, 1
        %vm3962 = vcmp.eq.s32.totalorder %v3930, 1
        %vm3963 = vcmp.eq.s32.totalorder %v3931, 1
        %vm3964 = vcmp.eq.s32.totalorder %v3932, 1
        %vm3965 = vcmp.eq.s32.totalorder %v3933, 1
        %vm3966 = vcmp.eq.s32.totalorder %v3934, 1
        %vm3967 = vcmp.eq.s32.totalorder %v3935, 1
        %vm3968 = vcmp.eq.s32.totalorder %v3936, 1
        %vm3969 = vcmp.eq.s32.totalorder %v3937, 1
        %vm3970 = vcmp.eq.s32.totalorder %v3938, 1
        %vm3971 = vcmp.eq.s32.totalorder %v3939, 1
        %vm3972 = vcmp.eq.s32.totalorder %v3940, 1
        %vm3973 = vcmp.eq.s32.totalorder %v3941, 1
        %vm3974 = vcmp.eq.s32.totalorder %v3942, 1
        %vm3975 = vcmp.eq.s32.totalorder %v3943, 1
        %vm3976 = vcmp.eq.s32.totalorder %v3944, 1
        %vm3977 = vcmp.eq.s32.totalorder %v3945, 1
        %vm3978 = vcmp.eq.s32.totalorder %v3946, 1
        %vm3979 = vcmp.eq.s32.totalorder %v3947, 1
        %vm3980 = vcmp.eq.s32.totalorder %v3948, 1
        %vm3981 = vcmp.eq.s32.totalorder %v3949, 1
        %vm3982 = vcmp.eq.s32.totalorder %v3950, 1
        %vm3983 = vcmp.eq.s32.totalorder %v3951, 1
        %vm3984 = vcmp.eq.s32.totalorder %v3952, 1
        %vm3985 = vcmp.eq.s32.totalorder %v3953, 1
        %v3986 = vsel %vm3954, %v2435, %v879
        %v3987 = vsel %vm3955, %v2440, %v884
        %v3988 = vsel %vm3956, %v2445, %v889
        %v3989 = vsel %vm3957, %v2450, %v894
        %v3990 = vsel %vm3958, %v2455, %v899
        %v3991 = vsel %vm3959, %v2460, %v904
        %v3992 = vsel %vm3960, %v2465, %v909
        %v3993 = vsel %vm3961, %v2470, %v914
        %v3994 = vsel %vm3962, %v2475, %v919
        %v3995 = vsel %vm3963, %v2480, %v924
        %v3996 = vsel %vm3964, %v2485, %v929
        %v3997 = vsel %vm3965, %v2490, %v934
        %v3998 = vsel %vm3966, %v2495, %v939
        %v3999 = vsel %vm3967, %v2500, %v944
        %v4000 = vsel %vm3968, %v2505, %v949
        %v4001 = vsel %vm3969, %v2510, %v954
        %v4002 = vsel %vm3970, %v2515, %v959
        %v4003 = vsel %vm3971, %v2520, %v964
        %v4004 = vsel %vm3972, %v2525, %v969
        %v4005 = vsel %vm3973, %v2530, %v974
        %v4006 = vsel %vm3974, %v2535, %v979
        %v4007 = vsel %vm3975, %v2540, %v984
        %v4008 = vsel %vm3976, %v2545, %v989
        %v4009 = vsel %vm3977, %v2550, %v994
        %v4010 = vsel %vm3978, %v2555, %v999
        %v4011 = vsel %vm3979, %v2560, %v1004
        %v4012 = vsel %vm3980, %v2565, %v1009
        %v4013 = vsel %vm3981, %v2570, %v1014
        %v4014 = vsel %vm3982, %v2575, %v1019
        %v4015 = vsel %vm3983, %v2580, %v1024
        %v4016 = vsel %vm3984, %v2585, %v1029
        %v4017 = vsel %vm3985, %v2590, %v1034
        %v4018 = vsel %vm3890, %v3858, %v2301
        %v4019 = vsel %vm3891, %v3859, %v2302
        %v4020 = vsel %vm3892, %v3860, %v2303
        %v4021 = vsel %vm3893, %v3861, %v2304
        %v4022 = vsel %vm3894, %v3862, %v2305
        %v4023 = vsel %vm3895, %v3863, %v2306
        %v4024 = vsel %vm3896, %v3864, %v2307
        %v4025 = vsel %vm3897, %v3865, %v2308
        %v4026 = vsel %vm3898, %v3866, %v2309
        %v4027 = vsel %vm3899, %v3867, %v2310
        %v4028 = vsel %vm3900, %v3868, %v2311
        %v4029 = vsel %vm3901, %v3869, %v2312
        %v4030 = vsel %vm3902, %v3870, %v2313
        %v4031 = vsel %vm3903, %v3871, %v2314
        %v4032 = vsel %vm3904, %v3872, %v2315
        %v4033 = vsel %vm3905, %v3873, %v2316
        %v4034 = vsel %vm3906, %v3874, %v2317
        %v4035 = vsel %vm3907, %v3875, %v2318
        %v4036 = vsel %vm3908, %v3876, %v2319
        %v4037 = vsel %vm3909, %v3877, %v2320
        %v4038 = vsel %vm3910, %v3878, %v2321
        %v4039 = vsel %vm3911, %v3879, %v2322
        %v4040 = vsel %vm3912, %v3880, %v2323
        %v4041 = vsel %vm3913, %v3881, %v2324
        %v4042 = vsel %vm3914, %v3882, %v2325
        %v4043 = vsel %vm3915, %v3883, %v2326
        %v4044 = vsel %vm3916, %v3884, %v2327
        %v4045 = vsel %vm3917, %v3885, %v2328
        %v4046 = vsel %vm3918, %v3886, %v2329
        %v4047 = vsel %vm3919, %v3887, %v2330
        %v4048 = vsel %vm3920, %v3888, %v2331
        %v4049 = vsel %vm3921, %v3889, %v2332
        %s4050 = scalar_lea.vmem %s1, 416
        %v4051 = vld [vmem:[%s4050] sm:$0xff]
        %v4052 = vld [vmem:[%s4050 + $0x8] sm:$0xff]
        %v4053 = vld [vmem:[%s4050 + $0x10] sm:$0xff]
        %v4054 = vld [vmem:[%s4050 + $0x18] sm:$0xff]
        %v4055 = vld [vmem:[%s4050 + $0x20] sm:$0xff]
        %v4056 = vld [vmem:[%s4050 + $0x28] sm:$0xff]
        %v4057 = vld [vmem:[%s4050 + $0x30] sm:$0xff]
        %v4058 = vld [vmem:[%s4050 + $0x38] sm:$0xff]
        %v4059 = vld [vmem:[%s4050 + $0x40] sm:$0xff]
        %v4060 = vld [vmem:[%s4050 + $0x48] sm:$0xff]
        %v4061 = vld [vmem:[%s4050 + $0x50] sm:$0xff]
        %v4062 = vld [vmem:[%s4050 + $0x58] sm:$0xff]
        %v4063 = vld [vmem:[%s4050 + $0x60] sm:$0xff]
        %v4064 = vld [vmem:[%s4050 + $0x68] sm:$0xff]
        %v4065 = vld [vmem:[%s4050 + $0x70] sm:$0xff]
        %v4066 = vld [vmem:[%s4050 + $0x78] sm:$0xff]
        %v4067 = vld [vmem:[%s4050 + $0x80] sm:$0xff]
        %v4068 = vld [vmem:[%s4050 + $0x88] sm:$0xff]
        %v4069 = vld [vmem:[%s4050 + $0x90] sm:$0xff]
        %v4070 = vld [vmem:[%s4050 + $0x98] sm:$0xff]
        %v4071 = vld [vmem:[%s4050 + $0xa0] sm:$0xff]
        %v4072 = vld [vmem:[%s4050 + $0xa8] sm:$0xff]
        %v4073 = vld [vmem:[%s4050 + $0xb0] sm:$0xff]
        %v4074 = vld [vmem:[%s4050 + $0xb8] sm:$0xff]
        %v4075 = vld [vmem:[%s4050 + $0xc0] sm:$0xff]
        %v4076 = vld [vmem:[%s4050 + $0xc8] sm:$0xff]
        %s4077 = scalar_lea.vmem %s2, 2
        %v4078 = vld [vmem:[%s4077] sm:$0x1]
        %v4080 = vlaneseq
        %v4081 = vshrl.u32 %v4080, 7
        %v4082 = vsub.s32 0, %v4081
        %v4083 = vrot.slane %v4078, %v4082
        %4085 = vmatprep.subr.mxu0 0.0
        %4086 = vmatpush1.msra.mxu0 %v4066
        %4087 = vmatprep.subr.mxu0 0.0
        %4088 = vmatpush1.msra.mxu0 %v4065
        %4089 = vmatprep.subr.mxu0 0.0
        %4090 = vmatpush1.msra.mxu0 %v4064
        %4091 = vmatprep.subr.mxu0 0.0
        %4092 = vmatpush1.msra.mxu0 %v4063
        %4093 = vmatprep.subr.mxu0 0.0
        %4094 = vmatpush1.msra.mxu0 %v4062
        %4095 = vmatprep.subr.mxu0 0.0
        %4096 = vmatpush1.msra.mxu0 %v4061
        %4097 = vmatprep.subr.mxu0 0.0
        %4098 = vmatpush1.msra.mxu0 %v4060
        %4099 = vmatprep.subr.mxu0 0.0
        %4100 = vmatpush1.msra.mxu0 %v4059
        %4101 = vmatprep.subr.mxu0 0.0
        %4102 = vmatpush1.msra.mxu0 %v4058
        %4103 = vmatprep.subr.mxu0 0.0
        %4104 = vmatpush1.msra.mxu0 %v4057
        %4105 = vmatprep.subr.mxu0 0.0
        %4106 = vmatpush1.msra.mxu0 %v4056
        %4107 = vmatprep.subr.mxu0 0.0
        %4108 = vmatpush1.msra.mxu0 %v4055
        %4109 = vmatprep.subr.mxu0 0.0
        %4110 = vmatpush1.msra.mxu0 %v4054
        %4111 = vmatprep.subr.mxu0 0.0
        %4112 = vmatpush1.msra.mxu0 %v4053
        %4113 = vmatprep.subr.mxu0 0.0
        %4114 = vmatpush1.msra.mxu0 %v4052
        %4115 = vmatprep.subr.mxu0 0.0
        %4116 = vmatpush1.msra.mxu0 %v4051
        %4117 = vmatprep.subr.mxu0 0.0
        %4118 = vmatpush2.msra.mxu0 0.0
        %4119 = vmatprep.subr.mxu0 0.0
        %4120 = vmatpush2.msra.mxu0 0.0
        %4121 = vmatprep.subr.mxu0 0.0
        %4122 = vmatpush2.msra.mxu0 0.0
        %4123 = vmatprep.subr.mxu0 0.0
        %4124 = vmatpush2.msra.mxu0 0.0
        %4125 = vmatprep.subr.mxu0 0.0
        %4126 = vmatpush2.msra.mxu0 0.0
        %4127 = vmatprep.subr.mxu0 0.0
        %4128 = vmatpush2.msra.mxu0 0.0
        %4129 = vmatprep.subr.mxu0 0.0
        %4130 = vmatpush2.msra.mxu0 %v4076
        %4131 = vmatprep.subr.mxu0 0.0
        %4132 = vmatpush2.msra.mxu0 %v4075
        %4133 = vmatprep.subr.mxu0 0.0
        %4134 = vmatpush2.msra.mxu0 %v4074
        %4135 = vmatprep.subr.mxu0 0.0
        %4136 = vmatpush2.msra.mxu0 %v4073
        %4137 = vmatprep.subr.mxu0 0.0
        %4138 = vmatpush2.msra.mxu0 %v4072
        %4139 = vmatprep.subr.mxu0 0.0
        %4140 = vmatpush2.msra.mxu0 %v4071
        %4141 = vmatprep.subr.mxu0 0.0
        %4142 = vmatpush2.msra.mxu0 %v4070
        %4143 = vmatprep.subr.mxu0 0.0
        %4144 = vmatpush2.msra.mxu0 %v4069
        %4145 = vmatprep.subr.mxu0 0.0
        %4146 = vmatpush2.msra.mxu0 %v4068
        %4147 = vmatprep.subr.mxu0 0.0
        %4148 = vmatpush2.msra.mxu0 %v4067
        %4149 = vmatprep.mubr.f32.mxu0 %v427
        %4150 = vmatmul.mubr.f32.gmra.mxu0 %v283
        %v4151 = vpop.f32.mrf.mxu0
        %v4152 = vadd.f32 %v4083, %v4151
        %v4153 = vpop.f32.mrf.mxu0
        %4154 = vmatprep.mubr.f32.mxu0 %v430
        %4155 = vmatmul.mubr.f32.gmra.mxu0 %v285
        %v4156 = vpop.f32.mrf.mxu0
        %v4157 = vadd.f32 %v4083, %v4156
        %v4158 = vpop.f32.mrf.mxu0
        %4159 = vmatprep.mubr.f32.mxu0 %v433
        %4160 = vmatmul.mubr.f32.gmra.mxu0 %v287
        %v4161 = vpop.f32.mrf.mxu0
        %v4162 = vadd.f32 %v4083, %v4161
        %v4163 = vpop.f32.mrf.mxu0
        %4164 = vmatprep.mubr.f32.mxu0 %v436
        %4165 = vmatmul.mubr.f32.gmra.mxu0 %v289
        %v4166 = vpop.f32.mrf.mxu0
        %v4167 = vadd.f32 %v4083, %v4166
        %v4168 = vpop.f32.mrf.mxu0
        %4169 = vmatprep.mubr.f32.mxu0 %v439
        %4170 = vmatmul.mubr.f32.gmra.mxu0 %v291
        %v4171 = vpop.f32.mrf.mxu0
        %v4172 = vadd.f32 %v4083, %v4171
        %v4173 = vpop.f32.mrf.mxu0
        %4174 = vmatprep.mubr.f32.mxu0 %v442
        %4175 = vmatmul.mubr.f32.gmra.mxu0 %v293
        %v4176 = vpop.f32.mrf.mxu0
        %v4177 = vadd.f32 %v4083, %v4176
        %v4178 = vpop.f32.mrf.mxu0
        %4179 = vmatprep.mubr.f32.mxu0 %v445
        %4180 = vmatmul.mubr.f32.gmra.mxu0 %v295
        %v4181 = vpop.f32.mrf.mxu0
        %v4182 = vadd.f32 %v4083, %v4181
        %v4183 = vpop.f32.mrf.mxu0
        %4184 = vmatprep.mubr.f32.mxu0 %v448
        %4185 = vmatmul.mubr.f32.gmra.mxu0 %v297
        %v4186 = vpop.f32.mrf.mxu0
        %v4187 = vadd.f32 %v4083, %v4186
        %v4188 = vpop.f32.mrf.mxu0
        %4189 = vmatprep.mubr.f32.mxu0 %v451
        %4190 = vmatmul.mubr.f32.gmra.mxu0 %v299
        %v4191 = vpop.f32.mrf.mxu0
        %v4192 = vadd.f32 %v4083, %v4191
        %v4193 = vpop.f32.mrf.mxu0
        %4194 = vmatprep.mubr.f32.mxu0 %v454
        %4195 = vmatmul.mubr.f32.gmra.mxu0 %v301
        %v4196 = vpop.f32.mrf.mxu0
        %v4197 = vadd.f32 %v4083, %v4196
        %v4198 = vpop.f32.mrf.mxu0
        %4199 = vmatprep.mubr.f32.mxu0 %v457
        %4200 = vmatmul.mubr.f32.gmra.mxu0 %v303
        %v4201 = vpop.f32.mrf.mxu0
        %v4202 = vadd.f32 %v4083, %v4201
        %v4203 = vpop.f32.mrf.mxu0
        %4204 = vmatprep.mubr.f32.mxu0 %v460
        %4205 = vmatmul.mubr.f32.gmra.mxu0 %v305
        %v4206 = vpop.f32.mrf.mxu0
        %v4207 = vadd.f32 %v4083, %v4206
        %v4208 = vpop.f32.mrf.mxu0
        %4209 = vmatprep.mubr.f32.mxu0 %v463
        %4210 = vmatmul.mubr.f32.gmra.mxu0 %v307
        %v4211 = vpop.f32.mrf.mxu0
        %v4212 = vadd.f32 %v4083, %v4211
        %v4213 = vpop.f32.mrf.mxu0
        %4214 = vmatprep.mubr.f32.mxu0 %v466
        %4215 = vmatmul.mubr.f32.gmra.mxu0 %v309
        %v4216 = vpop.f32.mrf.mxu0
        %v4217 = vadd.f32 %v4083, %v4216
        %v4218 = vpop.f32.mrf.mxu0
        %4219 = vmatprep.mubr.f32.mxu0 %v469
        %4220 = vmatmul.mubr.f32.gmra.mxu0 %v311
        %v4221 = vpop.f32.mrf.mxu0
        %v4222 = vadd.f32 %v4083, %v4221
        %v4223 = vpop.f32.mrf.mxu0
        %4224 = vmatprep.mubr.f32.mxu0 %v472
        %4225 = vmatmul.mubr.f32.gmra.mxu0 %v313
        %v4226 = vpop.f32.mrf.mxu0
        %v4227 = vadd.f32 %v4083, %v4226
        %v4228 = vpop.f32.mrf.mxu0
        %4229 = vmatprep.mubr.f32.mxu0 %v475
        %4230 = vmatmul.mubr.f32.gmra.mxu0 %v315
        %v4231 = vpop.f32.mrf.mxu0
        %v4232 = vadd.f32 %v4083, %v4231
        %v4233 = vpop.f32.mrf.mxu0
        %4234 = vmatprep.mubr.f32.mxu0 %v478
        %4235 = vmatmul.mubr.f32.gmra.mxu0 %v317
        %v4236 = vpop.f32.mrf.mxu0
        %v4237 = vadd.f32 %v4083, %v4236
        %v4238 = vpop.f32.mrf.mxu0
        %4239 = vmatprep.mubr.f32.mxu0 %v481
        %4240 = vmatmul.mubr.f32.gmra.mxu0 %v319
        %v4241 = vpop.f32.mrf.mxu0
        %v4242 = vadd.f32 %v4083, %v4241
        %v4243 = vpop.f32.mrf.mxu0
        %4244 = vmatprep.mubr.f32.mxu0 %v484
        %4245 = vmatmul.mubr.f32.gmra.mxu0 %v321
        %v4246 = vpop.f32.mrf.mxu0
        %v4247 = vadd.f32 %v4083, %v4246
        %v4248 = vpop.f32.mrf.mxu0
        %4249 = vmatprep.mubr.f32.mxu0 %v487
        %4250 = vmatmul.mubr.f32.gmra.mxu0 %v323
        %v4251 = vpop.f32.mrf.mxu0
        %v4252 = vadd.f32 %v4083, %v4251
        %v4253 = vpop.f32.mrf.mxu0
        %4254 = vmatprep.mubr.f32.mxu0 %v490
        %4255 = vmatmul.mubr.f32.gmra.mxu0 %v325
        %v4256 = vpop.f32.mrf.mxu0
        %v4257 = vadd.f32 %v4083, %v4256
        %v4258 = vpop.f32.mrf.mxu0
        %4259 = vmatprep.mubr.f32.mxu0 %v493
        %4260 = vmatmul.mubr.f32.gmra.mxu0 %v327
        %v4261 = vpop.f32.mrf.mxu0
        %v4262 = vadd.f32 %v4083, %v4261
        %v4263 = vpop.f32.mrf.mxu0
        %4264 = vmatprep.mubr.f32.mxu0 %v496
        %4265 = vmatmul.mubr.f32.gmra.mxu0 %v329
        %v4266 = vpop.f32.mrf.mxu0
        %v4267 = vadd.f32 %v4083, %v4266
        %v4268 = vpop.f32.mrf.mxu0
        %4269 = vmatprep.mubr.f32.mxu0 %v499
        %4270 = vmatmul.mubr.f32.gmra.mxu0 %v331
        %v4271 = vpop.f32.mrf.mxu0
        %v4272 = vadd.f32 %v4083, %v4271
        %v4273 = vpop.f32.mrf.mxu0
        %4274 = vmatprep.mubr.f32.mxu0 %v502
        %4275 = vmatmul.mubr.f32.gmra.mxu0 %v333
        %v4276 = vpop.f32.mrf.mxu0
        %v4277 = vadd.f32 %v4083, %v4276
        %v4278 = vpop.f32.mrf.mxu0
        %4279 = vmatprep.mubr.f32.mxu0 %v505
        %4280 = vmatmul.mubr.f32.gmra.mxu0 %v335
        %v4281 = vpop.f32.mrf.mxu0
        %v4282 = vadd.f32 %v4083, %v4281
        %v4283 = vpop.f32.mrf.mxu0
        %4284 = vmatprep.mubr.f32.mxu0 %v508
        %4285 = vmatmul.mubr.f32.gmra.mxu0 %v337
        %v4286 = vpop.f32.mrf.mxu0
        %v4287 = vadd.f32 %v4083, %v4286
        %v4288 = vpop.f32.mrf.mxu0
        %4289 = vmatprep.mubr.f32.mxu0 %v511
        %4290 = vmatmul.mubr.f32.gmra.mxu0 %v339
        %v4291 = vpop.f32.mrf.mxu0
        %v4292 = vadd.f32 %v4083, %v4291
        %v4293 = vpop.f32.mrf.mxu0
        %4294 = vmatprep.mubr.f32.mxu0 %v514
        %4295 = vmatmul.mubr.f32.gmra.mxu0 %v341
        %v4296 = vpop.f32.mrf.mxu0
        %v4297 = vadd.f32 %v4083, %v4296
        %v4298 = vpop.f32.mrf.mxu0
        %4299 = vmatprep.mubr.f32.mxu0 %v517
        %4300 = vmatmul.mubr.f32.gmra.mxu0 %v343
        %v4301 = vpop.f32.mrf.mxu0
        %v4302 = vadd.f32 %v4083, %v4301
        %v4303 = vpop.f32.mrf.mxu0
        %4304 = vmatprep.mubr.f32.mxu0 %v520
        %4305 = vmatmul.mubr.f32.gmra.mxu0 %v345
        %v4306 = vpop.f32.mrf.mxu0
        %v4307 = vadd.f32 %v4083, %v4306
        %v4308 = vpop.f32.mrf.mxu0
        %4309 = vdwg.mxu0
        %s4310 = scalar_lea.vmem %s3, 512
        %v4311 = vld [vmem:[%s4310] sm:$0xff]
        %v4312 = vld [vmem:[%s4310 + $0x8] sm:$0xff]
        %v4313 = vld [vmem:[%s4310 + $0x10] sm:$0xff]
        %v4314 = vld [vmem:[%s4310 + $0x18] sm:$0xff]
        %v4315 = vld [vmem:[%s4310 + $0x20] sm:$0xff]
        %v4316 = vld [vmem:[%s4310 + $0x28] sm:$0xff]
        %v4317 = vld [vmem:[%s4310 + $0x30] sm:$0xff]
        %v4318 = vld [vmem:[%s4310 + $0x38] sm:$0xff]
        %v4319 = vld [vmem:[%s4310 + $0x40] sm:$0xff]
        %v4320 = vld [vmem:[%s4310 + $0x48] sm:$0xff]
        %v4321 = vld [vmem:[%s4310 + $0x50] sm:$0xff]
        %v4322 = vld [vmem:[%s4310 + $0x58] sm:$0xff]
        %v4323 = vld [vmem:[%s4310 + $0x60] sm:$0xff]
        %v4324 = vld [vmem:[%s4310 + $0x68] sm:$0xff]
        %v4325 = vld [vmem:[%s4310 + $0x70] sm:$0xff]
        %v4326 = vld [vmem:[%s4310 + $0x78] sm:$0xff]
        %v4327 = vld [vmem:[%s4310 + $0x80] sm:$0xff]
        %v4328 = vld [vmem:[%s4310 + $0x88] sm:$0xff]
        %v4329 = vld [vmem:[%s4310 + $0x90] sm:$0xff]
        %v4330 = vld [vmem:[%s4310 + $0x98] sm:$0xff]
        %v4331 = vld [vmem:[%s4310 + $0xa0] sm:$0xff]
        %v4332 = vld [vmem:[%s4310 + $0xa8] sm:$0xff]
        %v4333 = vld [vmem:[%s4310 + $0xb0] sm:$0xff]
        %v4334 = vld [vmem:[%s4310 + $0xb8] sm:$0xff]
        %v4335 = vld [vmem:[%s4310 + $0xc0] sm:$0xff]
        %v4336 = vld [vmem:[%s4310 + $0xc8] sm:$0xff]
        %v4337 = vld [vmem:[%s4310 + $0xd0] sm:$0xff]
        %v4338 = vld [vmem:[%s4310 + $0xd8] sm:$0xff]
        %v4339 = vld [vmem:[%s4310 + $0xe0] sm:$0xff]
        %v4340 = vld [vmem:[%s4310 + $0xe8] sm:$0xff]
        %v4341 = vld [vmem:[%s4310 + $0xf0] sm:$0xff]
        %v4342 = vld [vmem:[%s4310 + $0xf8] sm:$0xff]
        %s4343 = scalar_lea.vmem %s4, 4
        %v4344 = vld [vmem:[%s4343] sm:$0x3]
        %v4346 = vlaneseq
        %v4347 = vshrl.u32 %v4346, 7
        %v4348 = vsub.s32 0, %v4347
        %v4349 = vrot.slane %v4344, %v4348
        %v4350 = vlaneseq
        %v4351 = vshrl.u32 %v4350, 7
        %v4352 = vsub.s32 1, %v4351
        %v4353 = vrot.slane %v4344, %v4352
        %4356 = vmatprep.subr.mxu0 %v4342
        %4357 = vmatpush1.msra.mxu0 %v4341
        %4358 = vmatprep.subr.mxu0 %v4340
        %4359 = vmatpush1.msra.mxu0 %v4339
        %4360 = vmatprep.subr.mxu0 %v4338
        %4361 = vmatpush1.msra.mxu0 %v4337
        %4362 = vmatprep.subr.mxu0 %v4336
        %4363 = vmatpush1.msra.mxu0 %v4335
        %4364 = vmatprep.subr.mxu0 %v4334
        %4365 = vmatpush1.msra.mxu0 %v4333
        %4366 = vmatprep.subr.mxu0 %v4332
        %4367 = vmatpush1.msra.mxu0 %v4331
        %4368 = vmatprep.subr.mxu0 %v4330
        %4369 = vmatpush1.msra.mxu0 %v4329
        %4370 = vmatprep.subr.mxu0 %v4328
        %4371 = vmatpush1.msra.mxu0 %v4327
        %4372 = vmatprep.subr.mxu0 %v4326
        %4373 = vmatpush1.msra.mxu0 %v4325
        %4374 = vmatprep.subr.mxu0 %v4324
        %4375 = vmatpush1.msra.mxu0 %v4323
        %4376 = vmatprep.subr.mxu0 %v4322
        %4377 = vmatpush1.msra.mxu0 %v4321
        %4378 = vmatprep.subr.mxu0 %v4320
        %4379 = vmatpush1.msra.mxu0 %v4319
        %4380 = vmatprep.subr.mxu0 %v4318
        %4381 = vmatpush1.msra.mxu0 %v4317
        %4382 = vmatprep.subr.mxu0 %v4316
        %4383 = vmatpush1.msra.mxu0 %v4315
        %4384 = vmatprep.subr.mxu0 %v4314
        %4385 = vmatpush1.msra.mxu0 %v4313
        %4386 = vmatprep.subr.mxu0 %v4312
        %4387 = vmatpush1.msra.mxu0 %v4311
        %4388 = vmatprep.subr.mxu0 0.0
        %4389 = vmatpush2.msra.mxu0 0.0
        %4390 = vmatprep.subr.mxu0 0.0
        %4391 = vmatpush2.msra.mxu0 0.0
        %4392 = vmatprep.subr.mxu0 0.0
        %4393 = vmatpush2.msra.mxu0 0.0
        %4394 = vmatprep.subr.mxu0 0.0
        %4395 = vmatpush2.msra.mxu0 0.0
        %4396 = vmatprep.subr.mxu0 0.0
        %4397 = vmatpush2.msra.mxu0 0.0
        %4398 = vmatprep.subr.mxu0 0.0
        %4399 = vmatpush2.msra.mxu0 0.0
        %4400 = vmatprep.subr.mxu0 0.0
        %4401 = vmatpush2.msra.mxu0 0.0
        %4402 = vmatprep.subr.mxu0 0.0
        %4403 = vmatpush2.msra.mxu0 0.0
        %4404 = vmatprep.subr.mxu0 0.0
        %4405 = vmatpush2.msra.mxu0 0.0
        %4406 = vmatprep.subr.mxu0 0.0
        %4407 = vmatpush2.msra.mxu0 0.0
        %4408 = vmatprep.subr.mxu0 0.0
        %4409 = vmatpush2.msra.mxu0 0.0
        %4410 = vmatprep.subr.mxu0 0.0
        %4411 = vmatpush2.msra.mxu0 0.0
        %4412 = vmatprep.subr.mxu0 0.0
        %4413 = vmatpush2.msra.mxu0 0.0
        %4414 = vmatprep.subr.mxu0 0.0
        %4415 = vmatpush2.msra.mxu0 0.0
        %4416 = vmatprep.subr.mxu0 0.0
        %4417 = vmatpush2.msra.mxu0 0.0
        %4418 = vmatprep.subr.mxu0 0.0
        %4419 = vmatpush2.msra.mxu0 0.0
        %4420 = vmatprep.mubr.f32.mxu0 0.0
        %4421 = vmatmul.mubr.f32.gmra.mxu0 %v4152
        %v4422 = vpop.f32.mrf.mxu0
        %v4423 = vadd.f32 %v4349, %v4422
        %v4424 = vpop.f32.mrf.mxu0
        %v4425 = vadd.f32 %v4353, %v4424
        %4426 = vmatprep.mubr.f32.mxu0 0.0
        %4427 = vmatmul.mubr.f32.gmra.mxu0 %v4157
        %v4428 = vpop.f32.mrf.mxu0
        %v4429 = vadd.f32 %v4349, %v4428
        %v4430 = vpop.f32.mrf.mxu0
        %v4431 = vadd.f32 %v4353, %v4430
        %4432 = vmatprep.mubr.f32.mxu0 0.0
        %4433 = vmatmul.mubr.f32.gmra.mxu0 %v4162
        %v4434 = vpop.f32.mrf.mxu0
        %v4435 = vadd.f32 %v4349, %v4434
        %v4436 = vpop.f32.mrf.mxu0
        %v4437 = vadd.f32 %v4353, %v4436
        %4438 = vmatprep.mubr.f32.mxu0 0.0
        %4439 = vmatmul.mubr.f32.gmra.mxu0 %v4167
        %v4440 = vpop.f32.mrf.mxu0
        %v4441 = vadd.f32 %v4349, %v4440
        %v4442 = vpop.f32.mrf.mxu0
        %v4443 = vadd.f32 %v4353, %v4442
        %4444 = vmatprep.mubr.f32.mxu0 0.0
        %4445 = vmatmul.mubr.f32.gmra.mxu0 %v4172
        %v4446 = vpop.f32.mrf.mxu0
        %v4447 = vadd.f32 %v4349, %v4446
        %v4448 = vpop.f32.mrf.mxu0
        %v4449 = vadd.f32 %v4353, %v4448
        %4450 = vmatprep.mubr.f32.mxu0 0.0
        %4451 = vmatmul.mubr.f32.gmra.mxu0 %v4177
        %v4452 = vpop.f32.mrf.mxu0
        %v4453 = vadd.f32 %v4349, %v4452
        %v4454 = vpop.f32.mrf.mxu0
        %v4455 = vadd.f32 %v4353, %v4454
        %4456 = vmatprep.mubr.f32.mxu0 0.0
        %4457 = vmatmul.mubr.f32.gmra.mxu0 %v4182
        %v4458 = vpop.f32.mrf.mxu0
        %v4459 = vadd.f32 %v4349, %v4458
        %v4460 = vpop.f32.mrf.mxu0
        %v4461 = vadd.f32 %v4353, %v4460
        %4462 = vmatprep.mubr.f32.mxu0 0.0
        %4463 = vmatmul.mubr.f32.gmra.mxu0 %v4187
        %v4464 = vpop.f32.mrf.mxu0
        %v4465 = vadd.f32 %v4349, %v4464
        %v4466 = vpop.f32.mrf.mxu0
        %v4467 = vadd.f32 %v4353, %v4466
        %4468 = vmatprep.mubr.f32.mxu0 0.0
        %4469 = vmatmul.mubr.f32.gmra.mxu0 %v4192
        %v4470 = vpop.f32.mrf.mxu0
        %v4471 = vadd.f32 %v4349, %v4470
        %v4472 = vpop.f32.mrf.mxu0
        %v4473 = vadd.f32 %v4353, %v4472
        %4474 = vmatprep.mubr.f32.mxu0 0.0
        %4475 = vmatmul.mubr.f32.gmra.mxu0 %v4197
        %v4476 = vpop.f32.mrf.mxu0
        %v4477 = vadd.f32 %v4349, %v4476
        %v4478 = vpop.f32.mrf.mxu0
        %v4479 = vadd.f32 %v4353, %v4478
        %4480 = vmatprep.mubr.f32.mxu0 0.0
        %4481 = vmatmul.mubr.f32.gmra.mxu0 %v4202
        %v4482 = vpop.f32.mrf.mxu0
        %v4483 = vadd.f32 %v4349, %v4482
        %v4484 = vpop.f32.mrf.mxu0
        %v4485 = vadd.f32 %v4353, %v4484
        %4486 = vmatprep.mubr.f32.mxu0 0.0
        %4487 = vmatmul.mubr.f32.gmra.mxu0 %v4207
        %v4488 = vpop.f32.mrf.mxu0
        %v4489 = vadd.f32 %v4349, %v4488
        %v4490 = vpop.f32.mrf.mxu0
        %v4491 = vadd.f32 %v4353, %v4490
        %4492 = vmatprep.mubr.f32.mxu0 0.0
        %4493 = vmatmul.mubr.f32.gmra.mxu0 %v4212
        %v4494 = vpop.f32.mrf.mxu0
        %v4495 = vadd.f32 %v4349, %v4494
        %v4496 = vpop.f32.mrf.mxu0
        %v4497 = vadd.f32 %v4353, %v4496
        %4498 = vmatprep.mubr.f32.mxu0 0.0
        %4499 = vmatmul.mubr.f32.gmra.mxu0 %v4217
        %v4500 = vpop.f32.mrf.mxu0
        %v4501 = vadd.f32 %v4349, %v4500
        %v4502 = vpop.f32.mrf.mxu0
        %v4503 = vadd.f32 %v4353, %v4502
        %4504 = vmatprep.mubr.f32.mxu0 0.0
        %4505 = vmatmul.mubr.f32.gmra.mxu0 %v4222
        %v4506 = vpop.f32.mrf.mxu0
        %v4507 = vadd.f32 %v4349, %v4506
        %v4508 = vpop.f32.mrf.mxu0
        %v4509 = vadd.f32 %v4353, %v4508
        %4510 = vmatprep.mubr.f32.mxu0 0.0
        %4511 = vmatmul.mubr.f32.gmra.mxu0 %v4227
        %v4512 = vpop.f32.mrf.mxu0
        %v4513 = vadd.f32 %v4349, %v4512
        %v4514 = vpop.f32.mrf.mxu0
        %v4515 = vadd.f32 %v4353, %v4514
        %4516 = vmatprep.mubr.f32.mxu0 0.0
        %4517 = vmatmul.mubr.f32.gmra.mxu0 %v4232
        %v4518 = vpop.f32.mrf.mxu0
        %v4519 = vadd.f32 %v4349, %v4518
        %v4520 = vpop.f32.mrf.mxu0
        %v4521 = vadd.f32 %v4353, %v4520
        %4522 = vmatprep.mubr.f32.mxu0 0.0
        %4523 = vmatmul.mubr.f32.gmra.mxu0 %v4237
        %v4524 = vpop.f32.mrf.mxu0
        %v4525 = vadd.f32 %v4349, %v4524
        %v4526 = vpop.f32.mrf.mxu0
        %v4527 = vadd.f32 %v4353, %v4526
        %4528 = vmatprep.mubr.f32.mxu0 0.0
        %4529 = vmatmul.mubr.f32.gmra.mxu0 %v4242
        %v4530 = vpop.f32.mrf.mxu0
        %v4531 = vadd.f32 %v4349, %v4530
        %v4532 = vpop.f32.mrf.mxu0
        %v4533 = vadd.f32 %v4353, %v4532
        %4534 = vmatprep.mubr.f32.mxu0 0.0
        %4535 = vmatmul.mubr.f32.gmra.mxu0 %v4247
        %v4536 = vpop.f32.mrf.mxu0
        %v4537 = vadd.f32 %v4349, %v4536
        %v4538 = vpop.f32.mrf.mxu0
        %v4539 = vadd.f32 %v4353, %v4538
        %4540 = vmatprep.mubr.f32.mxu0 0.0
        %4541 = vmatmul.mubr.f32.gmra.mxu0 %v4252
        %v4542 = vpop.f32.mrf.mxu0
        %v4543 = vadd.f32 %v4349, %v4542
        %v4544 = vpop.f32.mrf.mxu0
        %v4545 = vadd.f32 %v4353, %v4544
        %4546 = vmatprep.mubr.f32.mxu0 0.0
        %4547 = vmatmul.mubr.f32.gmra.mxu0 %v4257
        %v4548 = vpop.f32.mrf.mxu0
        %v4549 = vadd.f32 %v4349, %v4548
        %v4550 = vpop.f32.mrf.mxu0
        %v4551 = vadd.f32 %v4353, %v4550
        %4552 = vmatprep.mubr.f32.mxu0 0.0
        %4553 = vmatmul.mubr.f32.gmra.mxu0 %v4262
        %v4554 = vpop.f32.mrf.mxu0
        %v4555 = vadd.f32 %v4349, %v4554
        %v4556 = vpop.f32.mrf.mxu0
        %v4557 = vadd.f32 %v4353, %v4556
        %4558 = vmatprep.mubr.f32.mxu0 0.0
        %4559 = vmatmul.mubr.f32.gmra.mxu0 %v4267
        %v4560 = vpop.f32.mrf.mxu0
        %v4561 = vadd.f32 %v4349, %v4560
        %v4562 = vpop.f32.mrf.mxu0
        %v4563 = vadd.f32 %v4353, %v4562
        %4564 = vmatprep.mubr.f32.mxu0 0.0
        %4565 = vmatmul.mubr.f32.gmra.mxu0 %v4272
        %v4566 = vpop.f32.mrf.mxu0
        %v4567 = vadd.f32 %v4349, %v4566
        %v4568 = vpop.f32.mrf.mxu0
        %v4569 = vadd.f32 %v4353, %v4568
        %4570 = vmatprep.mubr.f32.mxu0 0.0
        %4571 = vmatmul.mubr.f32.gmra.mxu0 %v4277
        %v4572 = vpop.f32.mrf.mxu0
        %v4573 = vadd.f32 %v4349, %v4572
        %v4574 = vpop.f32.mrf.mxu0
        %v4575 = vadd.f32 %v4353, %v4574
        %4576 = vmatprep.mubr.f32.mxu0 0.0
        %4577 = vmatmul.mubr.f32.gmra.mxu0 %v4282
        %v4578 = vpop.f32.mrf.mxu0
        %v4579 = vadd.f32 %v4349, %v4578
        %v4580 = vpop.f32.mrf.mxu0
        %v4581 = vadd.f32 %v4353, %v4580
        %4582 = vmatprep.mubr.f32.mxu0 0.0
        %4583 = vmatmul.mubr.f32.gmra.mxu0 %v4287
        %v4584 = vpop.f32.mrf.mxu0
        %v4585 = vadd.f32 %v4349, %v4584
        %v4586 = vpop.f32.mrf.mxu0
        %v4587 = vadd.f32 %v4353, %v4586
        %4588 = vmatprep.mubr.f32.mxu0 0.0
        %4589 = vmatmul.mubr.f32.gmra.mxu0 %v4292
        %v4590 = vpop.f32.mrf.mxu0
        %v4591 = vadd.f32 %v4349, %v4590
        %v4592 = vpop.f32.mrf.mxu0
        %v4593 = vadd.f32 %v4353, %v4592
        %4594 = vmatprep.mubr.f32.mxu0 0.0
        %4595 = vmatmul.mubr.f32.gmra.mxu0 %v4297
        %v4596 = vpop.f32.mrf.mxu0
        %v4597 = vadd.f32 %v4349, %v4596
        %v4598 = vpop.f32.mrf.mxu0
        %v4599 = vadd.f32 %v4353, %v4598
        %4600 = vmatprep.mubr.f32.mxu0 0.0
        %4601 = vmatmul.mubr.f32.gmra.mxu0 %v4302
        %v4602 = vpop.f32.mrf.mxu0
        %v4603 = vadd.f32 %v4349, %v4602
        %v4604 = vpop.f32.mrf.mxu0
        %v4605 = vadd.f32 %v4353, %v4604
        %4606 = vmatprep.mubr.f32.mxu0 0.0
        %4607 = vmatmul.mubr.f32.gmra.mxu0 %v4307
        %v4608 = vpop.f32.mrf.mxu0
        %v4609 = vadd.f32 %v4349, %v4608
        %v4610 = vpop.f32.mrf.mxu0
        %v4611 = vadd.f32 %v4353, %v4610
        %4612 = vdwg.mxu0
        %v4613 = vmul.f32 %v4423, %v283
        %v4614 = vmul.f32 %v4425, %v284
        %v4615 = vmul.f32 %v4429, %v285
        %v4616 = vmul.f32 %v4431, %v286
        %v4617 = vmul.f32 %v4435, %v287
        %v4618 = vmul.f32 %v4437, %v288
        %v4619 = vmul.f32 %v4441, %v289
        %v4620 = vmul.f32 %v4443, %v290
        %v4621 = vmul.f32 %v4447, %v291
        %v4622 = vmul.f32 %v4449, %v292
        %v4623 = vmul.f32 %v4453, %v293
        %v4624 = vmul.f32 %v4455, %v294
        %v4625 = vmul.f32 %v4459, %v295
        %v4626 = vmul.f32 %v4461, %v296
        %v4627 = vmul.f32 %v4465, %v297
        %v4628 = vmul.f32 %v4467, %v298
        %v4629 = vmul.f32 %v4471, %v299
        %v4630 = vmul.f32 %v4473, %v300
        %v4631 = vmul.f32 %v4477, %v301
        %v4632 = vmul.f32 %v4479, %v302
        %v4633 = vmul.f32 %v4483, %v303
        %v4634 = vmul.f32 %v4485, %v304
        %v4635 = vmul.f32 %v4489, %v305
        %v4636 = vmul.f32 %v4491, %v306
        %v4637 = vmul.f32 %v4495, %v307
        %v4638 = vmul.f32 %v4497, %v308
        %v4639 = vmul.f32 %v4501, %v309
        %v4640 = vmul.f32 %v4503, %v310
        %v4641 = vmul.f32 %v4507, %v311
        %v4642 = vmul.f32 %v4509, %v312
        %v4643 = vmul.f32 %v4513, %v313
        %v4644 = vmul.f32 %v4515, %v314
        %v4645 = vmul.f32 %v4519, %v315
        %v4646 = vmul.f32 %v4521, %v316
        %v4647 = vmul.f32 %v4525, %v317
        %v4648 = vmul.f32 %v4527, %v318
        %v4649 = vmul.f32 %v4531, %v319
        %v4650 = vmul.f32 %v4533, %v320
        %v4651 = vmul.f32 %v4537, %v321
        %v4652 = vmul.f32 %v4539, %v322
        %v4653 = vmul.f32 %v4543, %v323
        %v4654 = vmul.f32 %v4545, %v324
        %v4655 = vmul.f32 %v4549, %v325
        %v4656 = vmul.f32 %v4551, %v326
        %v4657 = vmul.f32 %v4555, %v327
        %v4658 = vmul.f32 %v4557, %v328
        %v4659 = vmul.f32 %v4561, %v329
        %v4660 = vmul.f32 %v4563, %v330
        %v4661 = vmul.f32 %v4567, %v331
        %v4662 = vmul.f32 %v4569, %v332
        %v4663 = vmul.f32 %v4573, %v333
        %v4664 = vmul.f32 %v4575, %v334
        %v4665 = vmul.f32 %v4579, %v335
        %v4666 = vmul.f32 %v4581, %v336
        %v4667 = vmul.f32 %v4585, %v337
        %v4668 = vmul.f32 %v4587, %v338
        %v4669 = vmul.f32 %v4591, %v339
        %v4670 = vmul.f32 %v4593, %v340
        %v4671 = vmul.f32 %v4597, %v341
        %v4672 = vmul.f32 %v4599, %v342
        %v4673 = vmul.f32 %v4603, %v343
        %v4674 = vmul.f32 %v4605, %v344
        %v4675 = vmul.f32 %v4609, %v345
        %v4676 = vmul.f32 %v4611, %v346
        %v4678 = vsel %vm425, %v4614, 0
        %v4681 = vsel %vm425, %v4616, 0
        %v4684 = vsel %vm425, %v4618, 0
        %v4687 = vsel %vm425, %v4620, 0
        %v4690 = vsel %vm425, %v4622, 0
        %v4693 = vsel %vm425, %v4624, 0
        %v4696 = vsel %vm425, %v4626, 0
        %v4699 = vsel %vm425, %v4628, 0
        %v4702 = vsel %vm425, %v4630, 0
        %v4705 = vsel %vm425, %v4632, 0
        %v4708 = vsel %vm425, %v4634, 0
        %v4711 = vsel %vm425, %v4636, 0
        %v4714 = vsel %vm425, %v4638, 0
        %v4717 = vsel %vm425, %v4640, 0
        %v4720 = vsel %vm425, %v4642, 0
        %v4723 = vsel %vm425, %v4644, 0
        %v4726 = vsel %vm425, %v4646, 0
        %v4729 = vsel %vm425, %v4648, 0
        %v4732 = vsel %vm425, %v4650, 0
        %v4735 = vsel %vm425, %v4652, 0
        %v4738 = vsel %vm425, %v4654, 0
        %v4741 = vsel %vm425, %v4656, 0
        %v4744 = vsel %vm425, %v4658, 0
        %v4747 = vsel %vm425, %v4660, 0
        %v4750 = vsel %vm425, %v4662, 0
        %v4753 = vsel %vm425, %v4664, 0
        %v4756 = vsel %vm425, %v4666, 0
        %v4759 = vsel %vm425, %v4668, 0
        %v4762 = vsel %vm425, %v4670, 0
        %v4765 = vsel %vm425, %v4672, 0
        %v4768 = vsel %vm425, %v4674, 0
        %v4771 = vsel %vm425, %v4676, 0
        %4773 = vmatprep.subr.mxu0 0.0
        %4774 = vmatpush1.msra.mxu0 %v362
        %4775 = vmatprep.subr.mxu0 0.0
        %4776 = vmatpush1.msra.mxu0 %v361
        %4777 = vmatprep.subr.mxu0 0.0
        %4778 = vmatpush1.msra.mxu0 %v360
        %4779 = vmatprep.subr.mxu0 0.0
        %4780 = vmatpush1.msra.mxu0 %v359
        %4781 = vmatprep.subr.mxu0 0.0
        %4782 = vmatpush1.msra.mxu0 %v358
        %4783 = vmatprep.subr.mxu0 0.0
        %4784 = vmatpush1.msra.mxu0 %v357
        %4785 = vmatprep.subr.mxu0 0.0
        %4786 = vmatpush1.msra.mxu0 %v356
        %4787 = vmatprep.subr.mxu0 0.0
        %4788 = vmatpush1.msra.mxu0 %v355
        %4789 = vmatprep.subr.mxu0 0.0
        %4790 = vmatpush1.msra.mxu0 %v354
        %4791 = vmatprep.subr.mxu0 0.0
        %4792 = vmatpush1.msra.mxu0 %v353
        %4793 = vmatprep.subr.mxu0 0.0
        %4794 = vmatpush1.msra.mxu0 %v352
        %4795 = vmatprep.subr.mxu0 0.0
        %4796 = vmatpush1.msra.mxu0 %v351
        %4797 = vmatprep.subr.mxu0 0.0
        %4798 = vmatpush1.msra.mxu0 %v350
        %4799 = vmatprep.subr.mxu0 0.0
        %4800 = vmatpush1.msra.mxu0 %v349
        %4801 = vmatprep.subr.mxu0 0.0
        %4802 = vmatpush1.msra.mxu0 %v348
        %4803 = vmatprep.subr.mxu0 0.0
        %4804 = vmatpush1.msra.mxu0 %v347
        %4805 = vmatprep.subr.mxu0 0.0
        %4806 = vmatpush2.msra.mxu0 0.0
        %4807 = vmatprep.subr.mxu0 0.0
        %4808 = vmatpush2.msra.mxu0 0.0
        %4809 = vmatprep.subr.mxu0 0.0
        %4810 = vmatpush2.msra.mxu0 0.0
        %4811 = vmatprep.subr.mxu0 0.0
        %4812 = vmatpush2.msra.mxu0 0.0
        %4813 = vmatprep.subr.mxu0 0.0
        %4814 = vmatpush2.msra.mxu0 0.0
        %4815 = vmatprep.subr.mxu0 0.0
        %4816 = vmatpush2.msra.mxu0 0.0
        %4817 = vmatprep.subr.mxu0 0.0
        %4818 = vmatpush2.msra.mxu0 %v372
        %4819 = vmatprep.subr.mxu0 0.0
        %4820 = vmatpush2.msra.mxu0 %v371
        %4821 = vmatprep.subr.mxu0 0.0
        %4822 = vmatpush2.msra.mxu0 %v370
        %4823 = vmatprep.subr.mxu0 0.0
        %4824 = vmatpush2.msra.mxu0 %v369
        %4825 = vmatprep.subr.mxu0 0.0
        %4826 = vmatpush2.msra.mxu0 %v368
        %4827 = vmatprep.subr.mxu0 0.0
        %4828 = vmatpush2.msra.mxu0 %v367
        %4829 = vmatprep.subr.mxu0 0.0
        %4830 = vmatpush2.msra.mxu0 %v366
        %4831 = vmatprep.subr.mxu0 0.0
        %4832 = vmatpush2.msra.mxu0 %v365
        %4833 = vmatprep.subr.mxu0 0.0
        %4834 = vmatpush2.msra.mxu0 %v364
        %4835 = vmatprep.subr.mxu0 0.0
        %4836 = vmatpush2.msra.mxu0 %v363
        %4837 = vmatprep.mubr.f32.mxu0 %v4678
        %4838 = vmatmul.mubr.f32.gmra.mxu0 %v4613
        %v4839 = vpop.f32.mrf.mxu0
        %v4840 = vadd.f32 0.0, %v4839
        %v4841 = vpop.f32.mrf.mxu0
        %4842 = vmatprep.mubr.f32.mxu0 %v4681
        %4843 = vmatmul.mubr.f32.gmra.mxu0 %v4615
        %v4844 = vpop.f32.mrf.mxu0
        %v4845 = vadd.f32 0.0, %v4844
        %v4846 = vpop.f32.mrf.mxu0
        %4847 = vmatprep.mubr.f32.mxu0 %v4684
        %4848 = vmatmul.mubr.f32.gmra.mxu0 %v4617
        %v4849 = vpop.f32.mrf.mxu0
        %v4850 = vadd.f32 0.0, %v4849
        %v4851 = vpop.f32.mrf.mxu0
        %4852 = vmatprep.mubr.f32.mxu0 %v4687
        %4853 = vmatmul.mubr.f32.gmra.mxu0 %v4619
        %v4854 = vpop.f32.mrf.mxu0
        %v4855 = vadd.f32 0.0, %v4854
        %v4856 = vpop.f32.mrf.mxu0
        %4857 = vmatprep.mubr.f32.mxu0 %v4690
        %4858 = vmatmul.mubr.f32.gmra.mxu0 %v4621
        %v4859 = vpop.f32.mrf.mxu0
        %v4860 = vadd.f32 0.0, %v4859
        %v4861 = vpop.f32.mrf.mxu0
        %4862 = vmatprep.mubr.f32.mxu0 %v4693
        %4863 = vmatmul.mubr.f32.gmra.mxu0 %v4623
        %v4864 = vpop.f32.mrf.mxu0
        %v4865 = vadd.f32 0.0, %v4864
        %v4866 = vpop.f32.mrf.mxu0
        %4867 = vmatprep.mubr.f32.mxu0 %v4696
        %4868 = vmatmul.mubr.f32.gmra.mxu0 %v4625
        %v4869 = vpop.f32.mrf.mxu0
        %v4870 = vadd.f32 0.0, %v4869
        %v4871 = vpop.f32.mrf.mxu0
        %4872 = vmatprep.mubr.f32.mxu0 %v4699
        %4873 = vmatmul.mubr.f32.gmra.mxu0 %v4627
        %v4874 = vpop.f32.mrf.mxu0
        %v4875 = vadd.f32 0.0, %v4874
        %v4876 = vpop.f32.mrf.mxu0
        %4877 = vmatprep.mubr.f32.mxu0 %v4702
        %4878 = vmatmul.mubr.f32.gmra.mxu0 %v4629
        %v4879 = vpop.f32.mrf.mxu0
        %v4880 = vadd.f32 0.0, %v4879
        %v4881 = vpop.f32.mrf.mxu0
        %4882 = vmatprep.mubr.f32.mxu0 %v4705
        %4883 = vmatmul.mubr.f32.gmra.mxu0 %v4631
        %v4884 = vpop.f32.mrf.mxu0
        %v4885 = vadd.f32 0.0, %v4884
        %v4886 = vpop.f32.mrf.mxu0
        %4887 = vmatprep.mubr.f32.mxu0 %v4708
        %4888 = vmatmul.mubr.f32.gmra.mxu0 %v4633
        %v4889 = vpop.f32.mrf.mxu0
        %v4890 = vadd.f32 0.0, %v4889
        %v4891 = vpop.f32.mrf.mxu0
        %4892 = vmatprep.mubr.f32.mxu0 %v4711
        %4893 = vmatmul.mubr.f32.gmra.mxu0 %v4635
        %v4894 = vpop.f32.mrf.mxu0
        %v4895 = vadd.f32 0.0, %v4894
        %v4896 = vpop.f32.mrf.mxu0
        %4897 = vmatprep.mubr.f32.mxu0 %v4714
        %4898 = vmatmul.mubr.f32.gmra.mxu0 %v4637
        %v4899 = vpop.f32.mrf.mxu0
        %v4900 = vadd.f32 0.0, %v4899
        %v4901 = vpop.f32.mrf.mxu0
        %4902 = vmatprep.mubr.f32.mxu0 %v4717
        %4903 = vmatmul.mubr.f32.gmra.mxu0 %v4639
        %v4904 = vpop.f32.mrf.mxu0
        %v4905 = vadd.f32 0.0, %v4904
        %v4906 = vpop.f32.mrf.mxu0
        %4907 = vmatprep.mubr.f32.mxu0 %v4720
        %4908 = vmatmul.mubr.f32.gmra.mxu0 %v4641
        %v4909 = vpop.f32.mrf.mxu0
        %v4910 = vadd.f32 0.0, %v4909
        %v4911 = vpop.f32.mrf.mxu0
        %4912 = vmatprep.mubr.f32.mxu0 %v4723
        %4913 = vmatmul.mubr.f32.gmra.mxu0 %v4643
        %v4914 = vpop.f32.mrf.mxu0
        %v4915 = vadd.f32 0.0, %v4914
        %v4916 = vpop.f32.mrf.mxu0
        %4917 = vmatprep.mubr.f32.mxu0 %v4726
        %4918 = vmatmul.mubr.f32.gmra.mxu0 %v4645
        %v4919 = vpop.f32.mrf.mxu0
        %v4920 = vadd.f32 0.0, %v4919
        %v4921 = vpop.f32.mrf.mxu0
        %4922 = vmatprep.mubr.f32.mxu0 %v4729
        %4923 = vmatmul.mubr.f32.gmra.mxu0 %v4647
        %v4924 = vpop.f32.mrf.mxu0
        %v4925 = vadd.f32 0.0, %v4924
        %v4926 = vpop.f32.mrf.mxu0
        %4927 = vmatprep.mubr.f32.mxu0 %v4732
        %4928 = vmatmul.mubr.f32.gmra.mxu0 %v4649
        %v4929 = vpop.f32.mrf.mxu0
        %v4930 = vadd.f32 0.0, %v4929
        %v4931 = vpop.f32.mrf.mxu0
        %4932 = vmatprep.mubr.f32.mxu0 %v4735
        %4933 = vmatmul.mubr.f32.gmra.mxu0 %v4651
        %v4934 = vpop.f32.mrf.mxu0
        %v4935 = vadd.f32 0.0, %v4934
        %v4936 = vpop.f32.mrf.mxu0
        %4937 = vmatprep.mubr.f32.mxu0 %v4738
        %4938 = vmatmul.mubr.f32.gmra.mxu0 %v4653
        %v4939 = vpop.f32.mrf.mxu0
        %v4940 = vadd.f32 0.0, %v4939
        %v4941 = vpop.f32.mrf.mxu0
        %4942 = vmatprep.mubr.f32.mxu0 %v4741
        %4943 = vmatmul.mubr.f32.gmra.mxu0 %v4655
        %v4944 = vpop.f32.mrf.mxu0
        %v4945 = vadd.f32 0.0, %v4944
        %v4946 = vpop.f32.mrf.mxu0
        %4947 = vmatprep.mubr.f32.mxu0 %v4744
        %4948 = vmatmul.mubr.f32.gmra.mxu0 %v4657
        %v4949 = vpop.f32.mrf.mxu0
        %v4950 = vadd.f32 0.0, %v4949
        %v4951 = vpop.f32.mrf.mxu0
        %4952 = vmatprep.mubr.f32.mxu0 %v4747
        %4953 = vmatmul.mubr.f32.gmra.mxu0 %v4659
        %v4954 = vpop.f32.mrf.mxu0
        %v4955 = vadd.f32 0.0, %v4954
        %v4956 = vpop.f32.mrf.mxu0
        %4957 = vmatprep.mubr.f32.mxu0 %v4750
        %4958 = vmatmul.mubr.f32.gmra.mxu0 %v4661
        %v4959 = vpop.f32.mrf.mxu0
        %v4960 = vadd.f32 0.0, %v4959
        %v4961 = vpop.f32.mrf.mxu0
        %4962 = vmatprep.mubr.f32.mxu0 %v4753
        %4963 = vmatmul.mubr.f32.gmra.mxu0 %v4663
        %v4964 = vpop.f32.mrf.mxu0
        %v4965 = vadd.f32 0.0, %v4964
        %v4966 = vpop.f32.mrf.mxu0
        %4967 = vmatprep.mubr.f32.mxu0 %v4756
        %4968 = vmatmul.mubr.f32.gmra.mxu0 %v4665
        %v4969 = vpop.f32.mrf.mxu0
        %v4970 = vadd.f32 0.0, %v4969
        %v4971 = vpop.f32.mrf.mxu0
        %4972 = vmatprep.mubr.f32.mxu0 %v4759
        %4973 = vmatmul.mubr.f32.gmra.mxu0 %v4667
        %v4974 = vpop.f32.mrf.mxu0
        %v4975 = vadd.f32 0.0, %v4974
        %v4976 = vpop.f32.mrf.mxu0
        %4977 = vmatprep.mubr.f32.mxu0 %v4762
        %4978 = vmatmul.mubr.f32.gmra.mxu0 %v4669
        %v4979 = vpop.f32.mrf.mxu0
        %v4980 = vadd.f32 0.0, %v4979
        %v4981 = vpop.f32.mrf.mxu0
        %4982 = vmatprep.mubr.f32.mxu0 %v4765
        %4983 = vmatmul.mubr.f32.gmra.mxu0 %v4671
        %v4984 = vpop.f32.mrf.mxu0
        %v4985 = vadd.f32 0.0, %v4984
        %v4986 = vpop.f32.mrf.mxu0
        %4987 = vmatprep.mubr.f32.mxu0 %v4768
        %4988 = vmatmul.mubr.f32.gmra.mxu0 %v4673
        %v4989 = vpop.f32.mrf.mxu0
        %v4990 = vadd.f32 0.0, %v4989
        %v4991 = vpop.f32.mrf.mxu0
        %4992 = vmatprep.mubr.f32.mxu0 %v4771
        %4993 = vmatmul.mubr.f32.gmra.mxu0 %v4675
        %v4994 = vpop.f32.mrf.mxu0
        %v4995 = vadd.f32 0.0, %v4994
        %v4996 = vpop.f32.mrf.mxu0
        %4997 = vdwg.mxu0
        %v4998 = vmul.f32 %v4423, %v589
        %v4999 = vmul.f32 %v4425, %v591
        %v5000 = vmul.f32 %v4429, %v595
        %v5001 = vmul.f32 %v4431, %v597
        %v5002 = vmul.f32 %v4435, %v601
        %v5003 = vmul.f32 %v4437, %v603
        %v5004 = vmul.f32 %v4441, %v607
        %v5005 = vmul.f32 %v4443, %v609
        %v5006 = vmul.f32 %v4447, %v613
        %v5007 = vmul.f32 %v4449, %v615
        %v5008 = vmul.f32 %v4453, %v619
        %v5009 = vmul.f32 %v4455, %v621
        %v5010 = vmul.f32 %v4459, %v625
        %v5011 = vmul.f32 %v4461, %v627
        %v5012 = vmul.f32 %v4465, %v631
        %v5013 = vmul.f32 %v4467, %v633
        %v5014 = vmul.f32 %v4471, %v637
        %v5015 = vmul.f32 %v4473, %v639
        %v5016 = vmul.f32 %v4477, %v643
        %v5017 = vmul.f32 %v4479, %v645
        %v5018 = vmul.f32 %v4483, %v649
        %v5019 = vmul.f32 %v4485, %v651
        %v5020 = vmul.f32 %v4489, %v655
        %v5021 = vmul.f32 %v4491, %v657
        %v5022 = vmul.f32 %v4495, %v661
        %v5023 = vmul.f32 %v4497, %v663
        %v5024 = vmul.f32 %v4501, %v667
        %v5025 = vmul.f32 %v4503, %v669
        %v5026 = vmul.f32 %v4507, %v673
        %v5027 = vmul.f32 %v4509, %v675
        %v5028 = vmul.f32 %v4513, %v679
        %v5029 = vmul.f32 %v4515, %v681
        %v5030 = vmul.f32 %v4519, %v685
        %v5031 = vmul.f32 %v4521, %v687
        %v5032 = vmul.f32 %v4525, %v691
        %v5033 = vmul.f32 %v4527, %v693
        %v5034 = vmul.f32 %v4531, %v697
        %v5035 = vmul.f32 %v4533, %v699
        %v5036 = vmul.f32 %v4537, %v703
        %v5037 = vmul.f32 %v4539, %v705
        %v5038 = vmul.f32 %v4543, %v709
        %v5039 = vmul.f32 %v4545, %v711
        %v5040 = vmul.f32 %v4549, %v715
        %v5041 = vmul.f32 %v4551, %v717
        %v5042 = vmul.f32 %v4555, %v721
        %v5043 = vmul.f32 %v4557, %v723
        %v5044 = vmul.f32 %v4561, %v727
        %v5045 = vmul.f32 %v4563, %v729
        %v5046 = vmul.f32 %v4567, %v733
        %v5047 = vmul.f32 %v4569, %v735
        %v5048 = vmul.f32 %v4573, %v739
        %v5049 = vmul.f32 %v4575, %v741
        %v5050 = vmul.f32 %v4579, %v745
        %v5051 = vmul.f32 %v4581, %v747
        %v5052 = vmul.f32 %v4585, %v751
        %v5053 = vmul.f32 %v4587, %v753
        %v5054 = vmul.f32 %v4591, %v757
        %v5055 = vmul.f32 %v4593, %v759
        %v5056 = vmul.f32 %v4597, %v763
        %v5057 = vmul.f32 %v4599, %v765
        %v5058 = vmul.f32 %v4603, %v769
        %v5059 = vmul.f32 %v4605, %v771
        %v5060 = vmul.f32 %v4609, %v775
        %v5061 = vmul.f32 %v4611, %v777
        %v5063 = vsel %vm425, %v4999, 0
        %v5066 = vsel %vm425, %v5001, 0
        %v5069 = vsel %vm425, %v5003, 0
        %v5072 = vsel %vm425, %v5005, 0
        %v5075 = vsel %vm425, %v5007, 0
        %v5078 = vsel %vm425, %v5009, 0
        %v5081 = vsel %vm425, %v5011, 0
        %v5084 = vsel %vm425, %v5013, 0
        %v5087 = vsel %vm425, %v5015, 0
        %v5090 = vsel %vm425, %v5017, 0
        %v5093 = vsel %vm425, %v5019, 0
        %v5096 = vsel %vm425, %v5021, 0
        %v5099 = vsel %vm425, %v5023, 0
        %v5102 = vsel %vm425, %v5025, 0
        %v5105 = vsel %vm425, %v5027, 0
        %v5108 = vsel %vm425, %v5029, 0
        %v5111 = vsel %vm425, %v5031, 0
        %v5114 = vsel %vm425, %v5033, 0
        %v5117 = vsel %vm425, %v5035, 0
        %v5120 = vsel %vm425, %v5037, 0
        %v5123 = vsel %vm425, %v5039, 0
        %v5126 = vsel %vm425, %v5041, 0
        %v5129 = vsel %vm425, %v5043, 0
        %v5132 = vsel %vm425, %v5045, 0
        %v5135 = vsel %vm425, %v5047, 0
        %v5138 = vsel %vm425, %v5049, 0
        %v5141 = vsel %vm425, %v5051, 0
        %v5144 = vsel %vm425, %v5053, 0
        %v5147 = vsel %vm425, %v5055, 0
        %v5150 = vsel %vm425, %v5057, 0
        %v5153 = vsel %vm425, %v5059, 0
        %v5156 = vsel %vm425, %v5061, 0
        %5158 = vmatprep.subr.mxu0 0.0
        %5159 = vmatpush1.msra.mxu0 %v362
        %5160 = vmatprep.subr.mxu0 0.0
        %5161 = vmatpush1.msra.mxu0 %v361
        %5162 = vmatprep.subr.mxu0 0.0
        %5163 = vmatpush1.msra.mxu0 %v360
        %5164 = vmatprep.subr.mxu0 0.0
        %5165 = vmatpush1.msra.mxu0 %v359
        %5166 = vmatprep.subr.mxu0 0.0
        %5167 = vmatpush1.msra.mxu0 %v358
        %5168 = vmatprep.subr.mxu0 0.0
        %5169 = vmatpush1.msra.mxu0 %v357
        %5170 = vmatprep.subr.mxu0 0.0
        %5171 = vmatpush1.msra.mxu0 %v356
        %5172 = vmatprep.subr.mxu0 0.0
        %5173 = vmatpush1.msra.mxu0 %v355
        %5174 = vmatprep.subr.mxu0 0.0
        %5175 = vmatpush1.msra.mxu0 %v354
        %5176 = vmatprep.subr.mxu0 0.0
        %5177 = vmatpush1.msra.mxu0 %v353
        %5178 = vmatprep.subr.mxu0 0.0
        %5179 = vmatpush1.msra.mxu0 %v352
        %5180 = vmatprep.subr.mxu0 0.0
        %5181 = vmatpush1.msra.mxu0 %v351
        %5182 = vmatprep.subr.mxu0 0.0
        %5183 = vmatpush1.msra.mxu0 %v350
        %5184 = vmatprep.subr.mxu0 0.0
        %5185 = vmatpush1.msra.mxu0 %v349
        %5186 = vmatprep.subr.mxu0 0.0
        %5187 = vmatpush1.msra.mxu0 %v348
        %5188 = vmatprep.subr.mxu0 0.0
        %5189 = vmatpush1.msra.mxu0 %v347
        %5190 = vmatprep.subr.mxu0 0.0
        %5191 = vmatpush2.msra.mxu0 0.0
        %5192 = vmatprep.subr.mxu0 0.0
        %5193 = vmatpush2.msra.mxu0 0.0
        %5194 = vmatprep.subr.mxu0 0.0
        %5195 = vmatpush2.msra.mxu0 0.0
        %5196 = vmatprep.subr.mxu0 0.0
        %5197 = vmatpush2.msra.mxu0 0.0
        %5198 = vmatprep.subr.mxu0 0.0
        %5199 = vmatpush2.msra.mxu0 0.0
        %5200 = vmatprep.subr.mxu0 0.0
        %5201 = vmatpush2.msra.mxu0 0.0
        %5202 = vmatprep.subr.mxu0 0.0
        %5203 = vmatpush2.msra.mxu0 %v372
        %5204 = vmatprep.subr.mxu0 0.0
        %5205 = vmatpush2.msra.mxu0 %v371
        %5206 = vmatprep.subr.mxu0 0.0
        %5207 = vmatpush2.msra.mxu0 %v370
        %5208 = vmatprep.subr.mxu0 0.0
        %5209 = vmatpush2.msra.mxu0 %v369
        %5210 = vmatprep.subr.mxu0 0.0
        %5211 = vmatpush2.msra.mxu0 %v368
        %5212 = vmatprep.subr.mxu0 0.0
        %5213 = vmatpush2.msra.mxu0 %v367
        %5214 = vmatprep.subr.mxu0 0.0
        %5215 = vmatpush2.msra.mxu0 %v366
        %5216 = vmatprep.subr.mxu0 0.0
        %5217 = vmatpush2.msra.mxu0 %v365
        %5218 = vmatprep.subr.mxu0 0.0
        %5219 = vmatpush2.msra.mxu0 %v364
        %5220 = vmatprep.subr.mxu0 0.0
        %5221 = vmatpush2.msra.mxu0 %v363
        %5222 = vmatprep.mubr.f32.mxu0 %v5063
        %5223 = vmatmul.mubr.f32.gmra.mxu0 %v4998
        %v5224 = vpop.f32.mrf.mxu0
        %v5225 = vadd.f32 0.0, %v5224
        %v5226 = vpop.f32.mrf.mxu0
        %5227 = vmatprep.mubr.f32.mxu0 %v5066
        %5228 = vmatmul.mubr.f32.gmra.mxu0 %v5000
        %v5229 = vpop.f32.mrf.mxu0
        %v5230 = vadd.f32 0.0, %v5229
        %v5231 = vpop.f32.mrf.mxu0
        %5232 = vmatprep.mubr.f32.mxu0 %v5069
        %5233 = vmatmul.mubr.f32.gmra.mxu0 %v5002
        %v5234 = vpop.f32.mrf.mxu0
        %v5235 = vadd.f32 0.0, %v5234
        %v5236 = vpop.f32.mrf.mxu0
        %5237 = vmatprep.mubr.f32.mxu0 %v5072
        %5238 = vmatmul.mubr.f32.gmra.mxu0 %v5004
        %v5239 = vpop.f32.mrf.mxu0
        %v5240 = vadd.f32 0.0, %v5239
        %v5241 = vpop.f32.mrf.mxu0
        %5242 = vmatprep.mubr.f32.mxu0 %v5075
        %5243 = vmatmul.mubr.f32.gmra.mxu0 %v5006
        %v5244 = vpop.f32.mrf.mxu0
        %v5245 = vadd.f32 0.0, %v5244
        %v5246 = vpop.f32.mrf.mxu0
        %5247 = vmatprep.mubr.f32.mxu0 %v5078
        %5248 = vmatmul.mubr.f32.gmra.mxu0 %v5008
        %v5249 = vpop.f32.mrf.mxu0
        %v5250 = vadd.f32 0.0, %v5249
        %v5251 = vpop.f32.mrf.mxu0
        %5252 = vmatprep.mubr.f32.mxu0 %v5081
        %5253 = vmatmul.mubr.f32.gmra.mxu0 %v5010
        %v5254 = vpop.f32.mrf.mxu0
        %v5255 = vadd.f32 0.0, %v5254
        %v5256 = vpop.f32.mrf.mxu0
        %5257 = vmatprep.mubr.f32.mxu0 %v5084
        %5258 = vmatmul.mubr.f32.gmra.mxu0 %v5012
        %v5259 = vpop.f32.mrf.mxu0
        %v5260 = vadd.f32 0.0, %v5259
        %v5261 = vpop.f32.mrf.mxu0
        %5262 = vmatprep.mubr.f32.mxu0 %v5087
        %5263 = vmatmul.mubr.f32.gmra.mxu0 %v5014
        %v5264 = vpop.f32.mrf.mxu0
        %v5265 = vadd.f32 0.0, %v5264
        %v5266 = vpop.f32.mrf.mxu0
        %5267 = vmatprep.mubr.f32.mxu0 %v5090
        %5268 = vmatmul.mubr.f32.gmra.mxu0 %v5016
        %v5269 = vpop.f32.mrf.mxu0
        %v5270 = vadd.f32 0.0, %v5269
        %v5271 = vpop.f32.mrf.mxu0
        %5272 = vmatprep.mubr.f32.mxu0 %v5093
        %5273 = vmatmul.mubr.f32.gmra.mxu0 %v5018
        %v5274 = vpop.f32.mrf.mxu0
        %v5275 = vadd.f32 0.0, %v5274
        %v5276 = vpop.f32.mrf.mxu0
        %5277 = vmatprep.mubr.f32.mxu0 %v5096
        %5278 = vmatmul.mubr.f32.gmra.mxu0 %v5020
        %v5279 = vpop.f32.mrf.mxu0
        %v5280 = vadd.f32 0.0, %v5279
        %v5281 = vpop.f32.mrf.mxu0
        %5282 = vmatprep.mubr.f32.mxu0 %v5099
        %5283 = vmatmul.mubr.f32.gmra.mxu0 %v5022
        %v5284 = vpop.f32.mrf.mxu0
        %v5285 = vadd.f32 0.0, %v5284
        %v5286 = vpop.f32.mrf.mxu0
        %5287 = vmatprep.mubr.f32.mxu0 %v5102
        %5288 = vmatmul.mubr.f32.gmra.mxu0 %v5024
        %v5289 = vpop.f32.mrf.mxu0
        %v5290 = vadd.f32 0.0, %v5289
        %v5291 = vpop.f32.mrf.mxu0
        %5292 = vmatprep.mubr.f32.mxu0 %v5105
        %5293 = vmatmul.mubr.f32.gmra.mxu0 %v5026
        %v5294 = vpop.f32.mrf.mxu0
        %v5295 = vadd.f32 0.0, %v5294
        %v5296 = vpop.f32.mrf.mxu0
        %5297 = vmatprep.mubr.f32.mxu0 %v5108
        %5298 = vmatmul.mubr.f32.gmra.mxu0 %v5028
        %v5299 = vpop.f32.mrf.mxu0
        %v5300 = vadd.f32 0.0, %v5299
        %v5301 = vpop.f32.mrf.mxu0
        %5302 = vmatprep.mubr.f32.mxu0 %v5111
        %5303 = vmatmul.mubr.f32.gmra.mxu0 %v5030
        %v5304 = vpop.f32.mrf.mxu0
        %v5305 = vadd.f32 0.0, %v5304
        %v5306 = vpop.f32.mrf.mxu0
        %5307 = vmatprep.mubr.f32.mxu0 %v5114
        %5308 = vmatmul.mubr.f32.gmra.mxu0 %v5032
        %v5309 = vpop.f32.mrf.mxu0
        %v5310 = vadd.f32 0.0, %v5309
        %v5311 = vpop.f32.mrf.mxu0
        %5312 = vmatprep.mubr.f32.mxu0 %v5117
        %5313 = vmatmul.mubr.f32.gmra.mxu0 %v5034
        %v5314 = vpop.f32.mrf.mxu0
        %v5315 = vadd.f32 0.0, %v5314
        %v5316 = vpop.f32.mrf.mxu0
        %5317 = vmatprep.mubr.f32.mxu0 %v5120
        %5318 = vmatmul.mubr.f32.gmra.mxu0 %v5036
        %v5319 = vpop.f32.mrf.mxu0
        %v5320 = vadd.f32 0.0, %v5319
        %v5321 = vpop.f32.mrf.mxu0
        %5322 = vmatprep.mubr.f32.mxu0 %v5123
        %5323 = vmatmul.mubr.f32.gmra.mxu0 %v5038
        %v5324 = vpop.f32.mrf.mxu0
        %v5325 = vadd.f32 0.0, %v5324
        %v5326 = vpop.f32.mrf.mxu0
        %5327 = vmatprep.mubr.f32.mxu0 %v5126
        %5328 = vmatmul.mubr.f32.gmra.mxu0 %v5040
        %v5329 = vpop.f32.mrf.mxu0
        %v5330 = vadd.f32 0.0, %v5329
        %v5331 = vpop.f32.mrf.mxu0
        %5332 = vmatprep.mubr.f32.mxu0 %v5129
        %5333 = vmatmul.mubr.f32.gmra.mxu0 %v5042
        %v5334 = vpop.f32.mrf.mxu0
        %v5335 = vadd.f32 0.0, %v5334
        %v5336 = vpop.f32.mrf.mxu0
        %5337 = vmatprep.mubr.f32.mxu0 %v5132
        %5338 = vmatmul.mubr.f32.gmra.mxu0 %v5044
        %v5339 = vpop.f32.mrf.mxu0
        %v5340 = vadd.f32 0.0, %v5339
        %v5341 = vpop.f32.mrf.mxu0
        %5342 = vmatprep.mubr.f32.mxu0 %v5135
        %5343 = vmatmul.mubr.f32.gmra.mxu0 %v5046
        %v5344 = vpop.f32.mrf.mxu0
        %v5345 = vadd.f32 0.0, %v5344
        %v5346 = vpop.f32.mrf.mxu0
        %5347 = vmatprep.mubr.f32.mxu0 %v5138
        %5348 = vmatmul.mubr.f32.gmra.mxu0 %v5048
        %v5349 = vpop.f32.mrf.mxu0
        %v5350 = vadd.f32 0.0, %v5349
        %v5351 = vpop.f32.mrf.mxu0
        %5352 = vmatprep.mubr.f32.mxu0 %v5141
        %5353 = vmatmul.mubr.f32.gmra.mxu0 %v5050
        %v5354 = vpop.f32.mrf.mxu0
        %v5355 = vadd.f32 0.0, %v5354
        %v5356 = vpop.f32.mrf.mxu0
        %5357 = vmatprep.mubr.f32.mxu0 %v5144
        %5358 = vmatmul.mubr.f32.gmra.mxu0 %v5052
        %v5359 = vpop.f32.mrf.mxu0
        %v5360 = vadd.f32 0.0, %v5359
        %v5361 = vpop.f32.mrf.mxu0
        %5362 = vmatprep.mubr.f32.mxu0 %v5147
        %5363 = vmatmul.mubr.f32.gmra.mxu0 %v5054
        %v5364 = vpop.f32.mrf.mxu0
        %v5365 = vadd.f32 0.0, %v5364
        %v5366 = vpop.f32.mrf.mxu0
        %5367 = vmatprep.mubr.f32.mxu0 %v5150
        %5368 = vmatmul.mubr.f32.gmra.mxu0 %v5056
        %v5369 = vpop.f32.mrf.mxu0
        %v5370 = vadd.f32 0.0, %v5369
        %v5371 = vpop.f32.mrf.mxu0
        %5372 = vmatprep.mubr.f32.mxu0 %v5153
        %5373 = vmatmul.mubr.f32.gmra.mxu0 %v5058
        %v5374 = vpop.f32.mrf.mxu0
        %v5375 = vadd.f32 0.0, %v5374
        %v5376 = vpop.f32.mrf.mxu0
        %5377 = vmatprep.mubr.f32.mxu0 %v5156
        %5378 = vmatmul.mubr.f32.gmra.mxu0 %v5060
        %v5379 = vpop.f32.mrf.mxu0
        %v5380 = vadd.f32 0.0, %v5379
        %v5381 = vpop.f32.mrf.mxu0
        %5382 = vdwg.mxu0
        %v5383 = vmul.f32 %v4840, %v4840
        %v5384 = vmul.f32 %v4845, %v4845
        %v5385 = vmul.f32 %v4850, %v4850
        %v5386 = vmul.f32 %v4855, %v4855
        %v5387 = vmul.f32 %v4860, %v4860
        %v5388 = vmul.f32 %v4865, %v4865
        %v5389 = vmul.f32 %v4870, %v4870
        %v5390 = vmul.f32 %v4875, %v4875
        %v5391 = vmul.f32 %v4880, %v4880
        %v5392 = vmul.f32 %v4885, %v4885
        %v5393 = vmul.f32 %v4890, %v4890
        %v5394 = vmul.f32 %v4895, %v4895
        %v5395 = vmul.f32 %v4900, %v4900
        %v5396 = vmul.f32 %v4905, %v4905
        %v5397 = vmul.f32 %v4910, %v4910
        %v5398 = vmul.f32 %v4915, %v4915
        %v5399 = vmul.f32 %v4920, %v4920
        %v5400 = vmul.f32 %v4925, %v4925
        %v5401 = vmul.f32 %v4930, %v4930
        %v5402 = vmul.f32 %v4935, %v4935
        %v5403 = vmul.f32 %v4940, %v4940
        %v5404 = vmul.f32 %v4945, %v4945
        %v5405 = vmul.f32 %v4950, %v4950
        %v5406 = vmul.f32 %v4955, %v4955
        %v5407 = vmul.f32 %v4960, %v4960
        %v5408 = vmul.f32 %v4965, %v4965
        %v5409 = vmul.f32 %v4970, %v4970
        %v5410 = vmul.f32 %v4975, %v4975
        %v5411 = vmul.f32 %v4980, %v4980
        %v5412 = vmul.f32 %v4985, %v4985
        %v5413 = vmul.f32 %v4990, %v4990
        %v5414 = vmul.f32 %v4995, %v4995
        %v5415 = vmul.f32 %v5225, %v5225
        %v5416 = vmul.f32 %v5230, %v5230
        %v5417 = vmul.f32 %v5235, %v5235
        %v5418 = vmul.f32 %v5240, %v5240
        %v5419 = vmul.f32 %v5245, %v5245
        %v5420 = vmul.f32 %v5250, %v5250
        %v5421 = vmul.f32 %v5255, %v5255
        %v5422 = vmul.f32 %v5260, %v5260
        %v5423 = vmul.f32 %v5265, %v5265
        %v5424 = vmul.f32 %v5270, %v5270
        %v5425 = vmul.f32 %v5275, %v5275
        %v5426 = vmul.f32 %v5280, %v5280
        %v5427 = vmul.f32 %v5285, %v5285
        %v5428 = vmul.f32 %v5290, %v5290
        %v5429 = vmul.f32 %v5295, %v5295
        %v5430 = vmul.f32 %v5300, %v5300
        %v5431 = vmul.f32 %v5305, %v5305
        %v5432 = vmul.f32 %v5310, %v5310
        %v5433 = vmul.f32 %v5315, %v5315
        %v5434 = vmul.f32 %v5320, %v5320
        %v5435 = vmul.f32 %v5325, %v5325
        %v5436 = vmul.f32 %v5330, %v5330
        %v5437 = vmul.f32 %v5335, %v5335
        %v5438 = vmul.f32 %v5340, %v5340
        %v5439 = vmul.f32 %v5345, %v5345
        %v5440 = vmul.f32 %v5350, %v5350
        %v5441 = vmul.f32 %v5355, %v5355
        %v5442 = vmul.f32 %v5360, %v5360
        %v5443 = vmul.f32 %v5365, %v5365
        %v5444 = vmul.f32 %v5370, %v5370
        %v5445 = vmul.f32 %v5375, %v5375
        %v5446 = vmul.f32 %v5380, %v5380
        %v5447 = vadd.f32 %v5383, %v5415
        %v5448 = vadd.f32 %v5384, %v5416
        %v5449 = vadd.f32 %v5385, %v5417
        %v5450 = vadd.f32 %v5386, %v5418
        %v5451 = vadd.f32 %v5387, %v5419
        %v5452 = vadd.f32 %v5388, %v5420
        %v5453 = vadd.f32 %v5389, %v5421
        %v5454 = vadd.f32 %v5390, %v5422
        %v5455 = vadd.f32 %v5391, %v5423
        %v5456 = vadd.f32 %v5392, %v5424
        %v5457 = vadd.f32 %v5393, %v5425
        %v5458 = vadd.f32 %v5394, %v5426
        %v5459 = vadd.f32 %v5395, %v5427
        %v5460 = vadd.f32 %v5396, %v5428
        %v5461 = vadd.f32 %v5397, %v5429
        %v5462 = vadd.f32 %v5398, %v5430
        %v5463 = vadd.f32 %v5399, %v5431
        %v5464 = vadd.f32 %v5400, %v5432
        %v5465 = vadd.f32 %v5401, %v5433
        %v5466 = vadd.f32 %v5402, %v5434
        %v5467 = vadd.f32 %v5403, %v5435
        %v5468 = vadd.f32 %v5404, %v5436
        %v5469 = vadd.f32 %v5405, %v5437
        %v5470 = vadd.f32 %v5406, %v5438
        %v5471 = vadd.f32 %v5407, %v5439
        %v5472 = vadd.f32 %v5408, %v5440
        %v5473 = vadd.f32 %v5409, %v5441
        %v5474 = vadd.f32 %v5410, %v5442
        %v5475 = vadd.f32 %v5411, %v5443
        %v5476 = vadd.f32 %v5412, %v5444
        %v5477 = vadd.f32 %v5413, %v5445
        %v5478 = vadd.f32 %v5414, %v5446
        %v5479 = vsel %vm2204, %v5447, 0.0
        %5480 = vadd.xlane.f32.xlu0 %v5479
        %v5481 = vpop.xlane.xlu0 %5480
        %v5482 = vsel %vm2204, %v5448, 0.0
        %5483 = vadd.xlane.f32.xlu0 %v5482
        %v5484 = vpop.xlane.xlu0 %5483
        %v5485 = vsel %vm2204, %v5449, 0.0
        %5486 = vadd.xlane.f32.xlu0 %v5485
        %v5487 = vpop.xlane.xlu0 %5486
        %v5488 = vsel %vm2204, %v5450, 0.0
        %5489 = vadd.xlane.f32.xlu0 %v5488
        %v5490 = vpop.xlane.xlu0 %5489
        %v5491 = vsel %vm2204, %v5451, 0.0
        %5492 = vadd.xlane.f32.xlu0 %v5491
        %v5493 = vpop.xlane.xlu0 %5492
        %v5494 = vsel %vm2204, %v5452, 0.0
        %5495 = vadd.xlane.f32.xlu0 %v5494
        %v5496 = vpop.xlane.xlu0 %5495
        %v5497 = vsel %vm2204, %v5453, 0.0
        %5498 = vadd.xlane.f32.xlu0 %v5497
        %v5499 = vpop.xlane.xlu0 %5498
        %v5500 = vsel %vm2204, %v5454, 0.0
        %5501 = vadd.xlane.f32.xlu0 %v5500
        %v5502 = vpop.xlane.xlu0 %5501
        %v5503 = vsel %vm2204, %v5455, 0.0
        %5504 = vadd.xlane.f32.xlu0 %v5503
        %v5505 = vpop.xlane.xlu0 %5504
        %v5506 = vsel %vm2204, %v5456, 0.0
        %5507 = vadd.xlane.f32.xlu0 %v5506
        %v5508 = vpop.xlane.xlu0 %5507
        %v5509 = vsel %vm2204, %v5457, 0.0
        %5510 = vadd.xlane.f32.xlu0 %v5509
        %v5511 = vpop.xlane.xlu0 %5510
        %v5512 = vsel %vm2204, %v5458, 0.0
        %5513 = vadd.xlane.f32.xlu0 %v5512
        %v5514 = vpop.xlane.xlu0 %5513
        %v5515 = vsel %vm2204, %v5459, 0.0
        %5516 = vadd.xlane.f32.xlu0 %v5515
        %v5517 = vpop.xlane.xlu0 %5516
        %v5518 = vsel %vm2204, %v5460, 0.0
        %5519 = vadd.xlane.f32.xlu0 %v5518
        %v5520 = vpop.xlane.xlu0 %5519
        %v5521 = vsel %vm2204, %v5461, 0.0
        %5522 = vadd.xlane.f32.xlu0 %v5521
        %v5523 = vpop.xlane.xlu0 %5522
        %v5524 = vsel %vm2204, %v5462, 0.0
        %5525 = vadd.xlane.f32.xlu0 %v5524
        %v5526 = vpop.xlane.xlu0 %5525
        %v5527 = vsel %vm2204, %v5463, 0.0
        %5528 = vadd.xlane.f32.xlu0 %v5527
        %v5529 = vpop.xlane.xlu0 %5528
        %v5530 = vsel %vm2204, %v5464, 0.0
        %5531 = vadd.xlane.f32.xlu0 %v5530
        %v5532 = vpop.xlane.xlu0 %5531
        %v5533 = vsel %vm2204, %v5465, 0.0
        %5534 = vadd.xlane.f32.xlu0 %v5533
        %v5535 = vpop.xlane.xlu0 %5534
        %v5536 = vsel %vm2204, %v5466, 0.0
        %5537 = vadd.xlane.f32.xlu0 %v5536
        %v5538 = vpop.xlane.xlu0 %5537
        %v5539 = vsel %vm2204, %v5467, 0.0
        %5540 = vadd.xlane.f32.xlu0 %v5539
        %v5541 = vpop.xlane.xlu0 %5540
        %v5542 = vsel %vm2204, %v5468, 0.0
        %5543 = vadd.xlane.f32.xlu0 %v5542
        %v5544 = vpop.xlane.xlu0 %5543
        %v5545 = vsel %vm2204, %v5469, 0.0
        %5546 = vadd.xlane.f32.xlu0 %v5545
        %v5547 = vpop.xlane.xlu0 %5546
        %v5548 = vsel %vm2204, %v5470, 0.0
        %5549 = vadd.xlane.f32.xlu0 %v5548
        %v5550 = vpop.xlane.xlu0 %5549
        %v5551 = vsel %vm2204, %v5471, 0.0
        %5552 = vadd.xlane.f32.xlu0 %v5551
        %v5553 = vpop.xlane.xlu0 %5552
        %v5554 = vsel %vm2204, %v5472, 0.0
        %5555 = vadd.xlane.f32.xlu0 %v5554
        %v5556 = vpop.xlane.xlu0 %5555
        %v5557 = vsel %vm2204, %v5473, 0.0
        %5558 = vadd.xlane.f32.xlu0 %v5557
        %v5559 = vpop.xlane.xlu0 %5558
        %v5560 = vsel %vm2204, %v5474, 0.0
        %5561 = vadd.xlane.f32.xlu0 %v5560
        %v5562 = vpop.xlane.xlu0 %5561
        %v5563 = vsel %vm2204, %v5475, 0.0
        %5564 = vadd.xlane.f32.xlu0 %v5563
        %v5565 = vpop.xlane.xlu0 %5564
        %v5566 = vsel %vm2204, %v5476, 0.0
        %5567 = vadd.xlane.f32.xlu0 %v5566
        %v5568 = vpop.xlane.xlu0 %5567
        %v5569 = vsel %vm2204, %v5477, 0.0
        %5570 = vadd.xlane.f32.xlu0 %v5569
        %v5571 = vpop.xlane.xlu0 %5570
        %v5572 = vsel %vm2204, %v5478, 0.0
        %5573 = vadd.xlane.f32.xlu0 %v5572
        %v5574 = vpop.xlane.xlu0 %5573
        %v5575 = vmul.f32 %v5481, 0.07692308
        %v5576 = vmul.f32 %v5484, 0.07692308
        %v5577 = vmul.f32 %v5487, 0.07692308
        %v5578 = vmul.f32 %v5490, 0.07692308
        %v5579 = vmul.f32 %v5493, 0.07692308
        %v5580 = vmul.f32 %v5496, 0.07692308
        %v5581 = vmul.f32 %v5499, 0.07692308
        %v5582 = vmul.f32 %v5502, 0.07692308
        %v5583 = vmul.f32 %v5505, 0.07692308
        %v5584 = vmul.f32 %v5508, 0.07692308
        %v5585 = vmul.f32 %v5511, 0.07692308
        %v5586 = vmul.f32 %v5514, 0.07692308
        %v5587 = vmul.f32 %v5517, 0.07692308
        %v5588 = vmul.f32 %v5520, 0.07692308
        %v5589 = vmul.f32 %v5523, 0.07692308
        %v5590 = vmul.f32 %v5526, 0.07692308
        %v5591 = vmul.f32 %v5529, 0.07692308
        %v5592 = vmul.f32 %v5532, 0.07692308
        %v5593 = vmul.f32 %v5535, 0.07692308
        %v5594 = vmul.f32 %v5538, 0.07692308
        %v5595 = vmul.f32 %v5541, 0.07692308
        %v5596 = vmul.f32 %v5544, 0.07692308
        %v5597 = vmul.f32 %v5547, 0.07692308
        %v5598 = vmul.f32 %v5550, 0.07692308
        %v5599 = vmul.f32 %v5553, 0.07692308
        %v5600 = vmul.f32 %v5556, 0.07692308
        %v5601 = vmul.f32 %v5559, 0.07692308
        %v5602 = vmul.f32 %v5562, 0.07692308
        %v5603 = vmul.f32 %v5565, 0.07692308
        %v5604 = vmul.f32 %v5568, 0.07692308
        %v5605 = vmul.f32 %v5571, 0.07692308
        %v5606 = vmul.f32 %v5574, 0.07692308
        %vm5607 = vcmp.gt.f32.partialorder %v5575, %v4018
        %vm5608 = vcmp.gt.f32.partialorder %v5576, %v4019
        %vm5609 = vcmp.gt.f32.partialorder %v5577, %v4020
        %vm5610 = vcmp.gt.f32.partialorder %v5578, %v4021
        %vm5611 = vcmp.gt.f32.partialorder %v5579, %v4022
        %vm5612 = vcmp.gt.f32.partialorder %v5580, %v4023
        %vm5613 = vcmp.gt.f32.partialorder %v5581, %v4024
        %vm5614 = vcmp.gt.f32.partialorder %v5582, %v4025
        %vm5615 = vcmp.gt.f32.partialorder %v5583, %v4026
        %vm5616 = vcmp.gt.f32.partialorder %v5584, %v4027
        %vm5617 = vcmp.gt.f32.partialorder %v5585, %v4028
        %vm5618 = vcmp.gt.f32.partialorder %v5586, %v4029
        %vm5619 = vcmp.gt.f32.partialorder %v5587, %v4030
        %vm5620 = vcmp.gt.f32.partialorder %v5588, %v4031
        %vm5621 = vcmp.gt.f32.partialorder %v5589, %v4032
        %vm5622 = vcmp.gt.f32.partialorder %v5590, %v4033
        %vm5623 = vcmp.gt.f32.partialorder %v5591, %v4034
        %vm5624 = vcmp.gt.f32.partialorder %v5592, %v4035
        %vm5625 = vcmp.gt.f32.partialorder %v5593, %v4036
        %vm5626 = vcmp.gt.f32.partialorder %v5594, %v4037
        %vm5627 = vcmp.gt.f32.partialorder %v5595, %v4038
        %vm5628 = vcmp.gt.f32.partialorder %v5596, %v4039
        %vm5629 = vcmp.gt.f32.partialorder %v5597, %v4040
        %vm5630 = vcmp.gt.f32.partialorder %v5598, %v4041
        %vm5631 = vcmp.gt.f32.partialorder %v5599, %v4042
        %vm5632 = vcmp.gt.f32.partialorder %v5600, %v4043
        %vm5633 = vcmp.gt.f32.partialorder %v5601, %v4044
        %vm5634 = vcmp.gt.f32.partialorder %v5602, %v4045
        %vm5635 = vcmp.gt.f32.partialorder %v5603, %v4046
        %vm5636 = vcmp.gt.f32.partialorder %v5604, %v4047
        %vm5637 = vcmp.gt.f32.partialorder %v5605, %v4048
        %vm5638 = vcmp.gt.f32.partialorder %v5606, %v4049
        %v5639 = vsel %vm5607, 1, 0
        %v5640 = vsel %vm5608, 1, 0
        %v5641 = vsel %vm5609, 1, 0
        %v5642 = vsel %vm5610, 1, 0
        %v5643 = vsel %vm5611, 1, 0
        %v5644 = vsel %vm5612, 1, 0
        %v5645 = vsel %vm5613, 1, 0
        %v5646 = vsel %vm5614, 1, 0
        %v5647 = vsel %vm5615, 1, 0
        %v5648 = vsel %vm5616, 1, 0
        %v5649 = vsel %vm5617, 1, 0
        %v5650 = vsel %vm5618, 1, 0
        %v5651 = vsel %vm5619, 1, 0
        %v5652 = vsel %vm5620, 1, 0
        %v5653 = vsel %vm5621, 1, 0
        %v5654 = vsel %vm5622, 1, 0
        %v5655 = vsel %vm5623, 1, 0
        %v5656 = vsel %vm5624, 1, 0
        %v5657 = vsel %vm5625, 1, 0
        %v5658 = vsel %vm5626, 1, 0
        %v5659 = vsel %vm5627, 1, 0
        %v5660 = vsel %vm5628, 1, 0
        %v5661 = vsel %vm5629, 1, 0
        %v5662 = vsel %vm5630, 1, 0
        %v5663 = vsel %vm5631, 1, 0
        %v5664 = vsel %vm5632, 1, 0
        %v5665 = vsel %vm5633, 1, 0
        %v5666 = vsel %vm5634, 1, 0
        %v5667 = vsel %vm5635, 1, 0
        %v5668 = vsel %vm5636, 1, 0
        %v5669 = vsel %vm5637, 1, 0
        %v5670 = vsel %vm5638, 1, 0
        %vm5671 = vcmp.eq.s32.totalorder %v5639, 1
        %vm5672 = vcmp.eq.s32.totalorder %v5640, 1
        %vm5673 = vcmp.eq.s32.totalorder %v5641, 1
        %vm5674 = vcmp.eq.s32.totalorder %v5642, 1
        %vm5675 = vcmp.eq.s32.totalorder %v5643, 1
        %vm5676 = vcmp.eq.s32.totalorder %v5644, 1
        %vm5677 = vcmp.eq.s32.totalorder %v5645, 1
        %vm5678 = vcmp.eq.s32.totalorder %v5646, 1
        %vm5679 = vcmp.eq.s32.totalorder %v5647, 1
        %vm5680 = vcmp.eq.s32.totalorder %v5648, 1
        %vm5681 = vcmp.eq.s32.totalorder %v5649, 1
        %vm5682 = vcmp.eq.s32.totalorder %v5650, 1
        %vm5683 = vcmp.eq.s32.totalorder %v5651, 1
        %vm5684 = vcmp.eq.s32.totalorder %v5652, 1
        %vm5685 = vcmp.eq.s32.totalorder %v5653, 1
        %vm5686 = vcmp.eq.s32.totalorder %v5654, 1
        %vm5687 = vcmp.eq.s32.totalorder %v5655, 1
        %vm5688 = vcmp.eq.s32.totalorder %v5656, 1
        %vm5689 = vcmp.eq.s32.totalorder %v5657, 1
        %vm5690 = vcmp.eq.s32.totalorder %v5658, 1
        %vm5691 = vcmp.eq.s32.totalorder %v5659, 1
        %vm5692 = vcmp.eq.s32.totalorder %v5660, 1
        %vm5693 = vcmp.eq.s32.totalorder %v5661, 1
        %vm5694 = vcmp.eq.s32.totalorder %v5662, 1
        %vm5695 = vcmp.eq.s32.totalorder %v5663, 1
        %vm5696 = vcmp.eq.s32.totalorder %v5664, 1
        %vm5697 = vcmp.eq.s32.totalorder %v5665, 1
        %vm5698 = vcmp.eq.s32.totalorder %v5666, 1
        %vm5699 = vcmp.eq.s32.totalorder %v5667, 1
        %vm5700 = vcmp.eq.s32.totalorder %v5668, 1
        %vm5701 = vcmp.eq.s32.totalorder %v5669, 1
        %vm5702 = vcmp.eq.s32.totalorder %v5670, 1
        %v5703 = vsel %vm5671, %v4152, %v3986
        %v5704 = vsel %vm5672, %v4157, %v3987
        %v5705 = vsel %vm5673, %v4162, %v3988
        %v5706 = vsel %vm5674, %v4167, %v3989
        %v5707 = vsel %vm5675, %v4172, %v3990
        %v5708 = vsel %vm5676, %v4177, %v3991
        %v5709 = vsel %vm5677, %v4182, %v3992
        %v5710 = vsel %vm5678, %v4187, %v3993
        %v5711 = vsel %vm5679, %v4192, %v3994
        %v5712 = vsel %vm5680, %v4197, %v3995
        %v5713 = vsel %vm5681, %v4202, %v3996
        %v5714 = vsel %vm5682, %v4207, %v3997
        %v5715 = vsel %vm5683, %v4212, %v3998
        %v5716 = vsel %vm5684, %v4217, %v3999
        %v5717 = vsel %vm5685, %v4222, %v4000
        %v5718 = vsel %vm5686, %v4227, %v4001
        %v5719 = vsel %vm5687, %v4232, %v4002
        %v5720 = vsel %vm5688, %v4237, %v4003
        %v5721 = vsel %vm5689, %v4242, %v4004
        %v5722 = vsel %vm5690, %v4247, %v4005
        %v5723 = vsel %vm5691, %v4252, %v4006
        %v5724 = vsel %vm5692, %v4257, %v4007
        %v5725 = vsel %vm5693, %v4262, %v4008
        %v5726 = vsel %vm5694, %v4267, %v4009
        %v5727 = vsel %vm5695, %v4272, %v4010
        %v5728 = vsel %vm5696, %v4277, %v4011
        %v5729 = vsel %vm5697, %v4282, %v4012
        %v5730 = vsel %vm5698, %v4287, %v4013
        %v5731 = vsel %vm5699, %v4292, %v4014
        %v5732 = vsel %vm5700, %v4297, %v4015
        %v5733 = vsel %vm5701, %v4302, %v4016
        %v5734 = vsel %vm5702, %v4307, %v4017
        %v5735 = vsel %vm5607, %v5575, %v4018
        %v5736 = vsel %vm5608, %v5576, %v4019
        %v5737 = vsel %vm5609, %v5577, %v4020
        %v5738 = vsel %vm5610, %v5578, %v4021
        %v5739 = vsel %vm5611, %v5579, %v4022
        %v5740 = vsel %vm5612, %v5580, %v4023
        %v5741 = vsel %vm5613, %v5581, %v4024
        %v5742 = vsel %vm5614, %v5582, %v4025
        %v5743 = vsel %vm5615, %v5583, %v4026
        %v5744 = vsel %vm5616, %v5584, %v4027
        %v5745 = vsel %vm5617, %v5585, %v4028
        %v5746 = vsel %vm5618, %v5586, %v4029
        %v5747 = vsel %vm5619, %v5587, %v4030
        %v5748 = vsel %vm5620, %v5588, %v4031
        %v5749 = vsel %vm5621, %v5589, %v4032
        %v5750 = vsel %vm5622, %v5590, %v4033
        %v5751 = vsel %vm5623, %v5591, %v4034
        %v5752 = vsel %vm5624, %v5592, %v4035
        %v5753 = vsel %vm5625, %v5593, %v4036
        %v5754 = vsel %vm5626, %v5594, %v4037
        %v5755 = vsel %vm5627, %v5595, %v4038
        %v5756 = vsel %vm5628, %v5596, %v4039
        %v5757 = vsel %vm5629, %v5597, %v4040
        %v5758 = vsel %vm5630, %v5598, %v4041
        %v5759 = vsel %vm5631, %v5599, %v4042
        %v5760 = vsel %vm5632, %v5600, %v4043
        %v5761 = vsel %vm5633, %v5601, %v4044
        %v5762 = vsel %vm5634, %v5602, %v4045
        %v5763 = vsel %vm5635, %v5603, %v4046
        %v5764 = vsel %vm5636, %v5604, %v4047
        %v5765 = vsel %vm5637, %v5605, %v4048
        %v5766 = vsel %vm5638, %v5606, %v4049
        %s5767 = scalar_lea.vmem %s1, 624
        %v5768 = vld [vmem:[%s5767] sm:$0xff]
        %v5769 = vld [vmem:[%s5767 + $0x8] sm:$0xff]
        %v5770 = vld [vmem:[%s5767 + $0x10] sm:$0xff]
        %v5771 = vld [vmem:[%s5767 + $0x18] sm:$0xff]
        %v5772 = vld [vmem:[%s5767 + $0x20] sm:$0xff]
        %v5773 = vld [vmem:[%s5767 + $0x28] sm:$0xff]
        %v5774 = vld [vmem:[%s5767 + $0x30] sm:$0xff]
        %v5775 = vld [vmem:[%s5767 + $0x38] sm:$0xff]
        %v5776 = vld [vmem:[%s5767 + $0x40] sm:$0xff]
        %v5777 = vld [vmem:[%s5767 + $0x48] sm:$0xff]
        %v5778 = vld [vmem:[%s5767 + $0x50] sm:$0xff]
        %v5779 = vld [vmem:[%s5767 + $0x58] sm:$0xff]
        %v5780 = vld [vmem:[%s5767 + $0x60] sm:$0xff]
        %v5781 = vld [vmem:[%s5767 + $0x68] sm:$0xff]
        %v5782 = vld [vmem:[%s5767 + $0x70] sm:$0xff]
        %v5783 = vld [vmem:[%s5767 + $0x78] sm:$0xff]
        %v5784 = vld [vmem:[%s5767 + $0x80] sm:$0xff]
        %v5785 = vld [vmem:[%s5767 + $0x88] sm:$0xff]
        %v5786 = vld [vmem:[%s5767 + $0x90] sm:$0xff]
        %v5787 = vld [vmem:[%s5767 + $0x98] sm:$0xff]
        %v5788 = vld [vmem:[%s5767 + $0xa0] sm:$0xff]
        %v5789 = vld [vmem:[%s5767 + $0xa8] sm:$0xff]
        %v5790 = vld [vmem:[%s5767 + $0xb0] sm:$0xff]
        %v5791 = vld [vmem:[%s5767 + $0xb8] sm:$0xff]
        %v5792 = vld [vmem:[%s5767 + $0xc0] sm:$0xff]
        %v5793 = vld [vmem:[%s5767 + $0xc8] sm:$0xff]
        %s5794 = scalar_lea.vmem %s2, 3
        %v5795 = vld [vmem:[%s5794] sm:$0x1]
        %v5797 = vlaneseq
        %v5798 = vshrl.u32 %v5797, 7
        %v5799 = vsub.s32 0, %v5798
        %v5800 = vrot.slane %v5795, %v5799
        %5802 = vmatprep.subr.mxu0 0.0
        %5803 = vmatpush1.msra.mxu0 %v5783
        %5804 = vmatprep.subr.mxu0 0.0
        %5805 = vmatpush1.msra.mxu0 %v5782
        %5806 = vmatprep.subr.mxu0 0.0
        %5807 = vmatpush1.msra.mxu0 %v5781
        %5808 = vmatprep.subr.mxu0 0.0
        %5809 = vmatpush1.msra.mxu0 %v5780
        %5810 = vmatprep.subr.mxu0 0.0
        %5811 = vmatpush1.msra.mxu0 %v5779
        %5812 = vmatprep.subr.mxu0 0.0
        %5813 = vmatpush1.msra.mxu0 %v5778
        %5814 = vmatprep.subr.mxu0 0.0
        %5815 = vmatpush1.msra.mxu0 %v5777
        %5816 = vmatprep.subr.mxu0 0.0
        %5817 = vmatpush1.msra.mxu0 %v5776
        %5818 = vmatprep.subr.mxu0 0.0
        %5819 = vmatpush1.msra.mxu0 %v5775
        %5820 = vmatprep.subr.mxu0 0.0
        %5821 = vmatpush1.msra.mxu0 %v5774
        %5822 = vmatprep.subr.mxu0 0.0
        %5823 = vmatpush1.msra.mxu0 %v5773
        %5824 = vmatprep.subr.mxu0 0.0
        %5825 = vmatpush1.msra.mxu0 %v5772
        %5826 = vmatprep.subr.mxu0 0.0
        %5827 = vmatpush1.msra.mxu0 %v5771
        %5828 = vmatprep.subr.mxu0 0.0
        %5829 = vmatpush1.msra.mxu0 %v5770
        %5830 = vmatprep.subr.mxu0 0.0
        %5831 = vmatpush1.msra.mxu0 %v5769
        %5832 = vmatprep.subr.mxu0 0.0
        %5833 = vmatpush1.msra.mxu0 %v5768
        %5834 = vmatprep.subr.mxu0 0.0
        %5835 = vmatpush2.msra.mxu0 0.0
        %5836 = vmatprep.subr.mxu0 0.0
        %5837 = vmatpush2.msra.mxu0 0.0
        %5838 = vmatprep.subr.mxu0 0.0
        %5839 = vmatpush2.msra.mxu0 0.0
        %5840 = vmatprep.subr.mxu0 0.0
        %5841 = vmatpush2.msra.mxu0 0.0
        %5842 = vmatprep.subr.mxu0 0.0
        %5843 = vmatpush2.msra.mxu0 0.0
        %5844 = vmatprep.subr.mxu0 0.0
        %5845 = vmatpush2.msra.mxu0 0.0
        %5846 = vmatprep.subr.mxu0 0.0
        %5847 = vmatpush2.msra.mxu0 %v5793
        %5848 = vmatprep.subr.mxu0 0.0
        %5849 = vmatpush2.msra.mxu0 %v5792
        %5850 = vmatprep.subr.mxu0 0.0
        %5851 = vmatpush2.msra.mxu0 %v5791
        %5852 = vmatprep.subr.mxu0 0.0
        %5853 = vmatpush2.msra.mxu0 %v5790
        %5854 = vmatprep.subr.mxu0 0.0
        %5855 = vmatpush2.msra.mxu0 %v5789
        %5856 = vmatprep.subr.mxu0 0.0
        %5857 = vmatpush2.msra.mxu0 %v5788
        %5858 = vmatprep.subr.mxu0 0.0
        %5859 = vmatpush2.msra.mxu0 %v5787
        %5860 = vmatprep.subr.mxu0 0.0
        %5861 = vmatpush2.msra.mxu0 %v5786
        %5862 = vmatprep.subr.mxu0 0.0
        %5863 = vmatpush2.msra.mxu0 %v5785
        %5864 = vmatprep.subr.mxu0 0.0
        %5865 = vmatpush2.msra.mxu0 %v5784
        %5866 = vmatprep.mubr.f32.mxu0 %v427
        %5867 = vmatmul.mubr.f32.gmra.mxu0 %v283
        %v5868 = vpop.f32.mrf.mxu0
        %v5869 = vadd.f32 %v5800, %v5868
        %v5870 = vpop.f32.mrf.mxu0
        %5871 = vmatprep.mubr.f32.mxu0 %v430
        %5872 = vmatmul.mubr.f32.gmra.mxu0 %v285
        %v5873 = vpop.f32.mrf.mxu0
        %v5874 = vadd.f32 %v5800, %v5873
        %v5875 = vpop.f32.mrf.mxu0
        %5876 = vmatprep.mubr.f32.mxu0 %v433
        %5877 = vmatmul.mubr.f32.gmra.mxu0 %v287
        %v5878 = vpop.f32.mrf.mxu0
        %v5879 = vadd.f32 %v5800, %v5878
        %v5880 = vpop.f32.mrf.mxu0
        %5881 = vmatprep.mubr.f32.mxu0 %v436
        %5882 = vmatmul.mubr.f32.gmra.mxu0 %v289
        %v5883 = vpop.f32.mrf.mxu0
        %v5884 = vadd.f32 %v5800, %v5883
        %v5885 = vpop.f32.mrf.mxu0
        %5886 = vmatprep.mubr.f32.mxu0 %v439
        %5887 = vmatmul.mubr.f32.gmra.mxu0 %v291
        %v5888 = vpop.f32.mrf.mxu0
        %v5889 = vadd.f32 %v5800, %v5888
        %v5890 = vpop.f32.mrf.mxu0
        %5891 = vmatprep.mubr.f32.mxu0 %v442
        %5892 = vmatmul.mubr.f32.gmra.mxu0 %v293
        %v5893 = vpop.f32.mrf.mxu0
        %v5894 = vadd.f32 %v5800, %v5893
        %v5895 = vpop.f32.mrf.mxu0
        %5896 = vmatprep.mubr.f32.mxu0 %v445
        %5897 = vmatmul.mubr.f32.gmra.mxu0 %v295
        %v5898 = vpop.f32.mrf.mxu0
        %v5899 = vadd.f32 %v5800, %v5898
        %v5900 = vpop.f32.mrf.mxu0
        %5901 = vmatprep.mubr.f32.mxu0 %v448
        %5902 = vmatmul.mubr.f32.gmra.mxu0 %v297
        %v5903 = vpop.f32.mrf.mxu0
        %v5904 = vadd.f32 %v5800, %v5903
        %v5905 = vpop.f32.mrf.mxu0
        %5906 = vmatprep.mubr.f32.mxu0 %v451
        %5907 = vmatmul.mubr.f32.gmra.mxu0 %v299
        %v5908 = vpop.f32.mrf.mxu0
        %v5909 = vadd.f32 %v5800, %v5908
        %v5910 = vpop.f32.mrf.mxu0
        %5911 = vmatprep.mubr.f32.mxu0 %v454
        %5912 = vmatmul.mubr.f32.gmra.mxu0 %v301
        %v5913 = vpop.f32.mrf.mxu0
        %v5914 = vadd.f32 %v5800, %v5913
        %v5915 = vpop.f32.mrf.mxu0
        %5916 = vmatprep.mubr.f32.mxu0 %v457
        %5917 = vmatmul.mubr.f32.gmra.mxu0 %v303
        %v5918 = vpop.f32.mrf.mxu0
        %v5919 = vadd.f32 %v5800, %v5918
        %v5920 = vpop.f32.mrf.mxu0
        %5921 = vmatprep.mubr.f32.mxu0 %v460
        %5922 = vmatmul.mubr.f32.gmra.mxu0 %v305
        %v5923 = vpop.f32.mrf.mxu0
        %v5924 = vadd.f32 %v5800, %v5923
        %v5925 = vpop.f32.mrf.mxu0
        %5926 = vmatprep.mubr.f32.mxu0 %v463
        %5927 = vmatmul.mubr.f32.gmra.mxu0 %v307
        %v5928 = vpop.f32.mrf.mxu0
        %v5929 = vadd.f32 %v5800, %v5928
        %v5930 = vpop.f32.mrf.mxu0
        %5931 = vmatprep.mubr.f32.mxu0 %v466
        %5932 = vmatmul.mubr.f32.gmra.mxu0 %v309
        %v5933 = vpop.f32.mrf.mxu0
        %v5934 = vadd.f32 %v5800, %v5933
        %v5935 = vpop.f32.mrf.mxu0
        %5936 = vmatprep.mubr.f32.mxu0 %v469
        %5937 = vmatmul.mubr.f32.gmra.mxu0 %v311
        %v5938 = vpop.f32.mrf.mxu0
        %v5939 = vadd.f32 %v5800, %v5938
        %v5940 = vpop.f32.mrf.mxu0
        %5941 = vmatprep.mubr.f32.mxu0 %v472
        %5942 = vmatmul.mubr.f32.gmra.mxu0 %v313
        %v5943 = vpop.f32.mrf.mxu0
        %v5944 = vadd.f32 %v5800, %v5943
        %v5945 = vpop.f32.mrf.mxu0
        %5946 = vmatprep.mubr.f32.mxu0 %v475
        %5947 = vmatmul.mubr.f32.gmra.mxu0 %v315
        %v5948 = vpop.f32.mrf.mxu0
        %v5949 = vadd.f32 %v5800, %v5948
        %v5950 = vpop.f32.mrf.mxu0
        %5951 = vmatprep.mubr.f32.mxu0 %v478
        %5952 = vmatmul.mubr.f32.gmra.mxu0 %v317
        %v5953 = vpop.f32.mrf.mxu0
        %v5954 = vadd.f32 %v5800, %v5953
        %v5955 = vpop.f32.mrf.mxu0
        %5956 = vmatprep.mubr.f32.mxu0 %v481
        %5957 = vmatmul.mubr.f32.gmra.mxu0 %v319
        %v5958 = vpop.f32.mrf.mxu0
        %v5959 = vadd.f32 %v5800, %v5958
        %v5960 = vpop.f32.mrf.mxu0
        %5961 = vmatprep.mubr.f32.mxu0 %v484
        %5962 = vmatmul.mubr.f32.gmra.mxu0 %v321
        %v5963 = vpop.f32.mrf.mxu0
        %v5964 = vadd.f32 %v5800, %v5963
        %v5965 = vpop.f32.mrf.mxu0
        %5966 = vmatprep.mubr.f32.mxu0 %v487
        %5967 = vmatmul.mubr.f32.gmra.mxu0 %v323
        %v5968 = vpop.f32.mrf.mxu0
        %v5969 = vadd.f32 %v5800, %v5968
        %v5970 = vpop.f32.mrf.mxu0
        %5971 = vmatprep.mubr.f32.mxu0 %v490
        %5972 = vmatmul.mubr.f32.gmra.mxu0 %v325
        %v5973 = vpop.f32.mrf.mxu0
        %v5974 = vadd.f32 %v5800, %v5973
        %v5975 = vpop.f32.mrf.mxu0
        %5976 = vmatprep.mubr.f32.mxu0 %v493
        %5977 = vmatmul.mubr.f32.gmra.mxu0 %v327
        %v5978 = vpop.f32.mrf.mxu0
        %v5979 = vadd.f32 %v5800, %v5978
        %v5980 = vpop.f32.mrf.mxu0
        %5981 = vmatprep.mubr.f32.mxu0 %v496
        %5982 = vmatmul.mubr.f32.gmra.mxu0 %v329
        %v5983 = vpop.f32.mrf.mxu0
        %v5984 = vadd.f32 %v5800, %v5983
        %v5985 = vpop.f32.mrf.mxu0
        %5986 = vmatprep.mubr.f32.mxu0 %v499
        %5987 = vmatmul.mubr.f32.gmra.mxu0 %v331
        %v5988 = vpop.f32.mrf.mxu0
        %v5989 = vadd.f32 %v5800, %v5988
        %v5990 = vpop.f32.mrf.mxu0
        %5991 = vmatprep.mubr.f32.mxu0 %v502
        %5992 = vmatmul.mubr.f32.gmra.mxu0 %v333
        %v5993 = vpop.f32.mrf.mxu0
        %v5994 = vadd.f32 %v5800, %v5993
        %v5995 = vpop.f32.mrf.mxu0
        %5996 = vmatprep.mubr.f32.mxu0 %v505
        %5997 = vmatmul.mubr.f32.gmra.mxu0 %v335
        %v5998 = vpop.f32.mrf.mxu0
        %v5999 = vadd.f32 %v5800, %v5998
        %v6000 = vpop.f32.mrf.mxu0
        %6001 = vmatprep.mubr.f32.mxu0 %v508
        %6002 = vmatmul.mubr.f32.gmra.mxu0 %v337
        %v6003 = vpop.f32.mrf.mxu0
        %v6004 = vadd.f32 %v5800, %v6003
        %v6005 = vpop.f32.mrf.mxu0
        %6006 = vmatprep.mubr.f32.mxu0 %v511
        %6007 = vmatmul.mubr.f32.gmra.mxu0 %v339
        %v6008 = vpop.f32.mrf.mxu0
        %v6009 = vadd.f32 %v5800, %v6008
        %v6010 = vpop.f32.mrf.mxu0
        %6011 = vmatprep.mubr.f32.mxu0 %v514
        %6012 = vmatmul.mubr.f32.gmra.mxu0 %v341
        %v6013 = vpop.f32.mrf.mxu0
        %v6014 = vadd.f32 %v5800, %v6013
        %v6015 = vpop.f32.mrf.mxu0
        %6016 = vmatprep.mubr.f32.mxu0 %v517
        %6017 = vmatmul.mubr.f32.gmra.mxu0 %v343
        %v6018 = vpop.f32.mrf.mxu0
        %v6019 = vadd.f32 %v5800, %v6018
        %v6020 = vpop.f32.mrf.mxu0
        %6021 = vmatprep.mubr.f32.mxu0 %v520
        %6022 = vmatmul.mubr.f32.gmra.mxu0 %v345
        %v6023 = vpop.f32.mrf.mxu0
        %v6024 = vadd.f32 %v5800, %v6023
        %v6025 = vpop.f32.mrf.mxu0
        %6026 = vdwg.mxu0
        %s6027 = scalar_lea.vmem %s3, 768
        %v6028 = vld [vmem:[%s6027] sm:$0xff]
        %v6029 = vld [vmem:[%s6027 + $0x8] sm:$0xff]
        %v6030 = vld [vmem:[%s6027 + $0x10] sm:$0xff]
        %v6031 = vld [vmem:[%s6027 + $0x18] sm:$0xff]
        %v6032 = vld [vmem:[%s6027 + $0x20] sm:$0xff]
        %v6033 = vld [vmem:[%s6027 + $0x28] sm:$0xff]
        %v6034 = vld [vmem:[%s6027 + $0x30] sm:$0xff]
        %v6035 = vld [vmem:[%s6027 + $0x38] sm:$0xff]
        %v6036 = vld [vmem:[%s6027 + $0x40] sm:$0xff]
        %v6037 = vld [vmem:[%s6027 + $0x48] sm:$0xff]
        %v6038 = vld [vmem:[%s6027 + $0x50] sm:$0xff]
        %v6039 = vld [vmem:[%s6027 + $0x58] sm:$0xff]
        %v6040 = vld [vmem:[%s6027 + $0x60] sm:$0xff]
        %v6041 = vld [vmem:[%s6027 + $0x68] sm:$0xff]
        %v6042 = vld [vmem:[%s6027 + $0x70] sm:$0xff]
        %v6043 = vld [vmem:[%s6027 + $0x78] sm:$0xff]
        %v6044 = vld [vmem:[%s6027 + $0x80] sm:$0xff]
        %v6045 = vld [vmem:[%s6027 + $0x88] sm:$0xff]
        %v6046 = vld [vmem:[%s6027 + $0x90] sm:$0xff]
        %v6047 = vld [vmem:[%s6027 + $0x98] sm:$0xff]
        %v6048 = vld [vmem:[%s6027 + $0xa0] sm:$0xff]
        %v6049 = vld [vmem:[%s6027 + $0xa8] sm:$0xff]
        %v6050 = vld [vmem:[%s6027 + $0xb0] sm:$0xff]
        %v6051 = vld [vmem:[%s6027 + $0xb8] sm:$0xff]
        %v6052 = vld [vmem:[%s6027 + $0xc0] sm:$0xff]
        %v6053 = vld [vmem:[%s6027 + $0xc8] sm:$0xff]
        %v6054 = vld [vmem:[%s6027 + $0xd0] sm:$0xff]
        %v6055 = vld [vmem:[%s6027 + $0xd8] sm:$0xff]
        %v6056 = vld [vmem:[%s6027 + $0xe0] sm:$0xff]
        %v6057 = vld [vmem:[%s6027 + $0xe8] sm:$0xff]
        %v6058 = vld [vmem:[%s6027 + $0xf0] sm:$0xff]
        %v6059 = vld [vmem:[%s6027 + $0xf8] sm:$0xff]
        %s6060 = scalar_lea.vmem %s4, 6
        %v6061 = vld [vmem:[%s6060] sm:$0x3]
        %v6063 = vlaneseq
        %v6064 = vshrl.u32 %v6063, 7
        %v6065 = vsub.s32 0, %v6064
        %v6066 = vrot.slane %v6061, %v6065
        %v6067 = vlaneseq
        %v6068 = vshrl.u32 %v6067, 7
        %v6069 = vsub.s32 1, %v6068
        %v6070 = vrot.slane %v6061, %v6069
        %6073 = vmatprep.subr.mxu0 %v6059
        %6074 = vmatpush1.msra.mxu0 %v6058
        %6075 = vmatprep.subr.mxu0 %v6057
        %6076 = vmatpush1.msra.mxu0 %v6056
        %6077 = vmatprep.subr.mxu0 %v6055
        %6078 = vmatpush1.msra.mxu0 %v6054
        %6079 = vmatprep.subr.mxu0 %v6053
        %6080 = vmatpush1.msra.mxu0 %v6052
        %6081 = vmatprep.subr.mxu0 %v6051
        %6082 = vmatpush1.msra.mxu0 %v6050
        %6083 = vmatprep.subr.mxu0 %v6049
        %6084 = vmatpush1.msra.mxu0 %v6048
        %6085 = vmatprep.subr.mxu0 %v6047
        %6086 = vmatpush1.msra.mxu0 %v6046
        %6087 = vmatprep.subr.mxu0 %v6045
        %6088 = vmatpush1.msra.mxu0 %v6044
        %6089 = vmatprep.subr.mxu0 %v6043
        %6090 = vmatpush1.msra.mxu0 %v6042
        %6091 = vmatprep.subr.mxu0 %v6041
        %6092 = vmatpush1.msra.mxu0 %v6040
        %6093 = vmatprep.subr.mxu0 %v6039
        %6094 = vmatpush1.msra.mxu0 %v6038
        %6095 = vmatprep.subr.mxu0 %v6037
        %6096 = vmatpush1.msra.mxu0 %v6036
        %6097 = vmatprep.subr.mxu0 %v6035
        %6098 = vmatpush1.msra.mxu0 %v6034
        %6099 = vmatprep.subr.mxu0 %v6033
        %6100 = vmatpush1.msra.mxu0 %v6032
        %6101 = vmatprep.subr.mxu0 %v6031
        %6102 = vmatpush1.msra.mxu0 %v6030
        %6103 = vmatprep.subr.mxu0 %v6029
        %6104 = vmatpush1.msra.mxu0 %v6028
        %6105 = vmatprep.subr.mxu0 0.0
        %6106 = vmatpush2.msra.mxu0 0.0
        %6107 = vmatprep.subr.mxu0 0.0
        %6108 = vmatpush2.msra.mxu0 0.0
        %6109 = vmatprep.subr.mxu0 0.0
        %6110 = vmatpush2.msra.mxu0 0.0
        %6111 = vmatprep.subr.mxu0 0.0
        %6112 = vmatpush2.msra.mxu0 0.0
        %6113 = vmatprep.subr.mxu0 0.0
        %6114 = vmatpush2.msra.mxu0 0.0
        %6115 = vmatprep.subr.mxu0 0.0
        %6116 = vmatpush2.msra.mxu0 0.0
        %6117 = vmatprep.subr.mxu0 0.0
        %6118 = vmatpush2.msra.mxu0 0.0
        %6119 = vmatprep.subr.mxu0 0.0
        %6120 = vmatpush2.msra.mxu0 0.0
        %6121 = vmatprep.subr.mxu0 0.0
        %6122 = vmatpush2.msra.mxu0 0.0
        %6123 = vmatprep.subr.mxu0 0.0
        %6124 = vmatpush2.msra.mxu0 0.0
        %6125 = vmatprep.subr.mxu0 0.0
        %6126 = vmatpush2.msra.mxu0 0.0
        %6127 = vmatprep.subr.mxu0 0.0
        %6128 = vmatpush2.msra.mxu0 0.0
        %6129 = vmatprep.subr.mxu0 0.0
        %6130 = vmatpush2.msra.mxu0 0.0
        %6131 = vmatprep.subr.mxu0 0.0
        %6132 = vmatpush2.msra.mxu0 0.0
        %6133 = vmatprep.subr.mxu0 0.0
        %6134 = vmatpush2.msra.mxu0 0.0
        %6135 = vmatprep.subr.mxu0 0.0
        %6136 = vmatpush2.msra.mxu0 0.0
        %6137 = vmatprep.mubr.f32.mxu0 0.0
        %6138 = vmatmul.mubr.f32.gmra.mxu0 %v5869
        %v6139 = vpop.f32.mrf.mxu0
        %v6140 = vadd.f32 %v6066, %v6139
        %v6141 = vpop.f32.mrf.mxu0
        %v6142 = vadd.f32 %v6070, %v6141
        %6143 = vmatprep.mubr.f32.mxu0 0.0
        %6144 = vmatmul.mubr.f32.gmra.mxu0 %v5874
        %v6145 = vpop.f32.mrf.mxu0
        %v6146 = vadd.f32 %v6066, %v6145
        %v6147 = vpop.f32.mrf.mxu0
        %v6148 = vadd.f32 %v6070, %v6147
        %6149 = vmatprep.mubr.f32.mxu0 0.0
        %6150 = vmatmul.mubr.f32.gmra.mxu0 %v5879
        %v6151 = vpop.f32.mrf.mxu0
        %v6152 = vadd.f32 %v6066, %v6151
        %v6153 = vpop.f32.mrf.mxu0
        %v6154 = vadd.f32 %v6070, %v6153
        %6155 = vmatprep.mubr.f32.mxu0 0.0
        %6156 = vmatmul.mubr.f32.gmra.mxu0 %v5884
        %v6157 = vpop.f32.mrf.mxu0
        %v6158 = vadd.f32 %v6066, %v6157
        %v6159 = vpop.f32.mrf.mxu0
        %v6160 = vadd.f32 %v6070, %v6159
        %6161 = vmatprep.mubr.f32.mxu0 0.0
        %6162 = vmatmul.mubr.f32.gmra.mxu0 %v5889
        %v6163 = vpop.f32.mrf.mxu0
        %v6164 = vadd.f32 %v6066, %v6163
        %v6165 = vpop.f32.mrf.mxu0
        %v6166 = vadd.f32 %v6070, %v6165
        %6167 = vmatprep.mubr.f32.mxu0 0.0
        %6168 = vmatmul.mubr.f32.gmra.mxu0 %v5894
        %v6169 = vpop.f32.mrf.mxu0
        %v6170 = vadd.f32 %v6066, %v6169
        %v6171 = vpop.f32.mrf.mxu0
        %v6172 = vadd.f32 %v6070, %v6171
        %6173 = vmatprep.mubr.f32.mxu0 0.0
        %6174 = vmatmul.mubr.f32.gmra.mxu0 %v5899
        %v6175 = vpop.f32.mrf.mxu0
        %v6176 = vadd.f32 %v6066, %v6175
        %v6177 = vpop.f32.mrf.mxu0
        %v6178 = vadd.f32 %v6070, %v6177
        %6179 = vmatprep.mubr.f32.mxu0 0.0
        %6180 = vmatmul.mubr.f32.gmra.mxu0 %v5904
        %v6181 = vpop.f32.mrf.mxu0
        %v6182 = vadd.f32 %v6066, %v6181
        %v6183 = vpop.f32.mrf.mxu0
        %v6184 = vadd.f32 %v6070, %v6183
        %6185 = vmatprep.mubr.f32.mxu0 0.0
        %6186 = vmatmul.mubr.f32.gmra.mxu0 %v5909
        %v6187 = vpop.f32.mrf.mxu0
        %v6188 = vadd.f32 %v6066, %v6187
        %v6189 = vpop.f32.mrf.mxu0
        %v6190 = vadd.f32 %v6070, %v6189
        %6191 = vmatprep.mubr.f32.mxu0 0.0
        %6192 = vmatmul.mubr.f32.gmra.mxu0 %v5914
        %v6193 = vpop.f32.mrf.mxu0
        %v6194 = vadd.f32 %v6066, %v6193
        %v6195 = vpop.f32.mrf.mxu0
        %v6196 = vadd.f32 %v6070, %v6195
        %6197 = vmatprep.mubr.f32.mxu0 0.0
        %6198 = vmatmul.mubr.f32.gmra.mxu0 %v5919
        %v6199 = vpop.f32.mrf.mxu0
        %v6200 = vadd.f32 %v6066, %v6199
        %v6201 = vpop.f32.mrf.mxu0
        %v6202 = vadd.f32 %v6070, %v6201
        %6203 = vmatprep.mubr.f32.mxu0 0.0
        %6204 = vmatmul.mubr.f32.gmra.mxu0 %v5924
        %v6205 = vpop.f32.mrf.mxu0
        %v6206 = vadd.f32 %v6066, %v6205
        %v6207 = vpop.f32.mrf.mxu0
        %v6208 = vadd.f32 %v6070, %v6207
        %6209 = vmatprep.mubr.f32.mxu0 0.0
        %6210 = vmatmul.mubr.f32.gmra.mxu0 %v5929
        %v6211 = vpop.f32.mrf.mxu0
        %v6212 = vadd.f32 %v6066, %v6211
        %v6213 = vpop.f32.mrf.mxu0
        %v6214 = vadd.f32 %v6070, %v6213
        %6215 = vmatprep.mubr.f32.mxu0 0.0
        %6216 = vmatmul.mubr.f32.gmra.mxu0 %v5934
        %v6217 = vpop.f32.mrf.mxu0
        %v6218 = vadd.f32 %v6066, %v6217
        %v6219 = vpop.f32.mrf.mxu0
        %v6220 = vadd.f32 %v6070, %v6219
        %6221 = vmatprep.mubr.f32.mxu0 0.0
        %6222 = vmatmul.mubr.f32.gmra.mxu0 %v5939
        %v6223 = vpop.f32.mrf.mxu0
        %v6224 = vadd.f32 %v6066, %v6223
        %v6225 = vpop.f32.mrf.mxu0
        %v6226 = vadd.f32 %v6070, %v6225
        %6227 = vmatprep.mubr.f32.mxu0 0.0
        %6228 = vmatmul.mubr.f32.gmra.mxu0 %v5944
        %v6229 = vpop.f32.mrf.mxu0
        %v6230 = vadd.f32 %v6066, %v6229
        %v6231 = vpop.f32.mrf.mxu0
        %v6232 = vadd.f32 %v6070, %v6231
        %6233 = vmatprep.mubr.f32.mxu0 0.0
        %6234 = vmatmul.mubr.f32.gmra.mxu0 %v5949
        %v6235 = vpop.f32.mrf.mxu0
        %v6236 = vadd.f32 %v6066, %v6235
        %v6237 = vpop.f32.mrf.mxu0
        %v6238 = vadd.f32 %v6070, %v6237
        %6239 = vmatprep.mubr.f32.mxu0 0.0
        %6240 = vmatmul.mubr.f32.gmra.mxu0 %v5954
        %v6241 = vpop.f32.mrf.mxu0
        %v6242 = vadd.f32 %v6066, %v6241
        %v6243 = vpop.f32.mrf.mxu0
        %v6244 = vadd.f32 %v6070, %v6243
        %6245 = vmatprep.mubr.f32.mxu0 0.0
        %6246 = vmatmul.mubr.f32.gmra.mxu0 %v5959
        %v6247 = vpop.f32.mrf.mxu0
        %v6248 = vadd.f32 %v6066, %v6247
        %v6249 = vpop.f32.mrf.mxu0
        %v6250 = vadd.f32 %v6070, %v6249
        %6251 = vmatprep.mubr.f32.mxu0 0.0
        %6252 = vmatmul.mubr.f32.gmra.mxu0 %v5964
        %v6253 = vpop.f32.mrf.mxu0
        %v6254 = vadd.f32 %v6066, %v6253
        %v6255 = vpop.f32.mrf.mxu0
        %v6256 = vadd.f32 %v6070, %v6255
        %6257 = vmatprep.mubr.f32.mxu0 0.0
        %6258 = vmatmul.mubr.f32.gmra.mxu0 %v5969
        %v6259 = vpop.f32.mrf.mxu0
        %v6260 = vadd.f32 %v6066, %v6259
        %v6261 = vpop.f32.mrf.mxu0
        %v6262 = vadd.f32 %v6070, %v6261
        %6263 = vmatprep.mubr.f32.mxu0 0.0
        %6264 = vmatmul.mubr.f32.gmra.mxu0 %v5974
        %v6265 = vpop.f32.mrf.mxu0
        %v6266 = vadd.f32 %v6066, %v6265
        %v6267 = vpop.f32.mrf.mxu0
        %v6268 = vadd.f32 %v6070, %v6267
        %6269 = vmatprep.mubr.f32.mxu0 0.0
        %6270 = vmatmul.mubr.f32.gmra.mxu0 %v5979
        %v6271 = vpop.f32.mrf.mxu0
        %v6272 = vadd.f32 %v6066, %v6271
        %v6273 = vpop.f32.mrf.mxu0
        %v6274 = vadd.f32 %v6070, %v6273
        %6275 = vmatprep.mubr.f32.mxu0 0.0
        %6276 = vmatmul.mubr.f32.gmra.mxu0 %v5984
        %v6277 = vpop.f32.mrf.mxu0
        %v6278 = vadd.f32 %v6066, %v6277
        %v6279 = vpop.f32.mrf.mxu0
        %v6280 = vadd.f32 %v6070, %v6279
        %6281 = vmatprep.mubr.f32.mxu0 0.0
        %6282 = vmatmul.mubr.f32.gmra.mxu0 %v5989
        %v6283 = vpop.f32.mrf.mxu0
        %v6284 = vadd.f32 %v6066, %v6283
        %v6285 = vpop.f32.mrf.mxu0
        %v6286 = vadd.f32 %v6070, %v6285
        %6287 = vmatprep.mubr.f32.mxu0 0.0
        %6288 = vmatmul.mubr.f32.gmra.mxu0 %v5994
        %v6289 = vpop.f32.mrf.mxu0
        %v6290 = vadd.f32 %v6066, %v6289
        %v6291 = vpop.f32.mrf.mxu0
        %v6292 = vadd.f32 %v6070, %v6291
        %6293 = vmatprep.mubr.f32.mxu0 0.0
        %6294 = vmatmul.mubr.f32.gmra.mxu0 %v5999
        %v6295 = vpop.f32.mrf.mxu0
        %v6296 = vadd.f32 %v6066, %v6295
        %v6297 = vpop.f32.mrf.mxu0
        %v6298 = vadd.f32 %v6070, %v6297
        %6299 = vmatprep.mubr.f32.mxu0 0.0
        %6300 = vmatmul.mubr.f32.gmra.mxu0 %v6004
        %v6301 = vpop.f32.mrf.mxu0
        %v6302 = vadd.f32 %v6066, %v6301
        %v6303 = vpop.f32.mrf.mxu0
        %v6304 = vadd.f32 %v6070, %v6303
        %6305 = vmatprep.mubr.f32.mxu0 0.0
        %6306 = vmatmul.mubr.f32.gmra.mxu0 %v6009
        %v6307 = vpop.f32.mrf.mxu0
        %v6308 = vadd.f32 %v6066, %v6307
        %v6309 = vpop.f32.mrf.mxu0
        %v6310 = vadd.f32 %v6070, %v6309
        %6311 = vmatprep.mubr.f32.mxu0 0.0
        %6312 = vmatmul.mubr.f32.gmra.mxu0 %v6014
        %v6313 = vpop.f32.mrf.mxu0
        %v6314 = vadd.f32 %v6066, %v6313
        %v6315 = vpop.f32.mrf.mxu0
        %v6316 = vadd.f32 %v6070, %v6315
        %6317 = vmatprep.mubr.f32.mxu0 0.0
        %6318 = vmatmul.mubr.f32.gmra.mxu0 %v6019
        %v6319 = vpop.f32.mrf.mxu0
        %v6320 = vadd.f32 %v6066, %v6319
        %v6321 = vpop.f32.mrf.mxu0
        %v6322 = vadd.f32 %v6070, %v6321
        %6323 = vmatprep.mubr.f32.mxu0 0.0
        %6324 = vmatmul.mubr.f32.gmra.mxu0 %v6024
        %v6325 = vpop.f32.mrf.mxu0
        %v6326 = vadd.f32 %v6066, %v6325
        %v6327 = vpop.f32.mrf.mxu0
        %v6328 = vadd.f32 %v6070, %v6327
        %6329 = vdwg.mxu0
        %v6330 = vmul.f32 %v6140, %v283
        %v6331 = vmul.f32 %v6142, %v284
        %v6332 = vmul.f32 %v6146, %v285
        %v6333 = vmul.f32 %v6148, %v286
        %v6334 = vmul.f32 %v6152, %v287
        %v6335 = vmul.f32 %v6154, %v288
        %v6336 = vmul.f32 %v6158, %v289
        %v6337 = vmul.f32 %v6160, %v290
        %v6338 = vmul.f32 %v6164, %v291
        %v6339 = vmul.f32 %v6166, %v292
        %v6340 = vmul.f32 %v6170, %v293
        %v6341 = vmul.f32 %v6172, %v294
        %v6342 = vmul.f32 %v6176, %v295
        %v6343 = vmul.f32 %v6178, %v296
        %v6344 = vmul.f32 %v6182, %v297
        %v6345 = vmul.f32 %v6184, %v298
        %v6346 = vmul.f32 %v6188, %v299
        %v6347 = vmul.f32 %v6190, %v300
        %v6348 = vmul.f32 %v6194, %v301
        %v6349 = vmul.f32 %v6196, %v302
        %v6350 = vmul.f32 %v6200, %v303
        %v6351 = vmul.f32 %v6202, %v304
        %v6352 = vmul.f32 %v6206, %v305
        %v6353 = vmul.f32 %v6208, %v306
        %v6354 = vmul.f32 %v6212, %v307
        %v6355 = vmul.f32 %v6214, %v308
        %v6356 = vmul.f32 %v6218, %v309
        %v6357 = vmul.f32 %v6220, %v310
        %v6358 = vmul.f32 %v6224, %v311
        %v6359 = vmul.f32 %v6226, %v312
        %v6360 = vmul.f32 %v6230, %v313
        %v6361 = vmul.f32 %v6232, %v314
        %v6362 = vmul.f32 %v6236, %v315
        %v6363 = vmul.f32 %v6238, %v316
        %v6364 = vmul.f32 %v6242, %v317
        %v6365 = vmul.f32 %v6244, %v318
        %v6366 = vmul.f32 %v6248, %v319
        %v6367 = vmul.f32 %v6250, %v320
        %v6368 = vmul.f32 %v6254, %v321
        %v6369 = vmul.f32 %v6256, %v322
        %v6370 = vmul.f32 %v6260, %v323
        %v6371 = vmul.f32 %v6262, %v324
        %v6372 = vmul.f32 %v6266, %v325
        %v6373 = vmul.f32 %v6268, %v326
        %v6374 = vmul.f32 %v6272, %v327
        %v6375 = vmul.f32 %v6274, %v328
        %v6376 = vmul.f32 %v6278, %v329
        %v6377 = vmul.f32 %v6280, %v330
        %v6378 = vmul.f32 %v6284, %v331
        %v6379 = vmul.f32 %v6286, %v332
        %v6380 = vmul.f32 %v6290, %v333
        %v6381 = vmul.f32 %v6292, %v334
        %v6382 = vmul.f32 %v6296, %v335
        %v6383 = vmul.f32 %v6298, %v336
        %v6384 = vmul.f32 %v6302, %v337
        %v6385 = vmul.f32 %v6304, %v338
        %v6386 = vmul.f32 %v6308, %v339
        %v6387 = vmul.f32 %v6310, %v340
        %v6388 = vmul.f32 %v6314, %v341
        %v6389 = vmul.f32 %v6316, %v342
        %v6390 = vmul.f32 %v6320, %v343
        %v6391 = vmul.f32 %v6322, %v344
        %v6392 = vmul.f32 %v6326, %v345
        %v6393 = vmul.f32 %v6328, %v346
        %v6395 = vsel %vm425, %v6331, 0
        %v6398 = vsel %vm425, %v6333, 0
        %v6401 = vsel %vm425, %v6335, 0
        %v6404 = vsel %vm425, %v6337, 0
        %v6407 = vsel %vm425, %v6339, 0
        %v6410 = vsel %vm425, %v6341, 0
        %v6413 = vsel %vm425, %v6343, 0
        %v6416 = vsel %vm425, %v6345, 0
        %v6419 = vsel %vm425, %v6347, 0
        %v6422 = vsel %vm425, %v6349, 0
        %v6425 = vsel %vm425, %v6351, 0
        %v6428 = vsel %vm425, %v6353, 0
        %v6431 = vsel %vm425, %v6355, 0
        %v6434 = vsel %vm425, %v6357, 0
        %v6437 = vsel %vm425, %v6359, 0
        %v6440 = vsel %vm425, %v6361, 0
        %v6443 = vsel %vm425, %v6363, 0
        %v6446 = vsel %vm425, %v6365, 0
        %v6449 = vsel %vm425, %v6367, 0
        %v6452 = vsel %vm425, %v6369, 0
        %v6455 = vsel %vm425, %v6371, 0
        %v6458 = vsel %vm425, %v6373, 0
        %v6461 = vsel %vm425, %v6375, 0
        %v6464 = vsel %vm425, %v6377, 0
        %v6467 = vsel %vm425, %v6379, 0
        %v6470 = vsel %vm425, %v6381, 0
        %v6473 = vsel %vm425, %v6383, 0
        %v6476 = vsel %vm425, %v6385, 0
        %v6479 = vsel %vm425, %v6387, 0
        %v6482 = vsel %vm425, %v6389, 0
        %v6485 = vsel %vm425, %v6391, 0
        %v6488 = vsel %vm425, %v6393, 0
        %6490 = vmatprep.subr.mxu0 0.0
        %6491 = vmatpush1.msra.mxu0 %v362
        %6492 = vmatprep.subr.mxu0 0.0
        %6493 = vmatpush1.msra.mxu0 %v361
        %6494 = vmatprep.subr.mxu0 0.0
        %6495 = vmatpush1.msra.mxu0 %v360
        %6496 = vmatprep.subr.mxu0 0.0
        %6497 = vmatpush1.msra.mxu0 %v359
        %6498 = vmatprep.subr.mxu0 0.0
        %6499 = vmatpush1.msra.mxu0 %v358
        %6500 = vmatprep.subr.mxu0 0.0
        %6501 = vmatpush1.msra.mxu0 %v357
        %6502 = vmatprep.subr.mxu0 0.0
        %6503 = vmatpush1.msra.mxu0 %v356
        %6504 = vmatprep.subr.mxu0 0.0
        %6505 = vmatpush1.msra.mxu0 %v355
        %6506 = vmatprep.subr.mxu0 0.0
        %6507 = vmatpush1.msra.mxu0 %v354
        %6508 = vmatprep.subr.mxu0 0.0
        %6509 = vmatpush1.msra.mxu0 %v353
        %6510 = vmatprep.subr.mxu0 0.0
        %6511 = vmatpush1.msra.mxu0 %v352
        %6512 = vmatprep.subr.mxu0 0.0
        %6513 = vmatpush1.msra.mxu0 %v351
        %6514 = vmatprep.subr.mxu0 0.0
        %6515 = vmatpush1.msra.mxu0 %v350
        %6516 = vmatprep.subr.mxu0 0.0
        %6517 = vmatpush1.msra.mxu0 %v349
        %6518 = vmatprep.subr.mxu0 0.0
        %6519 = vmatpush1.msra.mxu0 %v348
        %6520 = vmatprep.subr.mxu0 0.0
        %6521 = vmatpush1.msra.mxu0 %v347
        %6522 = vmatprep.subr.mxu0 0.0
        %6523 = vmatpush2.msra.mxu0 0.0
        %6524 = vmatprep.subr.mxu0 0.0
        %6525 = vmatpush2.msra.mxu0 0.0
        %6526 = vmatprep.subr.mxu0 0.0
        %6527 = vmatpush2.msra.mxu0 0.0
        %6528 = vmatprep.subr.mxu0 0.0
        %6529 = vmatpush2.msra.mxu0 0.0
        %6530 = vmatprep.subr.mxu0 0.0
        %6531 = vmatpush2.msra.mxu0 0.0
        %6532 = vmatprep.subr.mxu0 0.0
        %6533 = vmatpush2.msra.mxu0 0.0
        %6534 = vmatprep.subr.mxu0 0.0
        %6535 = vmatpush2.msra.mxu0 %v372
        %6536 = vmatprep.subr.mxu0 0.0
        %6537 = vmatpush2.msra.mxu0 %v371
        %6538 = vmatprep.subr.mxu0 0.0
        %6539 = vmatpush2.msra.mxu0 %v370
        %6540 = vmatprep.subr.mxu0 0.0
        %6541 = vmatpush2.msra.mxu0 %v369
        %6542 = vmatprep.subr.mxu0 0.0
        %6543 = vmatpush2.msra.mxu0 %v368
        %6544 = vmatprep.subr.mxu0 0.0
        %6545 = vmatpush2.msra.mxu0 %v367
        %6546 = vmatprep.subr.mxu0 0.0
        %6547 = vmatpush2.msra.mxu0 %v366
        %6548 = vmatprep.subr.mxu0 0.0
        %6549 = vmatpush2.msra.mxu0 %v365
        %6550 = vmatprep.subr.mxu0 0.0
        %6551 = vmatpush2.msra.mxu0 %v364
        %6552 = vmatprep.subr.mxu0 0.0
        %6553 = vmatpush2.msra.mxu0 %v363
        %6554 = vmatprep.mubr.f32.mxu0 %v6395
        %6555 = vmatmul.mubr.f32.gmra.mxu0 %v6330
        %v6556 = vpop.f32.mrf.mxu0
        %v6557 = vadd.f32 0.0, %v6556
        %v6558 = vpop.f32.mrf.mxu0
        %6559 = vmatprep.mubr.f32.mxu0 %v6398
        %6560 = vmatmul.mubr.f32.gmra.mxu0 %v6332
        %v6561 = vpop.f32.mrf.mxu0
        %v6562 = vadd.f32 0.0, %v6561
        %v6563 = vpop.f32.mrf.mxu0
        %6564 = vmatprep.mubr.f32.mxu0 %v6401
        %6565 = vmatmul.mubr.f32.gmra.mxu0 %v6334
        %v6566 = vpop.f32.mrf.mxu0
        %v6567 = vadd.f32 0.0, %v6566
        %v6568 = vpop.f32.mrf.mxu0
        %6569 = vmatprep.mubr.f32.mxu0 %v6404
        %6570 = vmatmul.mubr.f32.gmra.mxu0 %v6336
        %v6571 = vpop.f32.mrf.mxu0
        %v6572 = vadd.f32 0.0, %v6571
        %v6573 = vpop.f32.mrf.mxu0
        %6574 = vmatprep.mubr.f32.mxu0 %v6407
        %6575 = vmatmul.mubr.f32.gmra.mxu0 %v6338
        %v6576 = vpop.f32.mrf.mxu0
        %v6577 = vadd.f32 0.0, %v6576
        %v6578 = vpop.f32.mrf.mxu0
        %6579 = vmatprep.mubr.f32.mxu0 %v6410
        %6580 = vmatmul.mubr.f32.gmra.mxu0 %v6340
        %v6581 = vpop.f32.mrf.mxu0
        %v6582 = vadd.f32 0.0, %v6581
        %v6583 = vpop.f32.mrf.mxu0
        %6584 = vmatprep.mubr.f32.mxu0 %v6413
        %6585 = vmatmul.mubr.f32.gmra.mxu0 %v6342
        %v6586 = vpop.f32.mrf.mxu0
        %v6587 = vadd.f32 0.0, %v6586
        %v6588 = vpop.f32.mrf.mxu0
        %6589 = vmatprep.mubr.f32.mxu0 %v6416
        %6590 = vmatmul.mubr.f32.gmra.mxu0 %v6344
        %v6591 = vpop.f32.mrf.mxu0
        %v6592 = vadd.f32 0.0, %v6591
        %v6593 = vpop.f32.mrf.mxu0
        %6594 = vmatprep.mubr.f32.mxu0 %v6419
        %6595 = vmatmul.mubr.f32.gmra.mxu0 %v6346
        %v6596 = vpop.f32.mrf.mxu0
        %v6597 = vadd.f32 0.0, %v6596
        %v6598 = vpop.f32.mrf.mxu0
        %6599 = vmatprep.mubr.f32.mxu0 %v6422
        %6600 = vmatmul.mubr.f32.gmra.mxu0 %v6348
        %v6601 = vpop.f32.mrf.mxu0
        %v6602 = vadd.f32 0.0, %v6601
        %v6603 = vpop.f32.mrf.mxu0
        %6604 = vmatprep.mubr.f32.mxu0 %v6425
        %6605 = vmatmul.mubr.f32.gmra.mxu0 %v6350
        %v6606 = vpop.f32.mrf.mxu0
        %v6607 = vadd.f32 0.0, %v6606
        %v6608 = vpop.f32.mrf.mxu0
        %6609 = vmatprep.mubr.f32.mxu0 %v6428
        %6610 = vmatmul.mubr.f32.gmra.mxu0 %v6352
        %v6611 = vpop.f32.mrf.mxu0
        %v6612 = vadd.f32 0.0, %v6611
        %v6613 = vpop.f32.mrf.mxu0
        %6614 = vmatprep.mubr.f32.mxu0 %v6431
        %6615 = vmatmul.mubr.f32.gmra.mxu0 %v6354
        %v6616 = vpop.f32.mrf.mxu0
        %v6617 = vadd.f32 0.0, %v6616
        %v6618 = vpop.f32.mrf.mxu0
        %6619 = vmatprep.mubr.f32.mxu0 %v6434
        %6620 = vmatmul.mubr.f32.gmra.mxu0 %v6356
        %v6621 = vpop.f32.mrf.mxu0
        %v6622 = vadd.f32 0.0, %v6621
        %v6623 = vpop.f32.mrf.mxu0
        %6624 = vmatprep.mubr.f32.mxu0 %v6437
        %6625 = vmatmul.mubr.f32.gmra.mxu0 %v6358
        %v6626 = vpop.f32.mrf.mxu0
        %v6627 = vadd.f32 0.0, %v6626
        %v6628 = vpop.f32.mrf.mxu0
        %6629 = vmatprep.mubr.f32.mxu0 %v6440
        %6630 = vmatmul.mubr.f32.gmra.mxu0 %v6360
        %v6631 = vpop.f32.mrf.mxu0
        %v6632 = vadd.f32 0.0, %v6631
        %v6633 = vpop.f32.mrf.mxu0
        %6634 = vmatprep.mubr.f32.mxu0 %v6443
        %6635 = vmatmul.mubr.f32.gmra.mxu0 %v6362
        %v6636 = vpop.f32.mrf.mxu0
        %v6637 = vadd.f32 0.0, %v6636
        %v6638 = vpop.f32.mrf.mxu0
        %6639 = vmatprep.mubr.f32.mxu0 %v6446
        %6640 = vmatmul.mubr.f32.gmra.mxu0 %v6364
        %v6641 = vpop.f32.mrf.mxu0
        %v6642 = vadd.f32 0.0, %v6641
        %v6643 = vpop.f32.mrf.mxu0
        %6644 = vmatprep.mubr.f32.mxu0 %v6449
        %6645 = vmatmul.mubr.f32.gmra.mxu0 %v6366
        %v6646 = vpop.f32.mrf.mxu0
        %v6647 = vadd.f32 0.0, %v6646
        %v6648 = vpop.f32.mrf.mxu0
        %6649 = vmatprep.mubr.f32.mxu0 %v6452
        %6650 = vmatmul.mubr.f32.gmra.mxu0 %v6368
        %v6651 = vpop.f32.mrf.mxu0
        %v6652 = vadd.f32 0.0, %v6651
        %v6653 = vpop.f32.mrf.mxu0
        %6654 = vmatprep.mubr.f32.mxu0 %v6455
        %6655 = vmatmul.mubr.f32.gmra.mxu0 %v6370
        %v6656 = vpop.f32.mrf.mxu0
        %v6657 = vadd.f32 0.0, %v6656
        %v6658 = vpop.f32.mrf.mxu0
        %6659 = vmatprep.mubr.f32.mxu0 %v6458
        %6660 = vmatmul.mubr.f32.gmra.mxu0 %v6372
        %v6661 = vpop.f32.mrf.mxu0
        %v6662 = vadd.f32 0.0, %v6661
        %v6663 = vpop.f32.mrf.mxu0
        %6664 = vmatprep.mubr.f32.mxu0 %v6461
        %6665 = vmatmul.mubr.f32.gmra.mxu0 %v6374
        %v6666 = vpop.f32.mrf.mxu0
        %v6667 = vadd.f32 0.0, %v6666
        %v6668 = vpop.f32.mrf.mxu0
        %6669 = vmatprep.mubr.f32.mxu0 %v6464
        %6670 = vmatmul.mubr.f32.gmra.mxu0 %v6376
        %v6671 = vpop.f32.mrf.mxu0
        %v6672 = vadd.f32 0.0, %v6671
        %v6673 = vpop.f32.mrf.mxu0
        %6674 = vmatprep.mubr.f32.mxu0 %v6467
        %6675 = vmatmul.mubr.f32.gmra.mxu0 %v6378
        %v6676 = vpop.f32.mrf.mxu0
        %v6677 = vadd.f32 0.0, %v6676
        %v6678 = vpop.f32.mrf.mxu0
        %6679 = vmatprep.mubr.f32.mxu0 %v6470
        %6680 = vmatmul.mubr.f32.gmra.mxu0 %v6380
        %v6681 = vpop.f32.mrf.mxu0
        %v6682 = vadd.f32 0.0, %v6681
        %v6683 = vpop.f32.mrf.mxu0
        %6684 = vmatprep.mubr.f32.mxu0 %v6473
        %6685 = vmatmul.mubr.f32.gmra.mxu0 %v6382
        %v6686 = vpop.f32.mrf.mxu0
        %v6687 = vadd.f32 0.0, %v6686
        %v6688 = vpop.f32.mrf.mxu0
        %6689 = vmatprep.mubr.f32.mxu0 %v6476
        %6690 = vmatmul.mubr.f32.gmra.mxu0 %v6384
        %v6691 = vpop.f32.mrf.mxu0
        %v6692 = vadd.f32 0.0, %v6691
        %v6693 = vpop.f32.mrf.mxu0
        %6694 = vmatprep.mubr.f32.mxu0 %v6479
        %6695 = vmatmul.mubr.f32.gmra.mxu0 %v6386
        %v6696 = vpop.f32.mrf.mxu0
        %v6697 = vadd.f32 0.0, %v6696
        %v6698 = vpop.f32.mrf.mxu0
        %6699 = vmatprep.mubr.f32.mxu0 %v6482
        %6700 = vmatmul.mubr.f32.gmra.mxu0 %v6388
        %v6701 = vpop.f32.mrf.mxu0
        %v6702 = vadd.f32 0.0, %v6701
        %v6703 = vpop.f32.mrf.mxu0
        %6704 = vmatprep.mubr.f32.mxu0 %v6485
        %6705 = vmatmul.mubr.f32.gmra.mxu0 %v6390
        %v6706 = vpop.f32.mrf.mxu0
        %v6707 = vadd.f32 0.0, %v6706
        %v6708 = vpop.f32.mrf.mxu0
        %6709 = vmatprep.mubr.f32.mxu0 %v6488
        %6710 = vmatmul.mubr.f32.gmra.mxu0 %v6392
        %v6711 = vpop.f32.mrf.mxu0
        %v6712 = vadd.f32 0.0, %v6711
        %v6713 = vpop.f32.mrf.mxu0
        %6714 = vdwg.mxu0
        %v6715 = vmul.f32 %v6140, %v589
        %v6716 = vmul.f32 %v6142, %v591
        %v6717 = vmul.f32 %v6146, %v595
        %v6718 = vmul.f32 %v6148, %v597
        %v6719 = vmul.f32 %v6152, %v601
        %v6720 = vmul.f32 %v6154, %v603
        %v6721 = vmul.f32 %v6158, %v607
        %v6722 = vmul.f32 %v6160, %v609
        %v6723 = vmul.f32 %v6164, %v613
        %v6724 = vmul.f32 %v6166, %v615
        %v6725 = vmul.f32 %v6170, %v619
        %v6726 = vmul.f32 %v6172, %v621
        %v6727 = vmul.f32 %v6176, %v625
        %v6728 = vmul.f32 %v6178, %v627
        %v6729 = vmul.f32 %v6182, %v631
        %v6730 = vmul.f32 %v6184, %v633
        %v6731 = vmul.f32 %v6188, %v637
        %v6732 = vmul.f32 %v6190, %v639
        %v6733 = vmul.f32 %v6194, %v643
        %v6734 = vmul.f32 %v6196, %v645
        %v6735 = vmul.f32 %v6200, %v649
        %v6736 = vmul.f32 %v6202, %v651
        %v6737 = vmul.f32 %v6206, %v655
        %v6738 = vmul.f32 %v6208, %v657
        %v6739 = vmul.f32 %v6212, %v661
        %v6740 = vmul.f32 %v6214, %v663
        %v6741 = vmul.f32 %v6218, %v667
        %v6742 = vmul.f32 %v6220, %v669
        %v6743 = vmul.f32 %v6224, %v673
        %v6744 = vmul.f32 %v6226, %v675
        %v6745 = vmul.f32 %v6230, %v679
        %v6746 = vmul.f32 %v6232, %v681
        %v6747 = vmul.f32 %v6236, %v685
        %v6748 = vmul.f32 %v6238, %v687
        %v6749 = vmul.f32 %v6242, %v691
        %v6750 = vmul.f32 %v6244, %v693
        %v6751 = vmul.f32 %v6248, %v697
        %v6752 = vmul.f32 %v6250, %v699
        %v6753 = vmul.f32 %v6254, %v703
        %v6754 = vmul.f32 %v6256, %v705
        %v6755 = vmul.f32 %v6260, %v709
        %v6756 = vmul.f32 %v6262, %v711
        %v6757 = vmul.f32 %v6266, %v715
        %v6758 = vmul.f32 %v6268, %v717
        %v6759 = vmul.f32 %v6272, %v721
        %v6760 = vmul.f32 %v6274, %v723
        %v6761 = vmul.f32 %v6278, %v727
        %v6762 = vmul.f32 %v6280, %v729
        %v6763 = vmul.f32 %v6284, %v733
        %v6764 = vmul.f32 %v6286, %v735
        %v6765 = vmul.f32 %v6290, %v739
        %v6766 = vmul.f32 %v6292, %v741
        %v6767 = vmul.f32 %v6296, %v745
        %v6768 = vmul.f32 %v6298, %v747
        %v6769 = vmul.f32 %v6302, %v751
        %v6770 = vmul.f32 %v6304, %v753
        %v6771 = vmul.f32 %v6308, %v757
        %v6772 = vmul.f32 %v6310, %v759
        %v6773 = vmul.f32 %v6314, %v763
        %v6774 = vmul.f32 %v6316, %v765
        %v6775 = vmul.f32 %v6320, %v769
        %v6776 = vmul.f32 %v6322, %v771
        %v6777 = vmul.f32 %v6326, %v775
        %v6778 = vmul.f32 %v6328, %v777
        %v6780 = vsel %vm425, %v6716, 0
        %v6783 = vsel %vm425, %v6718, 0
        %v6786 = vsel %vm425, %v6720, 0
        %v6789 = vsel %vm425, %v6722, 0
        %v6792 = vsel %vm425, %v6724, 0
        %v6795 = vsel %vm425, %v6726, 0
        %v6798 = vsel %vm425, %v6728, 0
        %v6801 = vsel %vm425, %v6730, 0
        %v6804 = vsel %vm425, %v6732, 0
        %v6807 = vsel %vm425, %v6734, 0
        %v6810 = vsel %vm425, %v6736, 0
        %v6813 = vsel %vm425, %v6738, 0
        %v6816 = vsel %vm425, %v6740, 0
        %v6819 = vsel %vm425, %v6742, 0
        %v6822 = vsel %vm425, %v6744, 0
        %v6825 = vsel %vm425, %v6746, 0
        %v6828 = vsel %vm425, %v6748, 0
        %v6831 = vsel %vm425, %v6750, 0
        %v6834 = vsel %vm425, %v6752, 0
        %v6837 = vsel %vm425, %v6754, 0
        %v6840 = vsel %vm425, %v6756, 0
        %v6843 = vsel %vm425, %v6758, 0
        %v6846 = vsel %vm425, %v6760, 0
        %v6849 = vsel %vm425, %v6762, 0
        %v6852 = vsel %vm425, %v6764, 0
        %v6855 = vsel %vm425, %v6766, 0
        %v6858 = vsel %vm425, %v6768, 0
        %v6861 = vsel %vm425, %v6770, 0
        %v6864 = vsel %vm425, %v6772, 0
        %v6867 = vsel %vm425, %v6774, 0
        %v6870 = vsel %vm425, %v6776, 0
        %v6873 = vsel %vm425, %v6778, 0
        %6875 = vmatprep.subr.mxu0 0.0
        %6876 = vmatpush1.msra.mxu0 %v362
        %6877 = vmatprep.subr.mxu0 0.0
        %6878 = vmatpush1.msra.mxu0 %v361
        %6879 = vmatprep.subr.mxu0 0.0
        %6880 = vmatpush1.msra.mxu0 %v360
        %6881 = vmatprep.subr.mxu0 0.0
        %6882 = vmatpush1.msra.mxu0 %v359
        %6883 = vmatprep.subr.mxu0 0.0
        %6884 = vmatpush1.msra.mxu0 %v358
        %6885 = vmatprep.subr.mxu0 0.0
        %6886 = vmatpush1.msra.mxu0 %v357
        %6887 = vmatprep.subr.mxu0 0.0
        %6888 = vmatpush1.msra.mxu0 %v356
        %6889 = vmatprep.subr.mxu0 0.0
        %6890 = vmatpush1.msra.mxu0 %v355
        %6891 = vmatprep.subr.mxu0 0.0
        %6892 = vmatpush1.msra.mxu0 %v354
        %6893 = vmatprep.subr.mxu0 0.0
        %6894 = vmatpush1.msra.mxu0 %v353
        %6895 = vmatprep.subr.mxu0 0.0
        %6896 = vmatpush1.msra.mxu0 %v352
        %6897 = vmatprep.subr.mxu0 0.0
        %6898 = vmatpush1.msra.mxu0 %v351
        %6899 = vmatprep.subr.mxu0 0.0
        %6900 = vmatpush1.msra.mxu0 %v350
        %6901 = vmatprep.subr.mxu0 0.0
        %6902 = vmatpush1.msra.mxu0 %v349
        %6903 = vmatprep.subr.mxu0 0.0
        %6904 = vmatpush1.msra.mxu0 %v348
        %6905 = vmatprep.subr.mxu0 0.0
        %6906 = vmatpush1.msra.mxu0 %v347
        %6907 = vmatprep.subr.mxu0 0.0
        %6908 = vmatpush2.msra.mxu0 0.0
        %6909 = vmatprep.subr.mxu0 0.0
        %6910 = vmatpush2.msra.mxu0 0.0
        %6911 = vmatprep.subr.mxu0 0.0
        %6912 = vmatpush2.msra.mxu0 0.0
        %6913 = vmatprep.subr.mxu0 0.0
        %6914 = vmatpush2.msra.mxu0 0.0
        %6915 = vmatprep.subr.mxu0 0.0
        %6916 = vmatpush2.msra.mxu0 0.0
        %6917 = vmatprep.subr.mxu0 0.0
        %6918 = vmatpush2.msra.mxu0 0.0
        %6919 = vmatprep.subr.mxu0 0.0
        %6920 = vmatpush2.msra.mxu0 %v372
        %6921 = vmatprep.subr.mxu0 0.0
        %6922 = vmatpush2.msra.mxu0 %v371
        %6923 = vmatprep.subr.mxu0 0.0
        %6924 = vmatpush2.msra.mxu0 %v370
        %6925 = vmatprep.subr.mxu0 0.0
        %6926 = vmatpush2.msra.mxu0 %v369
        %6927 = vmatprep.subr.mxu0 0.0
        %6928 = vmatpush2.msra.mxu0 %v368
        %6929 = vmatprep.subr.mxu0 0.0
        %6930 = vmatpush2.msra.mxu0 %v367
        %6931 = vmatprep.subr.mxu0 0.0
        %6932 = vmatpush2.msra.mxu0 %v366
        %6933 = vmatprep.subr.mxu0 0.0
        %6934 = vmatpush2.msra.mxu0 %v365
        %6935 = vmatprep.subr.mxu0 0.0
        %6936 = vmatpush2.msra.mxu0 %v364
        %6937 = vmatprep.subr.mxu0 0.0
        %6938 = vmatpush2.msra.mxu0 %v363
        %6939 = vmatprep.mubr.f32.mxu0 %v6780
        %6940 = vmatmul.mubr.f32.gmra.mxu0 %v6715
        %v6941 = vpop.f32.mrf.mxu0
        %v6942 = vadd.f32 0.0, %v6941
        %v6943 = vpop.f32.mrf.mxu0
        %6944 = vmatprep.mubr.f32.mxu0 %v6783
        %6945 = vmatmul.mubr.f32.gmra.mxu0 %v6717
        %v6946 = vpop.f32.mrf.mxu0
        %v6947 = vadd.f32 0.0, %v6946
        %v6948 = vpop.f32.mrf.mxu0
        %6949 = vmatprep.mubr.f32.mxu0 %v6786
        %6950 = vmatmul.mubr.f32.gmra.mxu0 %v6719
        %v6951 = vpop.f32.mrf.mxu0
        %v6952 = vadd.f32 0.0, %v6951
        %v6953 = vpop.f32.mrf.mxu0
        %6954 = vmatprep.mubr.f32.mxu0 %v6789
        %6955 = vmatmul.mubr.f32.gmra.mxu0 %v6721
        %v6956 = vpop.f32.mrf.mxu0
        %v6957 = vadd.f32 0.0, %v6956
        %v6958 = vpop.f32.mrf.mxu0
        %6959 = vmatprep.mubr.f32.mxu0 %v6792
        %6960 = vmatmul.mubr.f32.gmra.mxu0 %v6723
        %v6961 = vpop.f32.mrf.mxu0
        %v6962 = vadd.f32 0.0, %v6961
        %v6963 = vpop.f32.mrf.mxu0
        %6964 = vmatprep.mubr.f32.mxu0 %v6795
        %6965 = vmatmul.mubr.f32.gmra.mxu0 %v6725
        %v6966 = vpop.f32.mrf.mxu0
        %v6967 = vadd.f32 0.0, %v6966
        %v6968 = vpop.f32.mrf.mxu0
        %6969 = vmatprep.mubr.f32.mxu0 %v6798
        %6970 = vmatmul.mubr.f32.gmra.mxu0 %v6727
        %v6971 = vpop.f32.mrf.mxu0
        %v6972 = vadd.f32 0.0, %v6971
        %v6973 = vpop.f32.mrf.mxu0
        %6974 = vmatprep.mubr.f32.mxu0 %v6801
        %6975 = vmatmul.mubr.f32.gmra.mxu0 %v6729
        %v6976 = vpop.f32.mrf.mxu0
        %v6977 = vadd.f32 0.0, %v6976
        %v6978 = vpop.f32.mrf.mxu0
        %6979 = vmatprep.mubr.f32.mxu0 %v6804
        %6980 = vmatmul.mubr.f32.gmra.mxu0 %v6731
        %v6981 = vpop.f32.mrf.mxu0
        %v6982 = vadd.f32 0.0, %v6981
        %v6983 = vpop.f32.mrf.mxu0
        %6984 = vmatprep.mubr.f32.mxu0 %v6807
        %6985 = vmatmul.mubr.f32.gmra.mxu0 %v6733
        %v6986 = vpop.f32.mrf.mxu0
        %v6987 = vadd.f32 0.0, %v6986
        %v6988 = vpop.f32.mrf.mxu0
        %6989 = vmatprep.mubr.f32.mxu0 %v6810
        %6990 = vmatmul.mubr.f32.gmra.mxu0 %v6735
        %v6991 = vpop.f32.mrf.mxu0
        %v6992 = vadd.f32 0.0, %v6991
        %v6993 = vpop.f32.mrf.mxu0
        %6994 = vmatprep.mubr.f32.mxu0 %v6813
        %6995 = vmatmul.mubr.f32.gmra.mxu0 %v6737
        %v6996 = vpop.f32.mrf.mxu0
        %v6997 = vadd.f32 0.0, %v6996
        %v6998 = vpop.f32.mrf.mxu0
        %6999 = vmatprep.mubr.f32.mxu0 %v6816
        %7000 = vmatmul.mubr.f32.gmra.mxu0 %v6739
        %v7001 = vpop.f32.mrf.mxu0
        %v7002 = vadd.f32 0.0, %v7001
        %v7003 = vpop.f32.mrf.mxu0
        %7004 = vmatprep.mubr.f32.mxu0 %v6819
        %7005 = vmatmul.mubr.f32.gmra.mxu0 %v6741
        %v7006 = vpop.f32.mrf.mxu0
        %v7007 = vadd.f32 0.0, %v7006
        %v7008 = vpop.f32.mrf.mxu0
        %7009 = vmatprep.mubr.f32.mxu0 %v6822
        %7010 = vmatmul.mubr.f32.gmra.mxu0 %v6743
        %v7011 = vpop.f32.mrf.mxu0
        %v7012 = vadd.f32 0.0, %v7011
        %v7013 = vpop.f32.mrf.mxu0
        %7014 = vmatprep.mubr.f32.mxu0 %v6825
        %7015 = vmatmul.mubr.f32.gmra.mxu0 %v6745
        %v7016 = vpop.f32.mrf.mxu0
        %v7017 = vadd.f32 0.0, %v7016
        %v7018 = vpop.f32.mrf.mxu0
        %7019 = vmatprep.mubr.f32.mxu0 %v6828
        %7020 = vmatmul.mubr.f32.gmra.mxu0 %v6747
        %v7021 = vpop.f32.mrf.mxu0
        %v7022 = vadd.f32 0.0, %v7021
        %v7023 = vpop.f32.mrf.mxu0
        %7024 = vmatprep.mubr.f32.mxu0 %v6831
        %7025 = vmatmul.mubr.f32.gmra.mxu0 %v6749
        %v7026 = vpop.f32.mrf.mxu0
        %v7027 = vadd.f32 0.0, %v7026
        %v7028 = vpop.f32.mrf.mxu0
        %7029 = vmatprep.mubr.f32.mxu0 %v6834
        %7030 = vmatmul.mubr.f32.gmra.mxu0 %v6751
        %v7031 = vpop.f32.mrf.mxu0
        %v7032 = vadd.f32 0.0, %v7031
        %v7033 = vpop.f32.mrf.mxu0
        %7034 = vmatprep.mubr.f32.mxu0 %v6837
        %7035 = vmatmul.mubr.f32.gmra.mxu0 %v6753
        %v7036 = vpop.f32.mrf.mxu0
        %v7037 = vadd.f32 0.0, %v7036
        %v7038 = vpop.f32.mrf.mxu0
        %7039 = vmatprep.mubr.f32.mxu0 %v6840
        %7040 = vmatmul.mubr.f32.gmra.mxu0 %v6755
        %v7041 = vpop.f32.mrf.mxu0
        %v7042 = vadd.f32 0.0, %v7041
        %v7043 = vpop.f32.mrf.mxu0
        %7044 = vmatprep.mubr.f32.mxu0 %v6843
        %7045 = vmatmul.mubr.f32.gmra.mxu0 %v6757
        %v7046 = vpop.f32.mrf.mxu0
        %v7047 = vadd.f32 0.0, %v7046
        %v7048 = vpop.f32.mrf.mxu0
        %7049 = vmatprep.mubr.f32.mxu0 %v6846
        %7050 = vmatmul.mubr.f32.gmra.mxu0 %v6759
        %v7051 = vpop.f32.mrf.mxu0
        %v7052 = vadd.f32 0.0, %v7051
        %v7053 = vpop.f32.mrf.mxu0
        %7054 = vmatprep.mubr.f32.mxu0 %v6849
        %7055 = vmatmul.mubr.f32.gmra.mxu0 %v6761
        %v7056 = vpop.f32.mrf.mxu0
        %v7057 = vadd.f32 0.0, %v7056
        %v7058 = vpop.f32.mrf.mxu0
        %7059 = vmatprep.mubr.f32.mxu0 %v6852
        %7060 = vmatmul.mubr.f32.gmra.mxu0 %v6763
        %v7061 = vpop.f32.mrf.mxu0
        %v7062 = vadd.f32 0.0, %v7061
        %v7063 = vpop.f32.mrf.mxu0
        %7064 = vmatprep.mubr.f32.mxu0 %v6855
        %7065 = vmatmul.mubr.f32.gmra.mxu0 %v6765
        %v7066 = vpop.f32.mrf.mxu0
        %v7067 = vadd.f32 0.0, %v7066
        %v7068 = vpop.f32.mrf.mxu0
        %7069 = vmatprep.mubr.f32.mxu0 %v6858
        %7070 = vmatmul.mubr.f32.gmra.mxu0 %v6767
        %v7071 = vpop.f32.mrf.mxu0
        %v7072 = vadd.f32 0.0, %v7071
        %v7073 = vpop.f32.mrf.mxu0
        %7074 = vmatprep.mubr.f32.mxu0 %v6861
        %7075 = vmatmul.mubr.f32.gmra.mxu0 %v6769
        %v7076 = vpop.f32.mrf.mxu0
        %v7077 = vadd.f32 0.0, %v7076
        %v7078 = vpop.f32.mrf.mxu0
        %7079 = vmatprep.mubr.f32.mxu0 %v6864
        %7080 = vmatmul.mubr.f32.gmra.mxu0 %v6771
        %v7081 = vpop.f32.mrf.mxu0
        %v7082 = vadd.f32 0.0, %v7081
        %v7083 = vpop.f32.mrf.mxu0
        %7084 = vmatprep.mubr.f32.mxu0 %v6867
        %7085 = vmatmul.mubr.f32.gmra.mxu0 %v6773
        %v7086 = vpop.f32.mrf.mxu0
        %v7087 = vadd.f32 0.0, %v7086
        %v7088 = vpop.f32.mrf.mxu0
        %7089 = vmatprep.mubr.f32.mxu0 %v6870
        %7090 = vmatmul.mubr.f32.gmra.mxu0 %v6775
        %v7091 = vpop.f32.mrf.mxu0
        %v7092 = vadd.f32 0.0, %v7091
        %v7093 = vpop.f32.mrf.mxu0
        %7094 = vmatprep.mubr.f32.mxu0 %v6873
        %7095 = vmatmul.mubr.f32.gmra.mxu0 %v6777
        %v7096 = vpop.f32.mrf.mxu0
        %v7097 = vadd.f32 0.0, %v7096
        %v7098 = vpop.f32.mrf.mxu0
        %7099 = vdwg.mxu0
        %v7100 = vmul.f32 %v6557, %v6557
        %v7101 = vmul.f32 %v6562, %v6562
        %v7102 = vmul.f32 %v6567, %v6567
        %v7103 = vmul.f32 %v6572, %v6572
        %v7104 = vmul.f32 %v6577, %v6577
        %v7105 = vmul.f32 %v6582, %v6582
        %v7106 = vmul.f32 %v6587, %v6587
        %v7107 = vmul.f32 %v6592, %v6592
        %v7108 = vmul.f32 %v6597, %v6597
        %v7109 = vmul.f32 %v6602, %v6602
        %v7110 = vmul.f32 %v6607, %v6607
        %v7111 = vmul.f32 %v6612, %v6612
        %v7112 = vmul.f32 %v6617, %v6617
        %v7113 = vmul.f32 %v6622, %v6622
        %v7114 = vmul.f32 %v6627, %v6627
        %v7115 = vmul.f32 %v6632, %v6632
        %v7116 = vmul.f32 %v6637, %v6637
        %v7117 = vmul.f32 %v6642, %v6642
        %v7118 = vmul.f32 %v6647, %v6647
        %v7119 = vmul.f32 %v6652, %v6652
        %v7120 = vmul.f32 %v6657, %v6657
        %v7121 = vmul.f32 %v6662, %v6662
        %v7122 = vmul.f32 %v6667, %v6667
        %v7123 = vmul.f32 %v6672, %v6672
        %v7124 = vmul.f32 %v6677, %v6677
        %v7125 = vmul.f32 %v6682, %v6682
        %v7126 = vmul.f32 %v6687, %v6687
        %v7127 = vmul.f32 %v6692, %v6692
        %v7128 = vmul.f32 %v6697, %v6697
        %v7129 = vmul.f32 %v6702, %v6702
        %v7130 = vmul.f32 %v6707, %v6707
        %v7131 = vmul.f32 %v6712, %v6712
        %v7132 = vmul.f32 %v6942, %v6942
        %v7133 = vmul.f32 %v6947, %v6947
        %v7134 = vmul.f32 %v6952, %v6952
        %v7135 = vmul.f32 %v6957, %v6957
        %v7136 = vmul.f32 %v6962, %v6962
        %v7137 = vmul.f32 %v6967, %v6967
        %v7138 = vmul.f32 %v6972, %v6972
        %v7139 = vmul.f32 %v6977, %v6977
        %v7140 = vmul.f32 %v6982, %v6982
        %v7141 = vmul.f32 %v6987, %v6987
        %v7142 = vmul.f32 %v6992, %v6992
        %v7143 = vmul.f32 %v6997, %v6997
        %v7144 = vmul.f32 %v7002, %v7002
        %v7145 = vmul.f32 %v7007, %v7007
        %v7146 = vmul.f32 %v7012, %v7012
        %v7147 = vmul.f32 %v7017, %v7017
        %v7148 = vmul.f32 %v7022, %v7022
        %v7149 = vmul.f32 %v7027, %v7027
        %v7150 = vmul.f32 %v7032, %v7032
        %v7151 = vmul.f32 %v7037, %v7037
        %v7152 = vmul.f32 %v7042, %v7042
        %v7153 = vmul.f32 %v7047, %v7047
        %v7154 = vmul.f32 %v7052, %v7052
        %v7155 = vmul.f32 %v7057, %v7057
        %v7156 = vmul.f32 %v7062, %v7062
        %v7157 = vmul.f32 %v7067, %v7067
        %v7158 = vmul.f32 %v7072, %v7072
        %v7159 = vmul.f32 %v7077, %v7077
        %v7160 = vmul.f32 %v7082, %v7082
        %v7161 = vmul.f32 %v7087, %v7087
        %v7162 = vmul.f32 %v7092, %v7092
        %v7163 = vmul.f32 %v7097, %v7097
        %v7164 = vadd.f32 %v7100, %v7132
        %v7165 = vadd.f32 %v7101, %v7133
        %v7166 = vadd.f32 %v7102, %v7134
        %v7167 = vadd.f32 %v7103, %v7135
        %v7168 = vadd.f32 %v7104, %v7136
        %v7169 = vadd.f32 %v7105, %v7137
        %v7170 = vadd.f32 %v7106, %v7138
        %v7171 = vadd.f32 %v7107, %v7139
        %v7172 = vadd.f32 %v7108, %v7140
        %v7173 = vadd.f32 %v7109, %v7141
        %v7174 = vadd.f32 %v7110, %v7142
        %v7175 = vadd.f32 %v7111, %v7143
        %v7176 = vadd.f32 %v7112, %v7144
        %v7177 = vadd.f32 %v7113, %v7145
        %v7178 = vadd.f32 %v7114, %v7146
        %v7179 = vadd.f32 %v7115, %v7147
        %v7180 = vadd.f32 %v7116, %v7148
        %v7181 = vadd.f32 %v7117, %v7149
        %v7182 = vadd.f32 %v7118, %v7150
        %v7183 = vadd.f32 %v7119, %v7151
        %v7184 = vadd.f32 %v7120, %v7152
        %v7185 = vadd.f32 %v7121, %v7153
        %v7186 = vadd.f32 %v7122, %v7154
        %v7187 = vadd.f32 %v7123, %v7155
        %v7188 = vadd.f32 %v7124, %v7156
        %v7189 = vadd.f32 %v7125, %v7157
        %v7190 = vadd.f32 %v7126, %v7158
        %v7191 = vadd.f32 %v7127, %v7159
        %v7192 = vadd.f32 %v7128, %v7160
        %v7193 = vadd.f32 %v7129, %v7161
        %v7194 = vadd.f32 %v7130, %v7162
        %v7195 = vadd.f32 %v7131, %v7163
        %v7196 = vsel %vm2204, %v7164, 0.0
        %7197 = vadd.xlane.f32.xlu0 %v7196
        %v7198 = vpop.xlane.xlu0 %7197
        %v7199 = vsel %vm2204, %v7165, 0.0
        %7200 = vadd.xlane.f32.xlu0 %v7199
        %v7201 = vpop.xlane.xlu0 %7200
        %v7202 = vsel %vm2204, %v7166, 0.0
        %7203 = vadd.xlane.f32.xlu0 %v7202
        %v7204 = vpop.xlane.xlu0 %7203
        %v7205 = vsel %vm2204, %v7167, 0.0
        %7206 = vadd.xlane.f32.xlu0 %v7205
        %v7207 = vpop.xlane.xlu0 %7206
        %v7208 = vsel %vm2204, %v7168, 0.0
        %7209 = vadd.xlane.f32.xlu0 %v7208
        %v7210 = vpop.xlane.xlu0 %7209
        %v7211 = vsel %vm2204, %v7169, 0.0
        %7212 = vadd.xlane.f32.xlu0 %v7211
        %v7213 = vpop.xlane.xlu0 %7212
        %v7214 = vsel %vm2204, %v7170, 0.0
        %7215 = vadd.xlane.f32.xlu0 %v7214
        %v7216 = vpop.xlane.xlu0 %7215
        %v7217 = vsel %vm2204, %v7171, 0.0
        %7218 = vadd.xlane.f32.xlu0 %v7217
        %v7219 = vpop.xlane.xlu0 %7218
        %v7220 = vsel %vm2204, %v7172, 0.0
        %7221 = vadd.xlane.f32.xlu0 %v7220
        %v7222 = vpop.xlane.xlu0 %7221
        %v7223 = vsel %vm2204, %v7173, 0.0
        %7224 = vadd.xlane.f32.xlu0 %v7223
        %v7225 = vpop.xlane.xlu0 %7224
        %v7226 = vsel %vm2204, %v7174, 0.0
        %7227 = vadd.xlane.f32.xlu0 %v7226
        %v7228 = vpop.xlane.xlu0 %7227
        %v7229 = vsel %vm2204, %v7175, 0.0
        %7230 = vadd.xlane.f32.xlu0 %v7229
        %v7231 = vpop.xlane.xlu0 %7230
        %v7232 = vsel %vm2204, %v7176, 0.0
        %7233 = vadd.xlane.f32.xlu0 %v7232
        %v7234 = vpop.xlane.xlu0 %7233
        %v7235 = vsel %vm2204, %v7177, 0.0
        %7236 = vadd.xlane.f32.xlu0 %v7235
        %v7237 = vpop.xlane.xlu0 %7236
        %v7238 = vsel %vm2204, %v7178, 0.0
        %7239 = vadd.xlane.f32.xlu0 %v7238
        %v7240 = vpop.xlane.xlu0 %7239
        %v7241 = vsel %vm2204, %v7179, 0.0
        %7242 = vadd.xlane.f32.xlu0 %v7241
        %v7243 = vpop.xlane.xlu0 %7242
        %v7244 = vsel %vm2204, %v7180, 0.0
        %7245 = vadd.xlane.f32.xlu0 %v7244
        %v7246 = vpop.xlane.xlu0 %7245
        %v7247 = vsel %vm2204, %v7181, 0.0
        %7248 = vadd.xlane.f32.xlu0 %v7247
        %v7249 = vpop.xlane.xlu0 %7248
        %v7250 = vsel %vm2204, %v7182, 0.0
        %7251 = vadd.xlane.f32.xlu0 %v7250
        %v7252 = vpop.xlane.xlu0 %7251
        %v7253 = vsel %vm2204, %v7183, 0.0
        %7254 = vadd.xlane.f32.xlu0 %v7253
        %v7255 = vpop.xlane.xlu0 %7254
        %v7256 = vsel %vm2204, %v7184, 0.0
        %7257 = vadd.xlane.f32.xlu0 %v7256
        %v7258 = vpop.xlane.xlu0 %7257
        %v7259 = vsel %vm2204, %v7185, 0.0
        %7260 = vadd.xlane.f32.xlu0 %v7259
        %v7261 = vpop.xlane.xlu0 %7260
        %v7262 = vsel %vm2204, %v7186, 0.0
        %7263 = vadd.xlane.f32.xlu0 %v7262
        %v7264 = vpop.xlane.xlu0 %7263
        %v7265 = vsel %vm2204, %v7187, 0.0
        %7266 = vadd.xlane.f32.xlu0 %v7265
        %v7267 = vpop.xlane.xlu0 %7266
        %v7268 = vsel %vm2204, %v7188, 0.0
        %7269 = vadd.xlane.f32.xlu0 %v7268
        %v7270 = vpop.xlane.xlu0 %7269
        %v7271 = vsel %vm2204, %v7189, 0.0
        %7272 = vadd.xlane.f32.xlu0 %v7271
        %v7273 = vpop.xlane.xlu0 %7272
        %v7274 = vsel %vm2204, %v7190, 0.0
        %7275 = vadd.xlane.f32.xlu0 %v7274
        %v7276 = vpop.xlane.xlu0 %7275
        %v7277 = vsel %vm2204, %v7191, 0.0
        %7278 = vadd.xlane.f32.xlu0 %v7277
        %v7279 = vpop.xlane.xlu0 %7278
        %v7280 = vsel %vm2204, %v7192, 0.0
        %7281 = vadd.xlane.f32.xlu0 %v7280
        %v7282 = vpop.xlane.xlu0 %7281
        %v7283 = vsel %vm2204, %v7193, 0.0
        %7284 = vadd.xlane.f32.xlu0 %v7283
        %v7285 = vpop.xlane.xlu0 %7284
        %v7286 = vsel %vm2204, %v7194, 0.0
        %7287 = vadd.xlane.f32.xlu0 %v7286
        %v7288 = vpop.xlane.xlu0 %7287
        %v7289 = vsel %vm2204, %v7195, 0.0
        %7290 = vadd.xlane.f32.xlu0 %v7289
        %v7291 = vpop.xlane.xlu0 %7290
        %v7292 = vmul.f32 %v7198, 0.07692308
        %v7293 = vmul.f32 %v7201, 0.07692308
        %v7294 = vmul.f32 %v7204, 0.07692308
        %v7295 = vmul.f32 %v7207, 0.07692308
        %v7296 = vmul.f32 %v7210, 0.07692308
        %v7297 = vmul.f32 %v7213, 0.07692308
        %v7298 = vmul.f32 %v7216, 0.07692308
        %v7299 = vmul.f32 %v7219, 0.07692308
        %v7300 = vmul.f32 %v7222, 0.07692308
        %v7301 = vmul.f32 %v7225, 0.07692308
        %v7302 = vmul.f32 %v7228, 0.07692308
        %v7303 = vmul.f32 %v7231, 0.07692308
        %v7304 = vmul.f32 %v7234, 0.07692308
        %v7305 = vmul.f32 %v7237, 0.07692308
        %v7306 = vmul.f32 %v7240, 0.07692308
        %v7307 = vmul.f32 %v7243, 0.07692308
        %v7308 = vmul.f32 %v7246, 0.07692308
        %v7309 = vmul.f32 %v7249, 0.07692308
        %v7310 = vmul.f32 %v7252, 0.07692308
        %v7311 = vmul.f32 %v7255, 0.07692308
        %v7312 = vmul.f32 %v7258, 0.07692308
        %v7313 = vmul.f32 %v7261, 0.07692308
        %v7314 = vmul.f32 %v7264, 0.07692308
        %v7315 = vmul.f32 %v7267, 0.07692308
        %v7316 = vmul.f32 %v7270, 0.07692308
        %v7317 = vmul.f32 %v7273, 0.07692308
        %v7318 = vmul.f32 %v7276, 0.07692308
        %v7319 = vmul.f32 %v7279, 0.07692308
        %v7320 = vmul.f32 %v7282, 0.07692308
        %v7321 = vmul.f32 %v7285, 0.07692308
        %v7322 = vmul.f32 %v7288, 0.07692308
        %v7323 = vmul.f32 %v7291, 0.07692308
        %vm7324 = vcmp.gt.f32.partialorder %v7292, %v5735
        %vm7325 = vcmp.gt.f32.partialorder %v7293, %v5736
        %vm7326 = vcmp.gt.f32.partialorder %v7294, %v5737
        %vm7327 = vcmp.gt.f32.partialorder %v7295, %v5738
        %vm7328 = vcmp.gt.f32.partialorder %v7296, %v5739
        %vm7329 = vcmp.gt.f32.partialorder %v7297, %v5740
        %vm7330 = vcmp.gt.f32.partialorder %v7298, %v5741
        %vm7331 = vcmp.gt.f32.partialorder %v7299, %v5742
        %vm7332 = vcmp.gt.f32.partialorder %v7300, %v5743
        %vm7333 = vcmp.gt.f32.partialorder %v7301, %v5744
        %vm7334 = vcmp.gt.f32.partialorder %v7302, %v5745
        %vm7335 = vcmp.gt.f32.partialorder %v7303, %v5746
        %vm7336 = vcmp.gt.f32.partialorder %v7304, %v5747
        %vm7337 = vcmp.gt.f32.partialorder %v7305, %v5748
        %vm7338 = vcmp.gt.f32.partialorder %v7306, %v5749
        %vm7339 = vcmp.gt.f32.partialorder %v7307, %v5750
        %vm7340 = vcmp.gt.f32.partialorder %v7308, %v5751
        %vm7341 = vcmp.gt.f32.partialorder %v7309, %v5752
        %vm7342 = vcmp.gt.f32.partialorder %v7310, %v5753
        %vm7343 = vcmp.gt.f32.partialorder %v7311, %v5754
        %vm7344 = vcmp.gt.f32.partialorder %v7312, %v5755
        %vm7345 = vcmp.gt.f32.partialorder %v7313, %v5756
        %vm7346 = vcmp.gt.f32.partialorder %v7314, %v5757
        %vm7347 = vcmp.gt.f32.partialorder %v7315, %v5758
        %vm7348 = vcmp.gt.f32.partialorder %v7316, %v5759
        %vm7349 = vcmp.gt.f32.partialorder %v7317, %v5760
        %vm7350 = vcmp.gt.f32.partialorder %v7318, %v5761
        %vm7351 = vcmp.gt.f32.partialorder %v7319, %v5762
        %vm7352 = vcmp.gt.f32.partialorder %v7320, %v5763
        %vm7353 = vcmp.gt.f32.partialorder %v7321, %v5764
        %vm7354 = vcmp.gt.f32.partialorder %v7322, %v5765
        %vm7355 = vcmp.gt.f32.partialorder %v7323, %v5766
        %v7356 = vsel %vm7324, 1, 0
        %v7357 = vsel %vm7325, 1, 0
        %v7358 = vsel %vm7326, 1, 0
        %v7359 = vsel %vm7327, 1, 0
        %v7360 = vsel %vm7328, 1, 0
        %v7361 = vsel %vm7329, 1, 0
        %v7362 = vsel %vm7330, 1, 0
        %v7363 = vsel %vm7331, 1, 0
        %v7364 = vsel %vm7332, 1, 0
        %v7365 = vsel %vm7333, 1, 0
        %v7366 = vsel %vm7334, 1, 0
        %v7367 = vsel %vm7335, 1, 0
        %v7368 = vsel %vm7336, 1, 0
        %v7369 = vsel %vm7337, 1, 0
        %v7370 = vsel %vm7338, 1, 0
        %v7371 = vsel %vm7339, 1, 0
        %v7372 = vsel %vm7340, 1, 0
        %v7373 = vsel %vm7341, 1, 0
        %v7374 = vsel %vm7342, 1, 0
        %v7375 = vsel %vm7343, 1, 0
        %v7376 = vsel %vm7344, 1, 0
        %v7377 = vsel %vm7345, 1, 0
        %v7378 = vsel %vm7346, 1, 0
        %v7379 = vsel %vm7347, 1, 0
        %v7380 = vsel %vm7348, 1, 0
        %v7381 = vsel %vm7349, 1, 0
        %v7382 = vsel %vm7350, 1, 0
        %v7383 = vsel %vm7351, 1, 0
        %v7384 = vsel %vm7352, 1, 0
        %v7385 = vsel %vm7353, 1, 0
        %v7386 = vsel %vm7354, 1, 0
        %v7387 = vsel %vm7355, 1, 0
        %vm7388 = vcmp.eq.s32.totalorder %v7356, 1
        %vm7389 = vcmp.eq.s32.totalorder %v7357, 1
        %vm7390 = vcmp.eq.s32.totalorder %v7358, 1
        %vm7391 = vcmp.eq.s32.totalorder %v7359, 1
        %vm7392 = vcmp.eq.s32.totalorder %v7360, 1
        %vm7393 = vcmp.eq.s32.totalorder %v7361, 1
        %vm7394 = vcmp.eq.s32.totalorder %v7362, 1
        %vm7395 = vcmp.eq.s32.totalorder %v7363, 1
        %vm7396 = vcmp.eq.s32.totalorder %v7364, 1
        %vm7397 = vcmp.eq.s32.totalorder %v7365, 1
        %vm7398 = vcmp.eq.s32.totalorder %v7366, 1
        %vm7399 = vcmp.eq.s32.totalorder %v7367, 1
        %vm7400 = vcmp.eq.s32.totalorder %v7368, 1
        %vm7401 = vcmp.eq.s32.totalorder %v7369, 1
        %vm7402 = vcmp.eq.s32.totalorder %v7370, 1
        %vm7403 = vcmp.eq.s32.totalorder %v7371, 1
        %vm7404 = vcmp.eq.s32.totalorder %v7372, 1
        %vm7405 = vcmp.eq.s32.totalorder %v7373, 1
        %vm7406 = vcmp.eq.s32.totalorder %v7374, 1
        %vm7407 = vcmp.eq.s32.totalorder %v7375, 1
        %vm7408 = vcmp.eq.s32.totalorder %v7376, 1
        %vm7409 = vcmp.eq.s32.totalorder %v7377, 1
        %vm7410 = vcmp.eq.s32.totalorder %v7378, 1
        %vm7411 = vcmp.eq.s32.totalorder %v7379, 1
        %vm7412 = vcmp.eq.s32.totalorder %v7380, 1
        %vm7413 = vcmp.eq.s32.totalorder %v7381, 1
        %vm7414 = vcmp.eq.s32.totalorder %v7382, 1
        %vm7415 = vcmp.eq.s32.totalorder %v7383, 1
        %vm7416 = vcmp.eq.s32.totalorder %v7384, 1
        %vm7417 = vcmp.eq.s32.totalorder %v7385, 1
        %vm7418 = vcmp.eq.s32.totalorder %v7386, 1
        %vm7419 = vcmp.eq.s32.totalorder %v7387, 1
        %v7420 = vsel %vm7388, %v5869, %v5703
        %v7421 = vsel %vm7389, %v5874, %v5704
        %v7422 = vsel %vm7390, %v5879, %v5705
        %v7423 = vsel %vm7391, %v5884, %v5706
        %v7424 = vsel %vm7392, %v5889, %v5707
        %v7425 = vsel %vm7393, %v5894, %v5708
        %v7426 = vsel %vm7394, %v5899, %v5709
        %v7427 = vsel %vm7395, %v5904, %v5710
        %v7428 = vsel %vm7396, %v5909, %v5711
        %v7429 = vsel %vm7397, %v5914, %v5712
        %v7430 = vsel %vm7398, %v5919, %v5713
        %v7431 = vsel %vm7399, %v5924, %v5714
        %v7432 = vsel %vm7400, %v5929, %v5715
        %v7433 = vsel %vm7401, %v5934, %v5716
        %v7434 = vsel %vm7402, %v5939, %v5717
        %v7435 = vsel %vm7403, %v5944, %v5718
        %v7436 = vsel %vm7404, %v5949, %v5719
        %v7437 = vsel %vm7405, %v5954, %v5720
        %v7438 = vsel %vm7406, %v5959, %v5721
        %v7439 = vsel %vm7407, %v5964, %v5722
        %v7440 = vsel %vm7408, %v5969, %v5723
        %v7441 = vsel %vm7409, %v5974, %v5724
        %v7442 = vsel %vm7410, %v5979, %v5725
        %v7443 = vsel %vm7411, %v5984, %v5726
        %v7444 = vsel %vm7412, %v5989, %v5727
        %v7445 = vsel %vm7413, %v5994, %v5728
        %v7446 = vsel %vm7414, %v5999, %v5729
        %v7447 = vsel %vm7415, %v6004, %v5730
        %v7448 = vsel %vm7416, %v6009, %v5731
        %v7449 = vsel %vm7417, %v6014, %v5732
        %v7450 = vsel %vm7418, %v6019, %v5733
        %v7451 = vsel %vm7419, %v6024, %v5734
        %v7452 = vsel %vm7324, %v7292, %v5735
        %v7453 = vsel %vm7325, %v7293, %v5736
        %v7454 = vsel %vm7326, %v7294, %v5737
        %v7455 = vsel %vm7327, %v7295, %v5738
        %v7456 = vsel %vm7328, %v7296, %v5739
        %v7457 = vsel %vm7329, %v7297, %v5740
        %v7458 = vsel %vm7330, %v7298, %v5741
        %v7459 = vsel %vm7331, %v7299, %v5742
        %v7460 = vsel %vm7332, %v7300, %v5743
        %v7461 = vsel %vm7333, %v7301, %v5744
        %v7462 = vsel %vm7334, %v7302, %v5745
        %v7463 = vsel %vm7335, %v7303, %v5746
        %v7464 = vsel %vm7336, %v7304, %v5747
        %v7465 = vsel %vm7337, %v7305, %v5748
        %v7466 = vsel %vm7338, %v7306, %v5749
        %v7467 = vsel %vm7339, %v7307, %v5750
        %v7468 = vsel %vm7340, %v7308, %v5751
        %v7469 = vsel %vm7341, %v7309, %v5752
        %v7470 = vsel %vm7342, %v7310, %v5753
        %v7471 = vsel %vm7343, %v7311, %v5754
        %v7472 = vsel %vm7344, %v7312, %v5755
        %v7473 = vsel %vm7345, %v7313, %v5756
        %v7474 = vsel %vm7346, %v7314, %v5757
        %v7475 = vsel %vm7347, %v7315, %v5758
        %v7476 = vsel %vm7348, %v7316, %v5759
        %v7477 = vsel %vm7349, %v7317, %v5760
        %v7478 = vsel %vm7350, %v7318, %v5761
        %v7479 = vsel %vm7351, %v7319, %v5762
        %v7480 = vsel %vm7352, %v7320, %v5763
        %v7481 = vsel %vm7353, %v7321, %v5764
        %v7482 = vsel %vm7354, %v7322, %v5765
        %v7483 = vsel %vm7355, %v7323, %v5766
        %s7484 = scalar_lea.vmem %s1, 832
        %v7485 = vld [vmem:[%s7484] sm:$0xff]
        %v7486 = vld [vmem:[%s7484 + $0x8] sm:$0xff]
        %v7487 = vld [vmem:[%s7484 + $0x10] sm:$0xff]
        %v7488 = vld [vmem:[%s7484 + $0x18] sm:$0xff]
        %v7489 = vld [vmem:[%s7484 + $0x20] sm:$0xff]
        %v7490 = vld [vmem:[%s7484 + $0x28] sm:$0xff]
        %v7491 = vld [vmem:[%s7484 + $0x30] sm:$0xff]
        %v7492 = vld [vmem:[%s7484 + $0x38] sm:$0xff]
        %v7493 = vld [vmem:[%s7484 + $0x40] sm:$0xff]
        %v7494 = vld [vmem:[%s7484 + $0x48] sm:$0xff]
        %v7495 = vld [vmem:[%s7484 + $0x50] sm:$0xff]
        %v7496 = vld [vmem:[%s7484 + $0x58] sm:$0xff]
        %v7497 = vld [vmem:[%s7484 + $0x60] sm:$0xff]
        %v7498 = vld [vmem:[%s7484 + $0x68] sm:$0xff]
        %v7499 = vld [vmem:[%s7484 + $0x70] sm:$0xff]
        %v7500 = vld [vmem:[%s7484 + $0x78] sm:$0xff]
        %v7501 = vld [vmem:[%s7484 + $0x80] sm:$0xff]
        %v7502 = vld [vmem:[%s7484 + $0x88] sm:$0xff]
        %v7503 = vld [vmem:[%s7484 + $0x90] sm:$0xff]
        %v7504 = vld [vmem:[%s7484 + $0x98] sm:$0xff]
        %v7505 = vld [vmem:[%s7484 + $0xa0] sm:$0xff]
        %v7506 = vld [vmem:[%s7484 + $0xa8] sm:$0xff]
        %v7507 = vld [vmem:[%s7484 + $0xb0] sm:$0xff]
        %v7508 = vld [vmem:[%s7484 + $0xb8] sm:$0xff]
        %v7509 = vld [vmem:[%s7484 + $0xc0] sm:$0xff]
        %v7510 = vld [vmem:[%s7484 + $0xc8] sm:$0xff]
        %s7511 = scalar_lea.vmem %s2, 4
        %v7512 = vld [vmem:[%s7511] sm:$0x1]
        %v7514 = vlaneseq
        %v7515 = vshrl.u32 %v7514, 7
        %v7516 = vsub.s32 0, %v7515
        %v7517 = vrot.slane %v7512, %v7516
        %7519 = vmatprep.subr.mxu0 0.0
        %7520 = vmatpush1.msra.mxu0 %v7500
        %7521 = vmatprep.subr.mxu0 0.0
        %7522 = vmatpush1.msra.mxu0 %v7499
        %7523 = vmatprep.subr.mxu0 0.0
        %7524 = vmatpush1.msra.mxu0 %v7498
        %7525 = vmatprep.subr.mxu0 0.0
        %7526 = vmatpush1.msra.mxu0 %v7497
        %7527 = vmatprep.subr.mxu0 0.0
        %7528 = vmatpush1.msra.mxu0 %v7496
        %7529 = vmatprep.subr.mxu0 0.0
        %7530 = vmatpush1.msra.mxu0 %v7495
        %7531 = vmatprep.subr.mxu0 0.0
        %7532 = vmatpush1.msra.mxu0 %v7494
        %7533 = vmatprep.subr.mxu0 0.0
        %7534 = vmatpush1.msra.mxu0 %v7493
        %7535 = vmatprep.subr.mxu0 0.0
        %7536 = vmatpush1.msra.mxu0 %v7492
        %7537 = vmatprep.subr.mxu0 0.0
        %7538 = vmatpush1.msra.mxu0 %v7491
        %7539 = vmatprep.subr.mxu0 0.0
        %7540 = vmatpush1.msra.mxu0 %v7490
        %7541 = vmatprep.subr.mxu0 0.0
        %7542 = vmatpush1.msra.mxu0 %v7489
        %7543 = vmatprep.subr.mxu0 0.0
        %7544 = vmatpush1.msra.mxu0 %v7488
        %7545 = vmatprep.subr.mxu0 0.0
        %7546 = vmatpush1.msra.mxu0 %v7487
        %7547 = vmatprep.subr.mxu0 0.0
        %7548 = vmatpush1.msra.mxu0 %v7486
        %7549 = vmatprep.subr.mxu0 0.0
        %7550 = vmatpush1.msra.mxu0 %v7485
        %7551 = vmatprep.subr.mxu0 0.0
        %7552 = vmatpush2.msra.mxu0 0.0
        %7553 = vmatprep.subr.mxu0 0.0
        %7554 = vmatpush2.msra.mxu0 0.0
        %7555 = vmatprep.subr.mxu0 0.0
        %7556 = vmatpush2.msra.mxu0 0.0
        %7557 = vmatprep.subr.mxu0 0.0
        %7558 = vmatpush2.msra.mxu0 0.0
        %7559 = vmatprep.subr.mxu0 0.0
        %7560 = vmatpush2.msra.mxu0 0.0
        %7561 = vmatprep.subr.mxu0 0.0
        %7562 = vmatpush2.msra.mxu0 0.0
        %7563 = vmatprep.subr.mxu0 0.0
        %7564 = vmatpush2.msra.mxu0 %v7510
        %7565 = vmatprep.subr.mxu0 0.0
        %7566 = vmatpush2.msra.mxu0 %v7509
        %7567 = vmatprep.subr.mxu0 0.0
        %7568 = vmatpush2.msra.mxu0 %v7508
        %7569 = vmatprep.subr.mxu0 0.0
        %7570 = vmatpush2.msra.mxu0 %v7507
        %7571 = vmatprep.subr.mxu0 0.0
        %7572 = vmatpush2.msra.mxu0 %v7506
        %7573 = vmatprep.subr.mxu0 0.0
        %7574 = vmatpush2.msra.mxu0 %v7505
        %7575 = vmatprep.subr.mxu0 0.0
        %7576 = vmatpush2.msra.mxu0 %v7504
        %7577 = vmatprep.subr.mxu0 0.0
        %7578 = vmatpush2.msra.mxu0 %v7503
        %7579 = vmatprep.subr.mxu0 0.0
        %7580 = vmatpush2.msra.mxu0 %v7502
        %7581 = vmatprep.subr.mxu0 0.0
        %7582 = vmatpush2.msra.mxu0 %v7501
        %7583 = vmatprep.mubr.f32.mxu0 %v427
        %7584 = vmatmul.mubr.f32.gmra.mxu0 %v283
        %v7585 = vpop.f32.mrf.mxu0
        %v7586 = vadd.f32 %v7517, %v7585
        %v7587 = vpop.f32.mrf.mxu0
        %7588 = vmatprep.mubr.f32.mxu0 %v430
        %7589 = vmatmul.mubr.f32.gmra.mxu0 %v285
        %v7590 = vpop.f32.mrf.mxu0
        %v7591 = vadd.f32 %v7517, %v7590
        %v7592 = vpop.f32.mrf.mxu0
        %7593 = vmatprep.mubr.f32.mxu0 %v433
        %7594 = vmatmul.mubr.f32.gmra.mxu0 %v287
        %v7595 = vpop.f32.mrf.mxu0
        %v7596 = vadd.f32 %v7517, %v7595
        %v7597 = vpop.f32.mrf.mxu0
        %7598 = vmatprep.mubr.f32.mxu0 %v436
        %7599 = vmatmul.mubr.f32.gmra.mxu0 %v289
        %v7600 = vpop.f32.mrf.mxu0
        %v7601 = vadd.f32 %v7517, %v7600
        %v7602 = vpop.f32.mrf.mxu0
        %7603 = vmatprep.mubr.f32.mxu0 %v439
        %7604 = vmatmul.mubr.f32.gmra.mxu0 %v291
        %v7605 = vpop.f32.mrf.mxu0
        %v7606 = vadd.f32 %v7517, %v7605
        %v7607 = vpop.f32.mrf.mxu0
        %7608 = vmatprep.mubr.f32.mxu0 %v442
        %7609 = vmatmul.mubr.f32.gmra.mxu0 %v293
        %v7610 = vpop.f32.mrf.mxu0
        %v7611 = vadd.f32 %v7517, %v7610
        %v7612 = vpop.f32.mrf.mxu0
        %7613 = vmatprep.mubr.f32.mxu0 %v445
        %7614 = vmatmul.mubr.f32.gmra.mxu0 %v295
        %v7615 = vpop.f32.mrf.mxu0
        %v7616 = vadd.f32 %v7517, %v7615
        %v7617 = vpop.f32.mrf.mxu0
        %7618 = vmatprep.mubr.f32.mxu0 %v448
        %7619 = vmatmul.mubr.f32.gmra.mxu0 %v297
        %v7620 = vpop.f32.mrf.mxu0
        %v7621 = vadd.f32 %v7517, %v7620
        %v7622 = vpop.f32.mrf.mxu0
        %7623 = vmatprep.mubr.f32.mxu0 %v451
        %7624 = vmatmul.mubr.f32.gmra.mxu0 %v299
        %v7625 = vpop.f32.mrf.mxu0
        %v7626 = vadd.f32 %v7517, %v7625
        %v7627 = vpop.f32.mrf.mxu0
        %7628 = vmatprep.mubr.f32.mxu0 %v454
        %7629 = vmatmul.mubr.f32.gmra.mxu0 %v301
        %v7630 = vpop.f32.mrf.mxu0
        %v7631 = vadd.f32 %v7517, %v7630
        %v7632 = vpop.f32.mrf.mxu0
        %7633 = vmatprep.mubr.f32.mxu0 %v457
        %7634 = vmatmul.mubr.f32.gmra.mxu0 %v303
        %v7635 = vpop.f32.mrf.mxu0
        %v7636 = vadd.f32 %v7517, %v7635
        %v7637 = vpop.f32.mrf.mxu0
        %7638 = vmatprep.mubr.f32.mxu0 %v460
        %7639 = vmatmul.mubr.f32.gmra.mxu0 %v305
        %v7640 = vpop.f32.mrf.mxu0
        %v7641 = vadd.f32 %v7517, %v7640
        %v7642 = vpop.f32.mrf.mxu0
        %7643 = vmatprep.mubr.f32.mxu0 %v463
        %7644 = vmatmul.mubr.f32.gmra.mxu0 %v307
        %v7645 = vpop.f32.mrf.mxu0
        %v7646 = vadd.f32 %v7517, %v7645
        %v7647 = vpop.f32.mrf.mxu0
        %7648 = vmatprep.mubr.f32.mxu0 %v466
        %7649 = vmatmul.mubr.f32.gmra.mxu0 %v309
        %v7650 = vpop.f32.mrf.mxu0
        %v7651 = vadd.f32 %v7517, %v7650
        %v7652 = vpop.f32.mrf.mxu0
        %7653 = vmatprep.mubr.f32.mxu0 %v469
        %7654 = vmatmul.mubr.f32.gmra.mxu0 %v311
        %v7655 = vpop.f32.mrf.mxu0
        %v7656 = vadd.f32 %v7517, %v7655
        %v7657 = vpop.f32.mrf.mxu0
        %7658 = vmatprep.mubr.f32.mxu0 %v472
        %7659 = vmatmul.mubr.f32.gmra.mxu0 %v313
        %v7660 = vpop.f32.mrf.mxu0
        %v7661 = vadd.f32 %v7517, %v7660
        %v7662 = vpop.f32.mrf.mxu0
        %7663 = vmatprep.mubr.f32.mxu0 %v475
        %7664 = vmatmul.mubr.f32.gmra.mxu0 %v315
        %v7665 = vpop.f32.mrf.mxu0
        %v7666 = vadd.f32 %v7517, %v7665
        %v7667 = vpop.f32.mrf.mxu0
        %7668 = vmatprep.mubr.f32.mxu0 %v478
        %7669 = vmatmul.mubr.f32.gmra.mxu0 %v317
        %v7670 = vpop.f32.mrf.mxu0
        %v7671 = vadd.f32 %v7517, %v7670
        %v7672 = vpop.f32.mrf.mxu0
        %7673 = vmatprep.mubr.f32.mxu0 %v481
        %7674 = vmatmul.mubr.f32.gmra.mxu0 %v319
        %v7675 = vpop.f32.mrf.mxu0
        %v7676 = vadd.f32 %v7517, %v7675
        %v7677 = vpop.f32.mrf.mxu0
        %7678 = vmatprep.mubr.f32.mxu0 %v484
        %7679 = vmatmul.mubr.f32.gmra.mxu0 %v321
        %v7680 = vpop.f32.mrf.mxu0
        %v7681 = vadd.f32 %v7517, %v7680
        %v7682 = vpop.f32.mrf.mxu0
        %7683 = vmatprep.mubr.f32.mxu0 %v487
        %7684 = vmatmul.mubr.f32.gmra.mxu0 %v323
        %v7685 = vpop.f32.mrf.mxu0
        %v7686 = vadd.f32 %v7517, %v7685
        %v7687 = vpop.f32.mrf.mxu0
        %7688 = vmatprep.mubr.f32.mxu0 %v490
        %7689 = vmatmul.mubr.f32.gmra.mxu0 %v325
        %v7690 = vpop.f32.mrf.mxu0
        %v7691 = vadd.f32 %v7517, %v7690
        %v7692 = vpop.f32.mrf.mxu0
        %7693 = vmatprep.mubr.f32.mxu0 %v493
        %7694 = vmatmul.mubr.f32.gmra.mxu0 %v327
        %v7695 = vpop.f32.mrf.mxu0
        %v7696 = vadd.f32 %v7517, %v7695
        %v7697 = vpop.f32.mrf.mxu0
        %7698 = vmatprep.mubr.f32.mxu0 %v496
        %7699 = vmatmul.mubr.f32.gmra.mxu0 %v329
        %v7700 = vpop.f32.mrf.mxu0
        %v7701 = vadd.f32 %v7517, %v7700
        %v7702 = vpop.f32.mrf.mxu0
        %7703 = vmatprep.mubr.f32.mxu0 %v499
        %7704 = vmatmul.mubr.f32.gmra.mxu0 %v331
        %v7705 = vpop.f32.mrf.mxu0
        %v7706 = vadd.f32 %v7517, %v7705
        %v7707 = vpop.f32.mrf.mxu0
        %7708 = vmatprep.mubr.f32.mxu0 %v502
        %7709 = vmatmul.mubr.f32.gmra.mxu0 %v333
        %v7710 = vpop.f32.mrf.mxu0
        %v7711 = vadd.f32 %v7517, %v7710
        %v7712 = vpop.f32.mrf.mxu0
        %7713 = vmatprep.mubr.f32.mxu0 %v505
        %7714 = vmatmul.mubr.f32.gmra.mxu0 %v335
        %v7715 = vpop.f32.mrf.mxu0
        %v7716 = vadd.f32 %v7517, %v7715
        %v7717 = vpop.f32.mrf.mxu0
        %7718 = vmatprep.mubr.f32.mxu0 %v508
        %7719 = vmatmul.mubr.f32.gmra.mxu0 %v337
        %v7720 = vpop.f32.mrf.mxu0
        %v7721 = vadd.f32 %v7517, %v7720
        %v7722 = vpop.f32.mrf.mxu0
        %7723 = vmatprep.mubr.f32.mxu0 %v511
        %7724 = vmatmul.mubr.f32.gmra.mxu0 %v339
        %v7725 = vpop.f32.mrf.mxu0
        %v7726 = vadd.f32 %v7517, %v7725
        %v7727 = vpop.f32.mrf.mxu0
        %7728 = vmatprep.mubr.f32.mxu0 %v514
        %7729 = vmatmul.mubr.f32.gmra.mxu0 %v341
        %v7730 = vpop.f32.mrf.mxu0
        %v7731 = vadd.f32 %v7517, %v7730
        %v7732 = vpop.f32.mrf.mxu0
        %7733 = vmatprep.mubr.f32.mxu0 %v517
        %7734 = vmatmul.mubr.f32.gmra.mxu0 %v343
        %v7735 = vpop.f32.mrf.mxu0
        %v7736 = vadd.f32 %v7517, %v7735
        %v7737 = vpop.f32.mrf.mxu0
        %7738 = vmatprep.mubr.f32.mxu0 %v520
        %7739 = vmatmul.mubr.f32.gmra.mxu0 %v345
        %v7740 = vpop.f32.mrf.mxu0
        %v7741 = vadd.f32 %v7517, %v7740
        %v7742 = vpop.f32.mrf.mxu0
        %7743 = vdwg.mxu0
        %s7744 = scalar_lea.vmem %s3, 1024
        %v7745 = vld [vmem:[%s7744] sm:$0xff]
        %v7746 = vld [vmem:[%s7744 + $0x8] sm:$0xff]
        %v7747 = vld [vmem:[%s7744 + $0x10] sm:$0xff]
        %v7748 = vld [vmem:[%s7744 + $0x18] sm:$0xff]
        %v7749 = vld [vmem:[%s7744 + $0x20] sm:$0xff]
        %v7750 = vld [vmem:[%s7744 + $0x28] sm:$0xff]
        %v7751 = vld [vmem:[%s7744 + $0x30] sm:$0xff]
        %v7752 = vld [vmem:[%s7744 + $0x38] sm:$0xff]
        %v7753 = vld [vmem:[%s7744 + $0x40] sm:$0xff]
        %v7754 = vld [vmem:[%s7744 + $0x48] sm:$0xff]
        %v7755 = vld [vmem:[%s7744 + $0x50] sm:$0xff]
        %v7756 = vld [vmem:[%s7744 + $0x58] sm:$0xff]
        %v7757 = vld [vmem:[%s7744 + $0x60] sm:$0xff]
        %v7758 = vld [vmem:[%s7744 + $0x68] sm:$0xff]
        %v7759 = vld [vmem:[%s7744 + $0x70] sm:$0xff]
        %v7760 = vld [vmem:[%s7744 + $0x78] sm:$0xff]
        %v7761 = vld [vmem:[%s7744 + $0x80] sm:$0xff]
        %v7762 = vld [vmem:[%s7744 + $0x88] sm:$0xff]
        %v7763 = vld [vmem:[%s7744 + $0x90] sm:$0xff]
        %v7764 = vld [vmem:[%s7744 + $0x98] sm:$0xff]
        %v7765 = vld [vmem:[%s7744 + $0xa0] sm:$0xff]
        %v7766 = vld [vmem:[%s7744 + $0xa8] sm:$0xff]
        %v7767 = vld [vmem:[%s7744 + $0xb0] sm:$0xff]
        %v7768 = vld [vmem:[%s7744 + $0xb8] sm:$0xff]
        %v7769 = vld [vmem:[%s7744 + $0xc0] sm:$0xff]
        %v7770 = vld [vmem:[%s7744 + $0xc8] sm:$0xff]
        %v7771 = vld [vmem:[%s7744 + $0xd0] sm:$0xff]
        %v7772 = vld [vmem:[%s7744 + $0xd8] sm:$0xff]
        %v7773 = vld [vmem:[%s7744 + $0xe0] sm:$0xff]
        %v7774 = vld [vmem:[%s7744 + $0xe8] sm:$0xff]
        %v7775 = vld [vmem:[%s7744 + $0xf0] sm:$0xff]
        %v7776 = vld [vmem:[%s7744 + $0xf8] sm:$0xff]
        %s7777 = scalar_lea.vmem %s4, 8
        %v7778 = vld [vmem:[%s7777] sm:$0x3]
        %v7780 = vlaneseq
        %v7781 = vshrl.u32 %v7780, 7
        %v7782 = vsub.s32 0, %v7781
        %v7783 = vrot.slane %v7778, %v7782
        %v7784 = vlaneseq
        %v7785 = vshrl.u32 %v7784, 7
        %v7786 = vsub.s32 1, %v7785
        %v7787 = vrot.slane %v7778, %v7786
        %7790 = vmatprep.subr.mxu0 %v7776
        %7791 = vmatpush1.msra.mxu0 %v7775
        %7792 = vmatprep.subr.mxu0 %v7774
        %7793 = vmatpush1.msra.mxu0 %v7773
        %7794 = vmatprep.subr.mxu0 %v7772
        %7795 = vmatpush1.msra.mxu0 %v7771
        %7796 = vmatprep.subr.mxu0 %v7770
        %7797 = vmatpush1.msra.mxu0 %v7769
        %7798 = vmatprep.subr.mxu0 %v7768
        %7799 = vmatpush1.msra.mxu0 %v7767
        %7800 = vmatprep.subr.mxu0 %v7766
        %7801 = vmatpush1.msra.mxu0 %v7765
        %7802 = vmatprep.subr.mxu0 %v7764
        %7803 = vmatpush1.msra.mxu0 %v7763
        %7804 = vmatprep.subr.mxu0 %v7762
        %7805 = vmatpush1.msra.mxu0 %v7761
        %7806 = vmatprep.subr.mxu0 %v7760
        %7807 = vmatpush1.msra.mxu0 %v7759
        %7808 = vmatprep.subr.mxu0 %v7758
        %7809 = vmatpush1.msra.mxu0 %v7757
        %7810 = vmatprep.subr.mxu0 %v7756
        %7811 = vmatpush1.msra.mxu0 %v7755
        %7812 = vmatprep.subr.mxu0 %v7754
        %7813 = vmatpush1.msra.mxu0 %v7753
        %7814 = vmatprep.subr.mxu0 %v7752
        %7815 = vmatpush1.msra.mxu0 %v7751
        %7816 = vmatprep.subr.mxu0 %v7750
        %7817 = vmatpush1.msra.mxu0 %v7749
        %7818 = vmatprep.subr.mxu0 %v7748
        %7819 = vmatpush1.msra.mxu0 %v7747
        %7820 = vmatprep.subr.mxu0 %v7746
        %7821 = vmatpush1.msra.mxu0 %v7745
        %7822 = vmatprep.subr.mxu0 0.0
        %7823 = vmatpush2.msra.mxu0 0.0
        %7824 = vmatprep.subr.mxu0 0.0
        %7825 = vmatpush2.msra.mxu0 0.0
        %7826 = vmatprep.subr.mxu0 0.0
        %7827 = vmatpush2.msra.mxu0 0.0
        %7828 = vmatprep.subr.mxu0 0.0
        %7829 = vmatpush2.msra.mxu0 0.0
        %7830 = vmatprep.subr.mxu0 0.0
        %7831 = vmatpush2.msra.mxu0 0.0
        %7832 = vmatprep.subr.mxu0 0.0
        %7833 = vmatpush2.msra.mxu0 0.0
        %7834 = vmatprep.subr.mxu0 0.0
        %7835 = vmatpush2.msra.mxu0 0.0
        %7836 = vmatprep.subr.mxu0 0.0
        %7837 = vmatpush2.msra.mxu0 0.0
        %7838 = vmatprep.subr.mxu0 0.0
        %7839 = vmatpush2.msra.mxu0 0.0
        %7840 = vmatprep.subr.mxu0 0.0
        %7841 = vmatpush2.msra.mxu0 0.0
        %7842 = vmatprep.subr.mxu0 0.0
        %7843 = vmatpush2.msra.mxu0 0.0
        %7844 = vmatprep.subr.mxu0 0.0
        %7845 = vmatpush2.msra.mxu0 0.0
        %7846 = vmatprep.subr.mxu0 0.0
        %7847 = vmatpush2.msra.mxu0 0.0
        %7848 = vmatprep.subr.mxu0 0.0
        %7849 = vmatpush2.msra.mxu0 0.0
        %7850 = vmatprep.subr.mxu0 0.0
        %7851 = vmatpush2.msra.mxu0 0.0
        %7852 = vmatprep.subr.mxu0 0.0
        %7853 = vmatpush2.msra.mxu0 0.0
        %7854 = vmatprep.mubr.f32.mxu0 0.0
        %7855 = vmatmul.mubr.f32.gmra.mxu0 %v7586
        %v7856 = vpop.f32.mrf.mxu0
        %v7857 = vadd.f32 %v7783, %v7856
        %v7858 = vpop.f32.mrf.mxu0
        %v7859 = vadd.f32 %v7787, %v7858
        %7860 = vmatprep.mubr.f32.mxu0 0.0
        %7861 = vmatmul.mubr.f32.gmra.mxu0 %v7591
        %v7862 = vpop.f32.mrf.mxu0
        %v7863 = vadd.f32 %v7783, %v7862
        %v7864 = vpop.f32.mrf.mxu0
        %v7865 = vadd.f32 %v7787, %v7864
        %7866 = vmatprep.mubr.f32.mxu0 0.0
        %7867 = vmatmul.mubr.f32.gmra.mxu0 %v7596
        %v7868 = vpop.f32.mrf.mxu0
        %v7869 = vadd.f32 %v7783, %v7868
        %v7870 = vpop.f32.mrf.mxu0
        %v7871 = vadd.f32 %v7787, %v7870
        %7872 = vmatprep.mubr.f32.mxu0 0.0
        %7873 = vmatmul.mubr.f32.gmra.mxu0 %v7601
        %v7874 = vpop.f32.mrf.mxu0
        %v7875 = vadd.f32 %v7783, %v7874
        %v7876 = vpop.f32.mrf.mxu0
        %v7877 = vadd.f32 %v7787, %v7876
        %7878 = vmatprep.mubr.f32.mxu0 0.0
        %7879 = vmatmul.mubr.f32.gmra.mxu0 %v7606
        %v7880 = vpop.f32.mrf.mxu0
        %v7881 = vadd.f32 %v7783, %v7880
        %v7882 = vpop.f32.mrf.mxu0
        %v7883 = vadd.f32 %v7787, %v7882
        %7884 = vmatprep.mubr.f32.mxu0 0.0
        %7885 = vmatmul.mubr.f32.gmra.mxu0 %v7611
        %v7886 = vpop.f32.mrf.mxu0
        %v7887 = vadd.f32 %v7783, %v7886
        %v7888 = vpop.f32.mrf.mxu0
        %v7889 = vadd.f32 %v7787, %v7888
        %7890 = vmatprep.mubr.f32.mxu0 0.0
        %7891 = vmatmul.mubr.f32.gmra.mxu0 %v7616
        %v7892 = vpop.f32.mrf.mxu0
        %v7893 = vadd.f32 %v7783, %v7892
        %v7894 = vpop.f32.mrf.mxu0
        %v7895 = vadd.f32 %v7787, %v7894
        %7896 = vmatprep.mubr.f32.mxu0 0.0
        %7897 = vmatmul.mubr.f32.gmra.mxu0 %v7621
        %v7898 = vpop.f32.mrf.mxu0
        %v7899 = vadd.f32 %v7783, %v7898
        %v7900 = vpop.f32.mrf.mxu0
        %v7901 = vadd.f32 %v7787, %v7900
        %7902 = vmatprep.mubr.f32.mxu0 0.0
        %7903 = vmatmul.mubr.f32.gmra.mxu0 %v7626
        %v7904 = vpop.f32.mrf.mxu0
        %v7905 = vadd.f32 %v7783, %v7904
        %v7906 = vpop.f32.mrf.mxu0
        %v7907 = vadd.f32 %v7787, %v7906
        %7908 = vmatprep.mubr.f32.mxu0 0.0
        %7909 = vmatmul.mubr.f32.gmra.mxu0 %v7631
        %v7910 = vpop.f32.mrf.mxu0
        %v7911 = vadd.f32 %v7783, %v7910
        %v7912 = vpop.f32.mrf.mxu0
        %v7913 = vadd.f32 %v7787, %v7912
        %7914 = vmatprep.mubr.f32.mxu0 0.0
        %7915 = vmatmul.mubr.f32.gmra.mxu0 %v7636
        %v7916 = vpop.f32.mrf.mxu0
        %v7917 = vadd.f32 %v7783, %v7916
        %v7918 = vpop.f32.mrf.mxu0
        %v7919 = vadd.f32 %v7787, %v7918
        %7920 = vmatprep.mubr.f32.mxu0 0.0
        %7921 = vmatmul.mubr.f32.gmra.mxu0 %v7641
        %v7922 = vpop.f32.mrf.mxu0
        %v7923 = vadd.f32 %v7783, %v7922
        %v7924 = vpop.f32.mrf.mxu0
        %v7925 = vadd.f32 %v7787, %v7924
        %7926 = vmatprep.mubr.f32.mxu0 0.0
        %7927 = vmatmul.mubr.f32.gmra.mxu0 %v7646
        %v7928 = vpop.f32.mrf.mxu0
        %v7929 = vadd.f32 %v7783, %v7928
        %v7930 = vpop.f32.mrf.mxu0
        %v7931 = vadd.f32 %v7787, %v7930
        %7932 = vmatprep.mubr.f32.mxu0 0.0
        %7933 = vmatmul.mubr.f32.gmra.mxu0 %v7651
        %v7934 = vpop.f32.mrf.mxu0
        %v7935 = vadd.f32 %v7783, %v7934
        %v7936 = vpop.f32.mrf.mxu0
        %v7937 = vadd.f32 %v7787, %v7936
        %7938 = vmatprep.mubr.f32.mxu0 0.0
        %7939 = vmatmul.mubr.f32.gmra.mxu0 %v7656
        %v7940 = vpop.f32.mrf.mxu0
        %v7941 = vadd.f32 %v7783, %v7940
        %v7942 = vpop.f32.mrf.mxu0
        %v7943 = vadd.f32 %v7787, %v7942
        %7944 = vmatprep.mubr.f32.mxu0 0.0
        %7945 = vmatmul.mubr.f32.gmra.mxu0 %v7661
        %v7946 = vpop.f32.mrf.mxu0
        %v7947 = vadd.f32 %v7783, %v7946
        %v7948 = vpop.f32.mrf.mxu0
        %v7949 = vadd.f32 %v7787, %v7948
        %7950 = vmatprep.mubr.f32.mxu0 0.0
        %7951 = vmatmul.mubr.f32.gmra.mxu0 %v7666
        %v7952 = vpop.f32.mrf.mxu0
        %v7953 = vadd.f32 %v7783, %v7952
        %v7954 = vpop.f32.mrf.mxu0
        %v7955 = vadd.f32 %v7787, %v7954
        %7956 = vmatprep.mubr.f32.mxu0 0.0
        %7957 = vmatmul.mubr.f32.gmra.mxu0 %v7671
        %v7958 = vpop.f32.mrf.mxu0
        %v7959 = vadd.f32 %v7783, %v7958
        %v7960 = vpop.f32.mrf.mxu0
        %v7961 = vadd.f32 %v7787, %v7960
        %7962 = vmatprep.mubr.f32.mxu0 0.0
        %7963 = vmatmul.mubr.f32.gmra.mxu0 %v7676
        %v7964 = vpop.f32.mrf.mxu0
        %v7965 = vadd.f32 %v7783, %v7964
        %v7966 = vpop.f32.mrf.mxu0
        %v7967 = vadd.f32 %v7787, %v7966
        %7968 = vmatprep.mubr.f32.mxu0 0.0
        %7969 = vmatmul.mubr.f32.gmra.mxu0 %v7681
        %v7970 = vpop.f32.mrf.mxu0
        %v7971 = vadd.f32 %v7783, %v7970
        %v7972 = vpop.f32.mrf.mxu0
        %v7973 = vadd.f32 %v7787, %v7972
        %7974 = vmatprep.mubr.f32.mxu0 0.0
        %7975 = vmatmul.mubr.f32.gmra.mxu0 %v7686
        %v7976 = vpop.f32.mrf.mxu0
        %v7977 = vadd.f32 %v7783, %v7976
        %v7978 = vpop.f32.mrf.mxu0
        %v7979 = vadd.f32 %v7787, %v7978
        %7980 = vmatprep.mubr.f32.mxu0 0.0
        %7981 = vmatmul.mubr.f32.gmra.mxu0 %v7691
        %v7982 = vpop.f32.mrf.mxu0
        %v7983 = vadd.f32 %v7783, %v7982
        %v7984 = vpop.f32.mrf.mxu0
        %v7985 = vadd.f32 %v7787, %v7984
        %7986 = vmatprep.mubr.f32.mxu0 0.0
        %7987 = vmatmul.mubr.f32.gmra.mxu0 %v7696
        %v7988 = vpop.f32.mrf.mxu0
        %v7989 = vadd.f32 %v7783, %v7988
        %v7990 = vpop.f32.mrf.mxu0
        %v7991 = vadd.f32 %v7787, %v7990
        %7992 = vmatprep.mubr.f32.mxu0 0.0
        %7993 = vmatmul.mubr.f32.gmra.mxu0 %v7701
        %v7994 = vpop.f32.mrf.mxu0
        %v7995 = vadd.f32 %v7783, %v7994
        %v7996 = vpop.f32.mrf.mxu0
        %v7997 = vadd.f32 %v7787, %v7996
        %7998 = vmatprep.mubr.f32.mxu0 0.0
        %7999 = vmatmul.mubr.f32.gmra.mxu0 %v7706
        %v8000 = vpop.f32.mrf.mxu0
        %v8001 = vadd.f32 %v7783, %v8000
        %v8002 = vpop.f32.mrf.mxu0
        %v8003 = vadd.f32 %v7787, %v8002
        %8004 = vmatprep.mubr.f32.mxu0 0.0
        %8005 = vmatmul.mubr.f32.gmra.mxu0 %v7711
        %v8006 = vpop.f32.mrf.mxu0
        %v8007 = vadd.f32 %v7783, %v8006
        %v8008 = vpop.f32.mrf.mxu0
        %v8009 = vadd.f32 %v7787, %v8008
        %8010 = vmatprep.mubr.f32.mxu0 0.0
        %8011 = vmatmul.mubr.f32.gmra.mxu0 %v7716
        %v8012 = vpop.f32.mrf.mxu0
        %v8013 = vadd.f32 %v7783, %v8012
        %v8014 = vpop.f32.mrf.mxu0
        %v8015 = vadd.f32 %v7787, %v8014
        %8016 = vmatprep.mubr.f32.mxu0 0.0
        %8017 = vmatmul.mubr.f32.gmra.mxu0 %v7721
        %v8018 = vpop.f32.mrf.mxu0
        %v8019 = vadd.f32 %v7783, %v8018
        %v8020 = vpop.f32.mrf.mxu0
        %v8021 = vadd.f32 %v7787, %v8020
        %8022 = vmatprep.mubr.f32.mxu0 0.0
        %8023 = vmatmul.mubr.f32.gmra.mxu0 %v7726
        %v8024 = vpop.f32.mrf.mxu0
        %v8025 = vadd.f32 %v7783, %v8024
        %v8026 = vpop.f32.mrf.mxu0
        %v8027 = vadd.f32 %v7787, %v8026
        %8028 = vmatprep.mubr.f32.mxu0 0.0
        %8029 = vmatmul.mubr.f32.gmra.mxu0 %v7731
        %v8030 = vpop.f32.mrf.mxu0
        %v8031 = vadd.f32 %v7783, %v8030
        %v8032 = vpop.f32.mrf.mxu0
        %v8033 = vadd.f32 %v7787, %v8032
        %8034 = vmatprep.mubr.f32.mxu0 0.0
        %8035 = vmatmul.mubr.f32.gmra.mxu0 %v7736
        %v8036 = vpop.f32.mrf.mxu0
        %v8037 = vadd.f32 %v7783, %v8036
        %v8038 = vpop.f32.mrf.mxu0
        %v8039 = vadd.f32 %v7787, %v8038
        %8040 = vmatprep.mubr.f32.mxu0 0.0
        %8041 = vmatmul.mubr.f32.gmra.mxu0 %v7741
        %v8042 = vpop.f32.mrf.mxu0
        %v8043 = vadd.f32 %v7783, %v8042
        %v8044 = vpop.f32.mrf.mxu0
        %v8045 = vadd.f32 %v7787, %v8044
        %8046 = vdwg.mxu0
        %v8047 = vmul.f32 %v7857, %v283
        %v8048 = vmul.f32 %v7859, %v284
        %v8049 = vmul.f32 %v7863, %v285
        %v8050 = vmul.f32 %v7865, %v286
        %v8051 = vmul.f32 %v7869, %v287
        %v8052 = vmul.f32 %v7871, %v288
        %v8053 = vmul.f32 %v7875, %v289
        %v8054 = vmul.f32 %v7877, %v290
        %v8055 = vmul.f32 %v7881, %v291
        %v8056 = vmul.f32 %v7883, %v292
        %v8057 = vmul.f32 %v7887, %v293
        %v8058 = vmul.f32 %v7889, %v294
        %v8059 = vmul.f32 %v7893, %v295
        %v8060 = vmul.f32 %v7895, %v296
        %v8061 = vmul.f32 %v7899, %v297
        %v8062 = vmul.f32 %v7901, %v298
        %v8063 = vmul.f32 %v7905, %v299
        %v8064 = vmul.f32 %v7907, %v300
        %v8065 = vmul.f32 %v7911, %v301
        %v8066 = vmul.f32 %v7913, %v302
        %v8067 = vmul.f32 %v7917, %v303
        %v8068 = vmul.f32 %v7919, %v304
        %v8069 = vmul.f32 %v7923, %v305
        %v8070 = vmul.f32 %v7925, %v306
        %v8071 = vmul.f32 %v7929, %v307
        %v8072 = vmul.f32 %v7931, %v308
        %v8073 = vmul.f32 %v7935, %v309
        %v8074 = vmul.f32 %v7937, %v310
        %v8075 = vmul.f32 %v7941, %v311
        %v8076 = vmul.f32 %v7943, %v312
        %v8077 = vmul.f32 %v7947, %v313
        %v8078 = vmul.f32 %v7949, %v314
        %v8079 = vmul.f32 %v7953, %v315
        %v8080 = vmul.f32 %v7955, %v316
        %v8081 = vmul.f32 %v7959, %v317
        %v8082 = vmul.f32 %v7961, %v318
        %v8083 = vmul.f32 %v7965, %v319
        %v8084 = vmul.f32 %v7967, %v320
        %v8085 = vmul.f32 %v7971, %v321
        %v8086 = vmul.f32 %v7973, %v322
        %v8087 = vmul.f32 %v7977, %v323
        %v8088 = vmul.f32 %v7979, %v324
        %v8089 = vmul.f32 %v7983, %v325
        %v8090 = vmul.f32 %v7985, %v326
        %v8091 = vmul.f32 %v7989, %v327
        %v8092 = vmul.f32 %v7991, %v328
        %v8093 = vmul.f32 %v7995, %v329
        %v8094 = vmul.f32 %v7997, %v330
        %v8095 = vmul.f32 %v8001, %v331
        %v8096 = vmul.f32 %v8003, %v332
        %v8097 = vmul.f32 %v8007, %v333
        %v8098 = vmul.f32 %v8009, %v334
        %v8099 = vmul.f32 %v8013, %v335
        %v8100 = vmul.f32 %v8015, %v336
        %v8101 = vmul.f32 %v8019, %v337
        %v8102 = vmul.f32 %v8021, %v338
        %v8103 = vmul.f32 %v8025, %v339
        %v8104 = vmul.f32 %v8027, %v340
        %v8105 = vmul.f32 %v8031, %v341
        %v8106 = vmul.f32 %v8033, %v342
        %v8107 = vmul.f32 %v8037, %v343
        %v8108 = vmul.f32 %v8039, %v344
        %v8109 = vmul.f32 %v8043, %v345
        %v8110 = vmul.f32 %v8045, %v346
        %v8112 = vsel %vm425, %v8048, 0
        %v8115 = vsel %vm425, %v8050, 0
        %v8118 = vsel %vm425, %v8052, 0
        %v8121 = vsel %vm425, %v8054, 0
        %v8124 = vsel %vm425, %v8056, 0
        %v8127 = vsel %vm425, %v8058, 0
        %v8130 = vsel %vm425, %v8060, 0
        %v8133 = vsel %vm425, %v8062, 0
        %v8136 = vsel %vm425, %v8064, 0
        %v8139 = vsel %vm425, %v8066, 0
        %v8142 = vsel %vm425, %v8068, 0
        %v8145 = vsel %vm425, %v8070, 0
        %v8148 = vsel %vm425, %v8072, 0
        %v8151 = vsel %vm425, %v8074, 0
        %v8154 = vsel %vm425, %v8076, 0
        %v8157 = vsel %vm425, %v8078, 0
        %v8160 = vsel %vm425, %v8080, 0
        %v8163 = vsel %vm425, %v8082, 0
        %v8166 = vsel %vm425, %v8084, 0
        %v8169 = vsel %vm425, %v8086, 0
        %v8172 = vsel %vm425, %v8088, 0
        %v8175 = vsel %vm425, %v8090, 0
        %v8178 = vsel %vm425, %v8092, 0
        %v8181 = vsel %vm425, %v8094, 0
        %v8184 = vsel %vm425, %v8096, 0
        %v8187 = vsel %vm425, %v8098, 0
        %v8190 = vsel %vm425, %v8100, 0
        %v8193 = vsel %vm425, %v8102, 0
        %v8196 = vsel %vm425, %v8104, 0
        %v8199 = vsel %vm425, %v8106, 0
        %v8202 = vsel %vm425, %v8108, 0
        %v8205 = vsel %vm425, %v8110, 0
        %8207 = vmatprep.subr.mxu0 0.0
        %8208 = vmatpush1.msra.mxu0 %v362
        %8209 = vmatprep.subr.mxu0 0.0
        %8210 = vmatpush1.msra.mxu0 %v361
        %8211 = vmatprep.subr.mxu0 0.0
        %8212 = vmatpush1.msra.mxu0 %v360
        %8213 = vmatprep.subr.mxu0 0.0
        %8214 = vmatpush1.msra.mxu0 %v359
        %8215 = vmatprep.subr.mxu0 0.0
        %8216 = vmatpush1.msra.mxu0 %v358
        %8217 = vmatprep.subr.mxu0 0.0
        %8218 = vmatpush1.msra.mxu0 %v357
        %8219 = vmatprep.subr.mxu0 0.0
        %8220 = vmatpush1.msra.mxu0 %v356
        %8221 = vmatprep.subr.mxu0 0.0
        %8222 = vmatpush1.msra.mxu0 %v355
        %8223 = vmatprep.subr.mxu0 0.0
        %8224 = vmatpush1.msra.mxu0 %v354
        %8225 = vmatprep.subr.mxu0 0.0
        %8226 = vmatpush1.msra.mxu0 %v353
        %8227 = vmatprep.subr.mxu0 0.0
        %8228 = vmatpush1.msra.mxu0 %v352
        %8229 = vmatprep.subr.mxu0 0.0
        %8230 = vmatpush1.msra.mxu0 %v351
        %8231 = vmatprep.subr.mxu0 0.0
        %8232 = vmatpush1.msra.mxu0 %v350
        %8233 = vmatprep.subr.mxu0 0.0
        %8234 = vmatpush1.msra.mxu0 %v349
        %8235 = vmatprep.subr.mxu0 0.0
        %8236 = vmatpush1.msra.mxu0 %v348
        %8237 = vmatprep.subr.mxu0 0.0
        %8238 = vmatpush1.msra.mxu0 %v347
        %8239 = vmatprep.subr.mxu0 0.0
        %8240 = vmatpush2.msra.mxu0 0.0
        %8241 = vmatprep.subr.mxu0 0.0
        %8242 = vmatpush2.msra.mxu0 0.0
        %8243 = vmatprep.subr.mxu0 0.0
        %8244 = vmatpush2.msra.mxu0 0.0
        %8245 = vmatprep.subr.mxu0 0.0
        %8246 = vmatpush2.msra.mxu0 0.0
        %8247 = vmatprep.subr.mxu0 0.0
        %8248 = vmatpush2.msra.mxu0 0.0
        %8249 = vmatprep.subr.mxu0 0.0
        %8250 = vmatpush2.msra.mxu0 0.0
        %8251 = vmatprep.subr.mxu0 0.0
        %8252 = vmatpush2.msra.mxu0 %v372
        %8253 = vmatprep.subr.mxu0 0.0
        %8254 = vmatpush2.msra.mxu0 %v371
        %8255 = vmatprep.subr.mxu0 0.0
        %8256 = vmatpush2.msra.mxu0 %v370
        %8257 = vmatprep.subr.mxu0 0.0
        %8258 = vmatpush2.msra.mxu0 %v369
        %8259 = vmatprep.subr.mxu0 0.0
        %8260 = vmatpush2.msra.mxu0 %v368
        %8261 = vmatprep.subr.mxu0 0.0
        %8262 = vmatpush2.msra.mxu0 %v367
        %8263 = vmatprep.subr.mxu0 0.0
        %8264 = vmatpush2.msra.mxu0 %v366
        %8265 = vmatprep.subr.mxu0 0.0
        %8266 = vmatpush2.msra.mxu0 %v365
        %8267 = vmatprep.subr.mxu0 0.0
        %8268 = vmatpush2.msra.mxu0 %v364
        %8269 = vmatprep.subr.mxu0 0.0
        %8270 = vmatpush2.msra.mxu0 %v363
        %8271 = vmatprep.mubr.f32.mxu0 %v8112
        %8272 = vmatmul.mubr.f32.gmra.mxu0 %v8047
        %v8273 = vpop.f32.mrf.mxu0
        %v8274 = vadd.f32 0.0, %v8273
        %v8275 = vpop.f32.mrf.mxu0
        %8276 = vmatprep.mubr.f32.mxu0 %v8115
        %8277 = vmatmul.mubr.f32.gmra.mxu0 %v8049
        %v8278 = vpop.f32.mrf.mxu0
        %v8279 = vadd.f32 0.0, %v8278
        %v8280 = vpop.f32.mrf.mxu0
        %8281 = vmatprep.mubr.f32.mxu0 %v8118
        %8282 = vmatmul.mubr.f32.gmra.mxu0 %v8051
        %v8283 = vpop.f32.mrf.mxu0
        %v8284 = vadd.f32 0.0, %v8283
        %v8285 = vpop.f32.mrf.mxu0
        %8286 = vmatprep.mubr.f32.mxu0 %v8121
        %8287 = vmatmul.mubr.f32.gmra.mxu0 %v8053
        %v8288 = vpop.f32.mrf.mxu0
        %v8289 = vadd.f32 0.0, %v8288
        %v8290 = vpop.f32.mrf.mxu0
        %8291 = vmatprep.mubr.f32.mxu0 %v8124
        %8292 = vmatmul.mubr.f32.gmra.mxu0 %v8055
        %v8293 = vpop.f32.mrf.mxu0
        %v8294 = vadd.f32 0.0, %v8293
        %v8295 = vpop.f32.mrf.mxu0
        %8296 = vmatprep.mubr.f32.mxu0 %v8127
        %8297 = vmatmul.mubr.f32.gmra.mxu0 %v8057
        %v8298 = vpop.f32.mrf.mxu0
        %v8299 = vadd.f32 0.0, %v8298
        %v8300 = vpop.f32.mrf.mxu0
        %8301 = vmatprep.mubr.f32.mxu0 %v8130
        %8302 = vmatmul.mubr.f32.gmra.mxu0 %v8059
        %v8303 = vpop.f32.mrf.mxu0
        %v8304 = vadd.f32 0.0, %v8303
        %v8305 = vpop.f32.mrf.mxu0
        %8306 = vmatprep.mubr.f32.mxu0 %v8133
        %8307 = vmatmul.mubr.f32.gmra.mxu0 %v8061
        %v8308 = vpop.f32.mrf.mxu0
        %v8309 = vadd.f32 0.0, %v8308
        %v8310 = vpop.f32.mrf.mxu0
        %8311 = vmatprep.mubr.f32.mxu0 %v8136
        %8312 = vmatmul.mubr.f32.gmra.mxu0 %v8063
        %v8313 = vpop.f32.mrf.mxu0
        %v8314 = vadd.f32 0.0, %v8313
        %v8315 = vpop.f32.mrf.mxu0
        %8316 = vmatprep.mubr.f32.mxu0 %v8139
        %8317 = vmatmul.mubr.f32.gmra.mxu0 %v8065
        %v8318 = vpop.f32.mrf.mxu0
        %v8319 = vadd.f32 0.0, %v8318
        %v8320 = vpop.f32.mrf.mxu0
        %8321 = vmatprep.mubr.f32.mxu0 %v8142
        %8322 = vmatmul.mubr.f32.gmra.mxu0 %v8067
        %v8323 = vpop.f32.mrf.mxu0
        %v8324 = vadd.f32 0.0, %v8323
        %v8325 = vpop.f32.mrf.mxu0
        %8326 = vmatprep.mubr.f32.mxu0 %v8145
        %8327 = vmatmul.mubr.f32.gmra.mxu0 %v8069
        %v8328 = vpop.f32.mrf.mxu0
        %v8329 = vadd.f32 0.0, %v8328
        %v8330 = vpop.f32.mrf.mxu0
        %8331 = vmatprep.mubr.f32.mxu0 %v8148
        %8332 = vmatmul.mubr.f32.gmra.mxu0 %v8071
        %v8333 = vpop.f32.mrf.mxu0
        %v8334 = vadd.f32 0.0, %v8333
        %v8335 = vpop.f32.mrf.mxu0
        %8336 = vmatprep.mubr.f32.mxu0 %v8151
        %8337 = vmatmul.mubr.f32.gmra.mxu0 %v8073
        %v8338 = vpop.f32.mrf.mxu0
        %v8339 = vadd.f32 0.0, %v8338
        %v8340 = vpop.f32.mrf.mxu0
        %8341 = vmatprep.mubr.f32.mxu0 %v8154
        %8342 = vmatmul.mubr.f32.gmra.mxu0 %v8075
        %v8343 = vpop.f32.mrf.mxu0
        %v8344 = vadd.f32 0.0, %v8343
        %v8345 = vpop.f32.mrf.mxu0
        %8346 = vmatprep.mubr.f32.mxu0 %v8157
        %8347 = vmatmul.mubr.f32.gmra.mxu0 %v8077
        %v8348 = vpop.f32.mrf.mxu0
        %v8349 = vadd.f32 0.0, %v8348
        %v8350 = vpop.f32.mrf.mxu0
        %8351 = vmatprep.mubr.f32.mxu0 %v8160
        %8352 = vmatmul.mubr.f32.gmra.mxu0 %v8079
        %v8353 = vpop.f32.mrf.mxu0
        %v8354 = vadd.f32 0.0, %v8353
        %v8355 = vpop.f32.mrf.mxu0
        %8356 = vmatprep.mubr.f32.mxu0 %v8163
        %8357 = vmatmul.mubr.f32.gmra.mxu0 %v8081
        %v8358 = vpop.f32.mrf.mxu0
        %v8359 = vadd.f32 0.0, %v8358
        %v8360 = vpop.f32.mrf.mxu0
        %8361 = vmatprep.mubr.f32.mxu0 %v8166
        %8362 = vmatmul.mubr.f32.gmra.mxu0 %v8083
        %v8363 = vpop.f32.mrf.mxu0
        %v8364 = vadd.f32 0.0, %v8363
        %v8365 = vpop.f32.mrf.mxu0
        %8366 = vmatprep.mubr.f32.mxu0 %v8169
        %8367 = vmatmul.mubr.f32.gmra.mxu0 %v8085
        %v8368 = vpop.f32.mrf.mxu0
        %v8369 = vadd.f32 0.0, %v8368
        %v8370 = vpop.f32.mrf.mxu0
        %8371 = vmatprep.mubr.f32.mxu0 %v8172
        %8372 = vmatmul.mubr.f32.gmra.mxu0 %v8087
        %v8373 = vpop.f32.mrf.mxu0
        %v8374 = vadd.f32 0.0, %v8373
        %v8375 = vpop.f32.mrf.mxu0
        %8376 = vmatprep.mubr.f32.mxu0 %v8175
        %8377 = vmatmul.mubr.f32.gmra.mxu0 %v8089
        %v8378 = vpop.f32.mrf.mxu0
        %v8379 = vadd.f32 0.0, %v8378
        %v8380 = vpop.f32.mrf.mxu0
        %8381 = vmatprep.mubr.f32.mxu0 %v8178
        %8382 = vmatmul.mubr.f32.gmra.mxu0 %v8091
        %v8383 = vpop.f32.mrf.mxu0
        %v8384 = vadd.f32 0.0, %v8383
        %v8385 = vpop.f32.mrf.mxu0
        %8386 = vmatprep.mubr.f32.mxu0 %v8181
        %8387 = vmatmul.mubr.f32.gmra.mxu0 %v8093
        %v8388 = vpop.f32.mrf.mxu0
        %v8389 = vadd.f32 0.0, %v8388
        %v8390 = vpop.f32.mrf.mxu0
        %8391 = vmatprep.mubr.f32.mxu0 %v8184
        %8392 = vmatmul.mubr.f32.gmra.mxu0 %v8095
        %v8393 = vpop.f32.mrf.mxu0
        %v8394 = vadd.f32 0.0, %v8393
        %v8395 = vpop.f32.mrf.mxu0
        %8396 = vmatprep.mubr.f32.mxu0 %v8187
        %8397 = vmatmul.mubr.f32.gmra.mxu0 %v8097
        %v8398 = vpop.f32.mrf.mxu0
        %v8399 = vadd.f32 0.0, %v8398
        %v8400 = vpop.f32.mrf.mxu0
        %8401 = vmatprep.mubr.f32.mxu0 %v8190
        %8402 = vmatmul.mubr.f32.gmra.mxu0 %v8099
        %v8403 = vpop.f32.mrf.mxu0
        %v8404 = vadd.f32 0.0, %v8403
        %v8405 = vpop.f32.mrf.mxu0
        %8406 = vmatprep.mubr.f32.mxu0 %v8193
        %8407 = vmatmul.mubr.f32.gmra.mxu0 %v8101
        %v8408 = vpop.f32.mrf.mxu0
        %v8409 = vadd.f32 0.0, %v8408
        %v8410 = vpop.f32.mrf.mxu0
        %8411 = vmatprep.mubr.f32.mxu0 %v8196
        %8412 = vmatmul.mubr.f32.gmra.mxu0 %v8103
        %v8413 = vpop.f32.mrf.mxu0
        %v8414 = vadd.f32 0.0, %v8413
        %v8415 = vpop.f32.mrf.mxu0
        %8416 = vmatprep.mubr.f32.mxu0 %v8199
        %8417 = vmatmul.mubr.f32.gmra.mxu0 %v8105
        %v8418 = vpop.f32.mrf.mxu0
        %v8419 = vadd.f32 0.0, %v8418
        %v8420 = vpop.f32.mrf.mxu0
        %8421 = vmatprep.mubr.f32.mxu0 %v8202
        %8422 = vmatmul.mubr.f32.gmra.mxu0 %v8107
        %v8423 = vpop.f32.mrf.mxu0
        %v8424 = vadd.f32 0.0, %v8423
        %v8425 = vpop.f32.mrf.mxu0
        %8426 = vmatprep.mubr.f32.mxu0 %v8205
        %8427 = vmatmul.mubr.f32.gmra.mxu0 %v8109
        %v8428 = vpop.f32.mrf.mxu0
        %v8429 = vadd.f32 0.0, %v8428
        %v8430 = vpop.f32.mrf.mxu0
        %8431 = vdwg.mxu0
        %v8432 = vmul.f32 %v7857, %v589
        %v8433 = vmul.f32 %v7859, %v591
        %v8434 = vmul.f32 %v7863, %v595
        %v8435 = vmul.f32 %v7865, %v597
        %v8436 = vmul.f32 %v7869, %v601
        %v8437 = vmul.f32 %v7871, %v603
        %v8438 = vmul.f32 %v7875, %v607
        %v8439 = vmul.f32 %v7877, %v609
        %v8440 = vmul.f32 %v7881, %v613
        %v8441 = vmul.f32 %v7883, %v615
        %v8442 = vmul.f32 %v7887, %v619
        %v8443 = vmul.f32 %v7889, %v621
        %v8444 = vmul.f32 %v7893, %v625
        %v8445 = vmul.f32 %v7895, %v627
        %v8446 = vmul.f32 %v7899, %v631
        %v8447 = vmul.f32 %v7901, %v633
        %v8448 = vmul.f32 %v7905, %v637
        %v8449 = vmul.f32 %v7907, %v639
        %v8450 = vmul.f32 %v7911, %v643
        %v8451 = vmul.f32 %v7913, %v645
        %v8452 = vmul.f32 %v7917, %v649
        %v8453 = vmul.f32 %v7919, %v651
        %v8454 = vmul.f32 %v7923, %v655
        %v8455 = vmul.f32 %v7925, %v657
        %v8456 = vmul.f32 %v7929, %v661
        %v8457 = vmul.f32 %v7931, %v663
        %v8458 = vmul.f32 %v7935, %v667
        %v8459 = vmul.f32 %v7937, %v669
        %v8460 = vmul.f32 %v7941, %v673
        %v8461 = vmul.f32 %v7943, %v675
        %v8462 = vmul.f32 %v7947, %v679
        %v8463 = vmul.f32 %v7949, %v681
        %v8464 = vmul.f32 %v7953, %v685
        %v8465 = vmul.f32 %v7955, %v687
        %v8466 = vmul.f32 %v7959, %v691
        %v8467 = vmul.f32 %v7961, %v693
        %v8468 = vmul.f32 %v7965, %v697
        %v8469 = vmul.f32 %v7967, %v699
        %v8470 = vmul.f32 %v7971, %v703
        %v8471 = vmul.f32 %v7973, %v705
        %v8472 = vmul.f32 %v7977, %v709
        %v8473 = vmul.f32 %v7979, %v711
        %v8474 = vmul.f32 %v7983, %v715
        %v8475 = vmul.f32 %v7985, %v717
        %v8476 = vmul.f32 %v7989, %v721
        %v8477 = vmul.f32 %v7991, %v723
        %v8478 = vmul.f32 %v7995, %v727
        %v8479 = vmul.f32 %v7997, %v729
        %v8480 = vmul.f32 %v8001, %v733
        %v8481 = vmul.f32 %v8003, %v735
        %v8482 = vmul.f32 %v8007, %v739
        %v8483 = vmul.f32 %v8009, %v741
        %v8484 = vmul.f32 %v8013, %v745
        %v8485 = vmul.f32 %v8015, %v747
        %v8486 = vmul.f32 %v8019, %v751
        %v8487 = vmul.f32 %v8021, %v753
        %v8488 = vmul.f32 %v8025, %v757
        %v8489 = vmul.f32 %v8027, %v759
        %v8490 = vmul.f32 %v8031, %v763
        %v8491 = vmul.f32 %v8033, %v765
        %v8492 = vmul.f32 %v8037, %v769
        %v8493 = vmul.f32 %v8039, %v771
        %v8494 = vmul.f32 %v8043, %v775
        %v8495 = vmul.f32 %v8045, %v777
        %v8497 = vsel %vm425, %v8433, 0
        %v8500 = vsel %vm425, %v8435, 0
        %v8503 = vsel %vm425, %v8437, 0
        %v8506 = vsel %vm425, %v8439, 0
        %v8509 = vsel %vm425, %v8441, 0
        %v8512 = vsel %vm425, %v8443, 0
        %v8515 = vsel %vm425, %v8445, 0
        %v8518 = vsel %vm425, %v8447, 0
        %v8521 = vsel %vm425, %v8449, 0
        %v8524 = vsel %vm425, %v8451, 0
        %v8527 = vsel %vm425, %v8453, 0
        %v8530 = vsel %vm425, %v8455, 0
        %v8533 = vsel %vm425, %v8457, 0
        %v8536 = vsel %vm425, %v8459, 0
        %v8539 = vsel %vm425, %v8461, 0
        %v8542 = vsel %vm425, %v8463, 0
        %v8545 = vsel %vm425, %v8465, 0
        %v8548 = vsel %vm425, %v8467, 0
        %v8551 = vsel %vm425, %v8469, 0
        %v8554 = vsel %vm425, %v8471, 0
        %v8557 = vsel %vm425, %v8473, 0
        %v8560 = vsel %vm425, %v8475, 0
        %v8563 = vsel %vm425, %v8477, 0
        %v8566 = vsel %vm425, %v8479, 0
        %v8569 = vsel %vm425, %v8481, 0
        %v8572 = vsel %vm425, %v8483, 0
        %v8575 = vsel %vm425, %v8485, 0
        %v8578 = vsel %vm425, %v8487, 0
        %v8581 = vsel %vm425, %v8489, 0
        %v8584 = vsel %vm425, %v8491, 0
        %v8587 = vsel %vm425, %v8493, 0
        %v8590 = vsel %vm425, %v8495, 0
        %8592 = vmatprep.subr.mxu0 0.0
        %8593 = vmatpush1.msra.mxu0 %v362
        %8594 = vmatprep.subr.mxu0 0.0
        %8595 = vmatpush1.msra.mxu0 %v361
        %8596 = vmatprep.subr.mxu0 0.0
        %8597 = vmatpush1.msra.mxu0 %v360
        %8598 = vmatprep.subr.mxu0 0.0
        %8599 = vmatpush1.msra.mxu0 %v359
        %8600 = vmatprep.subr.mxu0 0.0
        %8601 = vmatpush1.msra.mxu0 %v358
        %8602 = vmatprep.subr.mxu0 0.0
        %8603 = vmatpush1.msra.mxu0 %v357
        %8604 = vmatprep.subr.mxu0 0.0
        %8605 = vmatpush1.msra.mxu0 %v356
        %8606 = vmatprep.subr.mxu0 0.0
        %8607 = vmatpush1.msra.mxu0 %v355
        %8608 = vmatprep.subr.mxu0 0.0
        %8609 = vmatpush1.msra.mxu0 %v354
        %8610 = vmatprep.subr.mxu0 0.0
        %8611 = vmatpush1.msra.mxu0 %v353
        %8612 = vmatprep.subr.mxu0 0.0
        %8613 = vmatpush1.msra.mxu0 %v352
        %8614 = vmatprep.subr.mxu0 0.0
        %8615 = vmatpush1.msra.mxu0 %v351
        %8616 = vmatprep.subr.mxu0 0.0
        %8617 = vmatpush1.msra.mxu0 %v350
        %8618 = vmatprep.subr.mxu0 0.0
        %8619 = vmatpush1.msra.mxu0 %v349
        %8620 = vmatprep.subr.mxu0 0.0
        %8621 = vmatpush1.msra.mxu0 %v348
        %8622 = vmatprep.subr.mxu0 0.0
        %8623 = vmatpush1.msra.mxu0 %v347
        %8624 = vmatprep.subr.mxu0 0.0
        %8625 = vmatpush2.msra.mxu0 0.0
        %8626 = vmatprep.subr.mxu0 0.0
        %8627 = vmatpush2.msra.mxu0 0.0
        %8628 = vmatprep.subr.mxu0 0.0
        %8629 = vmatpush2.msra.mxu0 0.0
        %8630 = vmatprep.subr.mxu0 0.0
        %8631 = vmatpush2.msra.mxu0 0.0
        %8632 = vmatprep.subr.mxu0 0.0
        %8633 = vmatpush2.msra.mxu0 0.0
        %8634 = vmatprep.subr.mxu0 0.0
        %8635 = vmatpush2.msra.mxu0 0.0
        %8636 = vmatprep.subr.mxu0 0.0
        %8637 = vmatpush2.msra.mxu0 %v372
        %8638 = vmatprep.subr.mxu0 0.0
        %8639 = vmatpush2.msra.mxu0 %v371
        %8640 = vmatprep.subr.mxu0 0.0
        %8641 = vmatpush2.msra.mxu0 %v370
        %8642 = vmatprep.subr.mxu0 0.0
        %8643 = vmatpush2.msra.mxu0 %v369
        %8644 = vmatprep.subr.mxu0 0.0
        %8645 = vmatpush2.msra.mxu0 %v368
        %8646 = vmatprep.subr.mxu0 0.0
        %8647 = vmatpush2.msra.mxu0 %v367
        %8648 = vmatprep.subr.mxu0 0.0
        %8649 = vmatpush2.msra.mxu0 %v366
        %8650 = vmatprep.subr.mxu0 0.0
        %8651 = vmatpush2.msra.mxu0 %v365
        %8652 = vmatprep.subr.mxu0 0.0
        %8653 = vmatpush2.msra.mxu0 %v364
        %8654 = vmatprep.subr.mxu0 0.0
        %8655 = vmatpush2.msra.mxu0 %v363
        %8656 = vmatprep.mubr.f32.mxu0 %v8497
        %8657 = vmatmul.mubr.f32.gmra.mxu0 %v8432
        %v8658 = vpop.f32.mrf.mxu0
        %v8659 = vadd.f32 0.0, %v8658
        %v8660 = vpop.f32.mrf.mxu0
        %8661 = vmatprep.mubr.f32.mxu0 %v8500
        %8662 = vmatmul.mubr.f32.gmra.mxu0 %v8434
        %v8663 = vpop.f32.mrf.mxu0
        %v8664 = vadd.f32 0.0, %v8663
        %v8665 = vpop.f32.mrf.mxu0
        %8666 = vmatprep.mubr.f32.mxu0 %v8503
        %8667 = vmatmul.mubr.f32.gmra.mxu0 %v8436
        %v8668 = vpop.f32.mrf.mxu0
        %v8669 = vadd.f32 0.0, %v8668
        %v8670 = vpop.f32.mrf.mxu0
        %8671 = vmatprep.mubr.f32.mxu0 %v8506
        %8672 = vmatmul.mubr.f32.gmra.mxu0 %v8438
        %v8673 = vpop.f32.mrf.mxu0
        %v8674 = vadd.f32 0.0, %v8673
        %v8675 = vpop.f32.mrf.mxu0
        %8676 = vmatprep.mubr.f32.mxu0 %v8509
        %8677 = vmatmul.mubr.f32.gmra.mxu0 %v8440
        %v8678 = vpop.f32.mrf.mxu0
        %v8679 = vadd.f32 0.0, %v8678
        %v8680 = vpop.f32.mrf.mxu0
        %8681 = vmatprep.mubr.f32.mxu0 %v8512
        %8682 = vmatmul.mubr.f32.gmra.mxu0 %v8442
        %v8683 = vpop.f32.mrf.mxu0
        %v8684 = vadd.f32 0.0, %v8683
        %v8685 = vpop.f32.mrf.mxu0
        %8686 = vmatprep.mubr.f32.mxu0 %v8515
        %8687 = vmatmul.mubr.f32.gmra.mxu0 %v8444
        %v8688 = vpop.f32.mrf.mxu0
        %v8689 = vadd.f32 0.0, %v8688
        %v8690 = vpop.f32.mrf.mxu0
        %8691 = vmatprep.mubr.f32.mxu0 %v8518
        %8692 = vmatmul.mubr.f32.gmra.mxu0 %v8446
        %v8693 = vpop.f32.mrf.mxu0
        %v8694 = vadd.f32 0.0, %v8693
        %v8695 = vpop.f32.mrf.mxu0
        %8696 = vmatprep.mubr.f32.mxu0 %v8521
        %8697 = vmatmul.mubr.f32.gmra.mxu0 %v8448
        %v8698 = vpop.f32.mrf.mxu0
        %v8699 = vadd.f32 0.0, %v8698
        %v8700 = vpop.f32.mrf.mxu0
        %8701 = vmatprep.mubr.f32.mxu0 %v8524
        %8702 = vmatmul.mubr.f32.gmra.mxu0 %v8450
        %v8703 = vpop.f32.mrf.mxu0
        %v8704 = vadd.f32 0.0, %v8703
        %v8705 = vpop.f32.mrf.mxu0
        %8706 = vmatprep.mubr.f32.mxu0 %v8527
        %8707 = vmatmul.mubr.f32.gmra.mxu0 %v8452
        %v8708 = vpop.f32.mrf.mxu0
        %v8709 = vadd.f32 0.0, %v8708
        %v8710 = vpop.f32.mrf.mxu0
        %8711 = vmatprep.mubr.f32.mxu0 %v8530
        %8712 = vmatmul.mubr.f32.gmra.mxu0 %v8454
        %v8713 = vpop.f32.mrf.mxu0
        %v8714 = vadd.f32 0.0, %v8713
        %v8715 = vpop.f32.mrf.mxu0
        %8716 = vmatprep.mubr.f32.mxu0 %v8533
        %8717 = vmatmul.mubr.f32.gmra.mxu0 %v8456
        %v8718 = vpop.f32.mrf.mxu0
        %v8719 = vadd.f32 0.0, %v8718
        %v8720 = vpop.f32.mrf.mxu0
        %8721 = vmatprep.mubr.f32.mxu0 %v8536
        %8722 = vmatmul.mubr.f32.gmra.mxu0 %v8458
        %v8723 = vpop.f32.mrf.mxu0
        %v8724 = vadd.f32 0.0, %v8723
        %v8725 = vpop.f32.mrf.mxu0
        %8726 = vmatprep.mubr.f32.mxu0 %v8539
        %8727 = vmatmul.mubr.f32.gmra.mxu0 %v8460
        %v8728 = vpop.f32.mrf.mxu0
        %v8729 = vadd.f32 0.0, %v8728
        %v8730 = vpop.f32.mrf.mxu0
        %8731 = vmatprep.mubr.f32.mxu0 %v8542
        %8732 = vmatmul.mubr.f32.gmra.mxu0 %v8462
        %v8733 = vpop.f32.mrf.mxu0
        %v8734 = vadd.f32 0.0, %v8733
        %v8735 = vpop.f32.mrf.mxu0
        %8736 = vmatprep.mubr.f32.mxu0 %v8545
        %8737 = vmatmul.mubr.f32.gmra.mxu0 %v8464
        %v8738 = vpop.f32.mrf.mxu0
        %v8739 = vadd.f32 0.0, %v8738
        %v8740 = vpop.f32.mrf.mxu0
        %8741 = vmatprep.mubr.f32.mxu0 %v8548
        %8742 = vmatmul.mubr.f32.gmra.mxu0 %v8466
        %v8743 = vpop.f32.mrf.mxu0
        %v8744 = vadd.f32 0.0, %v8743
        %v8745 = vpop.f32.mrf.mxu0
        %8746 = vmatprep.mubr.f32.mxu0 %v8551
        %8747 = vmatmul.mubr.f32.gmra.mxu0 %v8468
        %v8748 = vpop.f32.mrf.mxu0
        %v8749 = vadd.f32 0.0, %v8748
        %v8750 = vpop.f32.mrf.mxu0
        %8751 = vmatprep.mubr.f32.mxu0 %v8554
        %8752 = vmatmul.mubr.f32.gmra.mxu0 %v8470
        %v8753 = vpop.f32.mrf.mxu0
        %v8754 = vadd.f32 0.0, %v8753
        %v8755 = vpop.f32.mrf.mxu0
        %8756 = vmatprep.mubr.f32.mxu0 %v8557
        %8757 = vmatmul.mubr.f32.gmra.mxu0 %v8472
        %v8758 = vpop.f32.mrf.mxu0
        %v8759 = vadd.f32 0.0, %v8758
        %v8760 = vpop.f32.mrf.mxu0
        %8761 = vmatprep.mubr.f32.mxu0 %v8560
        %8762 = vmatmul.mubr.f32.gmra.mxu0 %v8474
        %v8763 = vpop.f32.mrf.mxu0
        %v8764 = vadd.f32 0.0, %v8763
        %v8765 = vpop.f32.mrf.mxu0
        %8766 = vmatprep.mubr.f32.mxu0 %v8563
        %8767 = vmatmul.mubr.f32.gmra.mxu0 %v8476
        %v8768 = vpop.f32.mrf.mxu0
        %v8769 = vadd.f32 0.0, %v8768
        %v8770 = vpop.f32.mrf.mxu0
        %8771 = vmatprep.mubr.f32.mxu0 %v8566
        %8772 = vmatmul.mubr.f32.gmra.mxu0 %v8478
        %v8773 = vpop.f32.mrf.mxu0
        %v8774 = vadd.f32 0.0, %v8773
        %v8775 = vpop.f32.mrf.mxu0
        %8776 = vmatprep.mubr.f32.mxu0 %v8569
        %8777 = vmatmul.mubr.f32.gmra.mxu0 %v8480
        %v8778 = vpop.f32.mrf.mxu0
        %v8779 = vadd.f32 0.0, %v8778
        %v8780 = vpop.f32.mrf.mxu0
        %8781 = vmatprep.mubr.f32.mxu0 %v8572
        %8782 = vmatmul.mubr.f32.gmra.mxu0 %v8482
        %v8783 = vpop.f32.mrf.mxu0
        %v8784 = vadd.f32 0.0, %v8783
        %v8785 = vpop.f32.mrf.mxu0
        %8786 = vmatprep.mubr.f32.mxu0 %v8575
        %8787 = vmatmul.mubr.f32.gmra.mxu0 %v8484
        %v8788 = vpop.f32.mrf.mxu0
        %v8789 = vadd.f32 0.0, %v8788
        %v8790 = vpop.f32.mrf.mxu0
        %8791 = vmatprep.mubr.f32.mxu0 %v8578
        %8792 = vmatmul.mubr.f32.gmra.mxu0 %v8486
        %v8793 = vpop.f32.mrf.mxu0
        %v8794 = vadd.f32 0.0, %v8793
        %v8795 = vpop.f32.mrf.mxu0
        %8796 = vmatprep.mubr.f32.mxu0 %v8581
        %8797 = vmatmul.mubr.f32.gmra.mxu0 %v8488
        %v8798 = vpop.f32.mrf.mxu0
        %v8799 = vadd.f32 0.0, %v8798
        %v8800 = vpop.f32.mrf.mxu0
        %8801 = vmatprep.mubr.f32.mxu0 %v8584
        %8802 = vmatmul.mubr.f32.gmra.mxu0 %v8490
        %v8803 = vpop.f32.mrf.mxu0
        %v8804 = vadd.f32 0.0, %v8803
        %v8805 = vpop.f32.mrf.mxu0
        %8806 = vmatprep.mubr.f32.mxu0 %v8587
        %8807 = vmatmul.mubr.f32.gmra.mxu0 %v8492
        %v8808 = vpop.f32.mrf.mxu0
        %v8809 = vadd.f32 0.0, %v8808
        %v8810 = vpop.f32.mrf.mxu0
        %8811 = vmatprep.mubr.f32.mxu0 %v8590
        %8812 = vmatmul.mubr.f32.gmra.mxu0 %v8494
        %v8813 = vpop.f32.mrf.mxu0
        %v8814 = vadd.f32 0.0, %v8813
        %v8815 = vpop.f32.mrf.mxu0
        %8816 = vdwg.mxu0
        %v8817 = vmul.f32 %v8274, %v8274
        %v8818 = vmul.f32 %v8279, %v8279
        %v8819 = vmul.f32 %v8284, %v8284
        %v8820 = vmul.f32 %v8289, %v8289
        %v8821 = vmul.f32 %v8294, %v8294
        %v8822 = vmul.f32 %v8299, %v8299
        %v8823 = vmul.f32 %v8304, %v8304
        %v8824 = vmul.f32 %v8309, %v8309
        %v8825 = vmul.f32 %v8314, %v8314
        %v8826 = vmul.f32 %v8319, %v8319
        %v8827 = vmul.f32 %v8324, %v8324
        %v8828 = vmul.f32 %v8329, %v8329
        %v8829 = vmul.f32 %v8334, %v8334
        %v8830 = vmul.f32 %v8339, %v8339
        %v8831 = vmul.f32 %v8344, %v8344
        %v8832 = vmul.f32 %v8349, %v8349
        %v8833 = vmul.f32 %v8354, %v8354
        %v8834 = vmul.f32 %v8359, %v8359
        %v8835 = vmul.f32 %v8364, %v8364
        %v8836 = vmul.f32 %v8369, %v8369
        %v8837 = vmul.f32 %v8374, %v8374
        %v8838 = vmul.f32 %v8379, %v8379
        %v8839 = vmul.f32 %v8384, %v8384
        %v8840 = vmul.f32 %v8389, %v8389
        %v8841 = vmul.f32 %v8394, %v8394
        %v8842 = vmul.f32 %v8399, %v8399
        %v8843 = vmul.f32 %v8404, %v8404
        %v8844 = vmul.f32 %v8409, %v8409
        %v8845 = vmul.f32 %v8414, %v8414
        %v8846 = vmul.f32 %v8419, %v8419
        %v8847 = vmul.f32 %v8424, %v8424
        %v8848 = vmul.f32 %v8429, %v8429
        %v8849 = vmul.f32 %v8659, %v8659
        %v8850 = vmul.f32 %v8664, %v8664
        %v8851 = vmul.f32 %v8669, %v8669
        %v8852 = vmul.f32 %v8674, %v8674
        %v8853 = vmul.f32 %v8679, %v8679
        %v8854 = vmul.f32 %v8684, %v8684
        %v8855 = vmul.f32 %v8689, %v8689
        %v8856 = vmul.f32 %v8694, %v8694
        %v8857 = vmul.f32 %v8699, %v8699
        %v8858 = vmul.f32 %v8704, %v8704
        %v8859 = vmul.f32 %v8709, %v8709
        %v8860 = vmul.f32 %v8714, %v8714
        %v8861 = vmul.f32 %v8719, %v8719
        %v8862 = vmul.f32 %v8724, %v8724
        %v8863 = vmul.f32 %v8729, %v8729
        %v8864 = vmul.f32 %v8734, %v8734
        %v8865 = vmul.f32 %v8739, %v8739
        %v8866 = vmul.f32 %v8744, %v8744
        %v8867 = vmul.f32 %v8749, %v8749
        %v8868 = vmul.f32 %v8754, %v8754
        %v8869 = vmul.f32 %v8759, %v8759
        %v8870 = vmul.f32 %v8764, %v8764
        %v8871 = vmul.f32 %v8769, %v8769
        %v8872 = vmul.f32 %v8774, %v8774
        %v8873 = vmul.f32 %v8779, %v8779
        %v8874 = vmul.f32 %v8784, %v8784
        %v8875 = vmul.f32 %v8789, %v8789
        %v8876 = vmul.f32 %v8794, %v8794
        %v8877 = vmul.f32 %v8799, %v8799
        %v8878 = vmul.f32 %v8804, %v8804
        %v8879 = vmul.f32 %v8809, %v8809
        %v8880 = vmul.f32 %v8814, %v8814
        %v8881 = vadd.f32 %v8817, %v8849
        %v8882 = vadd.f32 %v8818, %v8850
        %v8883 = vadd.f32 %v8819, %v8851
        %v8884 = vadd.f32 %v8820, %v8852
        %v8885 = vadd.f32 %v8821, %v8853
        %v8886 = vadd.f32 %v8822, %v8854
        %v8887 = vadd.f32 %v8823, %v8855
        %v8888 = vadd.f32 %v8824, %v8856
        %v8889 = vadd.f32 %v8825, %v8857
        %v8890 = vadd.f32 %v8826, %v8858
        %v8891 = vadd.f32 %v8827, %v8859
        %v8892 = vadd.f32 %v8828, %v8860
        %v8893 = vadd.f32 %v8829, %v8861
        %v8894 = vadd.f32 %v8830, %v8862
        %v8895 = vadd.f32 %v8831, %v8863
        %v8896 = vadd.f32 %v8832, %v8864
        %v8897 = vadd.f32 %v8833, %v8865
        %v8898 = vadd.f32 %v8834, %v8866
        %v8899 = vadd.f32 %v8835, %v8867
        %v8900 = vadd.f32 %v8836, %v8868
        %v8901 = vadd.f32 %v8837, %v8869
        %v8902 = vadd.f32 %v8838, %v8870
        %v8903 = vadd.f32 %v8839, %v8871
        %v8904 = vadd.f32 %v8840, %v8872
        %v8905 = vadd.f32 %v8841, %v8873
        %v8906 = vadd.f32 %v8842, %v8874
        %v8907 = vadd.f32 %v8843, %v8875
        %v8908 = vadd.f32 %v8844, %v8876
        %v8909 = vadd.f32 %v8845, %v8877
        %v8910 = vadd.f32 %v8846, %v8878
        %v8911 = vadd.f32 %v8847, %v8879
        %v8912 = vadd.f32 %v8848, %v8880
        %v8913 = vsel %vm2204, %v8881, 0.0
        %8914 = vadd.xlane.f32.xlu0 %v8913
        %v8915 = vpop.xlane.xlu0 %8914
        %v8916 = vsel %vm2204, %v8882, 0.0
        %8917 = vadd.xlane.f32.xlu0 %v8916
        %v8918 = vpop.xlane.xlu0 %8917
        %v8919 = vsel %vm2204, %v8883, 0.0
        %8920 = vadd.xlane.f32.xlu0 %v8919
        %v8921 = vpop.xlane.xlu0 %8920
        %v8922 = vsel %vm2204, %v8884, 0.0
        %8923 = vadd.xlane.f32.xlu0 %v8922
        %v8924 = vpop.xlane.xlu0 %8923
        %v8925 = vsel %vm2204, %v8885, 0.0
        %8926 = vadd.xlane.f32.xlu0 %v8925
        %v8927 = vpop.xlane.xlu0 %8926
        %v8928 = vsel %vm2204, %v8886, 0.0
        %8929 = vadd.xlane.f32.xlu0 %v8928
        %v8930 = vpop.xlane.xlu0 %8929
        %v8931 = vsel %vm2204, %v8887, 0.0
        %8932 = vadd.xlane.f32.xlu0 %v8931
        %v8933 = vpop.xlane.xlu0 %8932
        %v8934 = vsel %vm2204, %v8888, 0.0
        %8935 = vadd.xlane.f32.xlu0 %v8934
        %v8936 = vpop.xlane.xlu0 %8935
        %v8937 = vsel %vm2204, %v8889, 0.0
        %8938 = vadd.xlane.f32.xlu0 %v8937
        %v8939 = vpop.xlane.xlu0 %8938
        %v8940 = vsel %vm2204, %v8890, 0.0
        %8941 = vadd.xlane.f32.xlu0 %v8940
        %v8942 = vpop.xlane.xlu0 %8941
        %v8943 = vsel %vm2204, %v8891, 0.0
        %8944 = vadd.xlane.f32.xlu0 %v8943
        %v8945 = vpop.xlane.xlu0 %8944
        %v8946 = vsel %vm2204, %v8892, 0.0
        %8947 = vadd.xlane.f32.xlu0 %v8946
        %v8948 = vpop.xlane.xlu0 %8947
        %v8949 = vsel %vm2204, %v8893, 0.0
        %8950 = vadd.xlane.f32.xlu0 %v8949
        %v8951 = vpop.xlane.xlu0 %8950
        %v8952 = vsel %vm2204, %v8894, 0.0
        %8953 = vadd.xlane.f32.xlu0 %v8952
        %v8954 = vpop.xlane.xlu0 %8953
        %v8955 = vsel %vm2204, %v8895, 0.0
        %8956 = vadd.xlane.f32.xlu0 %v8955
        %v8957 = vpop.xlane.xlu0 %8956
        %v8958 = vsel %vm2204, %v8896, 0.0
        %8959 = vadd.xlane.f32.xlu0 %v8958
        %v8960 = vpop.xlane.xlu0 %8959
        %v8961 = vsel %vm2204, %v8897, 0.0
        %8962 = vadd.xlane.f32.xlu0 %v8961
        %v8963 = vpop.xlane.xlu0 %8962
        %v8964 = vsel %vm2204, %v8898, 0.0
        %8965 = vadd.xlane.f32.xlu0 %v8964
        %v8966 = vpop.xlane.xlu0 %8965
        %v8967 = vsel %vm2204, %v8899, 0.0
        %8968 = vadd.xlane.f32.xlu0 %v8967
        %v8969 = vpop.xlane.xlu0 %8968
        %v8970 = vsel %vm2204, %v8900, 0.0
        %8971 = vadd.xlane.f32.xlu0 %v8970
        %v8972 = vpop.xlane.xlu0 %8971
        %v8973 = vsel %vm2204, %v8901, 0.0
        %8974 = vadd.xlane.f32.xlu0 %v8973
        %v8975 = vpop.xlane.xlu0 %8974
        %v8976 = vsel %vm2204, %v8902, 0.0
        %8977 = vadd.xlane.f32.xlu0 %v8976
        %v8978 = vpop.xlane.xlu0 %8977
        %v8979 = vsel %vm2204, %v8903, 0.0
        %8980 = vadd.xlane.f32.xlu0 %v8979
        %v8981 = vpop.xlane.xlu0 %8980
        %v8982 = vsel %vm2204, %v8904, 0.0
        %8983 = vadd.xlane.f32.xlu0 %v8982
        %v8984 = vpop.xlane.xlu0 %8983
        %v8985 = vsel %vm2204, %v8905, 0.0
        %8986 = vadd.xlane.f32.xlu0 %v8985
        %v8987 = vpop.xlane.xlu0 %8986
        %v8988 = vsel %vm2204, %v8906, 0.0
        %8989 = vadd.xlane.f32.xlu0 %v8988
        %v8990 = vpop.xlane.xlu0 %8989
        %v8991 = vsel %vm2204, %v8907, 0.0
        %8992 = vadd.xlane.f32.xlu0 %v8991
        %v8993 = vpop.xlane.xlu0 %8992
        %v8994 = vsel %vm2204, %v8908, 0.0
        %8995 = vadd.xlane.f32.xlu0 %v8994
        %v8996 = vpop.xlane.xlu0 %8995
        %v8997 = vsel %vm2204, %v8909, 0.0
        %8998 = vadd.xlane.f32.xlu0 %v8997
        %v8999 = vpop.xlane.xlu0 %8998
        %v9000 = vsel %vm2204, %v8910, 0.0
        %9001 = vadd.xlane.f32.xlu0 %v9000
        %v9002 = vpop.xlane.xlu0 %9001
        %v9003 = vsel %vm2204, %v8911, 0.0
        %9004 = vadd.xlane.f32.xlu0 %v9003
        %v9005 = vpop.xlane.xlu0 %9004
        %v9006 = vsel %vm2204, %v8912, 0.0
        %9007 = vadd.xlane.f32.xlu0 %v9006
        %v9008 = vpop.xlane.xlu0 %9007
        %v9009 = vmul.f32 %v8915, 0.07692308
        %v9010 = vmul.f32 %v8918, 0.07692308
        %v9011 = vmul.f32 %v8921, 0.07692308
        %v9012 = vmul.f32 %v8924, 0.07692308
        %v9013 = vmul.f32 %v8927, 0.07692308
        %v9014 = vmul.f32 %v8930, 0.07692308
        %v9015 = vmul.f32 %v8933, 0.07692308
        %v9016 = vmul.f32 %v8936, 0.07692308
        %v9017 = vmul.f32 %v8939, 0.07692308
        %v9018 = vmul.f32 %v8942, 0.07692308
        %v9019 = vmul.f32 %v8945, 0.07692308
        %v9020 = vmul.f32 %v8948, 0.07692308
        %v9021 = vmul.f32 %v8951, 0.07692308
        %v9022 = vmul.f32 %v8954, 0.07692308
        %v9023 = vmul.f32 %v8957, 0.07692308
        %v9024 = vmul.f32 %v8960, 0.07692308
        %v9025 = vmul.f32 %v8963, 0.07692308
        %v9026 = vmul.f32 %v8966, 0.07692308
        %v9027 = vmul.f32 %v8969, 0.07692308
        %v9028 = vmul.f32 %v8972, 0.07692308
        %v9029 = vmul.f32 %v8975, 0.07692308
        %v9030 = vmul.f32 %v8978, 0.07692308
        %v9031 = vmul.f32 %v8981, 0.07692308
        %v9032 = vmul.f32 %v8984, 0.07692308
        %v9033 = vmul.f32 %v8987, 0.07692308
        %v9034 = vmul.f32 %v8990, 0.07692308
        %v9035 = vmul.f32 %v8993, 0.07692308
        %v9036 = vmul.f32 %v8996, 0.07692308
        %v9037 = vmul.f32 %v8999, 0.07692308
        %v9038 = vmul.f32 %v9002, 0.07692308
        %v9039 = vmul.f32 %v9005, 0.07692308
        %v9040 = vmul.f32 %v9008, 0.07692308
        %vm9041 = vcmp.gt.f32.partialorder %v9009, %v7452
        %vm9042 = vcmp.gt.f32.partialorder %v9010, %v7453
        %vm9043 = vcmp.gt.f32.partialorder %v9011, %v7454
        %vm9044 = vcmp.gt.f32.partialorder %v9012, %v7455
        %vm9045 = vcmp.gt.f32.partialorder %v9013, %v7456
        %vm9046 = vcmp.gt.f32.partialorder %v9014, %v7457
        %vm9047 = vcmp.gt.f32.partialorder %v9015, %v7458
        %vm9048 = vcmp.gt.f32.partialorder %v9016, %v7459
        %vm9049 = vcmp.gt.f32.partialorder %v9017, %v7460
        %vm9050 = vcmp.gt.f32.partialorder %v9018, %v7461
        %vm9051 = vcmp.gt.f32.partialorder %v9019, %v7462
        %vm9052 = vcmp.gt.f32.partialorder %v9020, %v7463
        %vm9053 = vcmp.gt.f32.partialorder %v9021, %v7464
        %vm9054 = vcmp.gt.f32.partialorder %v9022, %v7465
        %vm9055 = vcmp.gt.f32.partialorder %v9023, %v7466
        %vm9056 = vcmp.gt.f32.partialorder %v9024, %v7467
        %vm9057 = vcmp.gt.f32.partialorder %v9025, %v7468
        %vm9058 = vcmp.gt.f32.partialorder %v9026, %v7469
        %vm9059 = vcmp.gt.f32.partialorder %v9027, %v7470
        %vm9060 = vcmp.gt.f32.partialorder %v9028, %v7471
        %vm9061 = vcmp.gt.f32.partialorder %v9029, %v7472
        %vm9062 = vcmp.gt.f32.partialorder %v9030, %v7473
        %vm9063 = vcmp.gt.f32.partialorder %v9031, %v7474
        %vm9064 = vcmp.gt.f32.partialorder %v9032, %v7475
        %vm9065 = vcmp.gt.f32.partialorder %v9033, %v7476
        %vm9066 = vcmp.gt.f32.partialorder %v9034, %v7477
        %vm9067 = vcmp.gt.f32.partialorder %v9035, %v7478
        %vm9068 = vcmp.gt.f32.partialorder %v9036, %v7479
        %vm9069 = vcmp.gt.f32.partialorder %v9037, %v7480
        %vm9070 = vcmp.gt.f32.partialorder %v9038, %v7481
        %vm9071 = vcmp.gt.f32.partialorder %v9039, %v7482
        %vm9072 = vcmp.gt.f32.partialorder %v9040, %v7483
        %v9073 = vsel %vm9041, 1, 0
        %v9074 = vsel %vm9042, 1, 0
        %v9075 = vsel %vm9043, 1, 0
        %v9076 = vsel %vm9044, 1, 0
        %v9077 = vsel %vm9045, 1, 0
        %v9078 = vsel %vm9046, 1, 0
        %v9079 = vsel %vm9047, 1, 0
        %v9080 = vsel %vm9048, 1, 0
        %v9081 = vsel %vm9049, 1, 0
        %v9082 = vsel %vm9050, 1, 0
        %v9083 = vsel %vm9051, 1, 0
        %v9084 = vsel %vm9052, 1, 0
        %v9085 = vsel %vm9053, 1, 0
        %v9086 = vsel %vm9054, 1, 0
        %v9087 = vsel %vm9055, 1, 0
        %v9088 = vsel %vm9056, 1, 0
        %v9089 = vsel %vm9057, 1, 0
        %v9090 = vsel %vm9058, 1, 0
        %v9091 = vsel %vm9059, 1, 0
        %v9092 = vsel %vm9060, 1, 0
        %v9093 = vsel %vm9061, 1, 0
        %v9094 = vsel %vm9062, 1, 0
        %v9095 = vsel %vm9063, 1, 0
        %v9096 = vsel %vm9064, 1, 0
        %v9097 = vsel %vm9065, 1, 0
        %v9098 = vsel %vm9066, 1, 0
        %v9099 = vsel %vm9067, 1, 0
        %v9100 = vsel %vm9068, 1, 0
        %v9101 = vsel %vm9069, 1, 0
        %v9102 = vsel %vm9070, 1, 0
        %v9103 = vsel %vm9071, 1, 0
        %v9104 = vsel %vm9072, 1, 0
        %vm9105 = vcmp.eq.s32.totalorder %v9073, 1
        %vm9106 = vcmp.eq.s32.totalorder %v9074, 1
        %vm9107 = vcmp.eq.s32.totalorder %v9075, 1
        %vm9108 = vcmp.eq.s32.totalorder %v9076, 1
        %vm9109 = vcmp.eq.s32.totalorder %v9077, 1
        %vm9110 = vcmp.eq.s32.totalorder %v9078, 1
        %vm9111 = vcmp.eq.s32.totalorder %v9079, 1
        %vm9112 = vcmp.eq.s32.totalorder %v9080, 1
        %vm9113 = vcmp.eq.s32.totalorder %v9081, 1
        %vm9114 = vcmp.eq.s32.totalorder %v9082, 1
        %vm9115 = vcmp.eq.s32.totalorder %v9083, 1
        %vm9116 = vcmp.eq.s32.totalorder %v9084, 1
        %vm9117 = vcmp.eq.s32.totalorder %v9085, 1
        %vm9118 = vcmp.eq.s32.totalorder %v9086, 1
        %vm9119 = vcmp.eq.s32.totalorder %v9087, 1
        %vm9120 = vcmp.eq.s32.totalorder %v9088, 1
        %vm9121 = vcmp.eq.s32.totalorder %v9089, 1
        %vm9122 = vcmp.eq.s32.totalorder %v9090, 1
        %vm9123 = vcmp.eq.s32.totalorder %v9091, 1
        %vm9124 = vcmp.eq.s32.totalorder %v9092, 1
        %vm9125 = vcmp.eq.s32.totalorder %v9093, 1
        %vm9126 = vcmp.eq.s32.totalorder %v9094, 1
        %vm9127 = vcmp.eq.s32.totalorder %v9095, 1
        %vm9128 = vcmp.eq.s32.totalorder %v9096, 1
        %vm9129 = vcmp.eq.s32.totalorder %v9097, 1
        %vm9130 = vcmp.eq.s32.totalorder %v9098, 1
        %vm9131 = vcmp.eq.s32.totalorder %v9099, 1
        %vm9132 = vcmp.eq.s32.totalorder %v9100, 1
        %vm9133 = vcmp.eq.s32.totalorder %v9101, 1
        %vm9134 = vcmp.eq.s32.totalorder %v9102, 1
        %vm9135 = vcmp.eq.s32.totalorder %v9103, 1
        %vm9136 = vcmp.eq.s32.totalorder %v9104, 1
        %v9137 = vsel %vm9105, %v7586, %v7420
        %v9138 = vsel %vm9106, %v7591, %v7421
        %v9139 = vsel %vm9107, %v7596, %v7422
        %v9140 = vsel %vm9108, %v7601, %v7423
        %v9141 = vsel %vm9109, %v7606, %v7424
        %v9142 = vsel %vm9110, %v7611, %v7425
        %v9143 = vsel %vm9111, %v7616, %v7426
        %v9144 = vsel %vm9112, %v7621, %v7427
        %v9145 = vsel %vm9113, %v7626, %v7428
        %v9146 = vsel %vm9114, %v7631, %v7429
        %v9147 = vsel %vm9115, %v7636, %v7430
        %v9148 = vsel %vm9116, %v7641, %v7431
        %v9149 = vsel %vm9117, %v7646, %v7432
        %v9150 = vsel %vm9118, %v7651, %v7433
        %v9151 = vsel %vm9119, %v7656, %v7434
        %v9152 = vsel %vm9120, %v7661, %v7435
        %v9153 = vsel %vm9121, %v7666, %v7436
        %v9154 = vsel %vm9122, %v7671, %v7437
        %v9155 = vsel %vm9123, %v7676, %v7438
        %v9156 = vsel %vm9124, %v7681, %v7439
        %v9157 = vsel %vm9125, %v7686, %v7440
        %v9158 = vsel %vm9126, %v7691, %v7441
        %v9159 = vsel %vm9127, %v7696, %v7442
        %v9160 = vsel %vm9128, %v7701, %v7443
        %v9161 = vsel %vm9129, %v7706, %v7444
        %v9162 = vsel %vm9130, %v7711, %v7445
        %v9163 = vsel %vm9131, %v7716, %v7446
        %v9164 = vsel %vm9132, %v7721, %v7447
        %v9165 = vsel %vm9133, %v7726, %v7448
        %v9166 = vsel %vm9134, %v7731, %v7449
        %v9167 = vsel %vm9135, %v7736, %v7450
        %v9168 = vsel %vm9136, %v7741, %v7451
        %9169 = vst [vmem:[%s274] sm:$0xff] %v9137
        %9170 = vst [vmem:[%s274 + $0x8] sm:$0xff] %v9138
        %9171 = vst [vmem:[%s274 + $0x10] sm:$0xff] %v9139
        %9172 = vst [vmem:[%s274 + $0x18] sm:$0xff] %v9140
        %9173 = vst [vmem:[%s274 + $0x20] sm:$0xff] %v9141
        %9174 = vst [vmem:[%s274 + $0x28] sm:$0xff] %v9142
        %9175 = vst [vmem:[%s274 + $0x30] sm:$0xff] %v9143
        %9176 = vst [vmem:[%s274 + $0x38] sm:$0xff] %v9144
        %9177 = vst [vmem:[%s274 + $0x40] sm:$0xff] %v9145
        %9178 = vst [vmem:[%s274 + $0x48] sm:$0xff] %v9146
        %9179 = vst [vmem:[%s274 + $0x50] sm:$0xff] %v9147
        %9180 = vst [vmem:[%s274 + $0x58] sm:$0xff] %v9148
        %9181 = vst [vmem:[%s274 + $0x60] sm:$0xff] %v9149
        %9182 = vst [vmem:[%s274 + $0x68] sm:$0xff] %v9150
        %9183 = vst [vmem:[%s274 + $0x70] sm:$0xff] %v9151
        %9184 = vst [vmem:[%s274 + $0x78] sm:$0xff] %v9152
        %9185 = vst [vmem:[%s274 + $0x80] sm:$0xff] %v9153
        %9186 = vst [vmem:[%s274 + $0x88] sm:$0xff] %v9154
        %9187 = vst [vmem:[%s274 + $0x90] sm:$0xff] %v9155
        %9188 = vst [vmem:[%s274 + $0x98] sm:$0xff] %v9156
        %9189 = vst [vmem:[%s274 + $0xa0] sm:$0xff] %v9157
        %9190 = vst [vmem:[%s274 + $0xa8] sm:$0xff] %v9158
        %9191 = vst [vmem:[%s274 + $0xb0] sm:$0xff] %v9159
        %9192 = vst [vmem:[%s274 + $0xb8] sm:$0xff] %v9160
        %9193 = vst [vmem:[%s274 + $0xc0] sm:$0xff] %v9161
        %9194 = vst [vmem:[%s274 + $0xc8] sm:$0xff] %v9162
        %9195 = vst [vmem:[%s274 + $0xd0] sm:$0xff] %v9163
        %9196 = vst [vmem:[%s274 + $0xd8] sm:$0xff] %v9164
        %9197 = vst [vmem:[%s274 + $0xe0] sm:$0xff] %v9165
        %9198 = vst [vmem:[%s274 + $0xe8] sm:$0xff] %v9166
        %9199 = vst [vmem:[%s274 + $0xf0] sm:$0xff] %v9167
        %9200 = vst [vmem:[%s274 + $0xf8] sm:$0xff] %v9168
        %s9201 = sand.u32 %s181, 1
        %s9202 = scalar_lea.sflag [#allocation3], %s9201
        %s9203 = sand.u32 %s181, 1
        %s9204 = smul.addr %s9203, 256
        %s9205 = scalar_lea.vmem [#allocation2], %s9204
        // Predicated region
        $region49: #{tpu_custom_call.1} parent=47 // pred_check
          %p9206 = pneg %p191
        $region50: #{tpu_custom_call.1} parent=47 // pred_check_branch
          %9208 = sbr.rel (%p9206) target = $region52
        $region51: #{tpu_custom_call.1} parent=47 // pred_region
          %s9209 = smul.u32 32, %s21
          %s9211 = ssub.s32 4096, 4096
          %9212 = vsyncadd %s9202, %s9211
          %s9213 = smul.addr %s9209, 128
          %s9214 = scalar_lea.hbm %s7, %s9213
          %s9215 = sshll.u32 %s9205, 4
          %s9216 = int_to_ptr.vmem [resolvable:$true] %s9215
          %9221 = dma.vmem_to_hbm [thread:$0]  %s9216, 4096, %s9214, %s9202, 128, 128, 8
        $region52: #{tpu_custom_call.1} parent=47 // pred_fallthru
          _
      $region48: #{tpu_custom_call.1} parent=5 // pred_fallthru
        _
      %p9222 = scmp.le.s32.totalorder 2, %s16
      // Predicated region
      $region53: #{tpu_custom_call.1} parent=5 // pred_check
        %p9223 = pneg %p9222
      $region54: #{tpu_custom_call.1} parent=5 // pred_check_branch
        %9225 = sbr.rel (%p9223) target = $region56
      $region55: #{tpu_custom_call.1} parent=5 // pred_region
        %s9226 = ssub.s32 %s16, 2
        // Predicated region
        $region57: #{tpu_custom_call.1} parent=55 // pred_check
          %p9227 = pneg %p197
        $region58: #{tpu_custom_call.1} parent=55 // pred_check_branch
          %9229 = sbr.rel (%p9227) target = $region60
        $region59: #{tpu_custom_call.1} parent=55 // pred_region
          %s9230 = sand.u32 %s182, 1
          %s9231 = scalar_lea.sflag [#allocation3], %s9230
          %s9232 = sand.u32 %s182, 1
          %s9233 = smul.addr %s9232, 256
          %s9234 = scalar_lea.vmem [#allocation2], %s9233
          %9235 = dma.done %s9231, 4096
        $region60: #{tpu_custom_call.1} parent=55 // pred_fallthru
          _
      $region56: #{tpu_custom_call.1} parent=5 // pred_fallthru
        _
    $region6: #{tpu_custom_call.1} parent=1 // loop_footer
      %s20 = sadd.s32 1, %s16
    $region7: #{tpu_custom_call.1} parent=1 // loop_footer_branch
      %15 = sbr.rel target = $region3
    $region8: #{tpu_custom_call.1} parent=1 // loop_exit
      _
    %9236 = vsyncpa [#allocation3], 1
    %s9237 = scalar_lea.sflag [#allocation3], 1
    %9238 = vsyncpa %s9237, 1

</llo_original>
